<compile_context>
chip_gen: v7x
topology: tpu7x:2x2x1
jax: 0.10.0
libtpu: 0.0.40
codegen_flags: <defaults>
</compile_context>

<pallas_src>
import functools

import jax
import jax.numpy as jnp
from jax.experimental import pallas as pl
from jax.experimental.pallas import tpu as pltpu


# ----------------------------------------------------------------------------
# Fused Conv2d + bias + ReLU + MaxPool(2,2) kernel (one image per grid step)
# ----------------------------------------------------------------------------
def _conv_relu_pool_kernel(x_ref, w_ref, b_ref, s_ref, o_ref, *, K, W, L):
    """x_ref: (1, Cin, H*W)    bf16  flattened input image
       w_ref: (K*K, Cout, Cin) bf16  one (Cout, Cin) weight slab per conv tap
       b_ref: (Cout, 1)        f32   bias
       s_ref: (4, L, Hp*Wp)    bf16  0/1 pooling selection matrices
       o_ref: (1, Cout, Hp*Wp) bf16  pooled output feature map
    """
    x = x_ref[0]                                           # (Cin, H*W)

    # Shift-and-accumulate conv: for tap (kh, kw) the contribution to output
    # position (h, w) lives at flat input index kh*W+kw + h*W + w, so a single
    # contiguous lane slice of length L covers all output positions at once
    # (columns with w >= Wo wrap to the next row and are discarded later).
    acc = None
    for kh in range(K):
        for kw in range(K):
            start = kh * W + kw
            xs = x[:, start:start + L]                     # (Cin, L)
            part = jnp.dot(w_ref[kh * K + kw], xs,
                           preferred_element_type=jnp.float32)  # (Cout, L) f32
            acc = part if acc is None else acc + part

    # bias + ReLU epilogue in f32, then narrow for the pooling matmuls.
    acc = jnp.maximum(acc + b_ref[...], 0.0).astype(jnp.bfloat16)

    # 2x2/2 max-pool as four 0/1 selection matmuls (exact: one nonzero per
    # column).  This also drops the invalid wrap-around columns of the flat
    # window trick and keeps all pooling work on the MXU.
    pooled = None
    for q in range(4):
        sel = jnp.dot(acc, s_ref[q], preferred_element_type=jnp.float32)
        pooled = sel if pooled is None else jnp.maximum(pooled, sel)

    o_ref[0] = pooled.astype(o_ref.dtype)                  # (Cout, Hp*Wp)


def conv_relu_pool_pallas(x_flat, w_kk, b_col, s_sel, *, H, W, K):
    """x_flat: (N, Cin, H*W) bf16 -> (N, Cout, (H-K+1)//2 * (W-K+1)//2) bf16."""
    N, Cin, HW = x_flat.shape
    assert HW == H * W
    Cout = w_kk.shape[1]
    Ho, Wo = H - K + 1, W - K + 1
    Hp, Wp = Ho // 2, Wo // 2
    HpWp = Hp * Wp
    L = (Ho - 1) * W + Wo                 # flat-window length; max start + L == H*W

    kernel = functools.partial(_conv_relu_pool_kernel, K=K, W=W, L=L)
    flops = N * (2 * Cout * Cin * K * K * L + 2 * 4 * Cout * L * HpWp)
    bytes_accessed = ((x_flat.size + w_kk.size + s_sel.size) * 2
                      + b_col.size * 4 + N * Cout * HpWp * 2)

    return pl.pallas_call(
        kernel,
        out_shape=jax.ShapeDtypeStruct((N, Cout, HpWp), jnp.bfloat16),
        grid=(N,),
        in_specs=[
            pl.BlockSpec((1, Cin, HW), lambda n: (n, 0, 0)),
            pl.BlockSpec((K * K, Cout, Cin), lambda n: (0, 0, 0)),
            pl.BlockSpec((Cout, 1), lambda n: (0, 0)),
            pl.BlockSpec((4, L, HpWp), lambda n: (0, 0, 0)),
        ],
        out_specs=pl.BlockSpec((1, Cout, HpWp), lambda n: (n, 0, 0)),
        compiler_params=pltpu.CompilerParams(
            dimension_semantics=("parallel",)),
        cost_estimate=pl.CostEstimate(flops=int(flops), transcendentals=0,
                                      bytes_accessed=int(bytes_accessed)),
    )(x_flat, w_kk, b_col, s_sel)


# ----------------------------------------------------------------------------
# Fused fc1 -> ReLU -> fc2 -> ReLU -> fc3 kernel
# ----------------------------------------------------------------------------
def _mlp_kernel(x_ref, w1_ref, b1_ref, w2_ref, b2_ref, w3_ref, b3_ref, o_ref):
    h = jnp.dot(x_ref[...], w1_ref[...], preferred_element_type=jnp.float32)
    h = jnp.maximum(h + b1_ref[...], 0.0).astype(jnp.bfloat16)
    h = jnp.dot(h, w2_ref[...], preferred_element_type=jnp.float32)
    h = jnp.maximum(h + b2_ref[...], 0.0).astype(jnp.bfloat16)
    h = jnp.dot(h, w3_ref[...], preferred_element_type=jnp.float32)
    o_ref[...] = (h + b3_ref[...]).astype(o_ref.dtype)


def mlp_pallas(x, w1, b1, w2, b2, w3, b3):
    """x: (N, 400) bf16; weights (in, out) bf16; biases (1, out) f32 -> (N, 10) f32."""
    N, Kin = x.shape
    H1, H2, H3 = w1.shape[1], w2.shape[1], w3.shape[1]
    TM = N if N <= 256 else 256
    grid = (pl.cdiv(N, TM),)
    flops = 2 * N * (Kin * H1 + H1 * H2 + H2 * H3)
    bytes_accessed = (x.size * 2 + (w1.size + w2.size + w3.size) * 2
                      + (b1.size + b2.size + b3.size) * 4 + N * H3 * 4)
    return pl.pallas_call(
        _mlp_kernel,
        out_shape=jax.ShapeDtypeStruct((N, H3), jnp.float32),
        grid=grid,
        in_specs=[
            pl.BlockSpec((TM, Kin), lambda i: (i, 0)),
            pl.BlockSpec(w1.shape, lambda i: (0, 0)),
            pl.BlockSpec(b1.shape, lambda i: (0, 0)),
            pl.BlockSpec(w2.shape, lambda i: (0, 0)),
            pl.BlockSpec(b2.shape, lambda i: (0, 0)),
            pl.BlockSpec(w3.shape, lambda i: (0, 0)),
            pl.BlockSpec(b3.shape, lambda i: (0, 0)),
        ],
        out_specs=pl.BlockSpec((TM, H3), lambda i: (i, 0)),
        compiler_params=pltpu.CompilerParams(
            dimension_semantics=("parallel",)),
        cost_estimate=pl.CostEstimate(flops=int(flops), transcendentals=0,
                                      bytes_accessed=int(bytes_accessed)),
    )(x, w1, b1, w2, b2, w3, b3)


# ----------------------------------------------------------------------------
# Parameter init (deterministic, mimics PyTorch default uniform fan-in init)
# ----------------------------------------------------------------------------
def init_params(key):
    def uniform(k, shape, fan_in):
        bound = 1.0 / jnp.sqrt(fan_in)
        return jax.random.uniform(k, shape, jnp.float32, -bound, bound)

    ks = jax.random.split(key, 10)
    return {
        "conv1_w": uniform(ks[0], (6, 3, 5, 5), 3 * 5 * 5),
        "conv1_b": uniform(ks[1], (6,), 3 * 5 * 5),
        "conv2_w": uniform(ks[2], (16, 6, 5, 5), 6 * 5 * 5),
        "conv2_b": uniform(ks[3], (16,), 6 * 5 * 5),
        "fc1_w": uniform(ks[4], (120, 16 * 5 * 5), 16 * 5 * 5),
        "fc1_b": uniform(ks[5], (120,), 16 * 5 * 5),
        "fc2_w": uniform(ks[6], (84, 120), 120),
        "fc2_b": uniform(ks[7], (84,), 120),
        "fc3_w": uniform(ks[8], (10, 84), 84),
        "fc3_b": uniform(ks[9], (10,), 84),
    }


def _pool_selection(H, W, K):
    """(4, L, Hp*Wp) bf16 0/1 matrices: column (hp,wp) of quadrant (dh,dw)
    selects the conv-accumulator column (2*hp+dh)*W + (2*wp+dw)."""
    Ho, Wo = H - K + 1, W - K + 1
    Hp, Wp = Ho // 2, Wo // 2
    L = (Ho - 1) * W + Wo
    cols = jnp.arange(Hp * Wp)
    hp, wp = cols // Wp, cols % Wp
    mats = []
    for dh in range(2):
        for dw in range(2):
            rows = (2 * hp + dh) * W + (2 * wp + dw)               # (Hp*Wp,)
            mats.append((jnp.arange(L)[:, None] == rows[None, :]
                         ).astype(jnp.bfloat16))
    return jnp.stack(mats, axis=0)


def prepare_params(raw):
    """Hoisted, one-time layout transforms into kernel-ready form."""
    def conv_prep(w, b):
        Cout, Cin, K, _ = w.shape
        # (Cout, Cin, K, K) -> (K*K, Cout, Cin): one weight slab per conv tap.
        wkk = jnp.transpose(w, (2, 3, 0, 1)).reshape(K * K, Cout, Cin)
        return wkk.astype(jnp.bfloat16), b.reshape(Cout, 1).astype(jnp.float32)

    p = {}
    p["conv1_wkk"], p["conv1_b"] = conv_prep(raw["conv1_w"], raw["conv1_b"])
    p["conv2_wkk"], p["conv2_b"] = conv_prep(raw["conv2_w"], raw["conv2_b"])
    p["pool1_sel"] = _pool_selection(32, 32, 5)
    p["pool2_sel"] = _pool_selection(14, 14, 5)
    # fc weights pre-transposed to (in, out); biases as (1, out) f32.
    for name in ("fc1", "fc2", "fc3"):
        p[name + "_w"] = raw[name + "_w"].T.astype(jnp.bfloat16)
        p[name + "_b"] = raw[name + "_b"].reshape(1, -1).astype(jnp.float32)
    return p


# ----------------------------------------------------------------------------
# Forward pass (mirrors CNN.forward)
# ----------------------------------------------------------------------------
@jax.jit
def cnn_forward(x, params):
    # x: (N, 3, 32, 32) float32 NCHW, like the PyTorch module.
    N = x.shape[0]
    xf = x.reshape(N, 3, 32 * 32).astype(jnp.bfloat16)
    h = conv_relu_pool_pallas(xf, params["conv1_wkk"], params["conv1_b"],
                              params["pool1_sel"], H=32, W=32, K=5)   # (N, 6, 196)
    h = conv_relu_pool_pallas(h, params["conv2_wkk"], params["conv2_b"],
                              params["pool2_sel"], H=14, W=14, K=5)   # (N, 16, 25)
    h = h.reshape(N, 16 * 25)                                         # (N, 400)
    return mlp_pallas(h, params["fc1_w"], params["fc1_b"],
                      params["fc2_w"], params["fc2_b"],
                      params["fc3_w"], params["fc3_b"])               # (N, 10)


# ----------------------------------------------------------------------------
# Pure-JAX f32 reference (for correctness check)
# ----------------------------------------------------------------------------
@jax.jit
def reference_forward(x, raw):
    def conv_relu_pool(y, w, b):
        y = jax.lax.conv_general_dilated(
            y, w, window_strides=(1, 1), padding="VALID",
            dimension_numbers=("NCHW", "OIHW", "NCHW"))
        y = jnp.maximum(y + b[None, :, None, None], 0.0)
        return jax.lax.reduce_window(y, -jnp.inf, jax.lax.max,
                                     (1, 1, 2, 2), (1, 1, 2, 2), "VALID")

    y = conv_relu_pool(x, raw["conv1_w"], raw["conv1_b"])
    y = conv_relu_pool(y, raw["conv2_w"], raw["conv2_b"])
    y = y.reshape(y.shape[0], -1)
    y = jnp.maximum(y @ raw["fc1_w"].T + raw["fc1_b"], 0.0)
    y = jnp.maximum(y @ raw["fc2_w"].T + raw["fc2_b"], 0.0)
    return y @ raw["fc3_w"].T + raw["fc3_b"]


if __name__ == "__main__":
    key = jax.random.PRNGKey(0)
    k_param, k_input = jax.random.split(key)
    raw_params = init_params(k_param)
    params = prepare_params(raw_params)

    # Spatial size 32 is forced by the module's 16*5*5 flatten; batch kept small.
    x = jax.random.normal(k_input, (2, 3, 32, 32), dtype=jnp.float32)

    out = cnn_forward(x, params)
    jax.block_until_ready(out)

    assert out.shape == (2, 10) and out.dtype == jnp.float32
    ref = reference_forward(x, raw_params)
    # bf16 matmul operands (f32 accumulation) -> small deviation vs f32 ref.
    assert jnp.allclose(out, ref, atol=8e-2, rtol=8e-2)

    print("KERNEL_OK")
</pallas_src>

<mosaic_0001>
module attributes {stable_mosaic.version = 11 : i64} {
  func.func @_conv_relu_pool_kernel(%arg0: i32, %arg1: memref<1x3x1024xbf16, #tpu.memory_space<vmem>>, %arg2: memref<25x6x3xbf16, #tpu.memory_space<vmem>>, %arg3: memref<6x1xf32, #tpu.memory_space<vmem>>, %arg4: memref<4x892x196xbf16, #tpu.memory_space<vmem>>, %arg5: memref<1x6x196xbf16, #tpu.memory_space<vmem>>) attributes {dimension_semantics = [#tpu.dimension_semantics<parallel>], iteration_bounds = array<i64: 2>, scalar_prefetch = 0 : i64, scratch_operands = 0 : i64, tpu.core_type = #tpu.core_type<tc>, window_params = [{transform_indices = @transform_0, window_bounds = array<i64: 1, 3, 1024>}, {pipeline_mode = #tpu.pipeline_mode<synchronous>, transform_indices = @transform_1, window_bounds = array<i64: 25, 6, 3>}, {pipeline_mode = #tpu.pipeline_mode<synchronous>, transform_indices = @transform_2, window_bounds = array<i64: 6, 1>}, {pipeline_mode = #tpu.pipeline_mode<synchronous>, transform_indices = @transform_3, window_bounds = array<i64: 4, 892, 196>}, {transform_indices = @transform_4, window_bounds = array<i64: 1, 6, 196>}]} {
    %c0 = arith.constant 0 : index
    %c0_0 = arith.constant 0 : index
    %c0_1 = arith.constant 0 : index
    %0 = vector.load %arg1[%c0, %c0_0, %c0_1] : memref<1x3x1024xbf16, #tpu.memory_space<vmem>>, vector<1x3x1024xbf16>
    %1 = vector.shape_cast %0 : vector<1x3x1024xbf16> to vector<3x1024xbf16>
    %2 = vector.extract_strided_slice %1 {offsets = [0, 0], sizes = [3, 892], strides = [1, 1]} : vector<3x1024xbf16> to vector<3x892xbf16>
    %c0_2 = arith.constant 0 : index
    %c0_3 = arith.constant 0 : index
    %c0_4 = arith.constant 0 : index
    %3 = vector.load %arg2[%c0_2, %c0_3, %c0_4] : memref<25x6x3xbf16, #tpu.memory_space<vmem>>, vector<1x6x3xbf16>
    %4 = vector.shape_cast %3 : vector<1x6x3xbf16> to vector<6x3xbf16>
    %cst = arith.constant dense<0.000000e+00> : vector<6x892xf32>
    %5 = tpu.matmul %4, %2, %cst {dimension_numbers = #tpu.dot_dimension_numbers<[1], [0], [0], [1], [0, 0, 1, 1], [], []>} : vector<6x3xbf16>, vector<3x892xbf16>, vector<6x892xf32> -> vector<6x892xf32>
    %6 = vector.extract_strided_slice %1 {offsets = [0, 1], sizes = [3, 892], strides = [1, 1]} : vector<3x1024xbf16> to vector<3x892xbf16>
    %c1 = arith.constant 1 : index
    %c0_5 = arith.constant 0 : index
    %c0_6 = arith.constant 0 : index
    %7 = vector.load %arg2[%c1, %c0_5, %c0_6] : memref<25x6x3xbf16, #tpu.memory_space<vmem>>, vector<1x6x3xbf16>
    %8 = vector.shape_cast %7 : vector<1x6x3xbf16> to vector<6x3xbf16>
    %cst_7 = arith.constant dense<0.000000e+00> : vector<6x892xf32>
    %9 = tpu.matmul %8, %6, %cst_7 {dimension_numbers = #tpu.dot_dimension_numbers<[1], [0], [0], [1], [0, 0, 1, 1], [], []>} : vector<6x3xbf16>, vector<3x892xbf16>, vector<6x892xf32> -> vector<6x892xf32>
    %10 = arith.addf %5, %9 : vector<6x892xf32>
    %11 = vector.extract_strided_slice %1 {offsets = [0, 2], sizes = [3, 892], strides = [1, 1]} : vector<3x1024xbf16> to vector<3x892xbf16>
    %c2 = arith.constant 2 : index
    %c0_8 = arith.constant 0 : index
    %c0_9 = arith.constant 0 : index
    %12 = vector.load %arg2[%c2, %c0_8, %c0_9] : memref<25x6x3xbf16, #tpu.memory_space<vmem>>, vector<1x6x3xbf16>
    %13 = vector.shape_cast %12 : vector<1x6x3xbf16> to vector<6x3xbf16>
    %cst_10 = arith.constant dense<0.000000e+00> : vector<6x892xf32>
    %14 = tpu.matmul %13, %11, %cst_10 {dimension_numbers = #tpu.dot_dimension_numbers<[1], [0], [0], [1], [0, 0, 1, 1], [], []>} : vector<6x3xbf16>, vector<3x892xbf16>, vector<6x892xf32> -> vector<6x892xf32>
    %15 = arith.addf %10, %14 : vector<6x892xf32>
    %16 = vector.extract_strided_slice %1 {offsets = [0, 3], sizes = [3, 892], strides = [1, 1]} : vector<3x1024xbf16> to vector<3x892xbf16>
    %c3 = arith.constant 3 : index
    %c0_11 = arith.constant 0 : index
    %c0_12 = arith.constant 0 : index
    %17 = vector.load %arg2[%c3, %c0_11, %c0_12] : memref<25x6x3xbf16, #tpu.memory_space<vmem>>, vector<1x6x3xbf16>
    %18 = vector.shape_cast %17 : vector<1x6x3xbf16> to vector<6x3xbf16>
    %cst_13 = arith.constant dense<0.000000e+00> : vector<6x892xf32>
    %19 = tpu.matmul %18, %16, %cst_13 {dimension_numbers = #tpu.dot_dimension_numbers<[1], [0], [0], [1], [0, 0, 1, 1], [], []>} : vector<6x3xbf16>, vector<3x892xbf16>, vector<6x892xf32> -> vector<6x892xf32>
    %20 = arith.addf %15, %19 : vector<6x892xf32>
    %21 = vector.extract_strided_slice %1 {offsets = [0, 4], sizes = [3, 892], strides = [1, 1]} : vector<3x1024xbf16> to vector<3x892xbf16>
    %c4 = arith.constant 4 : index
    %c0_14 = arith.constant 0 : index
    %c0_15 = arith.constant 0 : index
    %22 = vector.load %arg2[%c4, %c0_14, %c0_15] : memref<25x6x3xbf16, #tpu.memory_space<vmem>>, vector<1x6x3xbf16>
    %23 = vector.shape_cast %22 : vector<1x6x3xbf16> to vector<6x3xbf16>
    %cst_16 = arith.constant dense<0.000000e+00> : vector<6x892xf32>
    %24 = tpu.matmul %23, %21, %cst_16 {dimension_numbers = #tpu.dot_dimension_numbers<[1], [0], [0], [1], [0, 0, 1, 1], [], []>} : vector<6x3xbf16>, vector<3x892xbf16>, vector<6x892xf32> -> vector<6x892xf32>
    %25 = arith.addf %20, %24 : vector<6x892xf32>
    %26 = vector.extract_strided_slice %1 {offsets = [0, 32], sizes = [3, 892], strides = [1, 1]} : vector<3x1024xbf16> to vector<3x892xbf16>
    %c5 = arith.constant 5 : index
    %c0_17 = arith.constant 0 : index
    %c0_18 = arith.constant 0 : index
    %27 = vector.load %arg2[%c5, %c0_17, %c0_18] : memref<25x6x3xbf16, #tpu.memory_space<vmem>>, vector<1x6x3xbf16>
    %28 = vector.shape_cast %27 : vector<1x6x3xbf16> to vector<6x3xbf16>
    %cst_19 = arith.constant dense<0.000000e+00> : vector<6x892xf32>
    %29 = tpu.matmul %28, %26, %cst_19 {dimension_numbers = #tpu.dot_dimension_numbers<[1], [0], [0], [1], [0, 0, 1, 1], [], []>} : vector<6x3xbf16>, vector<3x892xbf16>, vector<6x892xf32> -> vector<6x892xf32>
    %30 = arith.addf %25, %29 : vector<6x892xf32>
    %31 = vector.extract_strided_slice %1 {offsets = [0, 33], sizes = [3, 892], strides = [1, 1]} : vector<3x1024xbf16> to vector<3x892xbf16>
    %c6 = arith.constant 6 : index
    %c0_20 = arith.constant 0 : index
    %c0_21 = arith.constant 0 : index
    %32 = vector.load %arg2[%c6, %c0_20, %c0_21] : memref<25x6x3xbf16, #tpu.memory_space<vmem>>, vector<1x6x3xbf16>
    %33 = vector.shape_cast %32 : vector<1x6x3xbf16> to vector<6x3xbf16>
    %cst_22 = arith.constant dense<0.000000e+00> : vector<6x892xf32>
    %34 = tpu.matmul %33, %31, %cst_22 {dimension_numbers = #tpu.dot_dimension_numbers<[1], [0], [0], [1], [0, 0, 1, 1], [], []>} : vector<6x3xbf16>, vector<3x892xbf16>, vector<6x892xf32> -> vector<6x892xf32>
    %35 = arith.addf %30, %34 : vector<6x892xf32>
    %36 = vector.extract_strided_slice %1 {offsets = [0, 34], sizes = [3, 892], strides = [1, 1]} : vector<3x1024xbf16> to vector<3x892xbf16>
    %c7 = arith.constant 7 : index
    %c0_23 = arith.constant 0 : index
    %c0_24 = arith.constant 0 : index
    %37 = vector.load %arg2[%c7, %c0_23, %c0_24] : memref<25x6x3xbf16, #tpu.memory_space<vmem>>, vector<1x6x3xbf16>
    %38 = vector.shape_cast %37 : vector<1x6x3xbf16> to vector<6x3xbf16>
    %cst_25 = arith.constant dense<0.000000e+00> : vector<6x892xf32>
    %39 = tpu.matmul %38, %36, %cst_25 {dimension_numbers = #tpu.dot_dimension_numbers<[1], [0], [0], [1], [0, 0, 1, 1], [], []>} : vector<6x3xbf16>, vector<3x892xbf16>, vector<6x892xf32> -> vector<6x892xf32>
    %40 = arith.addf %35, %39 : vector<6x892xf32>
    %41 = vector.extract_strided_slice %1 {offsets = [0, 35], sizes = [3, 892], strides = [1, 1]} : vector<3x1024xbf16> to vector<3x892xbf16>
    %c8 = arith.constant 8 : index
    %c0_26 = arith.constant 0 : index
    %c0_27 = arith.constant 0 : index
    %42 = vector.load %arg2[%c8, %c0_26, %c0_27] : memref<25x6x3xbf16, #tpu.memory_space<vmem>>, vector<1x6x3xbf16>
    %43 = vector.shape_cast %42 : vector<1x6x3xbf16> to vector<6x3xbf16>
    %cst_28 = arith.constant dense<0.000000e+00> : vector<6x892xf32>
    %44 = tpu.matmul %43, %41, %cst_28 {dimension_numbers = #tpu.dot_dimension_numbers<[1], [0], [0], [1], [0, 0, 1, 1], [], []>} : vector<6x3xbf16>, vector<3x892xbf16>, vector<6x892xf32> -> vector<6x892xf32>
    %45 = arith.addf %40, %44 : vector<6x892xf32>
    %46 = vector.extract_strided_slice %1 {offsets = [0, 36], sizes = [3, 892], strides = [1, 1]} : vector<3x1024xbf16> to vector<3x892xbf16>
    %c9 = arith.constant 9 : index
    %c0_29 = arith.constant 0 : index
    %c0_30 = arith.constant 0 : index
    %47 = vector.load %arg2[%c9, %c0_29, %c0_30] : memref<25x6x3xbf16, #tpu.memory_space<vmem>>, vector<1x6x3xbf16>
    %48 = vector.shape_cast %47 : vector<1x6x3xbf16> to vector<6x3xbf16>
    %cst_31 = arith.constant dense<0.000000e+00> : vector<6x892xf32>
    %49 = tpu.matmul %48, %46, %cst_31 {dimension_numbers = #tpu.dot_dimension_numbers<[1], [0], [0], [1], [0, 0, 1, 1], [], []>} : vector<6x3xbf16>, vector<3x892xbf16>, vector<6x892xf32> -> vector<6x892xf32>
    %50 = arith.addf %45, %49 : vector<6x892xf32>
    %51 = vector.extract_strided_slice %1 {offsets = [0, 64], sizes = [3, 892], strides = [1, 1]} : vector<3x1024xbf16> to vector<3x892xbf16>
    %c10 = arith.constant 10 : index
    %c0_32 = arith.constant 0 : index
    %c0_33 = arith.constant 0 : index
    %52 = vector.load %arg2[%c10, %c0_32, %c0_33] : memref<25x6x3xbf16, #tpu.memory_space<vmem>>, vector<1x6x3xbf16>
    %53 = vector.shape_cast %52 : vector<1x6x3xbf16> to vector<6x3xbf16>
    %cst_34 = arith.constant dense<0.000000e+00> : vector<6x892xf32>
    %54 = tpu.matmul %53, %51, %cst_34 {dimension_numbers = #tpu.dot_dimension_numbers<[1], [0], [0], [1], [0, 0, 1, 1], [], []>} : vector<6x3xbf16>, vector<3x892xbf16>, vector<6x892xf32> -> vector<6x892xf32>
    %55 = arith.addf %50, %54 : vector<6x892xf32>
    %56 = vector.extract_strided_slice %1 {offsets = [0, 65], sizes = [3, 892], strides = [1, 1]} : vector<3x1024xbf16> to vector<3x892xbf16>
    %c11 = arith.constant 11 : index
    %c0_35 = arith.constant 0 : index
    %c0_36 = arith.constant 0 : index
    %57 = vector.load %arg2[%c11, %c0_35, %c0_36] : memref<25x6x3xbf16, #tpu.memory_space<vmem>>, vector<1x6x3xbf16>
    %58 = vector.shape_cast %57 : vector<1x6x3xbf16> to vector<6x3xbf16>
    %cst_37 = arith.constant dense<0.000000e+00> : vector<6x892xf32>
    %59 = tpu.matmul %58, %56, %cst_37 {dimension_numbers = #tpu.dot_dimension_numbers<[1], [0], [0], [1], [0, 0, 1, 1], [], []>} : vector<6x3xbf16>, vector<3x892xbf16>, vector<6x892xf32> -> vector<6x892xf32>
    %60 = arith.addf %55, %59 : vector<6x892xf32>
    %61 = vector.extract_strided_slice %1 {offsets = [0, 66], sizes = [3, 892], strides = [1, 1]} : vector<3x1024xbf16> to vector<3x892xbf16>
    %c12 = arith.constant 12 : index
    %c0_38 = arith.constant 0 : index
    %c0_39 = arith.constant 0 : index
    %62 = vector.load %arg2[%c12, %c0_38, %c0_39] : memref<25x6x3xbf16, #tpu.memory_space<vmem>>, vector<1x6x3xbf16>
    %63 = vector.shape_cast %62 : vector<1x6x3xbf16> to vector<6x3xbf16>
    %cst_40 = arith.constant dense<0.000000e+00> : vector<6x892xf32>
    %64 = tpu.matmul %63, %61, %cst_40 {dimension_numbers = #tpu.dot_dimension_numbers<[1], [0], [0], [1], [0, 0, 1, 1], [], []>} : vector<6x3xbf16>, vector<3x892xbf16>, vector<6x892xf32> -> vector<6x892xf32>
    %65 = arith.addf %60, %64 : vector<6x892xf32>
    %66 = vector.extract_strided_slice %1 {offsets = [0, 67], sizes = [3, 892], strides = [1, 1]} : vector<3x1024xbf16> to vector<3x892xbf16>
    %c13 = arith.constant 13 : index
    %c0_41 = arith.constant 0 : index
    %c0_42 = arith.constant 0 : index
    %67 = vector.load %arg2[%c13, %c0_41, %c0_42] : memref<25x6x3xbf16, #tpu.memory_space<vmem>>, vector<1x6x3xbf16>
    %68 = vector.shape_cast %67 : vector<1x6x3xbf16> to vector<6x3xbf16>
    %cst_43 = arith.constant dense<0.000000e+00> : vector<6x892xf32>
    %69 = tpu.matmul %68, %66, %cst_43 {dimension_numbers = #tpu.dot_dimension_numbers<[1], [0], [0], [1], [0, 0, 1, 1], [], []>} : vector<6x3xbf16>, vector<3x892xbf16>, vector<6x892xf32> -> vector<6x892xf32>
    %70 = arith.addf %65, %69 : vector<6x892xf32>
    %71 = vector.extract_strided_slice %1 {offsets = [0, 68], sizes = [3, 892], strides = [1, 1]} : vector<3x1024xbf16> to vector<3x892xbf16>
    %c14 = arith.constant 14 : index
    %c0_44 = arith.constant 0 : index
    %c0_45 = arith.constant 0 : index
    %72 = vector.load %arg2[%c14, %c0_44, %c0_45] : memref<25x6x3xbf16, #tpu.memory_space<vmem>>, vector<1x6x3xbf16>
    %73 = vector.shape_cast %72 : vector<1x6x3xbf16> to vector<6x3xbf16>
    %cst_46 = arith.constant dense<0.000000e+00> : vector<6x892xf32>
    %74 = tpu.matmul %73, %71, %cst_46 {dimension_numbers = #tpu.dot_dimension_numbers<[1], [0], [0], [1], [0, 0, 1, 1], [], []>} : vector<6x3xbf16>, vector<3x892xbf16>, vector<6x892xf32> -> vector<6x892xf32>
    %75 = arith.addf %70, %74 : vector<6x892xf32>
    %76 = vector.extract_strided_slice %1 {offsets = [0, 96], sizes = [3, 892], strides = [1, 1]} : vector<3x1024xbf16> to vector<3x892xbf16>
    %c15 = arith.constant 15 : index
    %c0_47 = arith.constant 0 : index
    %c0_48 = arith.constant 0 : index
    %77 = vector.load %arg2[%c15, %c0_47, %c0_48] : memref<25x6x3xbf16, #tpu.memory_space<vmem>>, vector<1x6x3xbf16>
    %78 = vector.shape_cast %77 : vector<1x6x3xbf16> to vector<6x3xbf16>
    %cst_49 = arith.constant dense<0.000000e+00> : vector<6x892xf32>
    %79 = tpu.matmul %78, %76, %cst_49 {dimension_numbers = #tpu.dot_dimension_numbers<[1], [0], [0], [1], [0, 0, 1, 1], [], []>} : vector<6x3xbf16>, vector<3x892xbf16>, vector<6x892xf32> -> vector<6x892xf32>
    %80 = arith.addf %75, %79 : vector<6x892xf32>
    %81 = vector.extract_strided_slice %1 {offsets = [0, 97], sizes = [3, 892], strides = [1, 1]} : vector<3x1024xbf16> to vector<3x892xbf16>
    %c16 = arith.constant 16 : index
    %c0_50 = arith.constant 0 : index
    %c0_51 = arith.constant 0 : index
    %82 = vector.load %arg2[%c16, %c0_50, %c0_51] : memref<25x6x3xbf16, #tpu.memory_space<vmem>>, vector<1x6x3xbf16>
    %83 = vector.shape_cast %82 : vector<1x6x3xbf16> to vector<6x3xbf16>
    %cst_52 = arith.constant dense<0.000000e+00> : vector<6x892xf32>
    %84 = tpu.matmul %83, %81, %cst_52 {dimension_numbers = #tpu.dot_dimension_numbers<[1], [0], [0], [1], [0, 0, 1, 1], [], []>} : vector<6x3xbf16>, vector<3x892xbf16>, vector<6x892xf32> -> vector<6x892xf32>
    %85 = arith.addf %80, %84 : vector<6x892xf32>
    %86 = vector.extract_strided_slice %1 {offsets = [0, 98], sizes = [3, 892], strides = [1, 1]} : vector<3x1024xbf16> to vector<3x892xbf16>
    %c17 = arith.constant 17 : index
    %c0_53 = arith.constant 0 : index
    %c0_54 = arith.constant 0 : index
    %87 = vector.load %arg2[%c17, %c0_53, %c0_54] : memref<25x6x3xbf16, #tpu.memory_space<vmem>>, vector<1x6x3xbf16>
    %88 = vector.shape_cast %87 : vector<1x6x3xbf16> to vector<6x3xbf16>
    %cst_55 = arith.constant dense<0.000000e+00> : vector<6x892xf32>
    %89 = tpu.matmul %88, %86, %cst_55 {dimension_numbers = #tpu.dot_dimension_numbers<[1], [0], [0], [1], [0, 0, 1, 1], [], []>} : vector<6x3xbf16>, vector<3x892xbf16>, vector<6x892xf32> -> vector<6x892xf32>
    %90 = arith.addf %85, %89 : vector<6x892xf32>
    %91 = vector.extract_strided_slice %1 {offsets = [0, 99], sizes = [3, 892], strides = [1, 1]} : vector<3x1024xbf16> to vector<3x892xbf16>
    %c18 = arith.constant 18 : index
    %c0_56 = arith.constant 0 : index
    %c0_57 = arith.constant 0 : index
    %92 = vector.load %arg2[%c18, %c0_56, %c0_57] : memref<25x6x3xbf16, #tpu.memory_space<vmem>>, vector<1x6x3xbf16>
    %93 = vector.shape_cast %92 : vector<1x6x3xbf16> to vector<6x3xbf16>
    %cst_58 = arith.constant dense<0.000000e+00> : vector<6x892xf32>
    %94 = tpu.matmul %93, %91, %cst_58 {dimension_numbers = #tpu.dot_dimension_numbers<[1], [0], [0], [1], [0, 0, 1, 1], [], []>} : vector<6x3xbf16>, vector<3x892xbf16>, vector<6x892xf32> -> vector<6x892xf32>
    %95 = arith.addf %90, %94 : vector<6x892xf32>
    %96 = vector.extract_strided_slice %1 {offsets = [0, 100], sizes = [3, 892], strides = [1, 1]} : vector<3x1024xbf16> to vector<3x892xbf16>
    %c19 = arith.constant 19 : index
    %c0_59 = arith.constant 0 : index
    %c0_60 = arith.constant 0 : index
    %97 = vector.load %arg2[%c19, %c0_59, %c0_60] : memref<25x6x3xbf16, #tpu.memory_space<vmem>>, vector<1x6x3xbf16>
    %98 = vector.shape_cast %97 : vector<1x6x3xbf16> to vector<6x3xbf16>
    %cst_61 = arith.constant dense<0.000000e+00> : vector<6x892xf32>
    %99 = tpu.matmul %98, %96, %cst_61 {dimension_numbers = #tpu.dot_dimension_numbers<[1], [0], [0], [1], [0, 0, 1, 1], [], []>} : vector<6x3xbf16>, vector<3x892xbf16>, vector<6x892xf32> -> vector<6x892xf32>
    %100 = arith.addf %95, %99 : vector<6x892xf32>
    %101 = vector.extract_strided_slice %1 {offsets = [0, 128], sizes = [3, 892], strides = [1, 1]} : vector<3x1024xbf16> to vector<3x892xbf16>
    %c20 = arith.constant 20 : index
    %c0_62 = arith.constant 0 : index
    %c0_63 = arith.constant 0 : index
    %102 = vector.load %arg2[%c20, %c0_62, %c0_63] : memref<25x6x3xbf16, #tpu.memory_space<vmem>>, vector<1x6x3xbf16>
    %103 = vector.shape_cast %102 : vector<1x6x3xbf16> to vector<6x3xbf16>
    %cst_64 = arith.constant dense<0.000000e+00> : vector<6x892xf32>
    %104 = tpu.matmul %103, %101, %cst_64 {dimension_numbers = #tpu.dot_dimension_numbers<[1], [0], [0], [1], [0, 0, 1, 1], [], []>} : vector<6x3xbf16>, vector<3x892xbf16>, vector<6x892xf32> -> vector<6x892xf32>
    %105 = arith.addf %100, %104 : vector<6x892xf32>
    %106 = vector.extract_strided_slice %1 {offsets = [0, 129], sizes = [3, 892], strides = [1, 1]} : vector<3x1024xbf16> to vector<3x892xbf16>
    %c21 = arith.constant 21 : index
    %c0_65 = arith.constant 0 : index
    %c0_66 = arith.constant 0 : index
    %107 = vector.load %arg2[%c21, %c0_65, %c0_66] : memref<25x6x3xbf16, #tpu.memory_space<vmem>>, vector<1x6x3xbf16>
    %108 = vector.shape_cast %107 : vector<1x6x3xbf16> to vector<6x3xbf16>
    %cst_67 = arith.constant dense<0.000000e+00> : vector<6x892xf32>
    %109 = tpu.matmul %108, %106, %cst_67 {dimension_numbers = #tpu.dot_dimension_numbers<[1], [0], [0], [1], [0, 0, 1, 1], [], []>} : vector<6x3xbf16>, vector<3x892xbf16>, vector<6x892xf32> -> vector<6x892xf32>
    %110 = arith.addf %105, %109 : vector<6x892xf32>
    %111 = vector.extract_strided_slice %1 {offsets = [0, 130], sizes = [3, 892], strides = [1, 1]} : vector<3x1024xbf16> to vector<3x892xbf16>
    %c22 = arith.constant 22 : index
    %c0_68 = arith.constant 0 : index
    %c0_69 = arith.constant 0 : index
    %112 = vector.load %arg2[%c22, %c0_68, %c0_69] : memref<25x6x3xbf16, #tpu.memory_space<vmem>>, vector<1x6x3xbf16>
    %113 = vector.shape_cast %112 : vector<1x6x3xbf16> to vector<6x3xbf16>
    %cst_70 = arith.constant dense<0.000000e+00> : vector<6x892xf32>
    %114 = tpu.matmul %113, %111, %cst_70 {dimension_numbers = #tpu.dot_dimension_numbers<[1], [0], [0], [1], [0, 0, 1, 1], [], []>} : vector<6x3xbf16>, vector<3x892xbf16>, vector<6x892xf32> -> vector<6x892xf32>
    %115 = arith.addf %110, %114 : vector<6x892xf32>
    %116 = vector.extract_strided_slice %1 {offsets = [0, 131], sizes = [3, 892], strides = [1, 1]} : vector<3x1024xbf16> to vector<3x892xbf16>
    %c23 = arith.constant 23 : index
    %c0_71 = arith.constant 0 : index
    %c0_72 = arith.constant 0 : index
    %117 = vector.load %arg2[%c23, %c0_71, %c0_72] : memref<25x6x3xbf16, #tpu.memory_space<vmem>>, vector<1x6x3xbf16>
    %118 = vector.shape_cast %117 : vector<1x6x3xbf16> to vector<6x3xbf16>
    %cst_73 = arith.constant dense<0.000000e+00> : vector<6x892xf32>
    %119 = tpu.matmul %118, %116, %cst_73 {dimension_numbers = #tpu.dot_dimension_numbers<[1], [0], [0], [1], [0, 0, 1, 1], [], []>} : vector<6x3xbf16>, vector<3x892xbf16>, vector<6x892xf32> -> vector<6x892xf32>
    %120 = arith.addf %115, %119 : vector<6x892xf32>
    %121 = vector.extract_strided_slice %1 {offsets = [0, 132], sizes = [3, 892], strides = [1, 1]} : vector<3x1024xbf16> to vector<3x892xbf16>
    %c24 = arith.constant 24 : index
    %c0_74 = arith.constant 0 : index
    %c0_75 = arith.constant 0 : index
    %122 = vector.load %arg2[%c24, %c0_74, %c0_75] : memref<25x6x3xbf16, #tpu.memory_space<vmem>>, vector<1x6x3xbf16>
    %123 = vector.shape_cast %122 : vector<1x6x3xbf16> to vector<6x3xbf16>
    %cst_76 = arith.constant dense<0.000000e+00> : vector<6x892xf32>
    %124 = tpu.matmul %123, %121, %cst_76 {dimension_numbers = #tpu.dot_dimension_numbers<[1], [0], [0], [1], [0, 0, 1, 1], [], []>} : vector<6x3xbf16>, vector<3x892xbf16>, vector<6x892xf32> -> vector<6x892xf32>
    %125 = arith.addf %120, %124 : vector<6x892xf32>
    %c0_77 = arith.constant 0 : index
    %c0_78 = arith.constant 0 : index
    %126 = vector.load %arg3[%c0_77, %c0_78] : memref<6x1xf32, #tpu.memory_space<vmem>>, vector<6x1xf32>
    %127 = vector.broadcast %126 : vector<6x1xf32> to vector<6x892xf32>
    %128 = arith.addf %125, %127 : vector<6x892xf32>
    %cst_79 = arith.constant 0.000000e+00 : f32
    %129 = vector.broadcast %cst_79 : f32 to vector<6x892xf32>
    %130 = arith.maximumf %128, %129 : vector<6x892xf32>
    %131 = arith.truncf %130 : vector<6x892xf32> to vector<6x892xbf16>
    %c0_80 = arith.constant 0 : index
    %c0_81 = arith.constant 0 : index
    %c0_82 = arith.constant 0 : index
    %132 = vector.load %arg4[%c0_80, %c0_81, %c0_82] : memref<4x892x196xbf16, #tpu.memory_space<vmem>>, vector<1x892x196xbf16>
    %133 = vector.shape_cast %132 : vector<1x892x196xbf16> to vector<892x196xbf16>
    %cst_83 = arith.constant dense<0.000000e+00> : vector<6x196xf32>
    %134 = tpu.matmul %131, %133, %cst_83 {dimension_numbers = #tpu.dot_dimension_numbers<[1], [0], [0], [1], [0, 0, 1, 1], [], []>} : vector<6x892xbf16>, vector<892x196xbf16>, vector<6x196xf32> -> vector<6x196xf32>
    %c1_84 = arith.constant 1 : index
    %c0_85 = arith.constant 0 : index
    %c0_86 = arith.constant 0 : index
    %135 = vector.load %arg4[%c1_84, %c0_85, %c0_86] : memref<4x892x196xbf16, #tpu.memory_space<vmem>>, vector<1x892x196xbf16>
    %136 = vector.shape_cast %135 : vector<1x892x196xbf16> to vector<892x196xbf16>
    %cst_87 = arith.constant dense<0.000000e+00> : vector<6x196xf32>
    %137 = tpu.matmul %131, %136, %cst_87 {dimension_numbers = #tpu.dot_dimension_numbers<[1], [0], [0], [1], [0, 0, 1, 1], [], []>} : vector<6x892xbf16>, vector<892x196xbf16>, vector<6x196xf32> -> vector<6x196xf32>
    %138 = arith.maximumf %134, %137 : vector<6x196xf32>
    %c2_88 = arith.constant 2 : index
    %c0_89 = arith.constant 0 : index
    %c0_90 = arith.constant 0 : index
    %139 = vector.load %arg4[%c2_88, %c0_89, %c0_90] : memref<4x892x196xbf16, #tpu.memory_space<vmem>>, vector<1x892x196xbf16>
    %140 = vector.shape_cast %139 : vector<1x892x196xbf16> to vector<892x196xbf16>
    %cst_91 = arith.constant dense<0.000000e+00> : vector<6x196xf32>
    %141 = tpu.matmul %131, %140, %cst_91 {dimension_numbers = #tpu.dot_dimension_numbers<[1], [0], [0], [1], [0, 0, 1, 1], [], []>} : vector<6x892xbf16>, vector<892x196xbf16>, vector<6x196xf32> -> vector<6x196xf32>
    %142 = arith.maximumf %138, %141 : vector<6x196xf32>
    %c3_92 = arith.constant 3 : index
    %c0_93 = arith.constant 0 : index
    %c0_94 = arith.constant 0 : index
    %143 = vector.load %arg4[%c3_92, %c0_93, %c0_94] : memref<4x892x196xbf16, #tpu.memory_space<vmem>>, vector<1x892x196xbf16>
    %144 = vector.shape_cast %143 : vector<1x892x196xbf16> to vector<892x196xbf16>
    %cst_95 = arith.constant dense<0.000000e+00> : vector<6x196xf32>
    %145 = tpu.matmul %131, %144, %cst_95 {dimension_numbers = #tpu.dot_dimension_numbers<[1], [0], [0], [1], [0, 0, 1, 1], [], []>} : vector<6x892xbf16>, vector<892x196xbf16>, vector<6x196xf32> -> vector<6x196xf32>
    %146 = arith.maximumf %142, %145 : vector<6x196xf32>
    %147 = arith.truncf %146 : vector<6x196xf32> to vector<6x196xbf16>
    %c0_96 = arith.constant 0 : index
    %c0_97 = arith.constant 0 : index
    %c0_98 = arith.constant 0 : index
    %148 = vector.load %arg5[%c0_96, %c0_97, %c0_98] : memref<1x6x196xbf16, #tpu.memory_space<vmem>>, vector<1x6x196xbf16>
    %149 = vector.shape_cast %148 : vector<1x6x196xbf16> to vector<6x196xbf16>
    %150 = vector.shape_cast %147 : vector<6x196xbf16> to vector<1x6x196xbf16>
    tpu.vector_store %arg5[%c0_96, %c0_97, %c0_98], %150 {strides = array<i32>} : memref<1x6x196xbf16, #tpu.memory_space<vmem>>, vector<1x6x196xbf16>,
    return
  }
  func.func @transform_0(%arg0: i32) -> (i32, i32, i32) {
    %c0_i32 = arith.constant 0 : i32
    %c0_i32_0 = arith.constant 0 : i32
    %c0_i32_1 = arith.constant 0 : i32
    return %arg0, %c0_i32, %c0_i32_0 : i32, i32, i32
  }
  func.func @transform_1(%arg0: i32) -> (i32, i32, i32) {
    %c0_i32 = arith.constant 0 : i32
    %c0_i32_0 = arith.constant 0 : i32
    %c0_i32_1 = arith.constant 0 : i32
    %c0_i32_2 = arith.constant 0 : i32
    return %c0_i32, %c0_i32_0, %c0_i32_1 : i32, i32, i32
  }
  func.func @transform_2(%arg0: i32) -> (i32, i32) {
    %c0_i32 = arith.constant 0 : i32
    %c0_i32_0 = arith.constant 0 : i32
    %c0_i32_1 = arith.constant 0 : i32
    return %c0_i32, %c0_i32_0 : i32, i32
  }
  func.func @transform_3(%arg0: i32) -> (i32, i32, i32) {
    %c0_i32 = arith.constant 0 : i32
    %c0_i32_0 = arith.constant 0 : i32
    %c0_i32_1 = arith.constant 0 : i32
    %c0_i32_2 = arith.constant 0 : i32
    return %c0_i32, %c0_i32_0, %c0_i32_1 : i32, i32, i32
  }
  func.func @transform_4(%arg0: i32) -> (i32, i32, i32) {
    %c0_i32 = arith.constant 0 : i32
    %c0_i32_0 = arith.constant 0 : i32
    %c0_i32_1 = arith.constant 0 : i32
    return %arg0, %c0_i32, %c0_i32_0 : i32, i32, i32
  }
}

module attributes {stable_mosaic.version = 11 : i64} {
  func.func @_conv_relu_pool_kernel(%arg0: i32, %arg1: memref<1x6x196xbf16, #tpu.memory_space<vmem>>, %arg2: memref<25x16x6xbf16, #tpu.memory_space<vmem>>, %arg3: memref<16x1xf32, #tpu.memory_space<vmem>>, %arg4: memref<4x136x25xbf16, #tpu.memory_space<vmem>>, %arg5: memref<1x16x25xbf16, #tpu.memory_space<vmem>>) attributes {dimension_semantics = [#tpu.dimension_semantics<parallel>], iteration_bounds = array<i64: 2>, scalar_prefetch = 0 : i64, scratch_operands = 0 : i64, tpu.core_type = #tpu.core_type<tc>, window_params = [{transform_indices = @transform_0, window_bounds = array<i64: 1, 6, 196>}, {pipeline_mode = #tpu.pipeline_mode<synchronous>, transform_indices = @transform_1, window_bounds = array<i64: 25, 16, 6>}, {pipeline_mode = #tpu.pipeline_mode<synchronous>, transform_indices = @transform_2, window_bounds = array<i64: 16, 1>}, {pipeline_mode = #tpu.pipeline_mode<synchronous>, transform_indices = @transform_3, window_bounds = array<i64: 4, 136, 25>}, {transform_indices = @transform_4, window_bounds = array<i64: 1, 16, 25>}]} {
    %c0 = arith.constant 0 : index
    %c0_0 = arith.constant 0 : index
    %c0_1 = arith.constant 0 : index
    %0 = vector.load %arg1[%c0, %c0_0, %c0_1] : memref<1x6x196xbf16, #tpu.memory_space<vmem>>, vector<1x6x196xbf16>
    %1 = vector.shape_cast %0 : vector<1x6x196xbf16> to vector<6x196xbf16>
    %2 = vector.extract_strided_slice %1 {offsets = [0, 0], sizes = [6, 136], strides = [1, 1]} : vector<6x196xbf16> to vector<6x136xbf16>
    %c0_2 = arith.constant 0 : index
    %c0_3 = arith.constant 0 : index
    %c0_4 = arith.constant 0 : index
    %3 = vector.load %arg2[%c0_2, %c0_3, %c0_4] : memref<25x16x6xbf16, #tpu.memory_space<vmem>>, vector<1x16x6xbf16>
    %4 = vector.shape_cast %3 : vector<1x16x6xbf16> to vector<16x6xbf16>
    %cst = arith.constant dense<0.000000e+00> : vector<16x136xf32>
    %5 = tpu.matmul %4, %2, %cst {dimension_numbers = #tpu.dot_dimension_numbers<[1], [0], [0], [1], [0, 0, 1, 1], [], []>} : vector<16x6xbf16>, vector<6x136xbf16>, vector<16x136xf32> -> vector<16x136xf32>
    %6 = vector.extract_strided_slice %1 {offsets = [0, 1], sizes = [6, 136], strides = [1, 1]} : vector<6x196xbf16> to vector<6x136xbf16>
    %c1 = arith.constant 1 : index
    %c0_5 = arith.constant 0 : index
    %c0_6 = arith.constant 0 : index
    %7 = vector.load %arg2[%c1, %c0_5, %c0_6] : memref<25x16x6xbf16, #tpu.memory_space<vmem>>, vector<1x16x6xbf16>
    %8 = vector.shape_cast %7 : vector<1x16x6xbf16> to vector<16x6xbf16>
    %cst_7 = arith.constant dense<0.000000e+00> : vector<16x136xf32>
    %9 = tpu.matmul %8, %6, %cst_7 {dimension_numbers = #tpu.dot_dimension_numbers<[1], [0], [0], [1], [0, 0, 1, 1], [], []>} : vector<16x6xbf16>, vector<6x136xbf16>, vector<16x136xf32> -> vector<16x136xf32>
    %10 = arith.addf %5, %9 : vector<16x136xf32>
    %11 = vector.extract_strided_slice %1 {offsets = [0, 2], sizes = [6, 136], strides = [1, 1]} : vector<6x196xbf16> to vector<6x136xbf16>
    %c2 = arith.constant 2 : index
    %c0_8 = arith.constant 0 : index
    %c0_9 = arith.constant 0 : index
    %12 = vector.load %arg2[%c2, %c0_8, %c0_9] : memref<25x16x6xbf16, #tpu.memory_space<vmem>>, vector<1x16x6xbf16>
    %13 = vector.shape_cast %12 : vector<1x16x6xbf16> to vector<16x6xbf16>
    %cst_10 = arith.constant dense<0.000000e+00> : vector<16x136xf32>
    %14 = tpu.matmul %13, %11, %cst_10 {dimension_numbers = #tpu.dot_dimension_numbers<[1], [0], [0], [1], [0, 0, 1, 1], [], []>} : vector<16x6xbf16>, vector<6x136xbf16>, vector<16x136xf32> -> vector<16x136xf32>
    %15 = arith.addf %10, %14 : vector<16x136xf32>
    %16 = vector.extract_strided_slice %1 {offsets = [0, 3], sizes = [6, 136], strides = [1, 1]} : vector<6x196xbf16> to vector<6x136xbf16>
    %c3 = arith.constant 3 : index
    %c0_11 = arith.constant 0 : index
    %c0_12 = arith.constant 0 : index
    %17 = vector.load %arg2[%c3, %c0_11, %c0_12] : memref<25x16x6xbf16, #tpu.memory_space<vmem>>, vector<1x16x6xbf16>
    %18 = vector.shape_cast %17 : vector<1x16x6xbf16> to vector<16x6xbf16>
    %cst_13 = arith.constant dense<0.000000e+00> : vector<16x136xf32>
    %19 = tpu.matmul %18, %16, %cst_13 {dimension_numbers = #tpu.dot_dimension_numbers<[1], [0], [0], [1], [0, 0, 1, 1], [], []>} : vector<16x6xbf16>, vector<6x136xbf16>, vector<16x136xf32> -> vector<16x136xf32>
    %20 = arith.addf %15, %19 : vector<16x136xf32>
    %21 = vector.extract_strided_slice %1 {offsets = [0, 4], sizes = [6, 136], strides = [1, 1]} : vector<6x196xbf16> to vector<6x136xbf16>
    %c4 = arith.constant 4 : index
    %c0_14 = arith.constant 0 : index
    %c0_15 = arith.constant 0 : index
    %22 = vector.load %arg2[%c4, %c0_14, %c0_15] : memref<25x16x6xbf16, #tpu.memory_space<vmem>>, vector<1x16x6xbf16>
    %23 = vector.shape_cast %22 : vector<1x16x6xbf16> to vector<16x6xbf16>
    %cst_16 = arith.constant dense<0.000000e+00> : vector<16x136xf32>
    %24 = tpu.matmul %23, %21, %cst_16 {dimension_numbers = #tpu.dot_dimension_numbers<[1], [0], [0], [1], [0, 0, 1, 1], [], []>} : vector<16x6xbf16>, vector<6x136xbf16>, vector<16x136xf32> -> vector<16x136xf32>
    %25 = arith.addf %20, %24 : vector<16x136xf32>
    %26 = vector.extract_strided_slice %1 {offsets = [0, 14], sizes = [6, 136], strides = [1, 1]} : vector<6x196xbf16> to vector<6x136xbf16>
    %c5 = arith.constant 5 : index
    %c0_17 = arith.constant 0 : index
    %c0_18 = arith.constant 0 : index
    %27 = vector.load %arg2[%c5, %c0_17, %c0_18] : memref<25x16x6xbf16, #tpu.memory_space<vmem>>, vector<1x16x6xbf16>
    %28 = vector.shape_cast %27 : vector<1x16x6xbf16> to vector<16x6xbf16>
    %cst_19 = arith.constant dense<0.000000e+00> : vector<16x136xf32>
    %29 = tpu.matmul %28, %26, %cst_19 {dimension_numbers = #tpu.dot_dimension_numbers<[1], [0], [0], [1], [0, 0, 1, 1], [], []>} : vector<16x6xbf16>, vector<6x136xbf16>, vector<16x136xf32> -> vector<16x136xf32>
    %30 = arith.addf %25, %29 : vector<16x136xf32>
    %31 = vector.extract_strided_slice %1 {offsets = [0, 15], sizes = [6, 136], strides = [1, 1]} : vector<6x196xbf16> to vector<6x136xbf16>
    %c6 = arith.constant 6 : index
    %c0_20 = arith.constant 0 : index
    %c0_21 = arith.constant 0 : index
    %32 = vector.load %arg2[%c6, %c0_20, %c0_21] : memref<25x16x6xbf16, #tpu.memory_space<vmem>>, vector<1x16x6xbf16>
    %33 = vector.shape_cast %32 : vector<1x16x6xbf16> to vector<16x6xbf16>
    %cst_22 = arith.constant dense<0.000000e+00> : vector<16x136xf32>
    %34 = tpu.matmul %33, %31, %cst_22 {dimension_numbers = #tpu.dot_dimension_numbers<[1], [0], [0], [1], [0, 0, 1, 1], [], []>} : vector<16x6xbf16>, vector<6x136xbf16>, vector<16x136xf32> -> vector<16x136xf32>
    %35 = arith.addf %30, %34 : vector<16x136xf32>
    %36 = vector.extract_strided_slice %1 {offsets = [0, 16], sizes = [6, 136], strides = [1, 1]} : vector<6x196xbf16> to vector<6x136xbf16>
    %c7 = arith.constant 7 : index
    %c0_23 = arith.constant 0 : index
    %c0_24 = arith.constant 0 : index
    %37 = vector.load %arg2[%c7, %c0_23, %c0_24] : memref<25x16x6xbf16, #tpu.memory_space<vmem>>, vector<1x16x6xbf16>
    %38 = vector.shape_cast %37 : vector<1x16x6xbf16> to vector<16x6xbf16>
    %cst_25 = arith.constant dense<0.000000e+00> : vector<16x136xf32>
    %39 = tpu.matmul %38, %36, %cst_25 {dimension_numbers = #tpu.dot_dimension_numbers<[1], [0], [0], [1], [0, 0, 1, 1], [], []>} : vector<16x6xbf16>, vector<6x136xbf16>, vector<16x136xf32> -> vector<16x136xf32>
    %40 = arith.addf %35, %39 : vector<16x136xf32>
    %41 = vector.extract_strided_slice %1 {offsets = [0, 17], sizes = [6, 136], strides = [1, 1]} : vector<6x196xbf16> to vector<6x136xbf16>
    %c8 = arith.constant 8 : index
    %c0_26 = arith.constant 0 : index
    %c0_27 = arith.constant 0 : index
    %42 = vector.load %arg2[%c8, %c0_26, %c0_27] : memref<25x16x6xbf16, #tpu.memory_space<vmem>>, vector<1x16x6xbf16>
    %43 = vector.shape_cast %42 : vector<1x16x6xbf16> to vector<16x6xbf16>
    %cst_28 = arith.constant dense<0.000000e+00> : vector<16x136xf32>
    %44 = tpu.matmul %43, %41, %cst_28 {dimension_numbers = #tpu.dot_dimension_numbers<[1], [0], [0], [1], [0, 0, 1, 1], [], []>} : vector<16x6xbf16>, vector<6x136xbf16>, vector<16x136xf32> -> vector<16x136xf32>
    %45 = arith.addf %40, %44 : vector<16x136xf32>
    %46 = vector.extract_strided_slice %1 {offsets = [0, 18], sizes = [6, 136], strides = [1, 1]} : vector<6x196xbf16> to vector<6x136xbf16>
    %c9 = arith.constant 9 : index
    %c0_29 = arith.constant 0 : index
    %c0_30 = arith.constant 0 : index
    %47 = vector.load %arg2[%c9, %c0_29, %c0_30] : memref<25x16x6xbf16, #tpu.memory_space<vmem>>, vector<1x16x6xbf16>
    %48 = vector.shape_cast %47 : vector<1x16x6xbf16> to vector<16x6xbf16>
    %cst_31 = arith.constant dense<0.000000e+00> : vector<16x136xf32>
    %49 = tpu.matmul %48, %46, %cst_31 {dimension_numbers = #tpu.dot_dimension_numbers<[1], [0], [0], [1], [0, 0, 1, 1], [], []>} : vector<16x6xbf16>, vector<6x136xbf16>, vector<16x136xf32> -> vector<16x136xf32>
    %50 = arith.addf %45, %49 : vector<16x136xf32>
    %51 = vector.extract_strided_slice %1 {offsets = [0, 28], sizes = [6, 136], strides = [1, 1]} : vector<6x196xbf16> to vector<6x136xbf16>
    %c10 = arith.constant 10 : index
    %c0_32 = arith.constant 0 : index
    %c0_33 = arith.constant 0 : index
    %52 = vector.load %arg2[%c10, %c0_32, %c0_33] : memref<25x16x6xbf16, #tpu.memory_space<vmem>>, vector<1x16x6xbf16>
    %53 = vector.shape_cast %52 : vector<1x16x6xbf16> to vector<16x6xbf16>
    %cst_34 = arith.constant dense<0.000000e+00> : vector<16x136xf32>
    %54 = tpu.matmul %53, %51, %cst_34 {dimension_numbers = #tpu.dot_dimension_numbers<[1], [0], [0], [1], [0, 0, 1, 1], [], []>} : vector<16x6xbf16>, vector<6x136xbf16>, vector<16x136xf32> -> vector<16x136xf32>
    %55 = arith.addf %50, %54 : vector<16x136xf32>
    %56 = vector.extract_strided_slice %1 {offsets = [0, 29], sizes = [6, 136], strides = [1, 1]} : vector<6x196xbf16> to vector<6x136xbf16>
    %c11 = arith.constant 11 : index
    %c0_35 = arith.constant 0 : index
    %c0_36 = arith.constant 0 : index
    %57 = vector.load %arg2[%c11, %c0_35, %c0_36] : memref<25x16x6xbf16, #tpu.memory_space<vmem>>, vector<1x16x6xbf16>
    %58 = vector.shape_cast %57 : vector<1x16x6xbf16> to vector<16x6xbf16>
    %cst_37 = arith.constant dense<0.000000e+00> : vector<16x136xf32>
    %59 = tpu.matmul %58, %56, %cst_37 {dimension_numbers = #tpu.dot_dimension_numbers<[1], [0], [0], [1], [0, 0, 1, 1], [], []>} : vector<16x6xbf16>, vector<6x136xbf16>, vector<16x136xf32> -> vector<16x136xf32>
    %60 = arith.addf %55, %59 : vector<16x136xf32>
    %61 = vector.extract_strided_slice %1 {offsets = [0, 30], sizes = [6, 136], strides = [1, 1]} : vector<6x196xbf16> to vector<6x136xbf16>
    %c12 = arith.constant 12 : index
    %c0_38 = arith.constant 0 : index
    %c0_39 = arith.constant 0 : index
    %62 = vector.load %arg2[%c12, %c0_38, %c0_39] : memref<25x16x6xbf16, #tpu.memory_space<vmem>>, vector<1x16x6xbf16>
    %63 = vector.shape_cast %62 : vector<1x16x6xbf16> to vector<16x6xbf16>
    %cst_40 = arith.constant dense<0.000000e+00> : vector<16x136xf32>
    %64 = tpu.matmul %63, %61, %cst_40 {dimension_numbers = #tpu.dot_dimension_numbers<[1], [0], [0], [1], [0, 0, 1, 1], [], []>} : vector<16x6xbf16>, vector<6x136xbf16>, vector<16x136xf32> -> vector<16x136xf32>
    %65 = arith.addf %60, %64 : vector<16x136xf32>
    %66 = vector.extract_strided_slice %1 {offsets = [0, 31], sizes = [6, 136], strides = [1, 1]} : vector<6x196xbf16> to vector<6x136xbf16>
    %c13 = arith.constant 13 : index
    %c0_41 = arith.constant 0 : index
    %c0_42 = arith.constant 0 : index
    %67 = vector.load %arg2[%c13, %c0_41, %c0_42] : memref<25x16x6xbf16, #tpu.memory_space<vmem>>, vector<1x16x6xbf16>
    %68 = vector.shape_cast %67 : vector<1x16x6xbf16> to vector<16x6xbf16>
    %cst_43 = arith.constant dense<0.000000e+00> : vector<16x136xf32>
    %69 = tpu.matmul %68, %66, %cst_43 {dimension_numbers = #tpu.dot_dimension_numbers<[1], [0], [0], [1], [0, 0, 1, 1], [], []>} : vector<16x6xbf16>, vector<6x136xbf16>, vector<16x136xf32> -> vector<16x136xf32>
    %70 = arith.addf %65, %69 : vector<16x136xf32>
    %71 = vector.extract_strided_slice %1 {offsets = [0, 32], sizes = [6, 136], strides = [1, 1]} : vector<6x196xbf16> to vector<6x136xbf16>
    %c14 = arith.constant 14 : index
    %c0_44 = arith.constant 0 : index
    %c0_45 = arith.constant 0 : index
    %72 = vector.load %arg2[%c14, %c0_44, %c0_45] : memref<25x16x6xbf16, #tpu.memory_space<vmem>>, vector<1x16x6xbf16>
    %73 = vector.shape_cast %72 : vector<1x16x6xbf16> to vector<16x6xbf16>
    %cst_46 = arith.constant dense<0.000000e+00> : vector<16x136xf32>
    %74 = tpu.matmul %73, %71, %cst_46 {dimension_numbers = #tpu.dot_dimension_numbers<[1], [0], [0], [1], [0, 0, 1, 1], [], []>} : vector<16x6xbf16>, vector<6x136xbf16>, vector<16x136xf32> -> vector<16x136xf32>
    %75 = arith.addf %70, %74 : vector<16x136xf32>
    %76 = vector.extract_strided_slice %1 {offsets = [0, 42], sizes = [6, 136], strides = [1, 1]} : vector<6x196xbf16> to vector<6x136xbf16>
    %c15 = arith.constant 15 : index
    %c0_47 = arith.constant 0 : index
    %c0_48 = arith.constant 0 : index
    %77 = vector.load %arg2[%c15, %c0_47, %c0_48] : memref<25x16x6xbf16, #tpu.memory_space<vmem>>, vector<1x16x6xbf16>
    %78 = vector.shape_cast %77 : vector<1x16x6xbf16> to vector<16x6xbf16>
    %cst_49 = arith.constant dense<0.000000e+00> : vector<16x136xf32>
    %79 = tpu.matmul %78, %76, %cst_49 {dimension_numbers = #tpu.dot_dimension_numbers<[1], [0], [0], [1], [0, 0, 1, 1], [], []>} : vector<16x6xbf16>, vector<6x136xbf16>, vector<16x136xf32> -> vector<16x136xf32>
    %80 = arith.addf %75, %79 : vector<16x136xf32>
    %81 = vector.extract_strided_slice %1 {offsets = [0, 43], sizes = [6, 136], strides = [1, 1]} : vector<6x196xbf16> to vector<6x136xbf16>
    %c16 = arith.constant 16 : index
    %c0_50 = arith.constant 0 : index
    %c0_51 = arith.constant 0 : index
    %82 = vector.load %arg2[%c16, %c0_50, %c0_51] : memref<25x16x6xbf16, #tpu.memory_space<vmem>>, vector<1x16x6xbf16>
    %83 = vector.shape_cast %82 : vector<1x16x6xbf16> to vector<16x6xbf16>
    %cst_52 = arith.constant dense<0.000000e+00> : vector<16x136xf32>
    %84 = tpu.matmul %83, %81, %cst_52 {dimension_numbers = #tpu.dot_dimension_numbers<[1], [0], [0], [1], [0, 0, 1, 1], [], []>} : vector<16x6xbf16>, vector<6x136xbf16>, vector<16x136xf32> -> vector<16x136xf32>
    %85 = arith.addf %80, %84 : vector<16x136xf32>
    %86 = vector.extract_strided_slice %1 {offsets = [0, 44], sizes = [6, 136], strides = [1, 1]} : vector<6x196xbf16> to vector<6x136xbf16>
    %c17 = arith.constant 17 : index
    %c0_53 = arith.constant 0 : index
    %c0_54 = arith.constant 0 : index
    %87 = vector.load %arg2[%c17, %c0_53, %c0_54] : memref<25x16x6xbf16, #tpu.memory_space<vmem>>, vector<1x16x6xbf16>
    %88 = vector.shape_cast %87 : vector<1x16x6xbf16> to vector<16x6xbf16>
    %cst_55 = arith.constant dense<0.000000e+00> : vector<16x136xf32>
    %89 = tpu.matmul %88, %86, %cst_55 {dimension_numbers = #tpu.dot_dimension_numbers<[1], [0], [0], [1], [0, 0, 1, 1], [], []>} : vector<16x6xbf16>, vector<6x136xbf16>, vector<16x136xf32> -> vector<16x136xf32>
    %90 = arith.addf %85, %89 : vector<16x136xf32>
    %91 = vector.extract_strided_slice %1 {offsets = [0, 45], sizes = [6, 136], strides = [1, 1]} : vector<6x196xbf16> to vector<6x136xbf16>
    %c18 = arith.constant 18 : index
    %c0_56 = arith.constant 0 : index
    %c0_57 = arith.constant 0 : index
    %92 = vector.load %arg2[%c18, %c0_56, %c0_57] : memref<25x16x6xbf16, #tpu.memory_space<vmem>>, vector<1x16x6xbf16>
    %93 = vector.shape_cast %92 : vector<1x16x6xbf16> to vector<16x6xbf16>
    %cst_58 = arith.constant dense<0.000000e+00> : vector<16x136xf32>
    %94 = tpu.matmul %93, %91, %cst_58 {dimension_numbers = #tpu.dot_dimension_numbers<[1], [0], [0], [1], [0, 0, 1, 1], [], []>} : vector<16x6xbf16>, vector<6x136xbf16>, vector<16x136xf32> -> vector<16x136xf32>
    %95 = arith.addf %90, %94 : vector<16x136xf32>
    %96 = vector.extract_strided_slice %1 {offsets = [0, 46], sizes = [6, 136], strides = [1, 1]} : vector<6x196xbf16> to vector<6x136xbf16>
    %c19 = arith.constant 19 : index
    %c0_59 = arith.constant 0 : index
    %c0_60 = arith.constant 0 : index
    %97 = vector.load %arg2[%c19, %c0_59, %c0_60] : memref<25x16x6xbf16, #tpu.memory_space<vmem>>, vector<1x16x6xbf16>
    %98 = vector.shape_cast %97 : vector<1x16x6xbf16> to vector<16x6xbf16>
    %cst_61 = arith.constant dense<0.000000e+00> : vector<16x136xf32>
    %99 = tpu.matmul %98, %96, %cst_61 {dimension_numbers = #tpu.dot_dimension_numbers<[1], [0], [0], [1], [0, 0, 1, 1], [], []>} : vector<16x6xbf16>, vector<6x136xbf16>, vector<16x136xf32> -> vector<16x136xf32>
    %100 = arith.addf %95, %99 : vector<16x136xf32>
    %101 = vector.extract_strided_slice %1 {offsets = [0, 56], sizes = [6, 136], strides = [1, 1]} : vector<6x196xbf16> to vector<6x136xbf16>
    %c20 = arith.constant 20 : index
    %c0_62 = arith.constant 0 : index
    %c0_63 = arith.constant 0 : index
    %102 = vector.load %arg2[%c20, %c0_62, %c0_63] : memref<25x16x6xbf16, #tpu.memory_space<vmem>>, vector<1x16x6xbf16>
    %103 = vector.shape_cast %102 : vector<1x16x6xbf16> to vector<16x6xbf16>
    %cst_64 = arith.constant dense<0.000000e+00> : vector<16x136xf32>
    %104 = tpu.matmul %103, %101, %cst_64 {dimension_numbers = #tpu.dot_dimension_numbers<[1], [0], [0], [1], [0, 0, 1, 1], [], []>} : vector<16x6xbf16>, vector<6x136xbf16>, vector<16x136xf32> -> vector<16x136xf32>
    %105 = arith.addf %100, %104 : vector<16x136xf32>
    %106 = vector.extract_strided_slice %1 {offsets = [0, 57], sizes = [6, 136], strides = [1, 1]} : vector<6x196xbf16> to vector<6x136xbf16>
    %c21 = arith.constant 21 : index
    %c0_65 = arith.constant 0 : index
    %c0_66 = arith.constant 0 : index
    %107 = vector.load %arg2[%c21, %c0_65, %c0_66] : memref<25x16x6xbf16, #tpu.memory_space<vmem>>, vector<1x16x6xbf16>
    %108 = vector.shape_cast %107 : vector<1x16x6xbf16> to vector<16x6xbf16>
    %cst_67 = arith.constant dense<0.000000e+00> : vector<16x136xf32>
    %109 = tpu.matmul %108, %106, %cst_67 {dimension_numbers = #tpu.dot_dimension_numbers<[1], [0], [0], [1], [0, 0, 1, 1], [], []>} : vector<16x6xbf16>, vector<6x136xbf16>, vector<16x136xf32> -> vector<16x136xf32>
    %110 = arith.addf %105, %109 : vector<16x136xf32>
    %111 = vector.extract_strided_slice %1 {offsets = [0, 58], sizes = [6, 136], strides = [1, 1]} : vector<6x196xbf16> to vector<6x136xbf16>
    %c22 = arith.constant 22 : index
    %c0_68 = arith.constant 0 : index
    %c0_69 = arith.constant 0 : index
    %112 = vector.load %arg2[%c22, %c0_68, %c0_69] : memref<25x16x6xbf16, #tpu.memory_space<vmem>>, vector<1x16x6xbf16>
    %113 = vector.shape_cast %112 : vector<1x16x6xbf16> to vector<16x6xbf16>
    %cst_70 = arith.constant dense<0.000000e+00> : vector<16x136xf32>
    %114 = tpu.matmul %113, %111, %cst_70 {dimension_numbers = #tpu.dot_dimension_numbers<[1], [0], [0], [1], [0, 0, 1, 1], [], []>} : vector<16x6xbf16>, vector<6x136xbf16>, vector<16x136xf32> -> vector<16x136xf32>
    %115 = arith.addf %110, %114 : vector<16x136xf32>
    %116 = vector.extract_strided_slice %1 {offsets = [0, 59], sizes = [6, 136], strides = [1, 1]} : vector<6x196xbf16> to vector<6x136xbf16>
    %c23 = arith.constant 23 : index
    %c0_71 = arith.constant 0 : index
    %c0_72 = arith.constant 0 : index
    %117 = vector.load %arg2[%c23, %c0_71, %c0_72] : memref<25x16x6xbf16, #tpu.memory_space<vmem>>, vector<1x16x6xbf16>
    %118 = vector.shape_cast %117 : vector<1x16x6xbf16> to vector<16x6xbf16>
    %cst_73 = arith.constant dense<0.000000e+00> : vector<16x136xf32>
    %119 = tpu.matmul %118, %116, %cst_73 {dimension_numbers = #tpu.dot_dimension_numbers<[1], [0], [0], [1], [0, 0, 1, 1], [], []>} : vector<16x6xbf16>, vector<6x136xbf16>, vector<16x136xf32> -> vector<16x136xf32>
    %120 = arith.addf %115, %119 : vector<16x136xf32>
    %121 = vector.extract_strided_slice %1 {offsets = [0, 60], sizes = [6, 136], strides = [1, 1]} : vector<6x196xbf16> to vector<6x136xbf16>
    %c24 = arith.constant 24 : index
    %c0_74 = arith.constant 0 : index
    %c0_75 = arith.constant 0 : index
    %122 = vector.load %arg2[%c24, %c0_74, %c0_75] : memref<25x16x6xbf16, #tpu.memory_space<vmem>>, vector<1x16x6xbf16>
    %123 = vector.shape_cast %122 : vector<1x16x6xbf16> to vector<16x6xbf16>
    %cst_76 = arith.constant dense<0.000000e+00> : vector<16x136xf32>
    %124 = tpu.matmul %123, %121, %cst_76 {dimension_numbers = #tpu.dot_dimension_numbers<[1], [0], [0], [1], [0, 0, 1, 1], [], []>} : vector<16x6xbf16>, vector<6x136xbf16>, vector<16x136xf32> -> vector<16x136xf32>
    %125 = arith.addf %120, %124 : vector<16x136xf32>
    %c0_77 = arith.constant 0 : index
    %c0_78 = arith.constant 0 : index
    %126 = vector.load %arg3[%c0_77, %c0_78] : memref<16x1xf32, #tpu.memory_space<vmem>>, vector<16x1xf32>
    %127 = vector.broadcast %126 : vector<16x1xf32> to vector<16x136xf32>
    %128 = arith.addf %125, %127 : vector<16x136xf32>
    %cst_79 = arith.constant 0.000000e+00 : f32
    %129 = vector.broadcast %cst_79 : f32 to vector<16x136xf32>
    %130 = arith.maximumf %128, %129 : vector<16x136xf32>
    %131 = arith.truncf %130 : vector<16x136xf32> to vector<16x136xbf16>
    %c0_80 = arith.constant 0 : index
    %c0_81 = arith.constant 0 : index
    %c0_82 = arith.constant 0 : index
    %132 = vector.load %arg4[%c0_80, %c0_81, %c0_82] : memref<4x136x25xbf16, #tpu.memory_space<vmem>>, vector<1x136x25xbf16>
    %133 = vector.shape_cast %132 : vector<1x136x25xbf16> to vector<136x25xbf16>
    %cst_83 = arith.constant dense<0.000000e+00> : vector<16x25xf32>
    %134 = tpu.matmul %131, %133, %cst_83 {dimension_numbers = #tpu.dot_dimension_numbers<[1], [0], [0], [1], [0, 0, 1, 1], [], []>} : vector<16x136xbf16>, vector<136x25xbf16>, vector<16x25xf32> -> vector<16x25xf32>
    %c1_84 = arith.constant 1 : index
    %c0_85 = arith.constant 0 : index
    %c0_86 = arith.constant 0 : index
    %135 = vector.load %arg4[%c1_84, %c0_85, %c0_86] : memref<4x136x25xbf16, #tpu.memory_space<vmem>>, vector<1x136x25xbf16>
    %136 = vector.shape_cast %135 : vector<1x136x25xbf16> to vector<136x25xbf16>
    %cst_87 = arith.constant dense<0.000000e+00> : vector<16x25xf32>
    %137 = tpu.matmul %131, %136, %cst_87 {dimension_numbers = #tpu.dot_dimension_numbers<[1], [0], [0], [1], [0, 0, 1, 1], [], []>} : vector<16x136xbf16>, vector<136x25xbf16>, vector<16x25xf32> -> vector<16x25xf32>
    %138 = arith.maximumf %134, %137 : vector<16x25xf32>
    %c2_88 = arith.constant 2 : index
    %c0_89 = arith.constant 0 : index
    %c0_90 = arith.constant 0 : index
    %139 = vector.load %arg4[%c2_88, %c0_89, %c0_90] : memref<4x136x25xbf16, #tpu.memory_space<vmem>>, vector<1x136x25xbf16>
    %140 = vector.shape_cast %139 : vector<1x136x25xbf16> to vector<136x25xbf16>
    %cst_91 = arith.constant dense<0.000000e+00> : vector<16x25xf32>
    %141 = tpu.matmul %131, %140, %cst_91 {dimension_numbers = #tpu.dot_dimension_numbers<[1], [0], [0], [1], [0, 0, 1, 1], [], []>} : vector<16x136xbf16>, vector<136x25xbf16>, vector<16x25xf32> -> vector<16x25xf32>
    %142 = arith.maximumf %138, %141 : vector<16x25xf32>
    %c3_92 = arith.constant 3 : index
    %c0_93 = arith.constant 0 : index
    %c0_94 = arith.constant 0 : index
    %143 = vector.load %arg4[%c3_92, %c0_93, %c0_94] : memref<4x136x25xbf16, #tpu.memory_space<vmem>>, vector<1x136x25xbf16>
    %144 = vector.shape_cast %143 : vector<1x136x25xbf16> to vector<136x25xbf16>
    %cst_95 = arith.constant dense<0.000000e+00> : vector<16x25xf32>
    %145 = tpu.matmul %131, %144, %cst_95 {dimension_numbers = #tpu.dot_dimension_numbers<[1], [0], [0], [1], [0, 0, 1, 1], [], []>} : vector<16x136xbf16>, vector<136x25xbf16>, vector<16x25xf32> -> vector<16x25xf32>
    %146 = arith.maximumf %142, %145 : vector<16x25xf32>
    %147 = arith.truncf %146 : vector<16x25xf32> to vector<16x25xbf16>
    %c0_96 = arith.constant 0 : index
    %c0_97 = arith.constant 0 : index
    %c0_98 = arith.constant 0 : index
    %148 = vector.load %arg5[%c0_96, %c0_97, %c0_98] : memref<1x16x25xbf16, #tpu.memory_space<vmem>>, vector<1x16x25xbf16>
    %149 = vector.shape_cast %148 : vector<1x16x25xbf16> to vector<16x25xbf16>
    %150 = vector.shape_cast %147 : vector<16x25xbf16> to vector<1x16x25xbf16>
    tpu.vector_store %arg5[%c0_96, %c0_97, %c0_98], %150 {strides = array<i32>} : memref<1x16x25xbf16, #tpu.memory_space<vmem>>, vector<1x16x25xbf16>,
    return
  }
  func.func @transform_0(%arg0: i32) -> (i32, i32, i32) {
    %c0_i32 = arith.constant 0 : i32
    %c0_i32_0 = arith.constant 0 : i32
    %c0_i32_1 = arith.constant 0 : i32
    return %arg0, %c0_i32, %c0_i32_0 : i32, i32, i32
  }
  func.func @transform_1(%arg0: i32) -> (i32, i32, i32) {
    %c0_i32 = arith.constant 0 : i32
    %c0_i32_0 = arith.constant 0 : i32
    %c0_i32_1 = arith.constant 0 : i32
    %c0_i32_2 = arith.constant 0 : i32
    return %c0_i32, %c0_i32_0, %c0_i32_1 : i32, i32, i32
  }
  func.func @transform_2(%arg0: i32) -> (i32, i32) {
    %c0_i32 = arith.constant 0 : i32
    %c0_i32_0 = arith.constant 0 : i32
    %c0_i32_1 = arith.constant 0 : i32
    return %c0_i32, %c0_i32_0 : i32, i32
  }
  func.func @transform_3(%arg0: i32) -> (i32, i32, i32) {
    %c0_i32 = arith.constant 0 : i32
    %c0_i32_0 = arith.constant 0 : i32
    %c0_i32_1 = arith.constant 0 : i32
    %c0_i32_2 = arith.constant 0 : i32
    return %c0_i32, %c0_i32_0, %c0_i32_1 : i32, i32, i32
  }
  func.func @transform_4(%arg0: i32) -> (i32, i32, i32) {
    %c0_i32 = arith.constant 0 : i32
    %c0_i32_0 = arith.constant 0 : i32
    %c0_i32_1 = arith.constant 0 : i32
    return %arg0, %c0_i32, %c0_i32_0 : i32, i32, i32
  }
}

module attributes {stable_mosaic.version = 11 : i64} {
  func.func @_mlp_kernel(%arg0: i32, %arg1: memref<2x400xbf16, #tpu.memory_space<vmem>>, %arg2: memref<400x120xbf16, #tpu.memory_space<vmem>>, %arg3: memref<1x120xf32, #tpu.memory_space<vmem>>, %arg4: memref<120x84xbf16, #tpu.memory_space<vmem>>, %arg5: memref<1x84xf32, #tpu.memory_space<vmem>>, %arg6: memref<84x10xbf16, #tpu.memory_space<vmem>>, %arg7: memref<1x10xf32, #tpu.memory_space<vmem>>, %arg8: memref<2x10xf32, #tpu.memory_space<vmem>>) attributes {dimension_semantics = [#tpu.dimension_semantics<parallel>], iteration_bounds = array<i64: 1>, scalar_prefetch = 0 : i64, scratch_operands = 0 : i64, tpu.core_type = #tpu.core_type<tc>, window_params = [{transform_indices = @transform_0, window_bounds = array<i64: 2, 400>}, {pipeline_mode = #tpu.pipeline_mode<synchronous>, transform_indices = @transform_1, window_bounds = array<i64: 400, 120>}, {pipeline_mode = #tpu.pipeline_mode<synchronous>, transform_indices = @transform_2, window_bounds = array<i64: 1, 120>}, {pipeline_mode = #tpu.pipeline_mode<synchronous>, transform_indices = @transform_3, window_bounds = array<i64: 120, 84>}, {pipeline_mode = #tpu.pipeline_mode<synchronous>, transform_indices = @transform_4, window_bounds = array<i64: 1, 84>}, {pipeline_mode = #tpu.pipeline_mode<synchronous>, transform_indices = @transform_5, window_bounds = array<i64: 84, 10>}, {pipeline_mode = #tpu.pipeline_mode<synchronous>, transform_indices = @transform_6, window_bounds = array<i64: 1, 10>}, {transform_indices = @transform_7, window_bounds = array<i64: 2, 10>}]} {
    %c0 = arith.constant 0 : index
    %c0_0 = arith.constant 0 : index
    %0 = vector.load %arg1[%c0, %c0_0] : memref<2x400xbf16, #tpu.memory_space<vmem>>, vector<2x400xbf16>
    %c0_1 = arith.constant 0 : index
    %c0_2 = arith.constant 0 : index
    %1 = vector.load %arg2[%c0_1, %c0_2] : memref<400x120xbf16, #tpu.memory_space<vmem>>, vector<400x120xbf16>
    %cst = arith.constant dense<0.000000e+00> : vector<2x120xf32>
    %2 = tpu.matmul %0, %1, %cst {dimension_numbers = #tpu.dot_dimension_numbers<[1], [0], [0], [1], [0, 0, 1, 1], [], []>} : vector<2x400xbf16>, vector<400x120xbf16>, vector<2x120xf32> -> vector<2x120xf32>
    %c0_3 = arith.constant 0 : index
    %c0_4 = arith.constant 0 : index
    %3 = vector.load %arg3[%c0_3, %c0_4] : memref<1x120xf32, #tpu.memory_space<vmem>>, vector<1x120xf32>
    %4 = vector.broadcast %3 : vector<1x120xf32> to vector<2x120xf32>
    %5 = arith.addf %2, %4 : vector<2x120xf32>
    %cst_5 = arith.constant 0.000000e+00 : f32
    %6 = vector.broadcast %cst_5 : f32 to vector<2x120xf32>
    %7 = arith.maximumf %5, %6 : vector<2x120xf32>
    %8 = arith.truncf %7 : vector<2x120xf32> to vector<2x120xbf16>
    %c0_6 = arith.constant 0 : index
    %c0_7 = arith.constant 0 : index
    %9 = vector.load %arg4[%c0_6, %c0_7] : memref<120x84xbf16, #tpu.memory_space<vmem>>, vector<120x84xbf16>
    %cst_8 = arith.constant dense<0.000000e+00> : vector<2x84xf32>
    %10 = tpu.matmul %8, %9, %cst_8 {dimension_numbers = #tpu.dot_dimension_numbers<[1], [0], [0], [1], [0, 0, 1, 1], [], []>} : vector<2x120xbf16>, vector<120x84xbf16>, vector<2x84xf32> -> vector<2x84xf32>
    %c0_9 = arith.constant 0 : index
    %c0_10 = arith.constant 0 : index
    %11 = vector.load %arg5[%c0_9, %c0_10] : memref<1x84xf32, #tpu.memory_space<vmem>>, vector<1x84xf32>
    %12 = vector.broadcast %11 : vector<1x84xf32> to vector<2x84xf32>
    %13 = arith.addf %10, %12 : vector<2x84xf32>
    %cst_11 = arith.constant 0.000000e+00 : f32
    %14 = vector.broadcast %cst_11 : f32 to vector<2x84xf32>
    %15 = arith.maximumf %13, %14 : vector<2x84xf32>
    %16 = arith.truncf %15 : vector<2x84xf32> to vector<2x84xbf16>
    %c0_12 = arith.constant 0 : index
    %c0_13 = arith.constant 0 : index
    %17 = vector.load %arg6[%c0_12, %c0_13] : memref<84x10xbf16, #tpu.memory_space<vmem>>, vector<84x10xbf16>
    %cst_14 = arith.constant dense<0.000000e+00> : vector<2x10xf32>
    %18 = tpu.matmul %16, %17, %cst_14 {dimension_numbers = #tpu.dot_dimension_numbers<[1], [0], [0], [1], [0, 0, 1, 1], [], []>} : vector<2x84xbf16>, vector<84x10xbf16>, vector<2x10xf32> -> vector<2x10xf32>
    %c0_15 = arith.constant 0 : index
    %c0_16 = arith.constant 0 : index
    %19 = vector.load %arg7[%c0_15, %c0_16] : memref<1x10xf32, #tpu.memory_space<vmem>>, vector<1x10xf32>
    %20 = vector.broadcast %19 : vector<1x10xf32> to vector<2x10xf32>
    %21 = arith.addf %18, %20 : vector<2x10xf32>
    %c0_17 = arith.constant 0 : index
    %c0_18 = arith.constant 0 : index
    %22 = vector.load %arg8[%c0_17, %c0_18] : memref<2x10xf32, #tpu.memory_space<vmem>>, vector<2x10xf32>
    tpu.vector_store %arg8[%c0_17, %c0_18], %21 {strides = array<i32>} : memref<2x10xf32, #tpu.memory_space<vmem>>, vector<2x10xf32>,
    return
  }
  func.func @transform_0(%arg0: i32) -> (i32, i32) {
    %c0_i32 = arith.constant 0 : i32
    %c0_i32_0 = arith.constant 0 : i32
    return %arg0, %c0_i32 : i32, i32
  }
  func.func @transform_1(%arg0: i32) -> (i32, i32) {
    %c0_i32 = arith.constant 0 : i32
    %c0_i32_0 = arith.constant 0 : i32
    %c0_i32_1 = arith.constant 0 : i32
    return %c0_i32, %c0_i32_0 : i32, i32
  }
  func.func @transform_2(%arg0: i32) -> (i32, i32) {
    %c0_i32 = arith.constant 0 : i32
    %c0_i32_0 = arith.constant 0 : i32
    %c0_i32_1 = arith.constant 0 : i32
    return %c0_i32, %c0_i32_0 : i32, i32
  }
  func.func @transform_3(%arg0: i32) -> (i32, i32) {
    %c0_i32 = arith.constant 0 : i32
    %c0_i32_0 = arith.constant 0 : i32
    %c0_i32_1 = arith.constant 0 : i32
    return %c0_i32, %c0_i32_0 : i32, i32
  }
  func.func @transform_4(%arg0: i32) -> (i32, i32) {
    %c0_i32 = arith.constant 0 : i32
    %c0_i32_0 = arith.constant 0 : i32
    %c0_i32_1 = arith.constant 0 : i32
    return %c0_i32, %c0_i32_0 : i32, i32
  }
  func.func @transform_5(%arg0: i32) -> (i32, i32) {
    %c0_i32 = arith.constant 0 : i32
    %c0_i32_0 = arith.constant 0 : i32
    %c0_i32_1 = arith.constant 0 : i32
    return %c0_i32, %c0_i32_0 : i32, i32
  }
  func.func @transform_6(%arg0: i32) -> (i32, i32) {
    %c0_i32 = arith.constant 0 : i32
    %c0_i32_0 = arith.constant 0 : i32
    %c0_i32_1 = arith.constant 0 : i32
    return %c0_i32, %c0_i32_0 : i32, i32
  }
  func.func @transform_7(%arg0: i32) -> (i32, i32) {
    %c0_i32 = arith.constant 0 : i32
    %c0_i32_0 = arith.constant 0 : i32
    return %arg0, %c0_i32 : i32, i32
  }
}

</mosaic_0001>

<llo_original>
// kernel: cnn_forward.5
$region0: #{cnn_forward.5}
  #allocation0 [shape = 'u32[]', space=smem, size = 0x4, offset = 0x4, fixed_abs, tag = 'smem constant byte address 0x4 - core index']
  #allocation1 [shape = 'u32[144,128]{1,0:T(1,128)}', space=vmem, size = 0x12000, scoped, tag = 'internal scratch']
  %s0 = inlined_call_operand.vmem [shape: bf16[2,400], index: 0, kind: input, shape index: {}]
  %s1 = inlined_call_operand.vmem [shape: bf16[400,120], index: 1, kind: input, shape index: {}]
  %s2 = inlined_call_operand.vmem [shape: f32[1,120], index: 2, kind: input, shape index: {}]
  %s3 = inlined_call_operand.vmem [shape: bf16[120,84], index: 3, kind: input, shape index: {}]
  %s4 = inlined_call_operand.vmem [shape: f32[1,84], index: 4, kind: input, shape index: {}]
  %s5 = inlined_call_operand.vmem [shape: bf16[84,10], index: 5, kind: input, shape index: {}]
  %s6 = inlined_call_operand.vmem [shape: f32[1,10], index: 6, kind: input, shape index: {}]
  %s7 = inlined_call_operand.hbm [shape: f32[2,10], index: 7, kind: output, shape index: {}]
  %s8 = sld [smem:[#allocation0]]
  $region38: #{cnn_forward.5} parent=0
    _
  %s10 = ssub.s32 1, %s8
  %s11 = scalar_select 0, %s10, %s8
  $region1: #{cnn_forward.5} parent=0
    #allocation2 [shape = 'u8[1024]{0}', space=vmem, size = 0x400, scoped, tag = 'output window, operand 0, single buffered']
    #allocation3 [shape = 's32[1]{0}', space=sflag, size = 0x4, scoped, tag = 'scoped memory for cnn_forward.5']
    %12 = vsyncpa [#allocation3], 0
    // Predicated region
    $region2: #{cnn_forward.5} parent=1 // pred_check
      _
    $region3: #{cnn_forward.5} parent=1 // pred_check_branch
      %14 = sbr.rel (0) target = $region5
    $region4: #{cnn_forward.5} parent=1 // pred_region
      _
    $region5: #{cnn_forward.5} parent=1 // pred_fallthru
      _
    // Predicated region
    $region6: #{cnn_forward.5} parent=1 // pred_check
      _
    $region7: #{cnn_forward.5} parent=1 // pred_check_branch
      %16 = sbr.rel (0) target = $region9
    $region8: #{cnn_forward.5} parent=1 // pred_region
      _
    $region9: #{cnn_forward.5} parent=1 // pred_fallthru
      _
    // Predicated region
    $region10: #{cnn_forward.5} parent=1 // pred_check
      _
    $region11: #{cnn_forward.5} parent=1 // pred_check_branch
      %18 = sbr.rel (0) target = $region13
    $region12: #{cnn_forward.5} parent=1 // pred_region
      _
    $region13: #{cnn_forward.5} parent=1 // pred_fallthru
      _
    // Predicated region
    $region14: #{cnn_forward.5} parent=1 // pred_check
      _
    $region15: #{cnn_forward.5} parent=1 // pred_check_branch
      %20 = sbr.rel (0) target = $region17
    $region16: #{cnn_forward.5} parent=1 // pred_region
      _
    $region17: #{cnn_forward.5} parent=1 // pred_fallthru
      _
    // Predicated region
    $region18: #{cnn_forward.5} parent=1 // pred_check
      _
    $region19: #{cnn_forward.5} parent=1 // pred_check_branch
      %22 = sbr.rel (0) target = $region21
    $region20: #{cnn_forward.5} parent=1 // pred_region
      _
    $region21: #{cnn_forward.5} parent=1 // pred_fallthru
      _
    // Predicated region
    $region22: #{cnn_forward.5} parent=1 // pred_check
      _
    $region23: #{cnn_forward.5} parent=1 // pred_check_branch
      %24 = sbr.rel (0) target = $region25
    $region24: #{cnn_forward.5} parent=1 // pred_region
      _
    $region25: #{cnn_forward.5} parent=1 // pred_fallthru
      _
    // Predicated region
    $region26: #{cnn_forward.5} parent=1 // pred_check
      _
    $region27: #{cnn_forward.5} parent=1 // pred_check_branch
      %26 = sbr.rel (0) target = $region29
    $region28: #{cnn_forward.5} parent=1 // pred_region
      _
    $region29: #{cnn_forward.5} parent=1 // pred_fallthru
      _
    %v28 = vld [vmem:[%s0] sm:$0xf]
    %v29 = vld [vmem:[%s1] sm:$0xf]
    %v30 = vld [vmem:[%s1 + $0x4] sm:$0xf]
    %v31 = vld [vmem:[%s1 + $0x8] sm:$0xf]
    %v32 = vld [vmem:[%s1 + $0xc] sm:$0xf]
    %v33 = vld [vmem:[%s1 + $0x10] sm:$0xf]
    %v34 = vld [vmem:[%s1 + $0x14] sm:$0xf]
    %v35 = vld [vmem:[%s1 + $0x18] sm:$0xf]
    %v36 = vld [vmem:[%s1 + $0x1c] sm:$0xf]
    %v37 = vld [vmem:[%s1 + $0x20] sm:$0xf]
    %v38 = vld [vmem:[%s1 + $0x24] sm:$0xf]
    %v39 = vld [vmem:[%s1 + $0x28] sm:$0xf]
    %v40 = vld [vmem:[%s1 + $0x2c] sm:$0xf]
    %v41 = vld [vmem:[%s1 + $0x30] sm:$0xf]
    %v42 = vld [vmem:[%s1 + $0x34] sm:$0xf]
    %v43 = vld [vmem:[%s1 + $0x38] sm:$0xf]
    %v44 = vld [vmem:[%s1 + $0x3c] sm:$0xf]
    %v45 = vld [vmem:[%s1 + $0x40] sm:$0xf]
    %v46 = vld [vmem:[%s1 + $0x44] sm:$0xf]
    %v47 = vld [vmem:[%s1 + $0x48] sm:$0xf]
    %v48 = vld [vmem:[%s1 + $0x4c] sm:$0xf]
    %v49 = vld [vmem:[%s1 + $0x50] sm:$0xf]
    %v50 = vld [vmem:[%s1 + $0x54] sm:$0xf]
    %v51 = vld [vmem:[%s1 + $0x58] sm:$0xf]
    %v52 = vld [vmem:[%s1 + $0x5c] sm:$0xf]
    %v53 = vld [vmem:[%s1 + $0x60] sm:$0xf]
    %v54 = vld [vmem:[%s1 + $0x64] sm:$0xf]
    %v55 = vld [vmem:[%s1 + $0x68] sm:$0xf]
    %v56 = vld [vmem:[%s1 + $0x6c] sm:$0xf]
    %v57 = vld [vmem:[%s1 + $0x70] sm:$0xf]
    %v58 = vld [vmem:[%s1 + $0x74] sm:$0xf]
    %v59 = vld [vmem:[%s1 + $0x78] sm:$0xf]
    %v60 = vld [vmem:[%s1 + $0x7c] sm:$0xf]
    %v61 = vld [vmem:[%s1 + $0x80] sm:$0xf]
    %v62 = vld [vmem:[%s1 + $0x84] sm:$0xf]
    %v63 = vld [vmem:[%s1 + $0x88] sm:$0xf]
    %v64 = vld [vmem:[%s1 + $0x8c] sm:$0xf]
    %v65 = vld [vmem:[%s1 + $0x90] sm:$0xf]
    %v66 = vld [vmem:[%s1 + $0x94] sm:$0xf]
    %v67 = vld [vmem:[%s1 + $0x98] sm:$0xf]
    %v68 = vld [vmem:[%s1 + $0x9c] sm:$0xf]
    %v69 = vld [vmem:[%s1 + $0xa0] sm:$0xf]
    %v70 = vld [vmem:[%s1 + $0xa4] sm:$0xf]
    %v71 = vld [vmem:[%s1 + $0xa8] sm:$0xf]
    %v72 = vld [vmem:[%s1 + $0xac] sm:$0xf]
    %v73 = vld [vmem:[%s1 + $0xb0] sm:$0xf]
    %v74 = vld [vmem:[%s1 + $0xb4] sm:$0xf]
    %v75 = vld [vmem:[%s1 + $0xb8] sm:$0xf]
    %v76 = vld [vmem:[%s1 + $0xbc] sm:$0xf]
    %v77 = vld [vmem:[%s1 + $0xc0] sm:$0xf]
    %v78 = vld [vmem:[%s1 + $0xc4] sm:$0xf]
    %v79 = vld [vmem:[%s2] sm:$0x1]
    %v81 = vlaneseq
    %v82 = vshrl.u32 %v81, 7
    %v83 = vsub.s32 0, %v82
    %v84 = vrot.slane %v79, %v83
    %v88 = vunpack.c.l.s4 1966171168
    %v89 = vunpack.c.0.s8 %v88
    %v90 = vlaneseq
    %v91 = vshrl.u32 %v90, 7
    %v92 = vsub.s32 %v89, %v91
    %v93 = vrot.slane %v28, %v92
    %v94 = vcombine.high %v93, %v93
    %v96 = vunpack.c.l.s4 1966171168
    %v97 = vunpack.c.0.s8 %v96
    %v98 = vlaneseq
    %v99 = vshrl.u32 %v98, 7
    %v100 = vsub.s32 %v97, %v99
    %v101 = vrot.slane %v93, %v100
    %v103 = vunpack.c.l.s4 1966171168
    %v104 = vunpack.c.0.s8 %v103
    %v105 = vlaneseq
    %v106 = vshrl.u32 %v105, 7
    %v107 = vsub.s32 %v104, %v106
    %v108 = vrot.slane %v94, %v107
    %v109 = vcombine.high %v101, %v101
    %v110 = vcombine.high %v108, %v108
    %v164 = vunpack.c.l.b16 %v29
    %v165 = vunpack.c.l.b16 %v30
    %v166 = vunpack.c.l.b16 %v31
    %v167 = vunpack.c.l.b16 %v32
    %v168 = vunpack.c.l.b16 %v33
    %v169 = vunpack.c.l.b16 %v34
    %v170 = vunpack.c.l.b16 %v35
    %v171 = vunpack.c.l.b16 %v36
    %v172 = vunpack.c.l.b16 %v37
    %v173 = vunpack.c.l.b16 %v38
    %v174 = vunpack.c.l.b16 %v39
    %v175 = vunpack.c.l.b16 %v40
    %v176 = vunpack.c.l.b16 %v41
    %v177 = vunpack.c.l.b16 %v42
    %v178 = vunpack.c.l.b16 %v43
    %v179 = vunpack.c.l.b16 %v44
    %v180 = vunpack.c.l.b16 %v45
    %v181 = vunpack.c.l.b16 %v46
    %v182 = vunpack.c.l.b16 %v47
    %v183 = vunpack.c.l.b16 %v48
    %v184 = vunpack.c.l.b16 %v49
    %v185 = vunpack.c.l.b16 %v50
    %v186 = vunpack.c.l.b16 %v51
    %v187 = vunpack.c.l.b16 %v52
    %v188 = vunpack.c.l.b16 %v53
    %v189 = vunpack.c.l.b16 %v54
    %v190 = vunpack.c.l.b16 %v55
    %v191 = vunpack.c.l.b16 %v56
    %v192 = vunpack.c.l.b16 %v57
    %v193 = vunpack.c.l.b16 %v58
    %v194 = vunpack.c.l.b16 %v59
    %v195 = vunpack.c.l.b16 %v60
    %v196 = vunpack.c.l.b16 %v61
    %v197 = vunpack.c.l.b16 %v62
    %v198 = vunpack.c.l.b16 %v63
    %v199 = vunpack.c.l.b16 %v64
    %v200 = vunpack.c.l.b16 %v65
    %v201 = vunpack.c.l.b16 %v66
    %v202 = vunpack.c.l.b16 %v67
    %v203 = vunpack.c.l.b16 %v68
    %v204 = vunpack.c.l.b16 %v69
    %v205 = vunpack.c.l.b16 %v70
    %v206 = vunpack.c.l.b16 %v71
    %v207 = vunpack.c.l.b16 %v72
    %v208 = vunpack.c.l.b16 %v73
    %v209 = vunpack.c.l.b16 %v74
    %v210 = vunpack.c.l.b16 %v75
    %v211 = vunpack.c.l.b16 %v76
    %v212 = vunpack.c.l.b16 %v77
    %v213 = vunpack.c.l.b16 %v78
    %v214 = vpack.c.b16 %v165, %v164
    %v215 = vpack.c.b16 %v167, %v166
    %v216 = vpack.c.b16 %v169, %v168
    %v217 = vpack.c.b16 %v171, %v170
    %v218 = vpack.c.b16 %v173, %v172
    %v219 = vpack.c.b16 %v175, %v174
    %v220 = vpack.c.b16 %v177, %v176
    %v221 = vpack.c.b16 %v179, %v178
    %v222 = vpack.c.b16 %v181, %v180
    %v223 = vpack.c.b16 %v183, %v182
    %v224 = vpack.c.b16 %v185, %v184
    %v225 = vpack.c.b16 %v187, %v186
    %v226 = vpack.c.b16 %v189, %v188
    %v227 = vpack.c.b16 %v191, %v190
    %v228 = vpack.c.b16 %v193, %v192
    %v229 = vpack.c.b16 %v195, %v194
    %v230 = vpack.c.b16 %v197, %v196
    %v231 = vpack.c.b16 %v199, %v198
    %v232 = vpack.c.b16 %v201, %v200
    %v233 = vpack.c.b16 %v203, %v202
    %v234 = vpack.c.b16 %v205, %v204
    %v235 = vpack.c.b16 %v207, %v206
    %v236 = vpack.c.b16 %v209, %v208
    %v237 = vpack.c.b16 %v211, %v210
    %v238 = vpack.c.b16 %v213, %v212
    %vm264 = vcmask 130048
    %v266 = vsel %vm264, %v110, 0
    %268 = vmatprep.subr.bf16.mxu0 0
    %269 = vmatpush1.bf16.msra.mxu0 %v214
    %270 = vmatprep.subr.bf16.mxu0 0
    %271 = vmatpush1.bf16.msra.mxu0 %v215
    %272 = vmatprep.subr.bf16.mxu0 0
    %273 = vmatpush1.bf16.msra.mxu0 %v216
    %274 = vmatprep.subr.bf16.mxu0 0
    %275 = vmatpush1.bf16.msra.mxu0 %v217
    %276 = vmatprep.subr.bf16.mxu0 0
    %277 = vmatpush1.bf16.msra.mxu0 %v218
    %278 = vmatprep.subr.bf16.mxu0 0
    %279 = vmatpush1.bf16.msra.mxu0 %v219
    %280 = vmatprep.subr.bf16.mxu0 0
    %281 = vmatpush1.bf16.msra.mxu0 %v220
    %282 = vmatprep.subr.bf16.mxu0 0
    %283 = vmatpush1.bf16.msra.mxu0 %v221
    %284 = vmatprep.subr.bf16.mxu0 0
    %285 = vmatpush1.bf16.msra.mxu0 %v222
    %286 = vmatprep.subr.bf16.mxu0 0
    %287 = vmatpush1.bf16.msra.mxu0 %v223
    %288 = vmatprep.subr.bf16.mxu0 0
    %289 = vmatpush1.bf16.msra.mxu0 %v224
    %290 = vmatprep.subr.bf16.mxu0 0
    %291 = vmatpush1.bf16.msra.mxu0 %v225
    %292 = vmatprep.subr.bf16.mxu0 0
    %293 = vmatpush1.bf16.msra.mxu0 %v226
    %294 = vmatprep.subr.bf16.mxu0 0
    %295 = vmatpush1.bf16.msra.mxu0 %v227
    %296 = vmatprep.subr.bf16.mxu0 0
    %297 = vmatpush1.bf16.msra.mxu0 %v228
    %298 = vmatprep.subr.bf16.mxu0 0
    %299 = vmatpush1.bf16.msra.mxu0 %v229
    %300 = vmatprep.mubr.bf16.mxu0 %v108
    %301 = vmatmul.mubr.bf16.gmra.mrb[0].mxu0 %v101
    %v302 = vpop.f32.mrb[0].mxu0
    %v303 = vadd.f32 %v84, %v302
    %v304 = vpop.f32.mrb[0].mxu0
    %v305 = vpop.f32.mrb[0].mxu0
    %v306 = vpop.f32.mrb[0].mxu0
    %307 = vdwg.mxu0
    %308 = vmatprep.subr.bf16.mxu0 0
    %309 = vmatpush1.bf16.msra.mxu0 %v230
    %310 = vmatprep.subr.bf16.mxu0 0
    %311 = vmatpush1.bf16.msra.mxu0 %v231
    %312 = vmatprep.subr.bf16.mxu0 0
    %313 = vmatpush1.bf16.msra.mxu0 %v232
    %314 = vmatprep.subr.bf16.mxu0 0
    %315 = vmatpush1.bf16.msra.mxu0 %v233
    %316 = vmatprep.subr.bf16.mxu0 0
    %317 = vmatpush1.bf16.msra.mxu0 %v234
    %318 = vmatprep.subr.bf16.mxu0 0
    %319 = vmatpush1.bf16.msra.mxu0 %v235
    %320 = vmatprep.subr.bf16.mxu0 0
    %321 = vmatpush1.bf16.msra.mxu0 %v236
    %322 = vmatprep.subr.bf16.mxu0 0
    %323 = vmatpush1.bf16.msra.mxu0 %v237
    %324 = vmatprep.subr.bf16.mxu0 0
    %325 = vmatpush1.bf16.msra.mxu0 %v238
    %326 = vmatprep.subr.bf16.mxu0 0
    %327 = vmatpush1.bf16.msra.mxu0 0
    %328 = vmatprep.subr.bf16.mxu0 0
    %329 = vmatpush1.bf16.msra.mxu0 0
    %330 = vmatprep.subr.bf16.mxu0 0
    %331 = vmatpush1.bf16.msra.mxu0 0
    %332 = vmatprep.subr.bf16.mxu0 0
    %333 = vmatpush1.bf16.msra.mxu0 0
    %334 = vmatprep.subr.bf16.mxu0 0
    %335 = vmatpush1.bf16.msra.mxu0 0
    %336 = vmatprep.subr.bf16.mxu0 0
    %337 = vmatpush1.bf16.msra.mxu0 0
    %338 = vmatprep.subr.bf16.mxu0 0
    %339 = vmatpush1.bf16.msra.mxu0 0
    %340 = vmatprep.mubr.bf16.mxu0 %v266
    %341 = vmatmul.mubr.bf16.gmra.mrb[0].mxu0 %v109
    %v342 = vpop.f32.mrb[0].mxu0
    %v343 = vadd.f32 %v303, %v342
    %v344 = vpop.f32.mrb[0].mxu0
    %v345 = vpop.f32.mrb[0].mxu0
    %v346 = vpop.f32.mrb[0].mxu0
    %347 = vdwg.mxu0
    %v348 = vmax.f32 %v343, 0.0
    %v349 = vpack.c.bf16 %v348, %v348
    %v350 = vld [vmem:[%s3] sm:$0xf]
    %v351 = vld [vmem:[%s3 + $0x4] sm:$0xf]
    %v352 = vld [vmem:[%s3 + $0x8] sm:$0xf]
    %v353 = vld [vmem:[%s3 + $0xc] sm:$0xf]
    %v354 = vld [vmem:[%s3 + $0x10] sm:$0xf]
    %v355 = vld [vmem:[%s3 + $0x14] sm:$0xf]
    %v356 = vld [vmem:[%s3 + $0x18] sm:$0xf]
    %v357 = vld [vmem:[%s3 + $0x1c] sm:$0xf]
    %v358 = vld [vmem:[%s3 + $0x20] sm:$0xf]
    %v359 = vld [vmem:[%s3 + $0x24] sm:$0xf]
    %v360 = vld [vmem:[%s3 + $0x28] sm:$0xf]
    %v361 = vld [vmem:[%s3 + $0x2c] sm:$0xf]
    %v362 = vld [vmem:[%s3 + $0x30] sm:$0xf]
    %v363 = vld [vmem:[%s3 + $0x34] sm:$0xf]
    %v364 = vld [vmem:[%s3 + $0x38] sm:$0xf]
    %v365 = vld [vmem:[%s4] sm:$0x1]
    %v367 = vlaneseq
    %v368 = vshrl.u32 %v367, 7
    %v369 = vsub.s32 0, %v368
    %v370 = vrot.slane %v365, %v369
    %v387 = vunpack.c.l.b16 %v350
    %v388 = vunpack.c.l.b16 %v351
    %v389 = vunpack.c.l.b16 %v352
    %v390 = vunpack.c.l.b16 %v353
    %v391 = vunpack.c.l.b16 %v354
    %v392 = vunpack.c.l.b16 %v355
    %v393 = vunpack.c.l.b16 %v356
    %v394 = vunpack.c.l.b16 %v357
    %v395 = vunpack.c.l.b16 %v358
    %v396 = vunpack.c.l.b16 %v359
    %v397 = vunpack.c.l.b16 %v360
    %v398 = vunpack.c.l.b16 %v361
    %v399 = vunpack.c.l.b16 %v362
    %v400 = vunpack.c.l.b16 %v363
    %v401 = vunpack.c.l.b16 %v364
    %v402 = vpack.c.b16 %v388, %v387
    %v403 = vpack.c.b16 %v390, %v389
    %v404 = vpack.c.b16 %v392, %v391
    %v405 = vpack.c.b16 %v394, %v393
    %v406 = vpack.c.b16 %v396, %v395
    %v407 = vpack.c.b16 %v398, %v397
    %v408 = vpack.c.b16 %v400, %v399
    %v409 = vpack.c.b16 %v401, %v401
    %vm417 = vcmask 982016
    %v419 = vsel %vm417, %v349, 0
    %vm421 = vcmask 1043456
    %v423 = vsel %vm421, %v409, 0
    %425 = vmatprep.subr.bf16.mxu0 0
    %426 = vmatpush1.bf16.msra.mxu0 %v402
    %427 = vmatprep.subr.bf16.mxu0 0
    %428 = vmatpush1.bf16.msra.mxu0 %v403
    %429 = vmatprep.subr.bf16.mxu0 0
    %430 = vmatpush1.bf16.msra.mxu0 %v404
    %431 = vmatprep.subr.bf16.mxu0 0
    %432 = vmatpush1.bf16.msra.mxu0 %v405
    %433 = vmatprep.subr.bf16.mxu0 0
    %434 = vmatpush1.bf16.msra.mxu0 %v406
    %435 = vmatprep.subr.bf16.mxu0 0
    %436 = vmatpush1.bf16.msra.mxu0 %v407
    %437 = vmatprep.subr.bf16.mxu0 0
    %438 = vmatpush1.bf16.msra.mxu0 %v408
    %439 = vmatprep.subr.bf16.mxu0 0
    %440 = vmatpush1.bf16.msra.mxu0 %v423
    %441 = vmatprep.subr.bf16.mxu0 0
    %442 = vmatpush1.bf16.msra.mxu0 0
    %443 = vmatprep.subr.bf16.mxu0 0
    %444 = vmatpush1.bf16.msra.mxu0 0
    %445 = vmatprep.subr.bf16.mxu0 0
    %446 = vmatpush1.bf16.msra.mxu0 0
    %447 = vmatprep.subr.bf16.mxu0 0
    %448 = vmatpush1.bf16.msra.mxu0 0
    %449 = vmatprep.subr.bf16.mxu0 0
    %450 = vmatpush1.bf16.msra.mxu0 0
    %451 = vmatprep.subr.bf16.mxu0 0
    %452 = vmatpush1.bf16.msra.mxu0 0
    %453 = vmatprep.subr.bf16.mxu0 0
    %454 = vmatpush1.bf16.msra.mxu0 0
    %455 = vmatprep.subr.bf16.mxu0 0
    %456 = vmatpush1.bf16.msra.mxu0 0
    %457 = vmatprep.mubr.bf16.mxu0 0
    %458 = vmatmul.mubr.bf16.gmra.mrb[0].mxu0 %v419
    %v459 = vpop.f32.mrb[0].mxu0
    %v460 = vadd.f32 %v370, %v459
    %v461 = vpop.f32.mrb[0].mxu0
    %v462 = vpop.f32.mrb[0].mxu0
    %v463 = vpop.f32.mrb[0].mxu0
    %464 = vdwg.mxu0
    %v465 = vmax.f32 %v460, 0.0
    %v466 = vpack.c.bf16 %v465, %v465
    %v467 = vld [vmem:[%s5] sm:$0xf]
    %v468 = vld [vmem:[%s5 + $0x4] sm:$0xf]
    %v469 = vld [vmem:[%s5 + $0x8] sm:$0xf]
    %v470 = vld [vmem:[%s5 + $0xc] sm:$0xf]
    %v471 = vld [vmem:[%s5 + $0x10] sm:$0xf]
    %v472 = vld [vmem:[%s5 + $0x14] sm:$0xf]
    %v473 = vld [vmem:[%s5 + $0x18] sm:$0xf]
    %v474 = vld [vmem:[%s5 + $0x1c] sm:$0xf]
    %v475 = vld [vmem:[%s5 + $0x20] sm:$0xf]
    %v476 = vld [vmem:[%s5 + $0x24] sm:$0xf]
    %v477 = vld [vmem:[%s5 + $0x28] sm:$0x3]
    %v478 = vld [vmem:[%s6] sm:$0x1]
    %v480 = vlaneseq
    %v481 = vshrl.u32 %v480, 7
    %v482 = vsub.s32 0, %v481
    %v483 = vrot.slane %v478, %v482
    %v496 = vunpack.c.l.b16 %v467
    %v497 = vunpack.c.l.b16 %v468
    %v498 = vunpack.c.l.b16 %v469
    %v499 = vunpack.c.l.b16 %v470
    %v500 = vunpack.c.l.b16 %v471
    %v501 = vunpack.c.l.b16 %v472
    %v502 = vunpack.c.l.b16 %v473
    %v503 = vunpack.c.l.b16 %v474
    %v504 = vunpack.c.l.b16 %v475
    %v505 = vunpack.c.l.b16 %v476
    %v506 = vunpack.c.l.b16 %v477
    %v507 = vpack.c.b16 %v497, %v496
    %v508 = vpack.c.b16 %v499, %v498
    %v509 = vpack.c.b16 %v501, %v500
    %v510 = vpack.c.b16 %v503, %v502
    %v511 = vpack.c.b16 %v505, %v504
    %v512 = vpack.c.b16 %v506, %v506
    %vm518 = vcmask 687104
    %v520 = vsel %vm518, %v466, 0
    %vm522 = vcmask 1041408
    %v524 = vsel %vm522, %v512, 0
    %526 = vmatprep.subr.bf16.mxu0 0
    %527 = vmatpush1.bf16.msra.mxu0 %v507
    %528 = vmatprep.subr.bf16.mxu0 0
    %529 = vmatpush1.bf16.msra.mxu0 %v508
    %530 = vmatprep.subr.bf16.mxu0 0
    %531 = vmatpush1.bf16.msra.mxu0 %v509
    %532 = vmatprep.subr.bf16.mxu0 0
    %533 = vmatpush1.bf16.msra.mxu0 %v510
    %534 = vmatprep.subr.bf16.mxu0 0
    %535 = vmatpush1.bf16.msra.mxu0 %v511
    %536 = vmatprep.subr.bf16.mxu0 0
    %537 = vmatpush1.bf16.msra.mxu0 %v524
    %538 = vmatprep.subr.bf16.mxu0 0
    %539 = vmatpush1.bf16.msra.mxu0 0
    %540 = vmatprep.subr.bf16.mxu0 0
    %541 = vmatpush1.bf16.msra.mxu0 0
    %542 = vmatprep.subr.bf16.mxu0 0
    %543 = vmatpush1.bf16.msra.mxu0 0
    %544 = vmatprep.subr.bf16.mxu0 0
    %545 = vmatpush1.bf16.msra.mxu0 0
    %546 = vmatprep.subr.bf16.mxu0 0
    %547 = vmatpush1.bf16.msra.mxu0 0
    %548 = vmatprep.subr.bf16.mxu0 0
    %549 = vmatpush1.bf16.msra.mxu0 0
    %550 = vmatprep.subr.bf16.mxu0 0
    %551 = vmatpush1.bf16.msra.mxu0 0
    %552 = vmatprep.subr.bf16.mxu0 0
    %553 = vmatpush1.bf16.msra.mxu0 0
    %554 = vmatprep.subr.bf16.mxu0 0
    %555 = vmatpush1.bf16.msra.mxu0 0
    %556 = vmatprep.subr.bf16.mxu0 0
    %557 = vmatpush1.bf16.msra.mxu0 0
    %558 = vmatprep.mubr.bf16.mxu0 0
    %559 = vmatmul.mubr.bf16.gmra.mrb[0].mxu0 %v520
    %v560 = vpop.f32.mrb[0].mxu0
    %v561 = vadd.f32 %v483, %v560
    %v562 = vpop.f32.mrb[0].mxu0
    %v563 = vpop.f32.mrb[0].mxu0
    %v564 = vpop.f32.mrb[0].mxu0
    %565 = vdwg.mxu0
    %vm566 = vcmask 74752
    %567 = vst.msk [vmem:[#allocation2] sm:$0x3] %vm566, %v561
    // Predicated region
    $region30: #{cnn_forward.5} parent=1 // pred_check
      _
    $region31: #{cnn_forward.5} parent=1 // pred_check_branch
      %569 = sbr.rel (0) target = $region33
    $region32: #{cnn_forward.5} parent=1 // pred_region
      %s571 = ssub.s32 32, 32
      %572 = vsyncadd [#allocation3], %s571
      %s574 = sshll.u32 [#allocation2], 4
      %s575 = int_to_ptr.vmem [resolvable:$true] %s574
      %577 = dma.vmem_to_hbm [thread:$0]  %s575, 32, %s7, [#allocation3]
    $region33: #{cnn_forward.5} parent=1 // pred_fallthru
      _
    // Predicated region
    $region34: #{cnn_forward.5} parent=1 // pred_check
      _
    $region35: #{cnn_forward.5} parent=1 // pred_check_branch
      %579 = sbr.rel (0) target = $region37
    $region36: #{cnn_forward.5} parent=1 // pred_region
      %580 = dma.done [#allocation3], 32
    $region37: #{cnn_forward.5} parent=1 // pred_fallthru
      _
    %581 = vsyncpa [#allocation3], 1

// kernel: cnn_forward.4
$region0: #{cnn_forward.4}
  #allocation0 [shape = 'u32[]', space=smem, size = 0x4, offset = 0x4, fixed_abs, tag = 'smem constant byte address 0x4 - core index']
  #allocation1 [shape = 'u32[144,128]{1,0:T(1,128)}', space=vmem, size = 0x12000, scoped, tag = 'internal scratch']
  %s0 = inlined_call_operand.vmem [shape: bf16[2,6,196], index: 0, kind: input, shape index: {}]
  %s1 = inlined_call_operand.vmem [shape: bf16[25,16,6], index: 1, kind: input, shape index: {}]
  %s2 = inlined_call_operand.vmem [shape: f32[16,1], index: 2, kind: input, shape index: {}]
  %s3 = inlined_call_operand.vmem [shape: bf16[4,136,25], index: 3, kind: input, shape index: {}]
  %s4 = inlined_call_operand.vmem [shape: bf16[2,16,25], index: 4, kind: output, shape index: {}]
  %s5 = sld [smem:[#allocation0]]
  $region49: #{cnn_forward.4} parent=0
    _
  %s7 = ssub.s32 1, %s5
  %s8 = scalar_select 0, %s7, %s5
  loop: start=0, step=1, limit=4
  $region2: #{cnn_forward.4} parent=0 // loop_pre_header
    _
  $region3: #{cnn_forward.4} parent=0 // loop_header
    %s10 = sphi 0, %s14
    %p11 = scmp.ge.s32.totalorder %s10, 4
    %s20 = sphi 0, %s22
    %s23 = sphi 0, %s20
    %s24 = sphi 0, %s23
    %s40 = sphi 0, %s24
    %s44 = sphi 0, %s44
    %s46 = sphi 0, %s44
    %s47 = sphi 0, %s46
    %s61 = sphi 0, %s47
    %s65 = sphi 0, %s65
    %s67 = sphi 0, %s65
    %s68 = sphi 0, %s67
    %s82 = sphi 0, %s68
    %s86 = sphi 0, %s86
    %s88 = sphi 0, %s86
    %s89 = sphi 0, %s88
    %s103 = sphi 0, %s89
    %s109 = sphi 0, %s111
    %s112 = sphi 0, %s109
    %s113 = sphi 0, %s112
    %s129 = sphi 0, %s113
  $region4: #{cnn_forward.4} parent=0 // loop_header_branch
    %13 = sbr.rel (%p11) target = $region8
  $region5: #{cnn_forward.4} parent=0 // loop_body
    %s15 = ssub.s32 %s10, 1
    %s16 = ssub.s32 %s10, 2
    %s17 = sadd.s32 %s10, 1
    %s18 = ssub.s32 %s10, %s17
    %p19 = scmp.eq.s32.totalorder %s18, 0
    %s21 = sadd.s32 %s20, 1
    %s22 = scalar_select %p19, %s20, %s21
    %p25 = pneg %p19
    %p26 = scmp.eq.s32.totalorder %s10, 1
    %p27 = por %p25, %p26
    %p28 = scmp.ne.s32.totalorder %s20, %s23
    %p29 = scmp.eq.s32.totalorder %s10, 0
    %p30 = por %p28, %p29
    %p31 = scmp.ne.s32.totalorder %s20, %s23
    %p32 = scmp.eq.s32.totalorder %s15, 1
    %p33 = por %p31, %p32
    %p34 = scmp.ne.s32.totalorder %s23, %s24
    %p35 = scmp.eq.s32.totalorder %s15, 0
    %p36 = por %p34, %p35
    %p37 = scmp.ne.s32.totalorder %s23, %s24
    %p38 = scmp.eq.s32.totalorder %s16, 1
    %p39 = por %p37, %p38
    %p41 = scmp.ne.s32.totalorder %s24, %s40
    %p42 = scmp.eq.s32.totalorder %s16, 0
    %p43 = por %p41, %p42
    %s45 = sadd.s32 %s44, 1
    %p48 = scmp.eq.s32.totalorder %s10, 1
    %p49 = scmp.ne.s32.totalorder %s44, %s46
    %p50 = scmp.eq.s32.totalorder %s10, 0
    %p51 = por %p49, %p50
    %p52 = scmp.ne.s32.totalorder %s44, %s46
    %p53 = scmp.eq.s32.totalorder %s15, 1
    %p54 = por %p52, %p53
    %p55 = scmp.ne.s32.totalorder %s46, %s47
    %p56 = scmp.eq.s32.totalorder %s15, 0
    %p57 = por %p55, %p56
    %p58 = scmp.ne.s32.totalorder %s46, %s47
    %p59 = scmp.eq.s32.totalorder %s16, 1
    %p60 = por %p58, %p59
    %p62 = scmp.ne.s32.totalorder %s47, %s61
    %p63 = scmp.eq.s32.totalorder %s16, 0
    %p64 = por %p62, %p63
    %s66 = sadd.s32 %s65, 1
    %p69 = scmp.eq.s32.totalorder %s10, 1
    %p70 = scmp.ne.s32.totalorder %s65, %s67
    %p71 = scmp.eq.s32.totalorder %s10, 0
    %p72 = por %p70, %p71
    %p73 = scmp.ne.s32.totalorder %s65, %s67
    %p74 = scmp.eq.s32.totalorder %s15, 1
    %p75 = por %p73, %p74
    %p76 = scmp.ne.s32.totalorder %s67, %s68
    %p77 = scmp.eq.s32.totalorder %s15, 0
    %p78 = por %p76, %p77
    %p79 = scmp.ne.s32.totalorder %s67, %s68
    %p80 = scmp.eq.s32.totalorder %s16, 1
    %p81 = por %p79, %p80
    %p83 = scmp.ne.s32.totalorder %s68, %s82
    %p84 = scmp.eq.s32.totalorder %s16, 0
    %p85 = por %p83, %p84
    %s87 = sadd.s32 %s86, 1
    %p90 = scmp.eq.s32.totalorder %s10, 1
    %p91 = scmp.ne.s32.totalorder %s86, %s88
    %p92 = scmp.eq.s32.totalorder %s10, 0
    %p93 = por %p91, %p92
    %p94 = scmp.ne.s32.totalorder %s86, %s88
    %p95 = scmp.eq.s32.totalorder %s15, 1
    %p96 = por %p94, %p95
    %p97 = scmp.ne.s32.totalorder %s88, %s89
    %p98 = scmp.eq.s32.totalorder %s15, 0
    %p99 = por %p97, %p98
    %p100 = scmp.ne.s32.totalorder %s88, %s89
    %p101 = scmp.eq.s32.totalorder %s16, 1
    %p102 = por %p100, %p101
    %p104 = scmp.ne.s32.totalorder %s89, %s103
    %p105 = scmp.eq.s32.totalorder %s16, 0
    %p106 = por %p104, %p105
    %s107 = ssub.s32 %s10, %s17
    %p108 = scmp.eq.s32.totalorder %s107, 0
    %s110 = sadd.s32 %s109, 1
    %s111 = scalar_select %p108, %s109, %s110
    %p114 = pneg %p108
    %p115 = scmp.eq.s32.totalorder %s10, 1
    %p116 = por %p114, %p115
    %p117 = scmp.ne.s32.totalorder %s109, %s112
    %p118 = scmp.eq.s32.totalorder %s10, 0
    %p119 = por %p117, %p118
    %p120 = scmp.ne.s32.totalorder %s109, %s112
    %p121 = scmp.eq.s32.totalorder %s15, 1
    %p122 = por %p120, %p121
    %p123 = scmp.ne.s32.totalorder %s112, %s113
    %p124 = scmp.eq.s32.totalorder %s15, 0
    %p125 = por %p123, %p124
    %p126 = scmp.ne.s32.totalorder %s112, %s113
    %p127 = scmp.eq.s32.totalorder %s16, 1
    %p128 = por %p126, %p127
    %p130 = scmp.ne.s32.totalorder %s113, %s129
    %p131 = scmp.eq.s32.totalorder %s16, 0
    %p132 = por %p130, %p131
    %p133 = scmp.le.s32.totalorder 1, %s10
    %p134 = scmp.lt.s32.totalorder %s10, 3
    %p135 = pnand %p133, %p134
    %p136 = pneg %p135
    // Predicated region
    $region9: #{cnn_forward.4} parent=5 // pred_check
      _
    $region10: #{cnn_forward.4} parent=5 // pred_check_branch
      %138 = sbr.rel (%p135) target = $region12
    $region11: #{cnn_forward.4} parent=5 // pred_region
      %s139 = ssub.s32 %s10, 1
      // Predicated region
      $region13: #{cnn_forward.4} parent=11 // pred_check
        %p140 = pneg %p57
      $region14: #{cnn_forward.4} parent=11 // pred_check_branch
        %142 = sbr.rel (%p140) target = $region16
      $region15: #{cnn_forward.4} parent=11 // pred_region
        _
      $region16: #{cnn_forward.4} parent=11 // pred_fallthru
        _
      // Predicated region
      $region17: #{cnn_forward.4} parent=11 // pred_check
        %p143 = pneg %p78
      $region18: #{cnn_forward.4} parent=11 // pred_check_branch
        %145 = sbr.rel (%p143) target = $region20
      $region19: #{cnn_forward.4} parent=11 // pred_region
        _
      $region20: #{cnn_forward.4} parent=11 // pred_fallthru
        _
      // Predicated region
      $region21: #{cnn_forward.4} parent=11 // pred_check
        %p146 = pneg %p99
      $region22: #{cnn_forward.4} parent=11 // pred_check_branch
        %148 = sbr.rel (%p146) target = $region24
      $region23: #{cnn_forward.4} parent=11 // pred_region
        _
      $region24: #{cnn_forward.4} parent=11 // pred_fallthru
        _
    $region12: #{cnn_forward.4} parent=5 // pred_fallthru
      _
    %p149 = scmp.lt.s32.totalorder %s10, 2
    // Predicated region
    $region25: #{cnn_forward.4} parent=5 // pred_check
      %p150 = pneg %p149
    $region26: #{cnn_forward.4} parent=5 // pred_check_branch
      %152 = sbr.rel (%p150) target = $region28
    $region27: #{cnn_forward.4} parent=5 // pred_region
      // Predicated region
      $region29: #{cnn_forward.4} parent=27 // pred_check
        %p153 = pneg %p30
      $region30: #{cnn_forward.4} parent=27 // pred_check_branch
        %155 = sbr.rel (%p153) target = $region32
      $region31: #{cnn_forward.4} parent=27 // pred_region
        %p156 = scmp.lt.s32.totalorder %s10, 1
        %s157 = scalar_select %p156, %s10, 1
        %s158 = smul.addr %s157, 2
        %s159 = smul.addr %s158, 4
        %s160 = scalar_lea.vmem %s0, %s159
      $region32: #{cnn_forward.4} parent=27 // pred_fallthru
        _
    $region28: #{cnn_forward.4} parent=5 // pred_fallthru
      _
    %p161 = scmp.le.s32.totalorder 1, %s10
    %p162 = scmp.lt.s32.totalorder %s10, 3
    %p163 = pnand %p161, %p162
    %p164 = pneg %p163
    // Predicated region
    $region33: #{cnn_forward.4} parent=5 // pred_check
      _
    $region34: #{cnn_forward.4} parent=5 // pred_check_branch
      %166 = sbr.rel (%p163) target = $region36
    $region35: #{cnn_forward.4} parent=5 // pred_region
      %s167 = ssub.s32 %s10, 1
      %p168 = scmp.lt.s32.totalorder %s15, 1
      %s169 = scalar_select %p168, %s15, 1
      %s170 = smul.addr %s169, 2
      %s171 = smul.addr %s170, 4
      %s172 = scalar_lea.vmem %s0, %s171
      %p173 = pneg %p36
      %p174 = pneg %p33
      %p175 = pneg %p57
      %p176 = pneg %p54
      %p177 = pneg %p78
      %p178 = pneg %p75
      %p179 = pneg %p99
      %p180 = pneg %p96
      %p181 = pneg %p125
      %p182 = pneg %p122
      %p183 = scmp.lt.s32.totalorder %s15, 1
      %s184 = scalar_select %p183, %s15, 1
      %s185 = smul.addr %s184, 2
      %s186 = smul.addr %s185, 4
      %s187 = scalar_lea.vmem %s4, %s186
      %p188 = scmp.lt.s32.totalorder %s15, 1
      %s189 = scalar_select %p188, %s15, 1
      %s190 = smul.addr %s189, 2
      %s191 = smul.addr %s190, 4
      %s192 = scalar_lea.vmem %s0, %s191
      %p193 = scmp.lt.s32.totalorder %s15, 1
      %s194 = scalar_select %p193, %s15, 1
      %s195 = smul.addr %s194, 2
      %s196 = smul.addr %s195, 4
      %s197 = scalar_lea.vmem %s4, %s196
      %v199 = vld [vmem:[%s192] sm:$0x77]
      %v200 = vld [vmem:[%s1] sm:$0xf]
      %v201 = vld [vmem:[%s1 + $0x4] sm:$0xf]
      %s202 = scalar_lea.vmem %s1, 8
      %v203 = vld [vmem:[%s202] sm:$0xf]
      %v204 = vld [vmem:[%s202 + $0x4] sm:$0xf]
      %v207 = vunpack.c.l.b16 %v203
      %v208 = vunpack.c.l.b16 %v204
      %v209 = vpack.c.b16 %v208, %v207
      %v211 = vunpack.c.l.b16 %v199
      %v212 = vunpack.c.h.b16 %v199
      %v213 = vpack.c.b16 %v211, %v211
      %v214 = vpack.c.b16 %v212, %v212
      %215 = vrot.lane.b32.xlu0 %v213, 127
      %v216 = vpop.permute.xlu0 %215
      %217 = vrot.lane.b32.xlu0 %v214, 127
      %v218 = vpop.permute.xlu0 %217
      %vm219 = vcmask 1039360
      %v220 = vsel %vm219, %v216, %v218
      %vm221 = vcmask 48128
      %v223 = vsel %vm221, %v209, 0
      %vm225 = vcmask 1042432
      %v227 = vsel %vm225, %v220, 0
      %v230 = vsel %vm225, %v218, 0
      %232 = vmatprep.subr.bf16.mxu0 %v230
      %233 = vmatpush1.bf16.msra.mxu0 %v227
      %234 = vmatprep.subr.bf16.mxu0 0
      %235 = vmatpush1.bf16.msra.mxu0 0
      %236 = vmatprep.subr.bf16.mxu0 0
      %237 = vmatpush1.bf16.msra.mxu0 0
      %238 = vmatprep.subr.bf16.mxu0 0
      %239 = vmatpush1.bf16.msra.mxu0 0
      %240 = vmatprep.subr.bf16.mxu0 0
      %241 = vmatpush1.bf16.msra.mxu0 0
      %242 = vmatprep.subr.bf16.mxu0 0
      %243 = vmatpush1.bf16.msra.mxu0 0
      %244 = vmatprep.subr.bf16.mxu0 0
      %245 = vmatpush1.bf16.msra.mxu0 0
      %246 = vmatprep.subr.bf16.mxu0 0
      %247 = vmatpush1.bf16.msra.mxu0 0
      %248 = vmatprep.subr.bf16.mxu0 0
      %249 = vmatpush1.bf16.msra.mxu0 0
      %250 = vmatprep.subr.bf16.mxu0 0
      %251 = vmatpush1.bf16.msra.mxu0 0
      %252 = vmatprep.subr.bf16.mxu0 0
      %253 = vmatpush1.bf16.msra.mxu0 0
      %254 = vmatprep.subr.bf16.mxu0 0
      %255 = vmatpush1.bf16.msra.mxu0 0
      %256 = vmatprep.subr.bf16.mxu0 0
      %257 = vmatpush1.bf16.msra.mxu0 0
      %258 = vmatprep.subr.bf16.mxu0 0
      %259 = vmatpush1.bf16.msra.mxu0 0
      %260 = vmatprep.subr.bf16.mxu0 0
      %261 = vmatpush1.bf16.msra.mxu0 0
      %262 = vmatprep.subr.bf16.mxu0 0
      %263 = vmatpush1.bf16.msra.mxu0 0
      %264 = vmatprep.mubr.bf16.mxu0 0
      %265 = vmatmul.mubr.bf16.gmra.mrb[0].mxu0 %v223
      %v266 = vpop.f32.mrb[0].mxu0
      %v267 = vadd.f32 0.0, %v266
      %v268 = vpop.f32.mrb[0].mxu0
      %v269 = vadd.f32 0.0, %v268
      %v270 = vpop.f32.mrb[0].mxu0
      %v271 = vadd.f32 0.0, %v270
      %v272 = vpop.f32.mrb[0].mxu0
      %v273 = vadd.f32 0.0, %v272
      %274 = vdwg.mxu0
      %v277 = vunpack.c.l.b16 %v200
      %v278 = vunpack.c.l.b16 %v201
      %v279 = vpack.c.b16 %v278, %v277
      %v281 = vsel %vm221, %v279, 0
      %v284 = vsel %vm225, %v213, 0
      %v287 = vsel %vm225, %v214, 0
      %289 = vmatprep.subr.bf16.mxu0 %v287
      %290 = vmatpush1.bf16.msra.mxu0 %v284
      %291 = vmatprep.subr.bf16.mxu0 0
      %292 = vmatpush1.bf16.msra.mxu0 0
      %293 = vmatprep.subr.bf16.mxu0 0
      %294 = vmatpush1.bf16.msra.mxu0 0
      %295 = vmatprep.subr.bf16.mxu0 0
      %296 = vmatpush1.bf16.msra.mxu0 0
      %297 = vmatprep.subr.bf16.mxu0 0
      %298 = vmatpush1.bf16.msra.mxu0 0
      %299 = vmatprep.subr.bf16.mxu0 0
      %300 = vmatpush1.bf16.msra.mxu0 0
      %301 = vmatprep.subr.bf16.mxu0 0
      %302 = vmatpush1.bf16.msra.mxu0 0
      %303 = vmatprep.subr.bf16.mxu0 0
      %304 = vmatpush1.bf16.msra.mxu0 0
      %305 = vmatprep.subr.bf16.mxu0 0
      %306 = vmatpush1.bf16.msra.mxu0 0
      %307 = vmatprep.subr.bf16.mxu0 0
      %308 = vmatpush1.bf16.msra.mxu0 0
      %309 = vmatprep.subr.bf16.mxu0 0
      %310 = vmatpush1.bf16.msra.mxu0 0
      %311 = vmatprep.subr.bf16.mxu0 0
      %312 = vmatpush1.bf16.msra.mxu0 0
      %313 = vmatprep.subr.bf16.mxu0 0
      %314 = vmatpush1.bf16.msra.mxu0 0
      %315 = vmatprep.subr.bf16.mxu0 0
      %316 = vmatpush1.bf16.msra.mxu0 0
      %317 = vmatprep.subr.bf16.mxu0 0
      %318 = vmatpush1.bf16.msra.mxu0 0
      %319 = vmatprep.subr.bf16.mxu0 0
      %320 = vmatpush1.bf16.msra.mxu0 0
      %321 = vmatprep.mubr.bf16.mxu0 0
      %322 = vmatmul.mubr.bf16.gmra.mrb[0].mxu0 %v281
      %v323 = vpop.f32.mrb[0].mxu0
      %v324 = vadd.f32 %v267, %v323
      %v325 = vpop.f32.mrb[0].mxu0
      %v326 = vadd.f32 %v269, %v325
      %v327 = vpop.f32.mrb[0].mxu0
      %v328 = vadd.f32 %v271, %v327
      %v329 = vpop.f32.mrb[0].mxu0
      %v330 = vadd.f32 %v273, %v329
      %331 = vdwg.mxu0
      %s332 = scalar_lea.vmem %s1, 16
      %v333 = vld [vmem:[%s332] sm:$0xf]
      %v334 = vld [vmem:[%s332 + $0x4] sm:$0xf]
      %v337 = vunpack.c.l.b16 %v333
      %v338 = vunpack.c.l.b16 %v334
      %v339 = vpack.c.b16 %v338, %v337
      %340 = vrot.lane.b32.xlu0 %v213, 126
      %v341 = vpop.permute.xlu0 %340
      %342 = vrot.lane.b32.xlu0 %v214, 126
      %v343 = vpop.permute.xlu0 %342
      %vm344 = vcmask 1031168
      %v345 = vsel %vm344, %v341, %v343
      %v347 = vsel %vm221, %v339, 0
      %v350 = vsel %vm225, %v345, 0
      %v353 = vsel %vm225, %v343, 0
      %355 = vmatprep.subr.bf16.mxu0 %v353
      %356 = vmatpush1.bf16.msra.mxu0 %v350
      %357 = vmatprep.subr.bf16.mxu0 0
      %358 = vmatpush1.bf16.msra.mxu0 0
      %359 = vmatprep.subr.bf16.mxu0 0
      %360 = vmatpush1.bf16.msra.mxu0 0
      %361 = vmatprep.subr.bf16.mxu0 0
      %362 = vmatpush1.bf16.msra.mxu0 0
      %363 = vmatprep.subr.bf16.mxu0 0
      %364 = vmatpush1.bf16.msra.mxu0 0
      %365 = vmatprep.subr.bf16.mxu0 0
      %366 = vmatpush1.bf16.msra.mxu0 0
      %367 = vmatprep.subr.bf16.mxu0 0
      %368 = vmatpush1.bf16.msra.mxu0 0
      %369 = vmatprep.subr.bf16.mxu0 0
      %370 = vmatpush1.bf16.msra.mxu0 0
      %371 = vmatprep.subr.bf16.mxu0 0
      %372 = vmatpush1.bf16.msra.mxu0 0
      %373 = vmatprep.subr.bf16.mxu0 0
      %374 = vmatpush1.bf16.msra.mxu0 0
      %375 = vmatprep.subr.bf16.mxu0 0
      %376 = vmatpush1.bf16.msra.mxu0 0
      %377 = vmatprep.subr.bf16.mxu0 0
      %378 = vmatpush1.bf16.msra.mxu0 0
      %379 = vmatprep.subr.bf16.mxu0 0
      %380 = vmatpush1.bf16.msra.mxu0 0
      %381 = vmatprep.subr.bf16.mxu0 0
      %382 = vmatpush1.bf16.msra.mxu0 0
      %383 = vmatprep.subr.bf16.mxu0 0
      %384 = vmatpush1.bf16.msra.mxu0 0
      %385 = vmatprep.subr.bf16.mxu0 0
      %386 = vmatpush1.bf16.msra.mxu0 0
      %387 = vmatprep.mubr.bf16.mxu0 0
      %388 = vmatmul.mubr.bf16.gmra.mrb[0].mxu0 %v347
      %v389 = vpop.f32.mrb[0].mxu0
      %v390 = vadd.f32 0.0, %v389
      %v391 = vpop.f32.mrb[0].mxu0
      %v392 = vadd.f32 0.0, %v391
      %v393 = vpop.f32.mrb[0].mxu0
      %v394 = vadd.f32 0.0, %v393
      %v395 = vpop.f32.mrb[0].mxu0
      %v396 = vadd.f32 0.0, %v395
      %397 = vdwg.mxu0
      %v398 = vadd.f32 %v324, %v390
      %v399 = vadd.f32 %v326, %v392
      %v400 = vadd.f32 %v328, %v394
      %v401 = vadd.f32 %v330, %v396
      %s402 = scalar_lea.vmem %s1, 24
      %v403 = vld [vmem:[%s402] sm:$0xf]
      %v404 = vld [vmem:[%s402 + $0x4] sm:$0xf]
      %v407 = vunpack.c.l.b16 %v403
      %v408 = vunpack.c.l.b16 %v404
      %v409 = vpack.c.b16 %v408, %v407
      %410 = vrot.lane.b32.xlu0 %v213, 125
      %v411 = vpop.permute.xlu0 %410
      %412 = vrot.lane.b32.xlu0 %v214, 125
      %v413 = vpop.permute.xlu0 %412
      %vm414 = vcmask 1022976
      %v415 = vsel %vm414, %v411, %v413
      %v417 = vsel %vm221, %v409, 0
      %v420 = vsel %vm225, %v415, 0
      %v423 = vsel %vm225, %v413, 0
      %425 = vmatprep.subr.bf16.mxu0 %v423
      %426 = vmatpush1.bf16.msra.mxu0 %v420
      %427 = vmatprep.subr.bf16.mxu0 0
      %428 = vmatpush1.bf16.msra.mxu0 0
      %429 = vmatprep.subr.bf16.mxu0 0
      %430 = vmatpush1.bf16.msra.mxu0 0
      %431 = vmatprep.subr.bf16.mxu0 0
      %432 = vmatpush1.bf16.msra.mxu0 0
      %433 = vmatprep.subr.bf16.mxu0 0
      %434 = vmatpush1.bf16.msra.mxu0 0
      %435 = vmatprep.subr.bf16.mxu0 0
      %436 = vmatpush1.bf16.msra.mxu0 0
      %437 = vmatprep.subr.bf16.mxu0 0
      %438 = vmatpush1.bf16.msra.mxu0 0
      %439 = vmatprep.subr.bf16.mxu0 0
      %440 = vmatpush1.bf16.msra.mxu0 0
      %441 = vmatprep.subr.bf16.mxu0 0
      %442 = vmatpush1.bf16.msra.mxu0 0
      %443 = vmatprep.subr.bf16.mxu0 0
      %444 = vmatpush1.bf16.msra.mxu0 0
      %445 = vmatprep.subr.bf16.mxu0 0
      %446 = vmatpush1.bf16.msra.mxu0 0
      %447 = vmatprep.subr.bf16.mxu0 0
      %448 = vmatpush1.bf16.msra.mxu0 0
      %449 = vmatprep.subr.bf16.mxu0 0
      %450 = vmatpush1.bf16.msra.mxu0 0
      %451 = vmatprep.subr.bf16.mxu0 0
      %452 = vmatpush1.bf16.msra.mxu0 0
      %453 = vmatprep.subr.bf16.mxu0 0
      %454 = vmatpush1.bf16.msra.mxu0 0
      %455 = vmatprep.subr.bf16.mxu0 0
      %456 = vmatpush1.bf16.msra.mxu0 0
      %457 = vmatprep.mubr.bf16.mxu0 0
      %458 = vmatmul.mubr.bf16.gmra.mrb[0].mxu0 %v417
      %v459 = vpop.f32.mrb[0].mxu0
      %v460 = vadd.f32 0.0, %v459
      %v461 = vpop.f32.mrb[0].mxu0
      %v462 = vadd.f32 0.0, %v461
      %v463 = vpop.f32.mrb[0].mxu0
      %v464 = vadd.f32 0.0, %v463
      %v465 = vpop.f32.mrb[0].mxu0
      %v466 = vadd.f32 0.0, %v465
      %467 = vdwg.mxu0
      %v468 = vadd.f32 %v398, %v460
      %v469 = vadd.f32 %v399, %v462
      %v470 = vadd.f32 %v400, %v464
      %v471 = vadd.f32 %v401, %v466
      %s472 = scalar_lea.vmem %s1, 32
      %v473 = vld [vmem:[%s472] sm:$0xf]
      %v474 = vld [vmem:[%s472 + $0x4] sm:$0xf]
      %v477 = vunpack.c.l.b16 %v473
      %v478 = vunpack.c.l.b16 %v474
      %v479 = vpack.c.b16 %v478, %v477
      %480 = vrot.lane.b32.xlu0 %v213, 124
      %v481 = vpop.permute.xlu0 %480
      %482 = vrot.lane.b32.xlu0 %v214, 124
      %v483 = vpop.permute.xlu0 %482
      %vm484 = vcmask 1014784
      %v485 = vsel %vm484, %v481, %v483
      %v487 = vsel %vm221, %v479, 0
      %v490 = vsel %vm225, %v485, 0
      %v493 = vsel %vm225, %v483, 0
      %495 = vmatprep.subr.bf16.mxu0 %v493
      %496 = vmatpush1.bf16.msra.mxu0 %v490
      %497 = vmatprep.subr.bf16.mxu0 0
      %498 = vmatpush1.bf16.msra.mxu0 0
      %499 = vmatprep.subr.bf16.mxu0 0
      %500 = vmatpush1.bf16.msra.mxu0 0
      %501 = vmatprep.subr.bf16.mxu0 0
      %502 = vmatpush1.bf16.msra.mxu0 0
      %503 = vmatprep.subr.bf16.mxu0 0
      %504 = vmatpush1.bf16.msra.mxu0 0
      %505 = vmatprep.subr.bf16.mxu0 0
      %506 = vmatpush1.bf16.msra.mxu0 0
      %507 = vmatprep.subr.bf16.mxu0 0
      %508 = vmatpush1.bf16.msra.mxu0 0
      %509 = vmatprep.subr.bf16.mxu0 0
      %510 = vmatpush1.bf16.msra.mxu0 0
      %511 = vmatprep.subr.bf16.mxu0 0
      %512 = vmatpush1.bf16.msra.mxu0 0
      %513 = vmatprep.subr.bf16.mxu0 0
      %514 = vmatpush1.bf16.msra.mxu0 0
      %515 = vmatprep.subr.bf16.mxu0 0
      %516 = vmatpush1.bf16.msra.mxu0 0
      %517 = vmatprep.subr.bf16.mxu0 0
      %518 = vmatpush1.bf16.msra.mxu0 0
      %519 = vmatprep.subr.bf16.mxu0 0
      %520 = vmatpush1.bf16.msra.mxu0 0
      %521 = vmatprep.subr.bf16.mxu0 0
      %522 = vmatpush1.bf16.msra.mxu0 0
      %523 = vmatprep.subr.bf16.mxu0 0
      %524 = vmatpush1.bf16.msra.mxu0 0
      %525 = vmatprep.subr.bf16.mxu0 0
      %526 = vmatpush1.bf16.msra.mxu0 0
      %527 = vmatprep.mubr.bf16.mxu0 0
      %528 = vmatmul.mubr.bf16.gmra.mrb[0].mxu0 %v487
      %v529 = vpop.f32.mrb[0].mxu0
      %v530 = vadd.f32 0.0, %v529
      %v531 = vpop.f32.mrb[0].mxu0
      %v532 = vadd.f32 0.0, %v531
      %v533 = vpop.f32.mrb[0].mxu0
      %v534 = vadd.f32 0.0, %v533
      %v535 = vpop.f32.mrb[0].mxu0
      %v536 = vadd.f32 0.0, %v535
      %537 = vdwg.mxu0
      %v538 = vadd.f32 %v468, %v530
      %v539 = vadd.f32 %v469, %v532
      %v540 = vadd.f32 %v470, %v534
      %v541 = vadd.f32 %v471, %v536
      %s542 = scalar_lea.vmem %s1, 40
      %v543 = vld [vmem:[%s542] sm:$0xf]
      %v544 = vld [vmem:[%s542 + $0x4] sm:$0xf]
      %v547 = vunpack.c.l.b16 %v543
      %v548 = vunpack.c.l.b16 %v544
      %v549 = vpack.c.b16 %v548, %v547
      %550 = vrot.lane.b32.xlu0 %v213, 114
      %v551 = vpop.permute.xlu0 %550
      %552 = vrot.lane.b32.xlu0 %v214, 114
      %v553 = vpop.permute.xlu0 %552
      %vm554 = vcmask 932864
      %v555 = vsel %vm554, %v551, %v553
      %v557 = vsel %vm221, %v549, 0
      %v560 = vsel %vm225, %v555, 0
      %v563 = vsel %vm225, %v553, 0
      %565 = vmatprep.subr.bf16.mxu0 %v563
      %566 = vmatpush1.bf16.msra.mxu0 %v560
      %567 = vmatprep.subr.bf16.mxu0 0
      %568 = vmatpush1.bf16.msra.mxu0 0
      %569 = vmatprep.subr.bf16.mxu0 0
      %570 = vmatpush1.bf16.msra.mxu0 0
      %571 = vmatprep.subr.bf16.mxu0 0
      %572 = vmatpush1.bf16.msra.mxu0 0
      %573 = vmatprep.subr.bf16.mxu0 0
      %574 = vmatpush1.bf16.msra.mxu0 0
      %575 = vmatprep.subr.bf16.mxu0 0
      %576 = vmatpush1.bf16.msra.mxu0 0
      %577 = vmatprep.subr.bf16.mxu0 0
      %578 = vmatpush1.bf16.msra.mxu0 0
      %579 = vmatprep.subr.bf16.mxu0 0
      %580 = vmatpush1.bf16.msra.mxu0 0
      %581 = vmatprep.subr.bf16.mxu0 0
      %582 = vmatpush1.bf16.msra.mxu0 0
      %583 = vmatprep.subr.bf16.mxu0 0
      %584 = vmatpush1.bf16.msra.mxu0 0
      %585 = vmatprep.subr.bf16.mxu0 0
      %586 = vmatpush1.bf16.msra.mxu0 0
      %587 = vmatprep.subr.bf16.mxu0 0
      %588 = vmatpush1.bf16.msra.mxu0 0
      %589 = vmatprep.subr.bf16.mxu0 0
      %590 = vmatpush1.bf16.msra.mxu0 0
      %591 = vmatprep.subr.bf16.mxu0 0
      %592 = vmatpush1.bf16.msra.mxu0 0
      %593 = vmatprep.subr.bf16.mxu0 0
      %594 = vmatpush1.bf16.msra.mxu0 0
      %595 = vmatprep.subr.bf16.mxu0 0
      %596 = vmatpush1.bf16.msra.mxu0 0
      %597 = vmatprep.mubr.bf16.mxu0 0
      %598 = vmatmul.mubr.bf16.gmra.mrb[0].mxu0 %v557
      %v599 = vpop.f32.mrb[0].mxu0
      %v600 = vadd.f32 0.0, %v599
      %v601 = vpop.f32.mrb[0].mxu0
      %v602 = vadd.f32 0.0, %v601
      %v603 = vpop.f32.mrb[0].mxu0
      %v604 = vadd.f32 0.0, %v603
      %v605 = vpop.f32.mrb[0].mxu0
      %v606 = vadd.f32 0.0, %v605
      %607 = vdwg.mxu0
      %v608 = vadd.f32 %v538, %v600
      %v609 = vadd.f32 %v539, %v602
      %v610 = vadd.f32 %v540, %v604
      %v611 = vadd.f32 %v541, %v606
      %s612 = scalar_lea.vmem %s1, 48
      %v613 = vld [vmem:[%s612] sm:$0xf]
      %v614 = vld [vmem:[%s612 + $0x4] sm:$0xf]
      %v617 = vunpack.c.l.b16 %v613
      %v618 = vunpack.c.l.b16 %v614
      %v619 = vpack.c.b16 %v618, %v617
      %620 = vrot.lane.b32.xlu0 %v213, 113
      %v621 = vpop.permute.xlu0 %620
      %622 = vrot.lane.b32.xlu0 %v214, 113
      %v623 = vpop.permute.xlu0 %622
      %vm624 = vcmask 924672
      %v625 = vsel %vm624, %v621, %v623
      %v627 = vsel %vm221, %v619, 0
      %v630 = vsel %vm225, %v625, 0
      %v633 = vsel %vm225, %v623, 0
      %635 = vmatprep.subr.bf16.mxu0 %v633
      %636 = vmatpush1.bf16.msra.mxu0 %v630
      %637 = vmatprep.subr.bf16.mxu0 0
      %638 = vmatpush1.bf16.msra.mxu0 0
      %639 = vmatprep.subr.bf16.mxu0 0
      %640 = vmatpush1.bf16.msra.mxu0 0
      %641 = vmatprep.subr.bf16.mxu0 0
      %642 = vmatpush1.bf16.msra.mxu0 0
      %643 = vmatprep.subr.bf16.mxu0 0
      %644 = vmatpush1.bf16.msra.mxu0 0
      %645 = vmatprep.subr.bf16.mxu0 0
      %646 = vmatpush1.bf16.msra.mxu0 0
      %647 = vmatprep.subr.bf16.mxu0 0
      %648 = vmatpush1.bf16.msra.mxu0 0
      %649 = vmatprep.subr.bf16.mxu0 0
      %650 = vmatpush1.bf16.msra.mxu0 0
      %651 = vmatprep.subr.bf16.mxu0 0
      %652 = vmatpush1.bf16.msra.mxu0 0
      %653 = vmatprep.subr.bf16.mxu0 0
      %654 = vmatpush1.bf16.msra.mxu0 0
      %655 = vmatprep.subr.bf16.mxu0 0
      %656 = vmatpush1.bf16.msra.mxu0 0
      %657 = vmatprep.subr.bf16.mxu0 0
      %658 = vmatpush1.bf16.msra.mxu0 0
      %659 = vmatprep.subr.bf16.mxu0 0
      %660 = vmatpush1.bf16.msra.mxu0 0
      %661 = vmatprep.subr.bf16.mxu0 0
      %662 = vmatpush1.bf16.msra.mxu0 0
      %663 = vmatprep.subr.bf16.mxu0 0
      %664 = vmatpush1.bf16.msra.mxu0 0
      %665 = vmatprep.subr.bf16.mxu0 0
      %666 = vmatpush1.bf16.msra.mxu0 0
      %667 = vmatprep.mubr.bf16.mxu0 0
      %668 = vmatmul.mubr.bf16.gmra.mrb[0].mxu0 %v627
      %v669 = vpop.f32.mrb[0].mxu0
      %v670 = vadd.f32 0.0, %v669
      %v671 = vpop.f32.mrb[0].mxu0
      %v672 = vadd.f32 0.0, %v671
      %v673 = vpop.f32.mrb[0].mxu0
      %v674 = vadd.f32 0.0, %v673
      %v675 = vpop.f32.mrb[0].mxu0
      %v676 = vadd.f32 0.0, %v675
      %677 = vdwg.mxu0
      %v678 = vadd.f32 %v608, %v670
      %v679 = vadd.f32 %v609, %v672
      %v680 = vadd.f32 %v610, %v674
      %v681 = vadd.f32 %v611, %v676
      %s682 = scalar_lea.vmem %s1, 56
      %v683 = vld [vmem:[%s682] sm:$0xf]
      %v684 = vld [vmem:[%s682 + $0x4] sm:$0xf]
      %v687 = vunpack.c.l.b16 %v683
      %v688 = vunpack.c.l.b16 %v684
      %v689 = vpack.c.b16 %v688, %v687
      %690 = vrot.lane.b32.xlu0 %v213, 112
      %v691 = vpop.permute.xlu0 %690
      %692 = vrot.lane.b32.xlu0 %v214, 112
      %v693 = vpop.permute.xlu0 %692
      %vm694 = vcmask 916480
      %v695 = vsel %vm694, %v691, %v693
      %v697 = vsel %vm221, %v689, 0
      %v700 = vsel %vm225, %v695, 0
      %v703 = vsel %vm225, %v693, 0
      %705 = vmatprep.subr.bf16.mxu0 %v703
      %706 = vmatpush1.bf16.msra.mxu0 %v700
      %707 = vmatprep.subr.bf16.mxu0 0
      %708 = vmatpush1.bf16.msra.mxu0 0
      %709 = vmatprep.subr.bf16.mxu0 0
      %710 = vmatpush1.bf16.msra.mxu0 0
      %711 = vmatprep.subr.bf16.mxu0 0
      %712 = vmatpush1.bf16.msra.mxu0 0
      %713 = vmatprep.subr.bf16.mxu0 0
      %714 = vmatpush1.bf16.msra.mxu0 0
      %715 = vmatprep.subr.bf16.mxu0 0
      %716 = vmatpush1.bf16.msra.mxu0 0
      %717 = vmatprep.subr.bf16.mxu0 0
      %718 = vmatpush1.bf16.msra.mxu0 0
      %719 = vmatprep.subr.bf16.mxu0 0
      %720 = vmatpush1.bf16.msra.mxu0 0
      %721 = vmatprep.subr.bf16.mxu0 0
      %722 = vmatpush1.bf16.msra.mxu0 0
      %723 = vmatprep.subr.bf16.mxu0 0
      %724 = vmatpush1.bf16.msra.mxu0 0
      %725 = vmatprep.subr.bf16.mxu0 0
      %726 = vmatpush1.bf16.msra.mxu0 0
      %727 = vmatprep.subr.bf16.mxu0 0
      %728 = vmatpush1.bf16.msra.mxu0 0
      %729 = vmatprep.subr.bf16.mxu0 0
      %730 = vmatpush1.bf16.msra.mxu0 0
      %731 = vmatprep.subr.bf16.mxu0 0
      %732 = vmatpush1.bf16.msra.mxu0 0
      %733 = vmatprep.subr.bf16.mxu0 0
      %734 = vmatpush1.bf16.msra.mxu0 0
      %735 = vmatprep.subr.bf16.mxu0 0
      %736 = vmatpush1.bf16.msra.mxu0 0
      %737 = vmatprep.mubr.bf16.mxu0 0
      %738 = vmatmul.mubr.bf16.gmra.mrb[0].mxu0 %v697
      %v739 = vpop.f32.mrb[0].mxu0
      %v740 = vadd.f32 0.0, %v739
      %v741 = vpop.f32.mrb[0].mxu0
      %v742 = vadd.f32 0.0, %v741
      %v743 = vpop.f32.mrb[0].mxu0
      %v744 = vadd.f32 0.0, %v743
      %v745 = vpop.f32.mrb[0].mxu0
      %v746 = vadd.f32 0.0, %v745
      %747 = vdwg.mxu0
      %v748 = vadd.f32 %v678, %v740
      %v749 = vadd.f32 %v679, %v742
      %v750 = vadd.f32 %v680, %v744
      %v751 = vadd.f32 %v681, %v746
      %s752 = scalar_lea.vmem %s1, 64
      %v753 = vld [vmem:[%s752] sm:$0xf]
      %v754 = vld [vmem:[%s752 + $0x4] sm:$0xf]
      %v757 = vunpack.c.l.b16 %v753
      %v758 = vunpack.c.l.b16 %v754
      %v759 = vpack.c.b16 %v758, %v757
      %760 = vrot.lane.b32.xlu0 %v213, 111
      %v761 = vpop.permute.xlu0 %760
      %762 = vrot.lane.b32.xlu0 %v214, 111
      %v763 = vpop.permute.xlu0 %762
      %vm764 = vcmask 908288
      %v765 = vsel %vm764, %v761, %v763
      %v767 = vsel %vm221, %v759, 0
      %v770 = vsel %vm225, %v765, 0
      %v773 = vsel %vm225, %v763, 0
      %775 = vmatprep.subr.bf16.mxu0 %v773
      %776 = vmatpush1.bf16.msra.mxu0 %v770
      %777 = vmatprep.subr.bf16.mxu0 0
      %778 = vmatpush1.bf16.msra.mxu0 0
      %779 = vmatprep.subr.bf16.mxu0 0
      %780 = vmatpush1.bf16.msra.mxu0 0
      %781 = vmatprep.subr.bf16.mxu0 0
      %782 = vmatpush1.bf16.msra.mxu0 0
      %783 = vmatprep.subr.bf16.mxu0 0
      %784 = vmatpush1.bf16.msra.mxu0 0
      %785 = vmatprep.subr.bf16.mxu0 0
      %786 = vmatpush1.bf16.msra.mxu0 0
      %787 = vmatprep.subr.bf16.mxu0 0
      %788 = vmatpush1.bf16.msra.mxu0 0
      %789 = vmatprep.subr.bf16.mxu0 0
      %790 = vmatpush1.bf16.msra.mxu0 0
      %791 = vmatprep.subr.bf16.mxu0 0
      %792 = vmatpush1.bf16.msra.mxu0 0
      %793 = vmatprep.subr.bf16.mxu0 0
      %794 = vmatpush1.bf16.msra.mxu0 0
      %795 = vmatprep.subr.bf16.mxu0 0
      %796 = vmatpush1.bf16.msra.mxu0 0
      %797 = vmatprep.subr.bf16.mxu0 0
      %798 = vmatpush1.bf16.msra.mxu0 0
      %799 = vmatprep.subr.bf16.mxu0 0
      %800 = vmatpush1.bf16.msra.mxu0 0
      %801 = vmatprep.subr.bf16.mxu0 0
      %802 = vmatpush1.bf16.msra.mxu0 0
      %803 = vmatprep.subr.bf16.mxu0 0
      %804 = vmatpush1.bf16.msra.mxu0 0
      %805 = vmatprep.subr.bf16.mxu0 0
      %806 = vmatpush1.bf16.msra.mxu0 0
      %807 = vmatprep.mubr.bf16.mxu0 0
      %808 = vmatmul.mubr.bf16.gmra.mrb[0].mxu0 %v767
      %v809 = vpop.f32.mrb[0].mxu0
      %v810 = vadd.f32 0.0, %v809
      %v811 = vpop.f32.mrb[0].mxu0
      %v812 = vadd.f32 0.0, %v811
      %v813 = vpop.f32.mrb[0].mxu0
      %v814 = vadd.f32 0.0, %v813
      %v815 = vpop.f32.mrb[0].mxu0
      %v816 = vadd.f32 0.0, %v815
      %817 = vdwg.mxu0
      %v818 = vadd.f32 %v748, %v810
      %v819 = vadd.f32 %v749, %v812
      %v820 = vadd.f32 %v750, %v814
      %v821 = vadd.f32 %v751, %v816
      %s822 = scalar_lea.vmem %s1, 72
      %v823 = vld [vmem:[%s822] sm:$0xf]
      %v824 = vld [vmem:[%s822 + $0x4] sm:$0xf]
      %v827 = vunpack.c.l.b16 %v823
      %v828 = vunpack.c.l.b16 %v824
      %v829 = vpack.c.b16 %v828, %v827
      %830 = vrot.lane.b32.xlu0 %v213, 110
      %v831 = vpop.permute.xlu0 %830
      %832 = vrot.lane.b32.xlu0 %v214, 110
      %v833 = vpop.permute.xlu0 %832
      %vm834 = vcmask 900096
      %v835 = vsel %vm834, %v831, %v833
      %v837 = vsel %vm221, %v829, 0
      %v840 = vsel %vm225, %v835, 0
      %v843 = vsel %vm225, %v833, 0
      %845 = vmatprep.subr.bf16.mxu0 %v843
      %846 = vmatpush1.bf16.msra.mxu0 %v840
      %847 = vmatprep.subr.bf16.mxu0 0
      %848 = vmatpush1.bf16.msra.mxu0 0
      %849 = vmatprep.subr.bf16.mxu0 0
      %850 = vmatpush1.bf16.msra.mxu0 0
      %851 = vmatprep.subr.bf16.mxu0 0
      %852 = vmatpush1.bf16.msra.mxu0 0
      %853 = vmatprep.subr.bf16.mxu0 0
      %854 = vmatpush1.bf16.msra.mxu0 0
      %855 = vmatprep.subr.bf16.mxu0 0
      %856 = vmatpush1.bf16.msra.mxu0 0
      %857 = vmatprep.subr.bf16.mxu0 0
      %858 = vmatpush1.bf16.msra.mxu0 0
      %859 = vmatprep.subr.bf16.mxu0 0
      %860 = vmatpush1.bf16.msra.mxu0 0
      %861 = vmatprep.subr.bf16.mxu0 0
      %862 = vmatpush1.bf16.msra.mxu0 0
      %863 = vmatprep.subr.bf16.mxu0 0
      %864 = vmatpush1.bf16.msra.mxu0 0
      %865 = vmatprep.subr.bf16.mxu0 0
      %866 = vmatpush1.bf16.msra.mxu0 0
      %867 = vmatprep.subr.bf16.mxu0 0
      %868 = vmatpush1.bf16.msra.mxu0 0
      %869 = vmatprep.subr.bf16.mxu0 0
      %870 = vmatpush1.bf16.msra.mxu0 0
      %871 = vmatprep.subr.bf16.mxu0 0
      %872 = vmatpush1.bf16.msra.mxu0 0
      %873 = vmatprep.subr.bf16.mxu0 0
      %874 = vmatpush1.bf16.msra.mxu0 0
      %875 = vmatprep.subr.bf16.mxu0 0
      %876 = vmatpush1.bf16.msra.mxu0 0
      %877 = vmatprep.mubr.bf16.mxu0 0
      %878 = vmatmul.mubr.bf16.gmra.mrb[0].mxu0 %v837
      %v879 = vpop.f32.mrb[0].mxu0
      %v880 = vadd.f32 0.0, %v879
      %v881 = vpop.f32.mrb[0].mxu0
      %v882 = vadd.f32 0.0, %v881
      %v883 = vpop.f32.mrb[0].mxu0
      %v884 = vadd.f32 0.0, %v883
      %v885 = vpop.f32.mrb[0].mxu0
      %v886 = vadd.f32 0.0, %v885
      %887 = vdwg.mxu0
      %v888 = vadd.f32 %v818, %v880
      %v889 = vadd.f32 %v819, %v882
      %v890 = vadd.f32 %v820, %v884
      %v891 = vadd.f32 %v821, %v886
      %s892 = scalar_lea.vmem %s1, 80
      %v893 = vld [vmem:[%s892] sm:$0xf]
      %v894 = vld [vmem:[%s892 + $0x4] sm:$0xf]
      %v897 = vunpack.c.l.b16 %v893
      %v898 = vunpack.c.l.b16 %v894
      %v899 = vpack.c.b16 %v898, %v897
      %900 = vrot.lane.b32.xlu0 %v213, 100
      %v901 = vpop.permute.xlu0 %900
      %902 = vrot.lane.b32.xlu0 %v214, 100
      %v903 = vpop.permute.xlu0 %902
      %vm904 = vcmask 818176
      %v905 = vsel %vm904, %v901, %v903
      %v907 = vsel %vm221, %v899, 0
      %v910 = vsel %vm225, %v905, 0
      %v913 = vsel %vm225, %v903, 0
      %915 = vmatprep.subr.bf16.mxu0 %v913
      %916 = vmatpush1.bf16.msra.mxu0 %v910
      %917 = vmatprep.subr.bf16.mxu0 0
      %918 = vmatpush1.bf16.msra.mxu0 0
      %919 = vmatprep.subr.bf16.mxu0 0
      %920 = vmatpush1.bf16.msra.mxu0 0
      %921 = vmatprep.subr.bf16.mxu0 0
      %922 = vmatpush1.bf16.msra.mxu0 0
      %923 = vmatprep.subr.bf16.mxu0 0
      %924 = vmatpush1.bf16.msra.mxu0 0
      %925 = vmatprep.subr.bf16.mxu0 0
      %926 = vmatpush1.bf16.msra.mxu0 0
      %927 = vmatprep.subr.bf16.mxu0 0
      %928 = vmatpush1.bf16.msra.mxu0 0
      %929 = vmatprep.subr.bf16.mxu0 0
      %930 = vmatpush1.bf16.msra.mxu0 0
      %931 = vmatprep.subr.bf16.mxu0 0
      %932 = vmatpush1.bf16.msra.mxu0 0
      %933 = vmatprep.subr.bf16.mxu0 0
      %934 = vmatpush1.bf16.msra.mxu0 0
      %935 = vmatprep.subr.bf16.mxu0 0
      %936 = vmatpush1.bf16.msra.mxu0 0
      %937 = vmatprep.subr.bf16.mxu0 0
      %938 = vmatpush1.bf16.msra.mxu0 0
      %939 = vmatprep.subr.bf16.mxu0 0
      %940 = vmatpush1.bf16.msra.mxu0 0
      %941 = vmatprep.subr.bf16.mxu0 0
      %942 = vmatpush1.bf16.msra.mxu0 0
      %943 = vmatprep.subr.bf16.mxu0 0
      %944 = vmatpush1.bf16.msra.mxu0 0
      %945 = vmatprep.subr.bf16.mxu0 0
      %946 = vmatpush1.bf16.msra.mxu0 0
      %947 = vmatprep.mubr.bf16.mxu0 0
      %948 = vmatmul.mubr.bf16.gmra.mrb[0].mxu0 %v907
      %v949 = vpop.f32.mrb[0].mxu0
      %v950 = vadd.f32 0.0, %v949
      %v951 = vpop.f32.mrb[0].mxu0
      %v952 = vadd.f32 0.0, %v951
      %v953 = vpop.f32.mrb[0].mxu0
      %v954 = vadd.f32 0.0, %v953
      %v955 = vpop.f32.mrb[0].mxu0
      %v956 = vadd.f32 0.0, %v955
      %957 = vdwg.mxu0
      %v958 = vadd.f32 %v888, %v950
      %v959 = vadd.f32 %v889, %v952
      %v960 = vadd.f32 %v890, %v954
      %v961 = vadd.f32 %v891, %v956
      %s962 = scalar_lea.vmem %s1, 88
      %v963 = vld [vmem:[%s962] sm:$0xf]
      %v964 = vld [vmem:[%s962 + $0x4] sm:$0xf]
      %v967 = vunpack.c.l.b16 %v963
      %v968 = vunpack.c.l.b16 %v964
      %v969 = vpack.c.b16 %v968, %v967
      %970 = vrot.lane.b32.xlu0 %v213, 99
      %v971 = vpop.permute.xlu0 %970
      %972 = vrot.lane.b32.xlu0 %v214, 99
      %v973 = vpop.permute.xlu0 %972
      %vm974 = vcmask 809984
      %v975 = vsel %vm974, %v971, %v973
      %v977 = vsel %vm221, %v969, 0
      %v980 = vsel %vm225, %v975, 0
      %v983 = vsel %vm225, %v973, 0
      %985 = vmatprep.subr.bf16.mxu0 %v983
      %986 = vmatpush1.bf16.msra.mxu0 %v980
      %987 = vmatprep.subr.bf16.mxu0 0
      %988 = vmatpush1.bf16.msra.mxu0 0
      %989 = vmatprep.subr.bf16.mxu0 0
      %990 = vmatpush1.bf16.msra.mxu0 0
      %991 = vmatprep.subr.bf16.mxu0 0
      %992 = vmatpush1.bf16.msra.mxu0 0
      %993 = vmatprep.subr.bf16.mxu0 0
      %994 = vmatpush1.bf16.msra.mxu0 0
      %995 = vmatprep.subr.bf16.mxu0 0
      %996 = vmatpush1.bf16.msra.mxu0 0
      %997 = vmatprep.subr.bf16.mxu0 0
      %998 = vmatpush1.bf16.msra.mxu0 0
      %999 = vmatprep.subr.bf16.mxu0 0
      %1000 = vmatpush1.bf16.msra.mxu0 0
      %1001 = vmatprep.subr.bf16.mxu0 0
      %1002 = vmatpush1.bf16.msra.mxu0 0
      %1003 = vmatprep.subr.bf16.mxu0 0
      %1004 = vmatpush1.bf16.msra.mxu0 0
      %1005 = vmatprep.subr.bf16.mxu0 0
      %1006 = vmatpush1.bf16.msra.mxu0 0
      %1007 = vmatprep.subr.bf16.mxu0 0
      %1008 = vmatpush1.bf16.msra.mxu0 0
      %1009 = vmatprep.subr.bf16.mxu0 0
      %1010 = vmatpush1.bf16.msra.mxu0 0
      %1011 = vmatprep.subr.bf16.mxu0 0
      %1012 = vmatpush1.bf16.msra.mxu0 0
      %1013 = vmatprep.subr.bf16.mxu0 0
      %1014 = vmatpush1.bf16.msra.mxu0 0
      %1015 = vmatprep.subr.bf16.mxu0 0
      %1016 = vmatpush1.bf16.msra.mxu0 0
      %1017 = vmatprep.mubr.bf16.mxu0 0
      %1018 = vmatmul.mubr.bf16.gmra.mrb[0].mxu0 %v977
      %v1019 = vpop.f32.mrb[0].mxu0
      %v1020 = vadd.f32 0.0, %v1019
      %v1021 = vpop.f32.mrb[0].mxu0
      %v1022 = vadd.f32 0.0, %v1021
      %v1023 = vpop.f32.mrb[0].mxu0
      %v1024 = vadd.f32 0.0, %v1023
      %v1025 = vpop.f32.mrb[0].mxu0
      %v1026 = vadd.f32 0.0, %v1025
      %1027 = vdwg.mxu0
      %v1028 = vadd.f32 %v958, %v1020
      %v1029 = vadd.f32 %v959, %v1022
      %v1030 = vadd.f32 %v960, %v1024
      %v1031 = vadd.f32 %v961, %v1026
      %s1032 = scalar_lea.vmem %s1, 96
      %v1033 = vld [vmem:[%s1032] sm:$0xf]
      %v1034 = vld [vmem:[%s1032 + $0x4] sm:$0xf]
      %v1037 = vunpack.c.l.b16 %v1033
      %v1038 = vunpack.c.l.b16 %v1034
      %v1039 = vpack.c.b16 %v1038, %v1037
      %1040 = vrot.lane.b32.xlu0 %v213, 98
      %v1041 = vpop.permute.xlu0 %1040
      %1042 = vrot.lane.b32.xlu0 %v214, 98
      %v1043 = vpop.permute.xlu0 %1042
      %vm1044 = vcmask 801792
      %v1045 = vsel %vm1044, %v1041, %v1043
      %v1047 = vsel %vm221, %v1039, 0
      %v1050 = vsel %vm225, %v1045, 0
      %v1053 = vsel %vm225, %v1043, 0
      %1055 = vmatprep.subr.bf16.mxu0 %v1053
      %1056 = vmatpush1.bf16.msra.mxu0 %v1050
      %1057 = vmatprep.subr.bf16.mxu0 0
      %1058 = vmatpush1.bf16.msra.mxu0 0
      %1059 = vmatprep.subr.bf16.mxu0 0
      %1060 = vmatpush1.bf16.msra.mxu0 0
      %1061 = vmatprep.subr.bf16.mxu0 0
      %1062 = vmatpush1.bf16.msra.mxu0 0
      %1063 = vmatprep.subr.bf16.mxu0 0
      %1064 = vmatpush1.bf16.msra.mxu0 0
      %1065 = vmatprep.subr.bf16.mxu0 0
      %1066 = vmatpush1.bf16.msra.mxu0 0
      %1067 = vmatprep.subr.bf16.mxu0 0
      %1068 = vmatpush1.bf16.msra.mxu0 0
      %1069 = vmatprep.subr.bf16.mxu0 0
      %1070 = vmatpush1.bf16.msra.mxu0 0
      %1071 = vmatprep.subr.bf16.mxu0 0
      %1072 = vmatpush1.bf16.msra.mxu0 0
      %1073 = vmatprep.subr.bf16.mxu0 0
      %1074 = vmatpush1.bf16.msra.mxu0 0
      %1075 = vmatprep.subr.bf16.mxu0 0
      %1076 = vmatpush1.bf16.msra.mxu0 0
      %1077 = vmatprep.subr.bf16.mxu0 0
      %1078 = vmatpush1.bf16.msra.mxu0 0
      %1079 = vmatprep.subr.bf16.mxu0 0
      %1080 = vmatpush1.bf16.msra.mxu0 0
      %1081 = vmatprep.subr.bf16.mxu0 0
      %1082 = vmatpush1.bf16.msra.mxu0 0
      %1083 = vmatprep.subr.bf16.mxu0 0
      %1084 = vmatpush1.bf16.msra.mxu0 0
      %1085 = vmatprep.subr.bf16.mxu0 0
      %1086 = vmatpush1.bf16.msra.mxu0 0
      %1087 = vmatprep.mubr.bf16.mxu0 0
      %1088 = vmatmul.mubr.bf16.gmra.mrb[0].mxu0 %v1047
      %v1089 = vpop.f32.mrb[0].mxu0
      %v1090 = vadd.f32 0.0, %v1089
      %v1091 = vpop.f32.mrb[0].mxu0
      %v1092 = vadd.f32 0.0, %v1091
      %v1093 = vpop.f32.mrb[0].mxu0
      %v1094 = vadd.f32 0.0, %v1093
      %v1095 = vpop.f32.mrb[0].mxu0
      %v1096 = vadd.f32 0.0, %v1095
      %1097 = vdwg.mxu0
      %v1098 = vadd.f32 %v1028, %v1090
      %v1099 = vadd.f32 %v1029, %v1092
      %v1100 = vadd.f32 %v1030, %v1094
      %v1101 = vadd.f32 %v1031, %v1096
      %s1102 = scalar_lea.vmem %s1, 104
      %v1103 = vld [vmem:[%s1102] sm:$0xf]
      %v1104 = vld [vmem:[%s1102 + $0x4] sm:$0xf]
      %v1107 = vunpack.c.l.b16 %v1103
      %v1108 = vunpack.c.l.b16 %v1104
      %v1109 = vpack.c.b16 %v1108, %v1107
      %1110 = vrot.lane.b32.xlu0 %v213, 97
      %v1111 = vpop.permute.xlu0 %1110
      %1112 = vrot.lane.b32.xlu0 %v214, 97
      %v1113 = vpop.permute.xlu0 %1112
      %vm1114 = vcmask 793600
      %v1115 = vsel %vm1114, %v1111, %v1113
      %v1117 = vsel %vm221, %v1109, 0
      %v1120 = vsel %vm225, %v1115, 0
      %v1123 = vsel %vm225, %v1113, 0
      %1125 = vmatprep.subr.bf16.mxu0 %v1123
      %1126 = vmatpush1.bf16.msra.mxu0 %v1120
      %1127 = vmatprep.subr.bf16.mxu0 0
      %1128 = vmatpush1.bf16.msra.mxu0 0
      %1129 = vmatprep.subr.bf16.mxu0 0
      %1130 = vmatpush1.bf16.msra.mxu0 0
      %1131 = vmatprep.subr.bf16.mxu0 0
      %1132 = vmatpush1.bf16.msra.mxu0 0
      %1133 = vmatprep.subr.bf16.mxu0 0
      %1134 = vmatpush1.bf16.msra.mxu0 0
      %1135 = vmatprep.subr.bf16.mxu0 0
      %1136 = vmatpush1.bf16.msra.mxu0 0
      %1137 = vmatprep.subr.bf16.mxu0 0
      %1138 = vmatpush1.bf16.msra.mxu0 0
      %1139 = vmatprep.subr.bf16.mxu0 0
      %1140 = vmatpush1.bf16.msra.mxu0 0
      %1141 = vmatprep.subr.bf16.mxu0 0
      %1142 = vmatpush1.bf16.msra.mxu0 0
      %1143 = vmatprep.subr.bf16.mxu0 0
      %1144 = vmatpush1.bf16.msra.mxu0 0
      %1145 = vmatprep.subr.bf16.mxu0 0
      %1146 = vmatpush1.bf16.msra.mxu0 0
      %1147 = vmatprep.subr.bf16.mxu0 0
      %1148 = vmatpush1.bf16.msra.mxu0 0
      %1149 = vmatprep.subr.bf16.mxu0 0
      %1150 = vmatpush1.bf16.msra.mxu0 0
      %1151 = vmatprep.subr.bf16.mxu0 0
      %1152 = vmatpush1.bf16.msra.mxu0 0
      %1153 = vmatprep.subr.bf16.mxu0 0
      %1154 = vmatpush1.bf16.msra.mxu0 0
      %1155 = vmatprep.subr.bf16.mxu0 0
      %1156 = vmatpush1.bf16.msra.mxu0 0
      %1157 = vmatprep.mubr.bf16.mxu0 0
      %1158 = vmatmul.mubr.bf16.gmra.mrb[0].mxu0 %v1117
      %v1159 = vpop.f32.mrb[0].mxu0
      %v1160 = vadd.f32 0.0, %v1159
      %v1161 = vpop.f32.mrb[0].mxu0
      %v1162 = vadd.f32 0.0, %v1161
      %v1163 = vpop.f32.mrb[0].mxu0
      %v1164 = vadd.f32 0.0, %v1163
      %v1165 = vpop.f32.mrb[0].mxu0
      %v1166 = vadd.f32 0.0, %v1165
      %1167 = vdwg.mxu0
      %v1168 = vadd.f32 %v1098, %v1160
      %v1169 = vadd.f32 %v1099, %v1162
      %v1170 = vadd.f32 %v1100, %v1164
      %v1171 = vadd.f32 %v1101, %v1166
      %s1172 = scalar_lea.vmem %s1, 112
      %v1173 = vld [vmem:[%s1172] sm:$0xf]
      %v1174 = vld [vmem:[%s1172 + $0x4] sm:$0xf]
      %v1177 = vunpack.c.l.b16 %v1173
      %v1178 = vunpack.c.l.b16 %v1174
      %v1179 = vpack.c.b16 %v1178, %v1177
      %1180 = vrot.lane.b32.xlu0 %v213, 96
      %v1181 = vpop.permute.xlu0 %1180
      %1182 = vrot.lane.b32.xlu0 %v214, 96
      %v1183 = vpop.permute.xlu0 %1182
      %vm1184 = vcmask 785408
      %v1185 = vsel %vm1184, %v1181, %v1183
      %v1187 = vsel %vm221, %v1179, 0
      %v1190 = vsel %vm225, %v1185, 0
      %v1193 = vsel %vm225, %v1183, 0
      %1195 = vmatprep.subr.bf16.mxu0 %v1193
      %1196 = vmatpush1.bf16.msra.mxu0 %v1190
      %1197 = vmatprep.subr.bf16.mxu0 0
      %1198 = vmatpush1.bf16.msra.mxu0 0
      %1199 = vmatprep.subr.bf16.mxu0 0
      %1200 = vmatpush1.bf16.msra.mxu0 0
      %1201 = vmatprep.subr.bf16.mxu0 0
      %1202 = vmatpush1.bf16.msra.mxu0 0
      %1203 = vmatprep.subr.bf16.mxu0 0
      %1204 = vmatpush1.bf16.msra.mxu0 0
      %1205 = vmatprep.subr.bf16.mxu0 0
      %1206 = vmatpush1.bf16.msra.mxu0 0
      %1207 = vmatprep.subr.bf16.mxu0 0
      %1208 = vmatpush1.bf16.msra.mxu0 0
      %1209 = vmatprep.subr.bf16.mxu0 0
      %1210 = vmatpush1.bf16.msra.mxu0 0
      %1211 = vmatprep.subr.bf16.mxu0 0
      %1212 = vmatpush1.bf16.msra.mxu0 0
      %1213 = vmatprep.subr.bf16.mxu0 0
      %1214 = vmatpush1.bf16.msra.mxu0 0
      %1215 = vmatprep.subr.bf16.mxu0 0
      %1216 = vmatpush1.bf16.msra.mxu0 0
      %1217 = vmatprep.subr.bf16.mxu0 0
      %1218 = vmatpush1.bf16.msra.mxu0 0
      %1219 = vmatprep.subr.bf16.mxu0 0
      %1220 = vmatpush1.bf16.msra.mxu0 0
      %1221 = vmatprep.subr.bf16.mxu0 0
      %1222 = vmatpush1.bf16.msra.mxu0 0
      %1223 = vmatprep.subr.bf16.mxu0 0
      %1224 = vmatpush1.bf16.msra.mxu0 0
      %1225 = vmatprep.subr.bf16.mxu0 0
      %1226 = vmatpush1.bf16.msra.mxu0 0
      %1227 = vmatprep.mubr.bf16.mxu0 0
      %1228 = vmatmul.mubr.bf16.gmra.mrb[0].mxu0 %v1187
      %v1229 = vpop.f32.mrb[0].mxu0
      %v1230 = vadd.f32 0.0, %v1229
      %v1231 = vpop.f32.mrb[0].mxu0
      %v1232 = vadd.f32 0.0, %v1231
      %v1233 = vpop.f32.mrb[0].mxu0
      %v1234 = vadd.f32 0.0, %v1233
      %v1235 = vpop.f32.mrb[0].mxu0
      %v1236 = vadd.f32 0.0, %v1235
      %1237 = vdwg.mxu0
      %v1238 = vadd.f32 %v1168, %v1230
      %v1239 = vadd.f32 %v1169, %v1232
      %v1240 = vadd.f32 %v1170, %v1234
      %v1241 = vadd.f32 %v1171, %v1236
      %s1242 = scalar_lea.vmem %s1, 120
      %v1243 = vld [vmem:[%s1242] sm:$0xf]
      %v1244 = vld [vmem:[%s1242 + $0x4] sm:$0xf]
      %v1247 = vunpack.c.l.b16 %v1243
      %v1248 = vunpack.c.l.b16 %v1244
      %v1249 = vpack.c.b16 %v1248, %v1247
      %1250 = vrot.lane.b32.xlu0 %v213, 86
      %v1251 = vpop.permute.xlu0 %1250
      %1252 = vrot.lane.b32.xlu0 %v214, 86
      %v1253 = vpop.permute.xlu0 %1252
      %vm1254 = vcmask 703488
      %v1255 = vsel %vm1254, %v1251, %v1253
      %v1257 = vsel %vm221, %v1249, 0
      %v1260 = vsel %vm225, %v1255, 0
      %v1263 = vsel %vm225, %v1253, 0
      %1265 = vmatprep.subr.bf16.mxu0 %v1263
      %1266 = vmatpush1.bf16.msra.mxu0 %v1260
      %1267 = vmatprep.subr.bf16.mxu0 0
      %1268 = vmatpush1.bf16.msra.mxu0 0
      %1269 = vmatprep.subr.bf16.mxu0 0
      %1270 = vmatpush1.bf16.msra.mxu0 0
      %1271 = vmatprep.subr.bf16.mxu0 0
      %1272 = vmatpush1.bf16.msra.mxu0 0
      %1273 = vmatprep.subr.bf16.mxu0 0
      %1274 = vmatpush1.bf16.msra.mxu0 0
      %1275 = vmatprep.subr.bf16.mxu0 0
      %1276 = vmatpush1.bf16.msra.mxu0 0
      %1277 = vmatprep.subr.bf16.mxu0 0
      %1278 = vmatpush1.bf16.msra.mxu0 0
      %1279 = vmatprep.subr.bf16.mxu0 0
      %1280 = vmatpush1.bf16.msra.mxu0 0
      %1281 = vmatprep.subr.bf16.mxu0 0
      %1282 = vmatpush1.bf16.msra.mxu0 0
      %1283 = vmatprep.subr.bf16.mxu0 0
      %1284 = vmatpush1.bf16.msra.mxu0 0
      %1285 = vmatprep.subr.bf16.mxu0 0
      %1286 = vmatpush1.bf16.msra.mxu0 0
      %1287 = vmatprep.subr.bf16.mxu0 0
      %1288 = vmatpush1.bf16.msra.mxu0 0
      %1289 = vmatprep.subr.bf16.mxu0 0
      %1290 = vmatpush1.bf16.msra.mxu0 0
      %1291 = vmatprep.subr.bf16.mxu0 0
      %1292 = vmatpush1.bf16.msra.mxu0 0
      %1293 = vmatprep.subr.bf16.mxu0 0
      %1294 = vmatpush1.bf16.msra.mxu0 0
      %1295 = vmatprep.subr.bf16.mxu0 0
      %1296 = vmatpush1.bf16.msra.mxu0 0
      %1297 = vmatprep.mubr.bf16.mxu0 0
      %1298 = vmatmul.mubr.bf16.gmra.mrb[0].mxu0 %v1257
      %v1299 = vpop.f32.mrb[0].mxu0
      %v1300 = vadd.f32 0.0, %v1299
      %v1301 = vpop.f32.mrb[0].mxu0
      %v1302 = vadd.f32 0.0, %v1301
      %v1303 = vpop.f32.mrb[0].mxu0
      %v1304 = vadd.f32 0.0, %v1303
      %v1305 = vpop.f32.mrb[0].mxu0
      %v1306 = vadd.f32 0.0, %v1305
      %1307 = vdwg.mxu0
      %v1308 = vadd.f32 %v1238, %v1300
      %v1309 = vadd.f32 %v1239, %v1302
      %v1310 = vadd.f32 %v1240, %v1304
      %v1311 = vadd.f32 %v1241, %v1306
      %s1312 = scalar_lea.vmem %s1, 128
      %v1313 = vld [vmem:[%s1312] sm:$0xf]
      %v1314 = vld [vmem:[%s1312 + $0x4] sm:$0xf]
      %v1317 = vunpack.c.l.b16 %v1313
      %v1318 = vunpack.c.l.b16 %v1314
      %v1319 = vpack.c.b16 %v1318, %v1317
      %1320 = vrot.lane.b32.xlu0 %v213, 85
      %v1321 = vpop.permute.xlu0 %1320
      %1322 = vrot.lane.b32.xlu0 %v214, 85
      %v1323 = vpop.permute.xlu0 %1322
      %vm1324 = vcmask 695296
      %v1325 = vsel %vm1324, %v1321, %v1323
      %v1327 = vsel %vm221, %v1319, 0
      %v1330 = vsel %vm225, %v1325, 0
      %v1333 = vsel %vm225, %v1323, 0
      %1335 = vmatprep.subr.bf16.mxu0 %v1333
      %1336 = vmatpush1.bf16.msra.mxu0 %v1330
      %1337 = vmatprep.subr.bf16.mxu0 0
      %1338 = vmatpush1.bf16.msra.mxu0 0
      %1339 = vmatprep.subr.bf16.mxu0 0
      %1340 = vmatpush1.bf16.msra.mxu0 0
      %1341 = vmatprep.subr.bf16.mxu0 0
      %1342 = vmatpush1.bf16.msra.mxu0 0
      %1343 = vmatprep.subr.bf16.mxu0 0
      %1344 = vmatpush1.bf16.msra.mxu0 0
      %1345 = vmatprep.subr.bf16.mxu0 0
      %1346 = vmatpush1.bf16.msra.mxu0 0
      %1347 = vmatprep.subr.bf16.mxu0 0
      %1348 = vmatpush1.bf16.msra.mxu0 0
      %1349 = vmatprep.subr.bf16.mxu0 0
      %1350 = vmatpush1.bf16.msra.mxu0 0
      %1351 = vmatprep.subr.bf16.mxu0 0
      %1352 = vmatpush1.bf16.msra.mxu0 0
      %1353 = vmatprep.subr.bf16.mxu0 0
      %1354 = vmatpush1.bf16.msra.mxu0 0
      %1355 = vmatprep.subr.bf16.mxu0 0
      %1356 = vmatpush1.bf16.msra.mxu0 0
      %1357 = vmatprep.subr.bf16.mxu0 0
      %1358 = vmatpush1.bf16.msra.mxu0 0
      %1359 = vmatprep.subr.bf16.mxu0 0
      %1360 = vmatpush1.bf16.msra.mxu0 0
      %1361 = vmatprep.subr.bf16.mxu0 0
      %1362 = vmatpush1.bf16.msra.mxu0 0
      %1363 = vmatprep.subr.bf16.mxu0 0
      %1364 = vmatpush1.bf16.msra.mxu0 0
      %1365 = vmatprep.subr.bf16.mxu0 0
      %1366 = vmatpush1.bf16.msra.mxu0 0
      %1367 = vmatprep.mubr.bf16.mxu0 0
      %1368 = vmatmul.mubr.bf16.gmra.mrb[0].mxu0 %v1327
      %v1369 = vpop.f32.mrb[0].mxu0
      %v1370 = vadd.f32 0.0, %v1369
      %v1371 = vpop.f32.mrb[0].mxu0
      %v1372 = vadd.f32 0.0, %v1371
      %v1373 = vpop.f32.mrb[0].mxu0
      %v1374 = vadd.f32 0.0, %v1373
      %v1375 = vpop.f32.mrb[0].mxu0
      %v1376 = vadd.f32 0.0, %v1375
      %1377 = vdwg.mxu0
      %v1378 = vadd.f32 %v1308, %v1370
      %v1379 = vadd.f32 %v1309, %v1372
      %v1380 = vadd.f32 %v1310, %v1374
      %v1381 = vadd.f32 %v1311, %v1376
      %s1382 = scalar_lea.vmem %s1, 136
      %v1383 = vld [vmem:[%s1382] sm:$0xf]
      %v1384 = vld [vmem:[%s1382 + $0x4] sm:$0xf]
      %v1387 = vunpack.c.l.b16 %v1383
      %v1388 = vunpack.c.l.b16 %v1384
      %v1389 = vpack.c.b16 %v1388, %v1387
      %1390 = vrot.lane.b32.xlu0 %v213, 84
      %v1391 = vpop.permute.xlu0 %1390
      %1392 = vrot.lane.b32.xlu0 %v214, 84
      %v1393 = vpop.permute.xlu0 %1392
      %vm1394 = vcmask 687104
      %v1395 = vsel %vm1394, %v1391, %v1393
      %v1397 = vsel %vm221, %v1389, 0
      %v1400 = vsel %vm225, %v1395, 0
      %v1403 = vsel %vm225, %v1393, 0
      %1405 = vmatprep.subr.bf16.mxu0 %v1403
      %1406 = vmatpush1.bf16.msra.mxu0 %v1400
      %1407 = vmatprep.subr.bf16.mxu0 0
      %1408 = vmatpush1.bf16.msra.mxu0 0
      %1409 = vmatprep.subr.bf16.mxu0 0
      %1410 = vmatpush1.bf16.msra.mxu0 0
      %1411 = vmatprep.subr.bf16.mxu0 0
      %1412 = vmatpush1.bf16.msra.mxu0 0
      %1413 = vmatprep.subr.bf16.mxu0 0
      %1414 = vmatpush1.bf16.msra.mxu0 0
      %1415 = vmatprep.subr.bf16.mxu0 0
      %1416 = vmatpush1.bf16.msra.mxu0 0
      %1417 = vmatprep.subr.bf16.mxu0 0
      %1418 = vmatpush1.bf16.msra.mxu0 0
      %1419 = vmatprep.subr.bf16.mxu0 0
      %1420 = vmatpush1.bf16.msra.mxu0 0
      %1421 = vmatprep.subr.bf16.mxu0 0
      %1422 = vmatpush1.bf16.msra.mxu0 0
      %1423 = vmatprep.subr.bf16.mxu0 0
      %1424 = vmatpush1.bf16.msra.mxu0 0
      %1425 = vmatprep.subr.bf16.mxu0 0
      %1426 = vmatpush1.bf16.msra.mxu0 0
      %1427 = vmatprep.subr.bf16.mxu0 0
      %1428 = vmatpush1.bf16.msra.mxu0 0
      %1429 = vmatprep.subr.bf16.mxu0 0
      %1430 = vmatpush1.bf16.msra.mxu0 0
      %1431 = vmatprep.subr.bf16.mxu0 0
      %1432 = vmatpush1.bf16.msra.mxu0 0
      %1433 = vmatprep.subr.bf16.mxu0 0
      %1434 = vmatpush1.bf16.msra.mxu0 0
      %1435 = vmatprep.subr.bf16.mxu0 0
      %1436 = vmatpush1.bf16.msra.mxu0 0
      %1437 = vmatprep.mubr.bf16.mxu0 0
      %1438 = vmatmul.mubr.bf16.gmra.mrb[0].mxu0 %v1397
      %v1439 = vpop.f32.mrb[0].mxu0
      %v1440 = vadd.f32 0.0, %v1439
      %v1441 = vpop.f32.mrb[0].mxu0
      %v1442 = vadd.f32 0.0, %v1441
      %v1443 = vpop.f32.mrb[0].mxu0
      %v1444 = vadd.f32 0.0, %v1443
      %v1445 = vpop.f32.mrb[0].mxu0
      %v1446 = vadd.f32 0.0, %v1445
      %1447 = vdwg.mxu0
      %v1448 = vadd.f32 %v1378, %v1440
      %v1449 = vadd.f32 %v1379, %v1442
      %v1450 = vadd.f32 %v1380, %v1444
      %v1451 = vadd.f32 %v1381, %v1446
      %s1452 = scalar_lea.vmem %s1, 144
      %v1453 = vld [vmem:[%s1452] sm:$0xf]
      %v1454 = vld [vmem:[%s1452 + $0x4] sm:$0xf]
      %v1457 = vunpack.c.l.b16 %v1453
      %v1458 = vunpack.c.l.b16 %v1454
      %v1459 = vpack.c.b16 %v1458, %v1457
      %1460 = vrot.lane.b32.xlu0 %v213, 83
      %v1461 = vpop.permute.xlu0 %1460
      %1462 = vrot.lane.b32.xlu0 %v214, 83
      %v1463 = vpop.permute.xlu0 %1462
      %vm1464 = vcmask 678912
      %v1465 = vsel %vm1464, %v1461, %v1463
      %v1467 = vsel %vm221, %v1459, 0
      %v1470 = vsel %vm225, %v1465, 0
      %v1473 = vsel %vm225, %v1463, 0
      %1475 = vmatprep.subr.bf16.mxu0 %v1473
      %1476 = vmatpush1.bf16.msra.mxu0 %v1470
      %1477 = vmatprep.subr.bf16.mxu0 0
      %1478 = vmatpush1.bf16.msra.mxu0 0
      %1479 = vmatprep.subr.bf16.mxu0 0
      %1480 = vmatpush1.bf16.msra.mxu0 0
      %1481 = vmatprep.subr.bf16.mxu0 0
      %1482 = vmatpush1.bf16.msra.mxu0 0
      %1483 = vmatprep.subr.bf16.mxu0 0
      %1484 = vmatpush1.bf16.msra.mxu0 0
      %1485 = vmatprep.subr.bf16.mxu0 0
      %1486 = vmatpush1.bf16.msra.mxu0 0
      %1487 = vmatprep.subr.bf16.mxu0 0
      %1488 = vmatpush1.bf16.msra.mxu0 0
      %1489 = vmatprep.subr.bf16.mxu0 0
      %1490 = vmatpush1.bf16.msra.mxu0 0
      %1491 = vmatprep.subr.bf16.mxu0 0
      %1492 = vmatpush1.bf16.msra.mxu0 0
      %1493 = vmatprep.subr.bf16.mxu0 0
      %1494 = vmatpush1.bf16.msra.mxu0 0
      %1495 = vmatprep.subr.bf16.mxu0 0
      %1496 = vmatpush1.bf16.msra.mxu0 0
      %1497 = vmatprep.subr.bf16.mxu0 0
      %1498 = vmatpush1.bf16.msra.mxu0 0
      %1499 = vmatprep.subr.bf16.mxu0 0
      %1500 = vmatpush1.bf16.msra.mxu0 0
      %1501 = vmatprep.subr.bf16.mxu0 0
      %1502 = vmatpush1.bf16.msra.mxu0 0
      %1503 = vmatprep.subr.bf16.mxu0 0
      %1504 = vmatpush1.bf16.msra.mxu0 0
      %1505 = vmatprep.subr.bf16.mxu0 0
      %1506 = vmatpush1.bf16.msra.mxu0 0
      %1507 = vmatprep.mubr.bf16.mxu0 0
      %1508 = vmatmul.mubr.bf16.gmra.mrb[0].mxu0 %v1467
      %v1509 = vpop.f32.mrb[0].mxu0
      %v1510 = vadd.f32 0.0, %v1509
      %v1511 = vpop.f32.mrb[0].mxu0
      %v1512 = vadd.f32 0.0, %v1511
      %v1513 = vpop.f32.mrb[0].mxu0
      %v1514 = vadd.f32 0.0, %v1513
      %v1515 = vpop.f32.mrb[0].mxu0
      %v1516 = vadd.f32 0.0, %v1515
      %1517 = vdwg.mxu0
      %v1518 = vadd.f32 %v1448, %v1510
      %v1519 = vadd.f32 %v1449, %v1512
      %v1520 = vadd.f32 %v1450, %v1514
      %v1521 = vadd.f32 %v1451, %v1516
      %s1522 = scalar_lea.vmem %s1, 152
      %v1523 = vld [vmem:[%s1522] sm:$0xf]
      %v1524 = vld [vmem:[%s1522 + $0x4] sm:$0xf]
      %v1527 = vunpack.c.l.b16 %v1523
      %v1528 = vunpack.c.l.b16 %v1524
      %v1529 = vpack.c.b16 %v1528, %v1527
      %1530 = vrot.lane.b32.xlu0 %v213, 82
      %v1531 = vpop.permute.xlu0 %1530
      %1532 = vrot.lane.b32.xlu0 %v214, 82
      %v1533 = vpop.permute.xlu0 %1532
      %vm1534 = vcmask 670720
      %v1535 = vsel %vm1534, %v1531, %v1533
      %v1537 = vsel %vm221, %v1529, 0
      %v1540 = vsel %vm225, %v1535, 0
      %v1543 = vsel %vm225, %v1533, 0
      %1545 = vmatprep.subr.bf16.mxu0 %v1543
      %1546 = vmatpush1.bf16.msra.mxu0 %v1540
      %1547 = vmatprep.subr.bf16.mxu0 0
      %1548 = vmatpush1.bf16.msra.mxu0 0
      %1549 = vmatprep.subr.bf16.mxu0 0
      %1550 = vmatpush1.bf16.msra.mxu0 0
      %1551 = vmatprep.subr.bf16.mxu0 0
      %1552 = vmatpush1.bf16.msra.mxu0 0
      %1553 = vmatprep.subr.bf16.mxu0 0
      %1554 = vmatpush1.bf16.msra.mxu0 0
      %1555 = vmatprep.subr.bf16.mxu0 0
      %1556 = vmatpush1.bf16.msra.mxu0 0
      %1557 = vmatprep.subr.bf16.mxu0 0
      %1558 = vmatpush1.bf16.msra.mxu0 0
      %1559 = vmatprep.subr.bf16.mxu0 0
      %1560 = vmatpush1.bf16.msra.mxu0 0
      %1561 = vmatprep.subr.bf16.mxu0 0
      %1562 = vmatpush1.bf16.msra.mxu0 0
      %1563 = vmatprep.subr.bf16.mxu0 0
      %1564 = vmatpush1.bf16.msra.mxu0 0
      %1565 = vmatprep.subr.bf16.mxu0 0
      %1566 = vmatpush1.bf16.msra.mxu0 0
      %1567 = vmatprep.subr.bf16.mxu0 0
      %1568 = vmatpush1.bf16.msra.mxu0 0
      %1569 = vmatprep.subr.bf16.mxu0 0
      %1570 = vmatpush1.bf16.msra.mxu0 0
      %1571 = vmatprep.subr.bf16.mxu0 0
      %1572 = vmatpush1.bf16.msra.mxu0 0
      %1573 = vmatprep.subr.bf16.mxu0 0
      %1574 = vmatpush1.bf16.msra.mxu0 0
      %1575 = vmatprep.subr.bf16.mxu0 0
      %1576 = vmatpush1.bf16.msra.mxu0 0
      %1577 = vmatprep.mubr.bf16.mxu0 0
      %1578 = vmatmul.mubr.bf16.gmra.mrb[0].mxu0 %v1537
      %v1579 = vpop.f32.mrb[0].mxu0
      %v1580 = vadd.f32 0.0, %v1579
      %v1581 = vpop.f32.mrb[0].mxu0
      %v1582 = vadd.f32 0.0, %v1581
      %v1583 = vpop.f32.mrb[0].mxu0
      %v1584 = vadd.f32 0.0, %v1583
      %v1585 = vpop.f32.mrb[0].mxu0
      %v1586 = vadd.f32 0.0, %v1585
      %1587 = vdwg.mxu0
      %v1588 = vadd.f32 %v1518, %v1580
      %v1589 = vadd.f32 %v1519, %v1582
      %v1590 = vadd.f32 %v1520, %v1584
      %v1591 = vadd.f32 %v1521, %v1586
      %s1592 = scalar_lea.vmem %s1, 160
      %v1593 = vld [vmem:[%s1592] sm:$0xf]
      %v1594 = vld [vmem:[%s1592 + $0x4] sm:$0xf]
      %v1597 = vunpack.c.l.b16 %v1593
      %v1598 = vunpack.c.l.b16 %v1594
      %v1599 = vpack.c.b16 %v1598, %v1597
      %1600 = vrot.lane.b32.xlu0 %v213, 72
      %v1601 = vpop.permute.xlu0 %1600
      %1602 = vrot.lane.b32.xlu0 %v214, 72
      %v1603 = vpop.permute.xlu0 %1602
      %vm1604 = vcmask 588800
      %v1605 = vsel %vm1604, %v1601, %v1603
      %v1607 = vsel %vm221, %v1599, 0
      %v1610 = vsel %vm225, %v1605, 0
      %v1613 = vsel %vm225, %v1603, 0
      %1615 = vmatprep.subr.bf16.mxu0 %v1613
      %1616 = vmatpush1.bf16.msra.mxu0 %v1610
      %1617 = vmatprep.subr.bf16.mxu0 0
      %1618 = vmatpush1.bf16.msra.mxu0 0
      %1619 = vmatprep.subr.bf16.mxu0 0
      %1620 = vmatpush1.bf16.msra.mxu0 0
      %1621 = vmatprep.subr.bf16.mxu0 0
      %1622 = vmatpush1.bf16.msra.mxu0 0
      %1623 = vmatprep.subr.bf16.mxu0 0
      %1624 = vmatpush1.bf16.msra.mxu0 0
      %1625 = vmatprep.subr.bf16.mxu0 0
      %1626 = vmatpush1.bf16.msra.mxu0 0
      %1627 = vmatprep.subr.bf16.mxu0 0
      %1628 = vmatpush1.bf16.msra.mxu0 0
      %1629 = vmatprep.subr.bf16.mxu0 0
      %1630 = vmatpush1.bf16.msra.mxu0 0
      %1631 = vmatprep.subr.bf16.mxu0 0
      %1632 = vmatpush1.bf16.msra.mxu0 0
      %1633 = vmatprep.subr.bf16.mxu0 0
      %1634 = vmatpush1.bf16.msra.mxu0 0
      %1635 = vmatprep.subr.bf16.mxu0 0
      %1636 = vmatpush1.bf16.msra.mxu0 0
      %1637 = vmatprep.subr.bf16.mxu0 0
      %1638 = vmatpush1.bf16.msra.mxu0 0
      %1639 = vmatprep.subr.bf16.mxu0 0
      %1640 = vmatpush1.bf16.msra.mxu0 0
      %1641 = vmatprep.subr.bf16.mxu0 0
      %1642 = vmatpush1.bf16.msra.mxu0 0
      %1643 = vmatprep.subr.bf16.mxu0 0
      %1644 = vmatpush1.bf16.msra.mxu0 0
      %1645 = vmatprep.subr.bf16.mxu0 0
      %1646 = vmatpush1.bf16.msra.mxu0 0
      %1647 = vmatprep.mubr.bf16.mxu0 0
      %1648 = vmatmul.mubr.bf16.gmra.mrb[0].mxu0 %v1607
      %v1649 = vpop.f32.mrb[0].mxu0
      %v1650 = vadd.f32 0.0, %v1649
      %v1651 = vpop.f32.mrb[0].mxu0
      %v1652 = vadd.f32 0.0, %v1651
      %v1653 = vpop.f32.mrb[0].mxu0
      %v1654 = vadd.f32 0.0, %v1653
      %v1655 = vpop.f32.mrb[0].mxu0
      %v1656 = vadd.f32 0.0, %v1655
      %1657 = vdwg.mxu0
      %v1658 = vadd.f32 %v1588, %v1650
      %v1659 = vadd.f32 %v1589, %v1652
      %v1660 = vadd.f32 %v1590, %v1654
      %v1661 = vadd.f32 %v1591, %v1656
      %s1662 = scalar_lea.vmem %s1, 168
      %v1663 = vld [vmem:[%s1662] sm:$0xf]
      %v1664 = vld [vmem:[%s1662 + $0x4] sm:$0xf]
      %v1667 = vunpack.c.l.b16 %v1663
      %v1668 = vunpack.c.l.b16 %v1664
      %v1669 = vpack.c.b16 %v1668, %v1667
      %1670 = vrot.lane.b32.xlu0 %v213, 71
      %v1671 = vpop.permute.xlu0 %1670
      %1672 = vrot.lane.b32.xlu0 %v214, 71
      %v1673 = vpop.permute.xlu0 %1672
      %vm1674 = vcmask 580608
      %v1675 = vsel %vm1674, %v1671, %v1673
      %v1677 = vsel %vm221, %v1669, 0
      %v1680 = vsel %vm225, %v1675, 0
      %v1683 = vsel %vm225, %v1673, 0
      %1685 = vmatprep.subr.bf16.mxu0 %v1683
      %1686 = vmatpush1.bf16.msra.mxu0 %v1680
      %1687 = vmatprep.subr.bf16.mxu0 0
      %1688 = vmatpush1.bf16.msra.mxu0 0
      %1689 = vmatprep.subr.bf16.mxu0 0
      %1690 = vmatpush1.bf16.msra.mxu0 0
      %1691 = vmatprep.subr.bf16.mxu0 0
      %1692 = vmatpush1.bf16.msra.mxu0 0
      %1693 = vmatprep.subr.bf16.mxu0 0
      %1694 = vmatpush1.bf16.msra.mxu0 0
      %1695 = vmatprep.subr.bf16.mxu0 0
      %1696 = vmatpush1.bf16.msra.mxu0 0
      %1697 = vmatprep.subr.bf16.mxu0 0
      %1698 = vmatpush1.bf16.msra.mxu0 0
      %1699 = vmatprep.subr.bf16.mxu0 0
      %1700 = vmatpush1.bf16.msra.mxu0 0
      %1701 = vmatprep.subr.bf16.mxu0 0
      %1702 = vmatpush1.bf16.msra.mxu0 0
      %1703 = vmatprep.subr.bf16.mxu0 0
      %1704 = vmatpush1.bf16.msra.mxu0 0
      %1705 = vmatprep.subr.bf16.mxu0 0
      %1706 = vmatpush1.bf16.msra.mxu0 0
      %1707 = vmatprep.subr.bf16.mxu0 0
      %1708 = vmatpush1.bf16.msra.mxu0 0
      %1709 = vmatprep.subr.bf16.mxu0 0
      %1710 = vmatpush1.bf16.msra.mxu0 0
      %1711 = vmatprep.subr.bf16.mxu0 0
      %1712 = vmatpush1.bf16.msra.mxu0 0
      %1713 = vmatprep.subr.bf16.mxu0 0
      %1714 = vmatpush1.bf16.msra.mxu0 0
      %1715 = vmatprep.subr.bf16.mxu0 0
      %1716 = vmatpush1.bf16.msra.mxu0 0
      %1717 = vmatprep.mubr.bf16.mxu0 0
      %1718 = vmatmul.mubr.bf16.gmra.mrb[0].mxu0 %v1677
      %v1719 = vpop.f32.mrb[0].mxu0
      %v1720 = vadd.f32 0.0, %v1719
      %v1721 = vpop.f32.mrb[0].mxu0
      %v1722 = vadd.f32 0.0, %v1721
      %v1723 = vpop.f32.mrb[0].mxu0
      %v1724 = vadd.f32 0.0, %v1723
      %v1725 = vpop.f32.mrb[0].mxu0
      %v1726 = vadd.f32 0.0, %v1725
      %1727 = vdwg.mxu0
      %v1728 = vadd.f32 %v1658, %v1720
      %v1729 = vadd.f32 %v1659, %v1722
      %v1730 = vadd.f32 %v1660, %v1724
      %v1731 = vadd.f32 %v1661, %v1726
      %s1732 = scalar_lea.vmem %s1, 176
      %v1733 = vld [vmem:[%s1732] sm:$0xf]
      %v1734 = vld [vmem:[%s1732 + $0x4] sm:$0xf]
      %v1737 = vunpack.c.l.b16 %v1733
      %v1738 = vunpack.c.l.b16 %v1734
      %v1739 = vpack.c.b16 %v1738, %v1737
      %1740 = vrot.lane.b32.xlu0 %v213, 70
      %v1741 = vpop.permute.xlu0 %1740
      %1742 = vrot.lane.b32.xlu0 %v214, 70
      %v1743 = vpop.permute.xlu0 %1742
      %vm1744 = vcmask 572416
      %v1745 = vsel %vm1744, %v1741, %v1743
      %v1747 = vsel %vm221, %v1739, 0
      %v1750 = vsel %vm225, %v1745, 0
      %v1753 = vsel %vm225, %v1743, 0
      %1755 = vmatprep.subr.bf16.mxu0 %v1753
      %1756 = vmatpush1.bf16.msra.mxu0 %v1750
      %1757 = vmatprep.subr.bf16.mxu0 0
      %1758 = vmatpush1.bf16.msra.mxu0 0
      %1759 = vmatprep.subr.bf16.mxu0 0
      %1760 = vmatpush1.bf16.msra.mxu0 0
      %1761 = vmatprep.subr.bf16.mxu0 0
      %1762 = vmatpush1.bf16.msra.mxu0 0
      %1763 = vmatprep.subr.bf16.mxu0 0
      %1764 = vmatpush1.bf16.msra.mxu0 0
      %1765 = vmatprep.subr.bf16.mxu0 0
      %1766 = vmatpush1.bf16.msra.mxu0 0
      %1767 = vmatprep.subr.bf16.mxu0 0
      %1768 = vmatpush1.bf16.msra.mxu0 0
      %1769 = vmatprep.subr.bf16.mxu0 0
      %1770 = vmatpush1.bf16.msra.mxu0 0
      %1771 = vmatprep.subr.bf16.mxu0 0
      %1772 = vmatpush1.bf16.msra.mxu0 0
      %1773 = vmatprep.subr.bf16.mxu0 0
      %1774 = vmatpush1.bf16.msra.mxu0 0
      %1775 = vmatprep.subr.bf16.mxu0 0
      %1776 = vmatpush1.bf16.msra.mxu0 0
      %1777 = vmatprep.subr.bf16.mxu0 0
      %1778 = vmatpush1.bf16.msra.mxu0 0
      %1779 = vmatprep.subr.bf16.mxu0 0
      %1780 = vmatpush1.bf16.msra.mxu0 0
      %1781 = vmatprep.subr.bf16.mxu0 0
      %1782 = vmatpush1.bf16.msra.mxu0 0
      %1783 = vmatprep.subr.bf16.mxu0 0
      %1784 = vmatpush1.bf16.msra.mxu0 0
      %1785 = vmatprep.subr.bf16.mxu0 0
      %1786 = vmatpush1.bf16.msra.mxu0 0
      %1787 = vmatprep.mubr.bf16.mxu0 0
      %1788 = vmatmul.mubr.bf16.gmra.mrb[0].mxu0 %v1747
      %v1789 = vpop.f32.mrb[0].mxu0
      %v1790 = vadd.f32 0.0, %v1789
      %v1791 = vpop.f32.mrb[0].mxu0
      %v1792 = vadd.f32 0.0, %v1791
      %v1793 = vpop.f32.mrb[0].mxu0
      %v1794 = vadd.f32 0.0, %v1793
      %v1795 = vpop.f32.mrb[0].mxu0
      %v1796 = vadd.f32 0.0, %v1795
      %1797 = vdwg.mxu0
      %v1798 = vadd.f32 %v1728, %v1790
      %v1799 = vadd.f32 %v1729, %v1792
      %v1800 = vadd.f32 %v1730, %v1794
      %v1801 = vadd.f32 %v1731, %v1796
      %s1802 = scalar_lea.vmem %s1, 184
      %v1803 = vld [vmem:[%s1802] sm:$0xf]
      %v1804 = vld [vmem:[%s1802 + $0x4] sm:$0xf]
      %v1807 = vunpack.c.l.b16 %v1803
      %v1808 = vunpack.c.l.b16 %v1804
      %v1809 = vpack.c.b16 %v1808, %v1807
      %1810 = vrot.lane.b32.xlu0 %v213, 69
      %v1811 = vpop.permute.xlu0 %1810
      %1812 = vrot.lane.b32.xlu0 %v214, 69
      %v1813 = vpop.permute.xlu0 %1812
      %vm1814 = vcmask 564224
      %v1815 = vsel %vm1814, %v1811, %v1813
      %v1817 = vsel %vm221, %v1809, 0
      %v1820 = vsel %vm225, %v1815, 0
      %v1823 = vsel %vm225, %v1813, 0
      %1825 = vmatprep.subr.bf16.mxu0 %v1823
      %1826 = vmatpush1.bf16.msra.mxu0 %v1820
      %1827 = vmatprep.subr.bf16.mxu0 0
      %1828 = vmatpush1.bf16.msra.mxu0 0
      %1829 = vmatprep.subr.bf16.mxu0 0
      %1830 = vmatpush1.bf16.msra.mxu0 0
      %1831 = vmatprep.subr.bf16.mxu0 0
      %1832 = vmatpush1.bf16.msra.mxu0 0
      %1833 = vmatprep.subr.bf16.mxu0 0
      %1834 = vmatpush1.bf16.msra.mxu0 0
      %1835 = vmatprep.subr.bf16.mxu0 0
      %1836 = vmatpush1.bf16.msra.mxu0 0
      %1837 = vmatprep.subr.bf16.mxu0 0
      %1838 = vmatpush1.bf16.msra.mxu0 0
      %1839 = vmatprep.subr.bf16.mxu0 0
      %1840 = vmatpush1.bf16.msra.mxu0 0
      %1841 = vmatprep.subr.bf16.mxu0 0
      %1842 = vmatpush1.bf16.msra.mxu0 0
      %1843 = vmatprep.subr.bf16.mxu0 0
      %1844 = vmatpush1.bf16.msra.mxu0 0
      %1845 = vmatprep.subr.bf16.mxu0 0
      %1846 = vmatpush1.bf16.msra.mxu0 0
      %1847 = vmatprep.subr.bf16.mxu0 0
      %1848 = vmatpush1.bf16.msra.mxu0 0
      %1849 = vmatprep.subr.bf16.mxu0 0
      %1850 = vmatpush1.bf16.msra.mxu0 0
      %1851 = vmatprep.subr.bf16.mxu0 0
      %1852 = vmatpush1.bf16.msra.mxu0 0
      %1853 = vmatprep.subr.bf16.mxu0 0
      %1854 = vmatpush1.bf16.msra.mxu0 0
      %1855 = vmatprep.subr.bf16.mxu0 0
      %1856 = vmatpush1.bf16.msra.mxu0 0
      %1857 = vmatprep.mubr.bf16.mxu0 0
      %1858 = vmatmul.mubr.bf16.gmra.mrb[0].mxu0 %v1817
      %v1859 = vpop.f32.mrb[0].mxu0
      %v1860 = vadd.f32 0.0, %v1859
      %v1861 = vpop.f32.mrb[0].mxu0
      %v1862 = vadd.f32 0.0, %v1861
      %v1863 = vpop.f32.mrb[0].mxu0
      %v1864 = vadd.f32 0.0, %v1863
      %v1865 = vpop.f32.mrb[0].mxu0
      %v1866 = vadd.f32 0.0, %v1865
      %1867 = vdwg.mxu0
      %v1868 = vadd.f32 %v1798, %v1860
      %v1869 = vadd.f32 %v1799, %v1862
      %v1870 = vadd.f32 %v1800, %v1864
      %v1871 = vadd.f32 %v1801, %v1866
      %s1872 = scalar_lea.vmem %s1, 192
      %v1873 = vld [vmem:[%s1872] sm:$0xf]
      %v1874 = vld [vmem:[%s1872 + $0x4] sm:$0xf]
      %v1877 = vunpack.c.l.b16 %v1873
      %v1878 = vunpack.c.l.b16 %v1874
      %v1879 = vpack.c.b16 %v1878, %v1877
      %1880 = vrot.lane.b32.xlu0 %v213, 68
      %v1881 = vpop.permute.xlu0 %1880
      %1882 = vrot.lane.b32.xlu0 %v214, 68
      %v1883 = vpop.permute.xlu0 %1882
      %vm1884 = vcmask 556032
      %v1885 = vsel %vm1884, %v1881, %v1883
      %v1887 = vsel %vm221, %v1879, 0
      %v1890 = vsel %vm225, %v1885, 0
      %v1893 = vsel %vm225, %v1883, 0
      %1895 = vmatprep.subr.bf16.mxu0 %v1893
      %1896 = vmatpush1.bf16.msra.mxu0 %v1890
      %1897 = vmatprep.subr.bf16.mxu0 0
      %1898 = vmatpush1.bf16.msra.mxu0 0
      %1899 = vmatprep.subr.bf16.mxu0 0
      %1900 = vmatpush1.bf16.msra.mxu0 0
      %1901 = vmatprep.subr.bf16.mxu0 0
      %1902 = vmatpush1.bf16.msra.mxu0 0
      %1903 = vmatprep.subr.bf16.mxu0 0
      %1904 = vmatpush1.bf16.msra.mxu0 0
      %1905 = vmatprep.subr.bf16.mxu0 0
      %1906 = vmatpush1.bf16.msra.mxu0 0
      %1907 = vmatprep.subr.bf16.mxu0 0
      %1908 = vmatpush1.bf16.msra.mxu0 0
      %1909 = vmatprep.subr.bf16.mxu0 0
      %1910 = vmatpush1.bf16.msra.mxu0 0
      %1911 = vmatprep.subr.bf16.mxu0 0
      %1912 = vmatpush1.bf16.msra.mxu0 0
      %1913 = vmatprep.subr.bf16.mxu0 0
      %1914 = vmatpush1.bf16.msra.mxu0 0
      %1915 = vmatprep.subr.bf16.mxu0 0
      %1916 = vmatpush1.bf16.msra.mxu0 0
      %1917 = vmatprep.subr.bf16.mxu0 0
      %1918 = vmatpush1.bf16.msra.mxu0 0
      %1919 = vmatprep.subr.bf16.mxu0 0
      %1920 = vmatpush1.bf16.msra.mxu0 0
      %1921 = vmatprep.subr.bf16.mxu0 0
      %1922 = vmatpush1.bf16.msra.mxu0 0
      %1923 = vmatprep.subr.bf16.mxu0 0
      %1924 = vmatpush1.bf16.msra.mxu0 0
      %1925 = vmatprep.subr.bf16.mxu0 0
      %1926 = vmatpush1.bf16.msra.mxu0 0
      %1927 = vmatprep.mubr.bf16.mxu0 0
      %1928 = vmatmul.mubr.bf16.gmra.mrb[0].mxu0 %v1887
      %v1929 = vpop.f32.mrb[0].mxu0
      %v1930 = vadd.f32 0.0, %v1929
      %v1931 = vpop.f32.mrb[0].mxu0
      %v1932 = vadd.f32 0.0, %v1931
      %v1933 = vpop.f32.mrb[0].mxu0
      %v1934 = vadd.f32 0.0, %v1933
      %v1935 = vpop.f32.mrb[0].mxu0
      %v1936 = vadd.f32 0.0, %v1935
      %1937 = vdwg.mxu0
      %v1938 = vadd.f32 %v1868, %v1930
      %v1939 = vadd.f32 %v1869, %v1932
      %v1940 = vadd.f32 %v1870, %v1934
      %v1941 = vadd.f32 %v1871, %v1936
      %v1942 = vld [vmem:[%s2] sm:$0xff]
      %v1943 = vld [vmem:[%s2 + $0x8] sm:$0xff]
      %1945 = vset.pattern.permute.xlu0 0
      %1946 = vperm.xlu0 %1945, %v1942
      %v1947 = vpop.permute.xlu0 %1946
      %1950 = vset.pattern.permute.xlu0 0
      %1951 = vperm.xlu0 %1950, %v1943
      %v1952 = vpop.permute.xlu0 %1951
      %v1954 = vadd.f32 %v1938, %v1947
      %v1955 = vadd.f32 %v1939, %v1947
      %v1956 = vadd.f32 %v1940, %v1952
      %v1957 = vadd.f32 %v1941, %v1952
      %v1958 = vmax.f32 %v1954, 0.0
      %v1959 = vmax.f32 %v1955, 0.0
      %v1960 = vmax.f32 %v1956, 0.0
      %v1961 = vmax.f32 %v1957, 0.0
      %v1962 = vpack.c.bf16 %v1960, %v1958
      %v1963 = vpack.c.bf16 %v1961, %v1959
      %v1964 = vld [vmem:[%s3] sm:$0xf]
      %v1965 = vld [vmem:[%s3 + $0x4] sm:$0xf]
      %v1966 = vld [vmem:[%s3 + $0x8] sm:$0xf]
      %v1967 = vld [vmem:[%s3 + $0xc] sm:$0xf]
      %v1968 = vld [vmem:[%s3 + $0x10] sm:$0xf]
      %v1969 = vld [vmem:[%s3 + $0x14] sm:$0xf]
      %v1970 = vld [vmem:[%s3 + $0x18] sm:$0xf]
      %v1971 = vld [vmem:[%s3 + $0x1c] sm:$0xf]
      %v1972 = vld [vmem:[%s3 + $0x20] sm:$0xf]
      %v1973 = vld [vmem:[%s3 + $0x24] sm:$0xf]
      %v1974 = vld [vmem:[%s3 + $0x28] sm:$0xf]
      %v1975 = vld [vmem:[%s3 + $0x2c] sm:$0xf]
      %v1976 = vld [vmem:[%s3 + $0x30] sm:$0xf]
      %v1977 = vld [vmem:[%s3 + $0x34] sm:$0xf]
      %v1978 = vld [vmem:[%s3 + $0x38] sm:$0xf]
      %v1979 = vld [vmem:[%s3 + $0x3c] sm:$0xf]
      %v1980 = vld [vmem:[%s3 + $0x40] sm:$0xf]
      %v1998 = vunpack.c.l.b16 %v1964
      %v1999 = vunpack.c.l.b16 %v1965
      %v2000 = vunpack.c.l.b16 %v1966
      %v2001 = vunpack.c.l.b16 %v1967
      %v2002 = vunpack.c.l.b16 %v1968
      %v2003 = vunpack.c.l.b16 %v1969
      %v2004 = vunpack.c.l.b16 %v1970
      %v2005 = vunpack.c.l.b16 %v1971
      %v2006 = vunpack.c.l.b16 %v1972
      %v2007 = vunpack.c.l.b16 %v1973
      %v2008 = vunpack.c.l.b16 %v1974
      %v2009 = vunpack.c.l.b16 %v1975
      %v2010 = vunpack.c.l.b16 %v1976
      %v2011 = vunpack.c.l.b16 %v1977
      %v2012 = vunpack.c.l.b16 %v1978
      %v2013 = vunpack.c.l.b16 %v1979
      %v2014 = vunpack.c.l.b16 %v1980
      %v2015 = vpack.c.b16 %v1999, %v1998
      %v2016 = vpack.c.b16 %v2001, %v2000
      %v2017 = vpack.c.b16 %v2003, %v2002
      %v2018 = vpack.c.b16 %v2005, %v2004
      %v2019 = vpack.c.b16 %v2007, %v2006
      %v2020 = vpack.c.b16 %v2009, %v2008
      %v2021 = vpack.c.b16 %v2011, %v2010
      %v2022 = vpack.c.b16 %v2013, %v2012
      %v2023 = vpack.c.b16 %v2014, %v2014
      %vm2032 = vcmask 64512
      %v2034 = vsel %vm2032, %v1963, 0
      %vm2036 = vcmask 1043456
      %v2038 = vsel %vm2036, %v2023, 0
      %2040 = vmatprep.subr.bf16.mxu0 0
      %2041 = vmatpush1.bf16.msra.mxu0 %v2015
      %2042 = vmatprep.subr.bf16.mxu0 0
      %2043 = vmatpush1.bf16.msra.mxu0 %v2016
      %2044 = vmatprep.subr.bf16.mxu0 0
      %2045 = vmatpush1.bf16.msra.mxu0 %v2017
      %2046 = vmatprep.subr.bf16.mxu0 0
      %2047 = vmatpush1.bf16.msra.mxu0 %v2018
      %2048 = vmatprep.subr.bf16.mxu0 0
      %2049 = vmatpush1.bf16.msra.mxu0 %v2019
      %2050 = vmatprep.subr.bf16.mxu0 0
      %2051 = vmatpush1.bf16.msra.mxu0 %v2020
      %2052 = vmatprep.subr.bf16.mxu0 0
      %2053 = vmatpush1.bf16.msra.mxu0 %v2021
      %2054 = vmatprep.subr.bf16.mxu0 0
      %2055 = vmatpush1.bf16.msra.mxu0 %v2022
      %2056 = vmatprep.subr.bf16.mxu0 0
      %2057 = vmatpush1.bf16.msra.mxu0 %v2038
      %2058 = vmatprep.subr.bf16.mxu0 0
      %2059 = vmatpush1.bf16.msra.mxu0 0
      %2060 = vmatprep.subr.bf16.mxu0 0
      %2061 = vmatpush1.bf16.msra.mxu0 0
      %2062 = vmatprep.subr.bf16.mxu0 0
      %2063 = vmatpush1.bf16.msra.mxu0 0
      %2064 = vmatprep.subr.bf16.mxu0 0
      %2065 = vmatpush1.bf16.msra.mxu0 0
      %2066 = vmatprep.subr.bf16.mxu0 0
      %2067 = vmatpush1.bf16.msra.mxu0 0
      %2068 = vmatprep.subr.bf16.mxu0 0
      %2069 = vmatpush1.bf16.msra.mxu0 0
      %2070 = vmatprep.subr.bf16.mxu0 0
      %2071 = vmatpush1.bf16.msra.mxu0 0
      %2072 = vmatprep.mubr.bf16.mxu0 %v2034
      %2073 = vmatmul.mubr.bf16.gmra.mrb[0].mxu0 %v1962
      %v2074 = vpop.f32.mrb[0].mxu0
      %v2075 = vadd.f32 0.0, %v2074
      %v2076 = vpop.f32.mrb[0].mxu0
      %v2077 = vpop.f32.mrb[0].mxu0
      %v2078 = vadd.f32 0.0, %v2077
      %v2079 = vpop.f32.mrb[0].mxu0
      %2080 = vdwg.mxu0
      %s2081 = scalar_lea.vmem %s3, 68
      %v2082 = vld [vmem:[%s2081] sm:$0xf]
      %v2083 = vld [vmem:[%s2081 + $0x4] sm:$0xf]
      %v2084 = vld [vmem:[%s2081 + $0x8] sm:$0xf]
      %v2085 = vld [vmem:[%s2081 + $0xc] sm:$0xf]
      %v2086 = vld [vmem:[%s2081 + $0x10] sm:$0xf]
      %v2087 = vld [vmem:[%s2081 + $0x14] sm:$0xf]
      %v2088 = vld [vmem:[%s2081 + $0x18] sm:$0xf]
      %v2089 = vld [vmem:[%s2081 + $0x1c] sm:$0xf]
      %v2090 = vld [vmem:[%s2081 + $0x20] sm:$0xf]
      %v2091 = vld [vmem:[%s2081 + $0x24] sm:$0xf]
      %v2092 = vld [vmem:[%s2081 + $0x28] sm:$0xf]
      %v2093 = vld [vmem:[%s2081 + $0x2c] sm:$0xf]
      %v2094 = vld [vmem:[%s2081 + $0x30] sm:$0xf]
      %v2095 = vld [vmem:[%s2081 + $0x34] sm:$0xf]
      %v2096 = vld [vmem:[%s2081 + $0x38] sm:$0xf]
      %v2097 = vld [vmem:[%s2081 + $0x3c] sm:$0xf]
      %v2098 = vld [vmem:[%s2081 + $0x40] sm:$0xf]
      %v2116 = vunpack.c.l.b16 %v2082
      %v2117 = vunpack.c.l.b16 %v2083
      %v2118 = vunpack.c.l.b16 %v2084
      %v2119 = vunpack.c.l.b16 %v2085
      %v2120 = vunpack.c.l.b16 %v2086
      %v2121 = vunpack.c.l.b16 %v2087
      %v2122 = vunpack.c.l.b16 %v2088
      %v2123 = vunpack.c.l.b16 %v2089
      %v2124 = vunpack.c.l.b16 %v2090
      %v2125 = vunpack.c.l.b16 %v2091
      %v2126 = vunpack.c.l.b16 %v2092
      %v2127 = vunpack.c.l.b16 %v2093
      %v2128 = vunpack.c.l.b16 %v2094
      %v2129 = vunpack.c.l.b16 %v2095
      %v2130 = vunpack.c.l.b16 %v2096
      %v2131 = vunpack.c.l.b16 %v2097
      %v2132 = vunpack.c.l.b16 %v2098
      %v2133 = vpack.c.b16 %v2117, %v2116
      %v2134 = vpack.c.b16 %v2119, %v2118
      %v2135 = vpack.c.b16 %v2121, %v2120
      %v2136 = vpack.c.b16 %v2123, %v2122
      %v2137 = vpack.c.b16 %v2125, %v2124
      %v2138 = vpack.c.b16 %v2127, %v2126
      %v2139 = vpack.c.b16 %v2129, %v2128
      %v2140 = vpack.c.b16 %v2131, %v2130
      %v2141 = vpack.c.b16 %v2132, %v2132
      %v2151 = vsel %vm2036, %v2141, 0
      %2153 = vmatprep.subr.bf16.mxu0 0
      %2154 = vmatpush1.bf16.msra.mxu0 %v2133
      %2155 = vmatprep.subr.bf16.mxu0 0
      %2156 = vmatpush1.bf16.msra.mxu0 %v2134
      %2157 = vmatprep.subr.bf16.mxu0 0
      %2158 = vmatpush1.bf16.msra.mxu0 %v2135
      %2159 = vmatprep.subr.bf16.mxu0 0
      %2160 = vmatpush1.bf16.msra.mxu0 %v2136
      %2161 = vmatprep.subr.bf16.mxu0 0
      %2162 = vmatpush1.bf16.msra.mxu0 %v2137
      %2163 = vmatprep.subr.bf16.mxu0 0
      %2164 = vmatpush1.bf16.msra.mxu0 %v2138
      %2165 = vmatprep.subr.bf16.mxu0 0
      %2166 = vmatpush1.bf16.msra.mxu0 %v2139
      %2167 = vmatprep.subr.bf16.mxu0 0
      %2168 = vmatpush1.bf16.msra.mxu0 %v2140
      %2169 = vmatprep.subr.bf16.mxu0 0
      %2170 = vmatpush1.bf16.msra.mxu0 %v2151
      %2171 = vmatprep.subr.bf16.mxu0 0
      %2172 = vmatpush1.bf16.msra.mxu0 0
      %2173 = vmatprep.subr.bf16.mxu0 0
      %2174 = vmatpush1.bf16.msra.mxu0 0
      %2175 = vmatprep.subr.bf16.mxu0 0
      %2176 = vmatpush1.bf16.msra.mxu0 0
      %2177 = vmatprep.subr.bf16.mxu0 0
      %2178 = vmatpush1.bf16.msra.mxu0 0
      %2179 = vmatprep.subr.bf16.mxu0 0
      %2180 = vmatpush1.bf16.msra.mxu0 0
      %2181 = vmatprep.subr.bf16.mxu0 0
      %2182 = vmatpush1.bf16.msra.mxu0 0
      %2183 = vmatprep.subr.bf16.mxu0 0
      %2184 = vmatpush1.bf16.msra.mxu0 0
      %2185 = vmatprep.mubr.bf16.mxu0 %v2034
      %2186 = vmatmul.mubr.bf16.gmra.mrb[0].mxu0 %v1962
      %v2187 = vpop.f32.mrb[0].mxu0
      %v2188 = vadd.f32 0.0, %v2187
      %v2189 = vpop.f32.mrb[0].mxu0
      %v2190 = vpop.f32.mrb[0].mxu0
      %v2191 = vadd.f32 0.0, %v2190
      %v2192 = vpop.f32.mrb[0].mxu0
      %2193 = vdwg.mxu0
      %v2194 = vmax.f32 %v2075, %v2188
      %v2195 = vmax.f32 %v2078, %v2191
      %s2196 = scalar_lea.vmem %s3, 136
      %v2197 = vld [vmem:[%s2196] sm:$0xf]
      %v2198 = vld [vmem:[%s2196 + $0x4] sm:$0xf]
      %v2199 = vld [vmem:[%s2196 + $0x8] sm:$0xf]
      %v2200 = vld [vmem:[%s2196 + $0xc] sm:$0xf]
      %v2201 = vld [vmem:[%s2196 + $0x10] sm:$0xf]
      %v2202 = vld [vmem:[%s2196 + $0x14] sm:$0xf]
      %v2203 = vld [vmem:[%s2196 + $0x18] sm:$0xf]
      %v2204 = vld [vmem:[%s2196 + $0x1c] sm:$0xf]
      %v2205 = vld [vmem:[%s2196 + $0x20] sm:$0xf]
      %v2206 = vld [vmem:[%s2196 + $0x24] sm:$0xf]
      %v2207 = vld [vmem:[%s2196 + $0x28] sm:$0xf]
      %v2208 = vld [vmem:[%s2196 + $0x2c] sm:$0xf]
      %v2209 = vld [vmem:[%s2196 + $0x30] sm:$0xf]
      %v2210 = vld [vmem:[%s2196 + $0x34] sm:$0xf]
      %v2211 = vld [vmem:[%s2196 + $0x38] sm:$0xf]
      %v2212 = vld [vmem:[%s2196 + $0x3c] sm:$0xf]
      %v2213 = vld [vmem:[%s2196 + $0x40] sm:$0xf]
      %v2231 = vunpack.c.l.b16 %v2197
      %v2232 = vunpack.c.l.b16 %v2198
      %v2233 = vunpack.c.l.b16 %v2199
      %v2234 = vunpack.c.l.b16 %v2200
      %v2235 = vunpack.c.l.b16 %v2201
      %v2236 = vunpack.c.l.b16 %v2202
      %v2237 = vunpack.c.l.b16 %v2203
      %v2238 = vunpack.c.l.b16 %v2204
      %v2239 = vunpack.c.l.b16 %v2205
      %v2240 = vunpack.c.l.b16 %v2206
      %v2241 = vunpack.c.l.b16 %v2207
      %v2242 = vunpack.c.l.b16 %v2208
      %v2243 = vunpack.c.l.b16 %v2209
      %v2244 = vunpack.c.l.b16 %v2210
      %v2245 = vunpack.c.l.b16 %v2211
      %v2246 = vunpack.c.l.b16 %v2212
      %v2247 = vunpack.c.l.b16 %v2213
      %v2248 = vpack.c.b16 %v2232, %v2231
      %v2249 = vpack.c.b16 %v2234, %v2233
      %v2250 = vpack.c.b16 %v2236, %v2235
      %v2251 = vpack.c.b16 %v2238, %v2237
      %v2252 = vpack.c.b16 %v2240, %v2239
      %v2253 = vpack.c.b16 %v2242, %v2241
      %v2254 = vpack.c.b16 %v2244, %v2243
      %v2255 = vpack.c.b16 %v2246, %v2245
      %v2256 = vpack.c.b16 %v2247, %v2247
      %v2266 = vsel %vm2036, %v2256, 0
      %2268 = vmatprep.subr.bf16.mxu0 0
      %2269 = vmatpush1.bf16.msra.mxu0 %v2248
      %2270 = vmatprep.subr.bf16.mxu0 0
      %2271 = vmatpush1.bf16.msra.mxu0 %v2249
      %2272 = vmatprep.subr.bf16.mxu0 0
      %2273 = vmatpush1.bf16.msra.mxu0 %v2250
      %2274 = vmatprep.subr.bf16.mxu0 0
      %2275 = vmatpush1.bf16.msra.mxu0 %v2251
      %2276 = vmatprep.subr.bf16.mxu0 0
      %2277 = vmatpush1.bf16.msra.mxu0 %v2252
      %2278 = vmatprep.subr.bf16.mxu0 0
      %2279 = vmatpush1.bf16.msra.mxu0 %v2253
      %2280 = vmatprep.subr.bf16.mxu0 0
      %2281 = vmatpush1.bf16.msra.mxu0 %v2254
      %2282 = vmatprep.subr.bf16.mxu0 0
      %2283 = vmatpush1.bf16.msra.mxu0 %v2255
      %2284 = vmatprep.subr.bf16.mxu0 0
      %2285 = vmatpush1.bf16.msra.mxu0 %v2266
      %2286 = vmatprep.subr.bf16.mxu0 0
      %2287 = vmatpush1.bf16.msra.mxu0 0
      %2288 = vmatprep.subr.bf16.mxu0 0
      %2289 = vmatpush1.bf16.msra.mxu0 0
      %2290 = vmatprep.subr.bf16.mxu0 0
      %2291 = vmatpush1.bf16.msra.mxu0 0
      %2292 = vmatprep.subr.bf16.mxu0 0
      %2293 = vmatpush1.bf16.msra.mxu0 0
      %2294 = vmatprep.subr.bf16.mxu0 0
      %2295 = vmatpush1.bf16.msra.mxu0 0
      %2296 = vmatprep.subr.bf16.mxu0 0
      %2297 = vmatpush1.bf16.msra.mxu0 0
      %2298 = vmatprep.subr.bf16.mxu0 0
      %2299 = vmatpush1.bf16.msra.mxu0 0
      %2300 = vmatprep.mubr.bf16.mxu0 %v2034
      %2301 = vmatmul.mubr.bf16.gmra.mrb[0].mxu0 %v1962
      %v2302 = vpop.f32.mrb[0].mxu0
      %v2303 = vadd.f32 0.0, %v2302
      %v2304 = vpop.f32.mrb[0].mxu0
      %v2305 = vpop.f32.mrb[0].mxu0
      %v2306 = vadd.f32 0.0, %v2305
      %v2307 = vpop.f32.mrb[0].mxu0
      %2308 = vdwg.mxu0
      %v2309 = vmax.f32 %v2194, %v2303
      %v2310 = vmax.f32 %v2195, %v2306
      %s2311 = scalar_lea.vmem %s3, 204
      %v2312 = vld [vmem:[%s2311] sm:$0xf]
      %v2313 = vld [vmem:[%s2311 + $0x4] sm:$0xf]
      %v2314 = vld [vmem:[%s2311 + $0x8] sm:$0xf]
      %v2315 = vld [vmem:[%s2311 + $0xc] sm:$0xf]
      %v2316 = vld [vmem:[%s2311 + $0x10] sm:$0xf]
      %v2317 = vld [vmem:[%s2311 + $0x14] sm:$0xf]
      %v2318 = vld [vmem:[%s2311 + $0x18] sm:$0xf]
      %v2319 = vld [vmem:[%s2311 + $0x1c] sm:$0xf]
      %v2320 = vld [vmem:[%s2311 + $0x20] sm:$0xf]
      %v2321 = vld [vmem:[%s2311 + $0x24] sm:$0xf]
      %v2322 = vld [vmem:[%s2311 + $0x28] sm:$0xf]
      %v2323 = vld [vmem:[%s2311 + $0x2c] sm:$0xf]
      %v2324 = vld [vmem:[%s2311 + $0x30] sm:$0xf]
      %v2325 = vld [vmem:[%s2311 + $0x34] sm:$0xf]
      %v2326 = vld [vmem:[%s2311 + $0x38] sm:$0xf]
      %v2327 = vld [vmem:[%s2311 + $0x3c] sm:$0xf]
      %v2328 = vld [vmem:[%s2311 + $0x40] sm:$0xf]
      %v2346 = vunpack.c.l.b16 %v2312
      %v2347 = vunpack.c.l.b16 %v2313
      %v2348 = vunpack.c.l.b16 %v2314
      %v2349 = vunpack.c.l.b16 %v2315
      %v2350 = vunpack.c.l.b16 %v2316
      %v2351 = vunpack.c.l.b16 %v2317
      %v2352 = vunpack.c.l.b16 %v2318
      %v2353 = vunpack.c.l.b16 %v2319
      %v2354 = vunpack.c.l.b16 %v2320
      %v2355 = vunpack.c.l.b16 %v2321
      %v2356 = vunpack.c.l.b16 %v2322
      %v2357 = vunpack.c.l.b16 %v2323
      %v2358 = vunpack.c.l.b16 %v2324
      %v2359 = vunpack.c.l.b16 %v2325
      %v2360 = vunpack.c.l.b16 %v2326
      %v2361 = vunpack.c.l.b16 %v2327
      %v2362 = vunpack.c.l.b16 %v2328
      %v2363 = vpack.c.b16 %v2347, %v2346
      %v2364 = vpack.c.b16 %v2349, %v2348
      %v2365 = vpack.c.b16 %v2351, %v2350
      %v2366 = vpack.c.b16 %v2353, %v2352
      %v2367 = vpack.c.b16 %v2355, %v2354
      %v2368 = vpack.c.b16 %v2357, %v2356
      %v2369 = vpack.c.b16 %v2359, %v2358
      %v2370 = vpack.c.b16 %v2361, %v2360
      %v2371 = vpack.c.b16 %v2362, %v2362
      %v2381 = vsel %vm2036, %v2371, 0
      %2383 = vmatprep.subr.bf16.mxu0 0
      %2384 = vmatpush1.bf16.msra.mxu0 %v2363
      %2385 = vmatprep.subr.bf16.mxu0 0
      %2386 = vmatpush1.bf16.msra.mxu0 %v2364
      %2387 = vmatprep.subr.bf16.mxu0 0
      %2388 = vmatpush1.bf16.msra.mxu0 %v2365
      %2389 = vmatprep.subr.bf16.mxu0 0
      %2390 = vmatpush1.bf16.msra.mxu0 %v2366
      %2391 = vmatprep.subr.bf16.mxu0 0
      %2392 = vmatpush1.bf16.msra.mxu0 %v2367
      %2393 = vmatprep.subr.bf16.mxu0 0
      %2394 = vmatpush1.bf16.msra.mxu0 %v2368
      %2395 = vmatprep.subr.bf16.mxu0 0
      %2396 = vmatpush1.bf16.msra.mxu0 %v2369
      %2397 = vmatprep.subr.bf16.mxu0 0
      %2398 = vmatpush1.bf16.msra.mxu0 %v2370
      %2399 = vmatprep.subr.bf16.mxu0 0
      %2400 = vmatpush1.bf16.msra.mxu0 %v2381
      %2401 = vmatprep.subr.bf16.mxu0 0
      %2402 = vmatpush1.bf16.msra.mxu0 0
      %2403 = vmatprep.subr.bf16.mxu0 0
      %2404 = vmatpush1.bf16.msra.mxu0 0
      %2405 = vmatprep.subr.bf16.mxu0 0
      %2406 = vmatpush1.bf16.msra.mxu0 0
      %2407 = vmatprep.subr.bf16.mxu0 0
      %2408 = vmatpush1.bf16.msra.mxu0 0
      %2409 = vmatprep.subr.bf16.mxu0 0
      %2410 = vmatpush1.bf16.msra.mxu0 0
      %2411 = vmatprep.subr.bf16.mxu0 0
      %2412 = vmatpush1.bf16.msra.mxu0 0
      %2413 = vmatprep.subr.bf16.mxu0 0
      %2414 = vmatpush1.bf16.msra.mxu0 0
      %2415 = vmatprep.mubr.bf16.mxu0 %v2034
      %2416 = vmatmul.mubr.bf16.gmra.mrb[0].mxu0 %v1962
      %v2417 = vpop.f32.mrb[0].mxu0
      %v2418 = vadd.f32 0.0, %v2417
      %v2419 = vpop.f32.mrb[0].mxu0
      %v2420 = vpop.f32.mrb[0].mxu0
      %v2421 = vadd.f32 0.0, %v2420
      %v2422 = vpop.f32.mrb[0].mxu0
      %2423 = vdwg.mxu0
      %v2424 = vmax.f32 %v2309, %v2418
      %v2425 = vmax.f32 %v2310, %v2421
      %v2426 = vpack.c.bf16 %v2425, %v2424
      %v2428 = vunpack.c.l.b16 %v2426
      %v2429 = vunpack.c.h.b16 %v2426
      %v2430 = vpack.c.b16 %v2428, %v2428
      %v2431 = vpack.c.b16 %v2429, %v2429
      %vm2434 = vcmask 199680
      %2435 = vst.msk [vmem:[%s197] sm:$0xf] %vm2434, %v2430
      %2436 = vst.msk [vmem:[%s197 + $0x4] sm:$0xf] %vm2434, %v2431
      %p2437 = scmp.lt.s32.totalorder %s15, 1
      %s2438 = scalar_select %p2437, %s15, 1
      %s2439 = smul.addr %s2438, 2
      %s2440 = smul.addr %s2439, 4
      %s2441 = scalar_lea.vmem %s4, %s2440
      // Predicated region
      $region37: #{cnn_forward.4} parent=35 // pred_check
        %p2442 = pneg %p122
      $region38: #{cnn_forward.4} parent=35 // pred_check_branch
        %2444 = sbr.rel (%p2442) target = $region40
      $region39: #{cnn_forward.4} parent=35 // pred_region
        _
      $region40: #{cnn_forward.4} parent=35 // pred_fallthru
        _
    $region36: #{cnn_forward.4} parent=5 // pred_fallthru
      _
    %p2445 = scmp.le.s32.totalorder 2, %s10
    // Predicated region
    $region41: #{cnn_forward.4} parent=5 // pred_check
      %p2446 = pneg %p2445
    $region42: #{cnn_forward.4} parent=5 // pred_check_branch
      %2448 = sbr.rel (%p2446) target = $region44
    $region43: #{cnn_forward.4} parent=5 // pred_region
      %s2449 = ssub.s32 %s10, 2
      // Predicated region
      $region45: #{cnn_forward.4} parent=43 // pred_check
        %p2450 = pneg %p128
      $region46: #{cnn_forward.4} parent=43 // pred_check_branch
        %2452 = sbr.rel (%p2450) target = $region48
      $region47: #{cnn_forward.4} parent=43 // pred_region
        %p2453 = scmp.lt.s32.totalorder %s16, 1
        %s2454 = scalar_select %p2453, %s16, 1
        %s2455 = smul.addr %s2454, 2
        %s2456 = smul.addr %s2455, 4
        %s2457 = scalar_lea.vmem %s4, %s2456
      $region48: #{cnn_forward.4} parent=43 // pred_fallthru
        _
    $region44: #{cnn_forward.4} parent=5 // pred_fallthru
      _
  $region6: #{cnn_forward.4} parent=0 // loop_footer
    %s14 = sadd.s32 1, %s10
  $region7: #{cnn_forward.4} parent=0 // loop_footer_branch
    %9 = sbr.rel target = $region3
  $region8: #{cnn_forward.4} parent=0 // loop_exit
    _

// kernel: cnn_forward.3
$region0: #{cnn_forward.3}
  #allocation0 [shape = 'u32[]', space=smem, size = 0x4, offset = 0x4, fixed_abs, tag = 'smem constant byte address 0x4 - core index']
  #allocation1 [shape = 'u32[144,128]{1,0:T(1,128)}', space=vmem, size = 0x12000, scoped, tag = 'internal scratch']
  %s0 = inlined_call_operand.vmem [shape: bf16[2,3,1024], index: 0, kind: input, shape index: {}]
  %s1 = inlined_call_operand.vmem [shape: bf16[25,6,3], index: 1, kind: input, shape index: {}]
  %s2 = inlined_call_operand.vmem [shape: f32[6,1], index: 2, kind: input, shape index: {}]
  %s3 = inlined_call_operand.vmem [shape: bf16[4,892,196], index: 3, kind: input, shape index: {}]
  %s4 = inlined_call_operand.vmem [shape: bf16[2,6,196], index: 4, kind: output, shape index: {}]
  %s5 = sld [smem:[#allocation0]]
  $region49: #{cnn_forward.3} parent=0
    _
  %s7 = ssub.s32 1, %s5
  %s8 = scalar_select 0, %s7, %s5
  loop: start=0, step=1, limit=4
  $region2: #{cnn_forward.3} parent=0 // loop_pre_header
    _
  $region3: #{cnn_forward.3} parent=0 // loop_header
    %s10 = sphi 0, %s14
    %p11 = scmp.ge.s32.totalorder %s10, 4
    %s20 = sphi 0, %s22
    %s23 = sphi 0, %s20
    %s24 = sphi 0, %s23
    %s40 = sphi 0, %s24
    %s44 = sphi 0, %s44
    %s46 = sphi 0, %s44
    %s47 = sphi 0, %s46
    %s61 = sphi 0, %s47
    %s65 = sphi 0, %s65
    %s67 = sphi 0, %s65
    %s68 = sphi 0, %s67
    %s82 = sphi 0, %s68
    %s86 = sphi 0, %s86
    %s88 = sphi 0, %s86
    %s89 = sphi 0, %s88
    %s103 = sphi 0, %s89
    %s109 = sphi 0, %s111
    %s112 = sphi 0, %s109
    %s113 = sphi 0, %s112
    %s129 = sphi 0, %s113
  $region4: #{cnn_forward.3} parent=0 // loop_header_branch
    %13 = sbr.rel (%p11) target = $region8
  $region5: #{cnn_forward.3} parent=0 // loop_body
    %s15 = ssub.s32 %s10, 1
    %s16 = ssub.s32 %s10, 2
    %s17 = sadd.s32 %s10, 1
    %s18 = ssub.s32 %s10, %s17
    %p19 = scmp.eq.s32.totalorder %s18, 0
    %s21 = sadd.s32 %s20, 1
    %s22 = scalar_select %p19, %s20, %s21
    %p25 = pneg %p19
    %p26 = scmp.eq.s32.totalorder %s10, 1
    %p27 = por %p25, %p26
    %p28 = scmp.ne.s32.totalorder %s20, %s23
    %p29 = scmp.eq.s32.totalorder %s10, 0
    %p30 = por %p28, %p29
    %p31 = scmp.ne.s32.totalorder %s20, %s23
    %p32 = scmp.eq.s32.totalorder %s15, 1
    %p33 = por %p31, %p32
    %p34 = scmp.ne.s32.totalorder %s23, %s24
    %p35 = scmp.eq.s32.totalorder %s15, 0
    %p36 = por %p34, %p35
    %p37 = scmp.ne.s32.totalorder %s23, %s24
    %p38 = scmp.eq.s32.totalorder %s16, 1
    %p39 = por %p37, %p38
    %p41 = scmp.ne.s32.totalorder %s24, %s40
    %p42 = scmp.eq.s32.totalorder %s16, 0
    %p43 = por %p41, %p42
    %s45 = sadd.s32 %s44, 1
    %p48 = scmp.eq.s32.totalorder %s10, 1
    %p49 = scmp.ne.s32.totalorder %s44, %s46
    %p50 = scmp.eq.s32.totalorder %s10, 0
    %p51 = por %p49, %p50
    %p52 = scmp.ne.s32.totalorder %s44, %s46
    %p53 = scmp.eq.s32.totalorder %s15, 1
    %p54 = por %p52, %p53
    %p55 = scmp.ne.s32.totalorder %s46, %s47
    %p56 = scmp.eq.s32.totalorder %s15, 0
    %p57 = por %p55, %p56
    %p58 = scmp.ne.s32.totalorder %s46, %s47
    %p59 = scmp.eq.s32.totalorder %s16, 1
    %p60 = por %p58, %p59
    %p62 = scmp.ne.s32.totalorder %s47, %s61
    %p63 = scmp.eq.s32.totalorder %s16, 0
    %p64 = por %p62, %p63
    %s66 = sadd.s32 %s65, 1
    %p69 = scmp.eq.s32.totalorder %s10, 1
    %p70 = scmp.ne.s32.totalorder %s65, %s67
    %p71 = scmp.eq.s32.totalorder %s10, 0
    %p72 = por %p70, %p71
    %p73 = scmp.ne.s32.totalorder %s65, %s67
    %p74 = scmp.eq.s32.totalorder %s15, 1
    %p75 = por %p73, %p74
    %p76 = scmp.ne.s32.totalorder %s67, %s68
    %p77 = scmp.eq.s32.totalorder %s15, 0
    %p78 = por %p76, %p77
    %p79 = scmp.ne.s32.totalorder %s67, %s68
    %p80 = scmp.eq.s32.totalorder %s16, 1
    %p81 = por %p79, %p80
    %p83 = scmp.ne.s32.totalorder %s68, %s82
    %p84 = scmp.eq.s32.totalorder %s16, 0
    %p85 = por %p83, %p84
    %s87 = sadd.s32 %s86, 1
    %p90 = scmp.eq.s32.totalorder %s10, 1
    %p91 = scmp.ne.s32.totalorder %s86, %s88
    %p92 = scmp.eq.s32.totalorder %s10, 0
    %p93 = por %p91, %p92
    %p94 = scmp.ne.s32.totalorder %s86, %s88
    %p95 = scmp.eq.s32.totalorder %s15, 1
    %p96 = por %p94, %p95
    %p97 = scmp.ne.s32.totalorder %s88, %s89
    %p98 = scmp.eq.s32.totalorder %s15, 0
    %p99 = por %p97, %p98
    %p100 = scmp.ne.s32.totalorder %s88, %s89
    %p101 = scmp.eq.s32.totalorder %s16, 1
    %p102 = por %p100, %p101
    %p104 = scmp.ne.s32.totalorder %s89, %s103
    %p105 = scmp.eq.s32.totalorder %s16, 0
    %p106 = por %p104, %p105
    %s107 = ssub.s32 %s10, %s17
    %p108 = scmp.eq.s32.totalorder %s107, 0
    %s110 = sadd.s32 %s109, 1
    %s111 = scalar_select %p108, %s109, %s110
    %p114 = pneg %p108
    %p115 = scmp.eq.s32.totalorder %s10, 1
    %p116 = por %p114, %p115
    %p117 = scmp.ne.s32.totalorder %s109, %s112
    %p118 = scmp.eq.s32.totalorder %s10, 0
    %p119 = por %p117, %p118
    %p120 = scmp.ne.s32.totalorder %s109, %s112
    %p121 = scmp.eq.s32.totalorder %s15, 1
    %p122 = por %p120, %p121
    %p123 = scmp.ne.s32.totalorder %s112, %s113
    %p124 = scmp.eq.s32.totalorder %s15, 0
    %p125 = por %p123, %p124
    %p126 = scmp.ne.s32.totalorder %s112, %s113
    %p127 = scmp.eq.s32.totalorder %s16, 1
    %p128 = por %p126, %p127
    %p130 = scmp.ne.s32.totalorder %s113, %s129
    %p131 = scmp.eq.s32.totalorder %s16, 0
    %p132 = por %p130, %p131
    %p133 = scmp.le.s32.totalorder 1, %s10
    %p134 = scmp.lt.s32.totalorder %s10, 3
    %p135 = pnand %p133, %p134
    %p136 = pneg %p135
    // Predicated region
    $region9: #{cnn_forward.3} parent=5 // pred_check
      _
    $region10: #{cnn_forward.3} parent=5 // pred_check_branch
      %138 = sbr.rel (%p135) target = $region12
    $region11: #{cnn_forward.3} parent=5 // pred_region
      %s139 = ssub.s32 %s10, 1
      // Predicated region
      $region13: #{cnn_forward.3} parent=11 // pred_check
        %p140 = pneg %p57
      $region14: #{cnn_forward.3} parent=11 // pred_check_branch
        %142 = sbr.rel (%p140) target = $region16
      $region15: #{cnn_forward.3} parent=11 // pred_region
        _
      $region16: #{cnn_forward.3} parent=11 // pred_fallthru
        _
      // Predicated region
      $region17: #{cnn_forward.3} parent=11 // pred_check
        %p143 = pneg %p78
      $region18: #{cnn_forward.3} parent=11 // pred_check_branch
        %145 = sbr.rel (%p143) target = $region20
      $region19: #{cnn_forward.3} parent=11 // pred_region
        _
      $region20: #{cnn_forward.3} parent=11 // pred_fallthru
        _
      // Predicated region
      $region21: #{cnn_forward.3} parent=11 // pred_check
        %p146 = pneg %p99
      $region22: #{cnn_forward.3} parent=11 // pred_check_branch
        %148 = sbr.rel (%p146) target = $region24
      $region23: #{cnn_forward.3} parent=11 // pred_region
        _
      $region24: #{cnn_forward.3} parent=11 // pred_fallthru
        _
    $region12: #{cnn_forward.3} parent=5 // pred_fallthru
      _
    %p149 = scmp.lt.s32.totalorder %s10, 2
    // Predicated region
    $region25: #{cnn_forward.3} parent=5 // pred_check
      %p150 = pneg %p149
    $region26: #{cnn_forward.3} parent=5 // pred_check_branch
      %152 = sbr.rel (%p150) target = $region28
    $region27: #{cnn_forward.3} parent=5 // pred_region
      // Predicated region
      $region29: #{cnn_forward.3} parent=27 // pred_check
        %p153 = pneg %p30
      $region30: #{cnn_forward.3} parent=27 // pred_check_branch
        %155 = sbr.rel (%p153) target = $region32
      $region31: #{cnn_forward.3} parent=27 // pred_region
        %p156 = scmp.lt.s32.totalorder %s10, 1
        %s157 = scalar_select %p156, %s10, 1
        %s158 = smul.addr %s157, 8
        %s159 = smul.addr %s158, 2
        %s160 = scalar_lea.vmem %s0, %s159
      $region32: #{cnn_forward.3} parent=27 // pred_fallthru
        _
    $region28: #{cnn_forward.3} parent=5 // pred_fallthru
      _
    %p161 = scmp.le.s32.totalorder 1, %s10
    %p162 = scmp.lt.s32.totalorder %s10, 3
    %p163 = pnand %p161, %p162
    %p164 = pneg %p163
    // Predicated region
    $region33: #{cnn_forward.3} parent=5 // pred_check
      _
    $region34: #{cnn_forward.3} parent=5 // pred_check_branch
      %166 = sbr.rel (%p163) target = $region36
    $region35: #{cnn_forward.3} parent=5 // pred_region
      %s167 = ssub.s32 %s10, 1
      %p168 = scmp.lt.s32.totalorder %s15, 1
      %s169 = scalar_select %p168, %s15, 1
      %s170 = smul.addr %s169, 8
      %s171 = smul.addr %s170, 2
      %s172 = scalar_lea.vmem %s0, %s171
      %p173 = pneg %p36
      %p174 = pneg %p33
      %p175 = pneg %p57
      %p176 = pneg %p54
      %p177 = pneg %p78
      %p178 = pneg %p75
      %p179 = pneg %p99
      %p180 = pneg %p96
      %p181 = pneg %p125
      %p182 = pneg %p122
      %p183 = scmp.lt.s32.totalorder %s15, 1
      %s184 = scalar_select %p183, %s15, 1
      %s185 = smul.addr %s184, 2
      %s186 = smul.addr %s185, 4
      %s187 = scalar_lea.vmem %s4, %s186
      %p188 = scmp.lt.s32.totalorder %s15, 1
      %s189 = scalar_select %p188, %s15, 1
      %s190 = smul.addr %s189, 8
      %s191 = smul.addr %s190, 2
      %s192 = scalar_lea.vmem %s0, %s191
      %p193 = scmp.lt.s32.totalorder %s15, 1
      %s194 = scalar_select %p193, %s15, 1
      %s195 = smul.addr %s194, 2
      %s196 = smul.addr %s195, 4
      %s197 = scalar_lea.vmem %s4, %s196
      %v199 = vld [vmem:[%s192] sm:$0xff]
      %v200 = vld [vmem:[%s192 + $0x8] sm:$0xff]
      %v201 = vld [vmem:[%s1] sm:$0x7]
      %s202 = scalar_lea.vmem %s1, 4
      %v203 = vld [vmem:[%s202] sm:$0x7]
      %v206 = vcombine.high %v199, %v199
      %v208 = vunpack.c.l.s4 1983009808
      %v209 = vunpack.c.0.s8 %v208
      %v210 = vlaneseq
      %v211 = vshrl.u32 %v210, 7
      %v212 = vsub.s32 %v209, %v211
      %v213 = vrot.slane %v199, %v212
      %v215 = vunpack.c.l.s4 1983009808
      %v216 = vunpack.c.0.s8 %v215
      %v217 = vlaneseq
      %v218 = vshrl.u32 %v217, 7
      %v219 = vsub.s32 %v216, %v218
      %v220 = vrot.slane %v206, %v219
      %v221 = vcombine.high %v213, %v213
      %v222 = vcombine.high %v220, %v220
      %v223 = vcombine.high %v200, %v200
      %v225 = vunpack.c.l.s4 1983009808
      %v226 = vunpack.c.0.s8 %v225
      %v227 = vlaneseq
      %v228 = vshrl.u32 %v227, 7
      %v229 = vsub.s32 %v226, %v228
      %v230 = vrot.slane %v200, %v229
      %v232 = vunpack.c.l.s4 1983009808
      %v233 = vunpack.c.0.s8 %v232
      %v234 = vlaneseq
      %v235 = vshrl.u32 %v234, 7
      %v236 = vsub.s32 %v233, %v235
      %v237 = vrot.slane %v223, %v236
      %v238 = vcombine.high %v230, %v230
      %239 = vrot.lane.b32.xlu0 %v213, 127
      %v240 = vpop.permute.xlu0 %239
      %241 = vrot.lane.b32.xlu0 %v221, 127
      %v242 = vpop.permute.xlu0 %241
      %243 = vrot.lane.b32.xlu0 %v220, 127
      %v244 = vpop.permute.xlu0 %243
      %245 = vrot.lane.b32.xlu0 %v222, 127
      %v246 = vpop.permute.xlu0 %245
      %247 = vrot.lane.b32.xlu0 %v230, 127
      %v248 = vpop.permute.xlu0 %247
      %249 = vrot.lane.b32.xlu0 %v238, 127
      %v250 = vpop.permute.xlu0 %249
      %251 = vrot.lane.b32.xlu0 %v237, 127
      %v252 = vpop.permute.xlu0 %251
      %vm253 = vcmask 1039360
      %v254 = vsel %vm253, %v240, %v242
      %v255 = vsel %vm253, %v242, %v244
      %v256 = vsel %vm253, %v244, %v246
      %v257 = vsel %vm253, %v246, %v248
      %v258 = vsel %vm253, %v248, %v250
      %v259 = vsel %vm253, %v250, %v252
      %vm260 = vcmask 23552
      %v262 = vsel %vm260, %v203, 0
      %vm264 = vcmask 1040384
      %vm265 = vcmask 1041408
      %v266 = vsel %vm264, 4294967295, 65535
      %v267 = vsel %vm265, %v266, 0
      %v269 = vand.u32 %v254, %v267
      %v272 = vand.u32 %v255, %v267
      %v275 = vand.u32 %v256, %v267
      %v278 = vand.u32 %v257, %v267
      %v281 = vand.u32 %v258, %v267
      %v284 = vand.u32 %v259, %v267
      %v287 = vand.u32 %v252, %v267
      %289 = vmatprep.subr.bf16.mxu0 %v272
      %290 = vmatpush1.bf16.msra.mxu0 %v269
      %291 = vmatprep.subr.bf16.mxu0 0
      %292 = vmatpush1.bf16.msra.mxu0 0
      %293 = vmatprep.subr.bf16.mxu0 0
      %294 = vmatpush1.bf16.msra.mxu0 0
      %295 = vmatprep.subr.bf16.mxu0 0
      %296 = vmatpush1.bf16.msra.mxu0 0
      %297 = vmatprep.subr.bf16.mxu0 0
      %298 = vmatpush1.bf16.msra.mxu0 0
      %299 = vmatprep.subr.bf16.mxu0 0
      %300 = vmatpush1.bf16.msra.mxu0 0
      %301 = vmatprep.subr.bf16.mxu0 0
      %302 = vmatpush1.bf16.msra.mxu0 0
      %303 = vmatprep.subr.bf16.mxu0 0
      %304 = vmatpush1.bf16.msra.mxu0 0
      %305 = vmatprep.subr.bf16.mxu0 0
      %306 = vmatpush1.bf16.msra.mxu0 0
      %307 = vmatprep.subr.bf16.mxu0 0
      %308 = vmatpush1.bf16.msra.mxu0 0
      %309 = vmatprep.subr.bf16.mxu0 0
      %310 = vmatpush1.bf16.msra.mxu0 0
      %311 = vmatprep.subr.bf16.mxu0 0
      %312 = vmatpush1.bf16.msra.mxu0 0
      %313 = vmatprep.subr.bf16.mxu0 0
      %314 = vmatpush1.bf16.msra.mxu0 0
      %315 = vmatprep.subr.bf16.mxu0 0
      %316 = vmatpush1.bf16.msra.mxu0 0
      %317 = vmatprep.subr.bf16.mxu0 0
      %318 = vmatpush1.bf16.msra.mxu0 0
      %319 = vmatprep.subr.bf16.mxu0 0
      %320 = vmatpush1.bf16.msra.mxu0 0
      %321 = vmatprep.mubr.bf16.mxu0 0
      %322 = vmatmul.mubr.bf16.gmra.mrb[0].mxu0 %v262
      %v323 = vpop.f32.mrb[0].mxu0
      %v324 = vadd.f32 0.0, %v323
      %v325 = vpop.f32.mrb[0].mxu0
      %v326 = vadd.f32 0.0, %v325
      %v327 = vpop.f32.mrb[0].mxu0
      %v328 = vpop.f32.mrb[0].mxu0
      %329 = vdwg.mxu0
      %330 = vmatprep.subr.bf16.mxu0 %v278
      %331 = vmatpush1.bf16.msra.mxu0 %v275
      %332 = vmatprep.subr.bf16.mxu0 0
      %333 = vmatpush1.bf16.msra.mxu0 0
      %334 = vmatprep.subr.bf16.mxu0 0
      %335 = vmatpush1.bf16.msra.mxu0 0
      %336 = vmatprep.subr.bf16.mxu0 0
      %337 = vmatpush1.bf16.msra.mxu0 0
      %338 = vmatprep.subr.bf16.mxu0 0
      %339 = vmatpush1.bf16.msra.mxu0 0
      %340 = vmatprep.subr.bf16.mxu0 0
      %341 = vmatpush1.bf16.msra.mxu0 0
      %342 = vmatprep.subr.bf16.mxu0 0
      %343 = vmatpush1.bf16.msra.mxu0 0
      %344 = vmatprep.subr.bf16.mxu0 0
      %345 = vmatpush1.bf16.msra.mxu0 0
      %346 = vmatprep.subr.bf16.mxu0 0
      %347 = vmatpush1.bf16.msra.mxu0 0
      %348 = vmatprep.subr.bf16.mxu0 0
      %349 = vmatpush1.bf16.msra.mxu0 0
      %350 = vmatprep.subr.bf16.mxu0 0
      %351 = vmatpush1.bf16.msra.mxu0 0
      %352 = vmatprep.subr.bf16.mxu0 0
      %353 = vmatpush1.bf16.msra.mxu0 0
      %354 = vmatprep.subr.bf16.mxu0 0
      %355 = vmatpush1.bf16.msra.mxu0 0
      %356 = vmatprep.subr.bf16.mxu0 0
      %357 = vmatpush1.bf16.msra.mxu0 0
      %358 = vmatprep.subr.bf16.mxu0 0
      %359 = vmatpush1.bf16.msra.mxu0 0
      %360 = vmatprep.subr.bf16.mxu0 0
      %361 = vmatpush1.bf16.msra.mxu0 0
      %362 = vmatprep.mubr.bf16.mxu0 0
      %363 = vmatmul.mubr.bf16.gmra.mrb[0].mxu0 %v262
      %v364 = vpop.f32.mrb[0].mxu0
      %v365 = vadd.f32 0.0, %v364
      %v366 = vpop.f32.mrb[0].mxu0
      %v367 = vadd.f32 0.0, %v366
      %v368 = vpop.f32.mrb[0].mxu0
      %v369 = vpop.f32.mrb[0].mxu0
      %370 = vdwg.mxu0
      %371 = vmatprep.subr.bf16.mxu0 %v284
      %372 = vmatpush1.bf16.msra.mxu0 %v281
      %373 = vmatprep.subr.bf16.mxu0 0
      %374 = vmatpush1.bf16.msra.mxu0 0
      %375 = vmatprep.subr.bf16.mxu0 0
      %376 = vmatpush1.bf16.msra.mxu0 0
      %377 = vmatprep.subr.bf16.mxu0 0
      %378 = vmatpush1.bf16.msra.mxu0 0
      %379 = vmatprep.subr.bf16.mxu0 0
      %380 = vmatpush1.bf16.msra.mxu0 0
      %381 = vmatprep.subr.bf16.mxu0 0
      %382 = vmatpush1.bf16.msra.mxu0 0
      %383 = vmatprep.subr.bf16.mxu0 0
      %384 = vmatpush1.bf16.msra.mxu0 0
      %385 = vmatprep.subr.bf16.mxu0 0
      %386 = vmatpush1.bf16.msra.mxu0 0
      %387 = vmatprep.subr.bf16.mxu0 0
      %388 = vmatpush1.bf16.msra.mxu0 0
      %389 = vmatprep.subr.bf16.mxu0 0
      %390 = vmatpush1.bf16.msra.mxu0 0
      %391 = vmatprep.subr.bf16.mxu0 0
      %392 = vmatpush1.bf16.msra.mxu0 0
      %393 = vmatprep.subr.bf16.mxu0 0
      %394 = vmatpush1.bf16.msra.mxu0 0
      %395 = vmatprep.subr.bf16.mxu0 0
      %396 = vmatpush1.bf16.msra.mxu0 0
      %397 = vmatprep.subr.bf16.mxu0 0
      %398 = vmatpush1.bf16.msra.mxu0 0
      %399 = vmatprep.subr.bf16.mxu0 0
      %400 = vmatpush1.bf16.msra.mxu0 0
      %401 = vmatprep.subr.bf16.mxu0 0
      %402 = vmatpush1.bf16.msra.mxu0 0
      %403 = vmatprep.mubr.bf16.mxu0 0
      %404 = vmatmul.mubr.bf16.gmra.mrb[0].mxu0 %v262
      %v405 = vpop.f32.mrb[0].mxu0
      %v406 = vadd.f32 0.0, %v405
      %v407 = vpop.f32.mrb[0].mxu0
      %v408 = vadd.f32 0.0, %v407
      %v409 = vpop.f32.mrb[0].mxu0
      %v410 = vpop.f32.mrb[0].mxu0
      %411 = vdwg.mxu0
      %412 = vmatprep.subr.bf16.mxu0 0
      %413 = vmatpush1.bf16.msra.mxu0 %v287
      %414 = vmatprep.subr.bf16.mxu0 0
      %415 = vmatpush1.bf16.msra.mxu0 0
      %416 = vmatprep.subr.bf16.mxu0 0
      %417 = vmatpush1.bf16.msra.mxu0 0
      %418 = vmatprep.subr.bf16.mxu0 0
      %419 = vmatpush1.bf16.msra.mxu0 0
      %420 = vmatprep.subr.bf16.mxu0 0
      %421 = vmatpush1.bf16.msra.mxu0 0
      %422 = vmatprep.subr.bf16.mxu0 0
      %423 = vmatpush1.bf16.msra.mxu0 0
      %424 = vmatprep.subr.bf16.mxu0 0
      %425 = vmatpush1.bf16.msra.mxu0 0
      %426 = vmatprep.subr.bf16.mxu0 0
      %427 = vmatpush1.bf16.msra.mxu0 0
      %428 = vmatprep.subr.bf16.mxu0 0
      %429 = vmatpush1.bf16.msra.mxu0 0
      %430 = vmatprep.subr.bf16.mxu0 0
      %431 = vmatpush1.bf16.msra.mxu0 0
      %432 = vmatprep.subr.bf16.mxu0 0
      %433 = vmatpush1.bf16.msra.mxu0 0
      %434 = vmatprep.subr.bf16.mxu0 0
      %435 = vmatpush1.bf16.msra.mxu0 0
      %436 = vmatprep.subr.bf16.mxu0 0
      %437 = vmatpush1.bf16.msra.mxu0 0
      %438 = vmatprep.subr.bf16.mxu0 0
      %439 = vmatpush1.bf16.msra.mxu0 0
      %440 = vmatprep.subr.bf16.mxu0 0
      %441 = vmatpush1.bf16.msra.mxu0 0
      %442 = vmatprep.subr.bf16.mxu0 0
      %443 = vmatpush1.bf16.msra.mxu0 0
      %444 = vmatprep.mubr.bf16.mxu0 0
      %445 = vmatmul.mubr.bf16.gmra.mrb[0].mxu0 %v262
      %v446 = vpop.f32.mrb[0].mxu0
      %v447 = vadd.f32 0.0, %v446
      %v448 = vpop.f32.mrb[0].mxu0
      %v449 = vpop.f32.mrb[0].mxu0
      %v450 = vpop.f32.mrb[0].mxu0
      %451 = vdwg.mxu0
      %v453 = vsel %vm260, %v201, 0
      %v456 = vand.u32 %v213, %v267
      %v459 = vand.u32 %v221, %v267
      %v462 = vand.u32 %v220, %v267
      %v465 = vand.u32 %v222, %v267
      %v468 = vand.u32 %v230, %v267
      %v471 = vand.u32 %v238, %v267
      %v474 = vand.u32 %v237, %v267
      %476 = vmatprep.subr.bf16.mxu0 %v459
      %477 = vmatpush1.bf16.msra.mxu0 %v456
      %478 = vmatprep.subr.bf16.mxu0 0
      %479 = vmatpush1.bf16.msra.mxu0 0
      %480 = vmatprep.subr.bf16.mxu0 0
      %481 = vmatpush1.bf16.msra.mxu0 0
      %482 = vmatprep.subr.bf16.mxu0 0
      %483 = vmatpush1.bf16.msra.mxu0 0
      %484 = vmatprep.subr.bf16.mxu0 0
      %485 = vmatpush1.bf16.msra.mxu0 0
      %486 = vmatprep.subr.bf16.mxu0 0
      %487 = vmatpush1.bf16.msra.mxu0 0
      %488 = vmatprep.subr.bf16.mxu0 0
      %489 = vmatpush1.bf16.msra.mxu0 0
      %490 = vmatprep.subr.bf16.mxu0 0
      %491 = vmatpush1.bf16.msra.mxu0 0
      %492 = vmatprep.subr.bf16.mxu0 0
      %493 = vmatpush1.bf16.msra.mxu0 0
      %494 = vmatprep.subr.bf16.mxu0 0
      %495 = vmatpush1.bf16.msra.mxu0 0
      %496 = vmatprep.subr.bf16.mxu0 0
      %497 = vmatpush1.bf16.msra.mxu0 0
      %498 = vmatprep.subr.bf16.mxu0 0
      %499 = vmatpush1.bf16.msra.mxu0 0
      %500 = vmatprep.subr.bf16.mxu0 0
      %501 = vmatpush1.bf16.msra.mxu0 0
      %502 = vmatprep.subr.bf16.mxu0 0
      %503 = vmatpush1.bf16.msra.mxu0 0
      %504 = vmatprep.subr.bf16.mxu0 0
      %505 = vmatpush1.bf16.msra.mxu0 0
      %506 = vmatprep.subr.bf16.mxu0 0
      %507 = vmatpush1.bf16.msra.mxu0 0
      %508 = vmatprep.mubr.bf16.mxu0 0
      %509 = vmatmul.mubr.bf16.gmra.mrb[0].mxu0 %v453
      %v510 = vpop.f32.mrb[0].mxu0
      %v511 = vadd.f32 %v324, %v510
      %v512 = vpop.f32.mrb[0].mxu0
      %v513 = vadd.f32 %v326, %v512
      %v514 = vpop.f32.mrb[0].mxu0
      %v515 = vpop.f32.mrb[0].mxu0
      %516 = vdwg.mxu0
      %517 = vmatprep.subr.bf16.mxu0 %v465
      %518 = vmatpush1.bf16.msra.mxu0 %v462
      %519 = vmatprep.subr.bf16.mxu0 0
      %520 = vmatpush1.bf16.msra.mxu0 0
      %521 = vmatprep.subr.bf16.mxu0 0
      %522 = vmatpush1.bf16.msra.mxu0 0
      %523 = vmatprep.subr.bf16.mxu0 0
      %524 = vmatpush1.bf16.msra.mxu0 0
      %525 = vmatprep.subr.bf16.mxu0 0
      %526 = vmatpush1.bf16.msra.mxu0 0
      %527 = vmatprep.subr.bf16.mxu0 0
      %528 = vmatpush1.bf16.msra.mxu0 0
      %529 = vmatprep.subr.bf16.mxu0 0
      %530 = vmatpush1.bf16.msra.mxu0 0
      %531 = vmatprep.subr.bf16.mxu0 0
      %532 = vmatpush1.bf16.msra.mxu0 0
      %533 = vmatprep.subr.bf16.mxu0 0
      %534 = vmatpush1.bf16.msra.mxu0 0
      %535 = vmatprep.subr.bf16.mxu0 0
      %536 = vmatpush1.bf16.msra.mxu0 0
      %537 = vmatprep.subr.bf16.mxu0 0
      %538 = vmatpush1.bf16.msra.mxu0 0
      %539 = vmatprep.subr.bf16.mxu0 0
      %540 = vmatpush1.bf16.msra.mxu0 0
      %541 = vmatprep.subr.bf16.mxu0 0
      %542 = vmatpush1.bf16.msra.mxu0 0
      %543 = vmatprep.subr.bf16.mxu0 0
      %544 = vmatpush1.bf16.msra.mxu0 0
      %545 = vmatprep.subr.bf16.mxu0 0
      %546 = vmatpush1.bf16.msra.mxu0 0
      %547 = vmatprep.subr.bf16.mxu0 0
      %548 = vmatpush1.bf16.msra.mxu0 0
      %549 = vmatprep.mubr.bf16.mxu0 0
      %550 = vmatmul.mubr.bf16.gmra.mrb[0].mxu0 %v453
      %v551 = vpop.f32.mrb[0].mxu0
      %v552 = vadd.f32 %v365, %v551
      %v553 = vpop.f32.mrb[0].mxu0
      %v554 = vadd.f32 %v367, %v553
      %v555 = vpop.f32.mrb[0].mxu0
      %v556 = vpop.f32.mrb[0].mxu0
      %557 = vdwg.mxu0
      %558 = vmatprep.subr.bf16.mxu0 %v471
      %559 = vmatpush1.bf16.msra.mxu0 %v468
      %560 = vmatprep.subr.bf16.mxu0 0
      %561 = vmatpush1.bf16.msra.mxu0 0
      %562 = vmatprep.subr.bf16.mxu0 0
      %563 = vmatpush1.bf16.msra.mxu0 0
      %564 = vmatprep.subr.bf16.mxu0 0
      %565 = vmatpush1.bf16.msra.mxu0 0
      %566 = vmatprep.subr.bf16.mxu0 0
      %567 = vmatpush1.bf16.msra.mxu0 0
      %568 = vmatprep.subr.bf16.mxu0 0
      %569 = vmatpush1.bf16.msra.mxu0 0
      %570 = vmatprep.subr.bf16.mxu0 0
      %571 = vmatpush1.bf16.msra.mxu0 0
      %572 = vmatprep.subr.bf16.mxu0 0
      %573 = vmatpush1.bf16.msra.mxu0 0
      %574 = vmatprep.subr.bf16.mxu0 0
      %575 = vmatpush1.bf16.msra.mxu0 0
      %576 = vmatprep.subr.bf16.mxu0 0
      %577 = vmatpush1.bf16.msra.mxu0 0
      %578 = vmatprep.subr.bf16.mxu0 0
      %579 = vmatpush1.bf16.msra.mxu0 0
      %580 = vmatprep.subr.bf16.mxu0 0
      %581 = vmatpush1.bf16.msra.mxu0 0
      %582 = vmatprep.subr.bf16.mxu0 0
      %583 = vmatpush1.bf16.msra.mxu0 0
      %584 = vmatprep.subr.bf16.mxu0 0
      %585 = vmatpush1.bf16.msra.mxu0 0
      %586 = vmatprep.subr.bf16.mxu0 0
      %587 = vmatpush1.bf16.msra.mxu0 0
      %588 = vmatprep.subr.bf16.mxu0 0
      %589 = vmatpush1.bf16.msra.mxu0 0
      %590 = vmatprep.mubr.bf16.mxu0 0
      %591 = vmatmul.mubr.bf16.gmra.mrb[0].mxu0 %v453
      %v592 = vpop.f32.mrb[0].mxu0
      %v593 = vadd.f32 %v406, %v592
      %v594 = vpop.f32.mrb[0].mxu0
      %v595 = vadd.f32 %v408, %v594
      %v596 = vpop.f32.mrb[0].mxu0
      %v597 = vpop.f32.mrb[0].mxu0
      %598 = vdwg.mxu0
      %599 = vmatprep.subr.bf16.mxu0 0
      %600 = vmatpush1.bf16.msra.mxu0 %v474
      %601 = vmatprep.subr.bf16.mxu0 0
      %602 = vmatpush1.bf16.msra.mxu0 0
      %603 = vmatprep.subr.bf16.mxu0 0
      %604 = vmatpush1.bf16.msra.mxu0 0
      %605 = vmatprep.subr.bf16.mxu0 0
      %606 = vmatpush1.bf16.msra.mxu0 0
      %607 = vmatprep.subr.bf16.mxu0 0
      %608 = vmatpush1.bf16.msra.mxu0 0
      %609 = vmatprep.subr.bf16.mxu0 0
      %610 = vmatpush1.bf16.msra.mxu0 0
      %611 = vmatprep.subr.bf16.mxu0 0
      %612 = vmatpush1.bf16.msra.mxu0 0
      %613 = vmatprep.subr.bf16.mxu0 0
      %614 = vmatpush1.bf16.msra.mxu0 0
      %615 = vmatprep.subr.bf16.mxu0 0
      %616 = vmatpush1.bf16.msra.mxu0 0
      %617 = vmatprep.subr.bf16.mxu0 0
      %618 = vmatpush1.bf16.msra.mxu0 0
      %619 = vmatprep.subr.bf16.mxu0 0
      %620 = vmatpush1.bf16.msra.mxu0 0
      %621 = vmatprep.subr.bf16.mxu0 0
      %622 = vmatpush1.bf16.msra.mxu0 0
      %623 = vmatprep.subr.bf16.mxu0 0
      %624 = vmatpush1.bf16.msra.mxu0 0
      %625 = vmatprep.subr.bf16.mxu0 0
      %626 = vmatpush1.bf16.msra.mxu0 0
      %627 = vmatprep.subr.bf16.mxu0 0
      %628 = vmatpush1.bf16.msra.mxu0 0
      %629 = vmatprep.subr.bf16.mxu0 0
      %630 = vmatpush1.bf16.msra.mxu0 0
      %631 = vmatprep.mubr.bf16.mxu0 0
      %632 = vmatmul.mubr.bf16.gmra.mrb[0].mxu0 %v453
      %v633 = vpop.f32.mrb[0].mxu0
      %v634 = vadd.f32 %v447, %v633
      %v635 = vpop.f32.mrb[0].mxu0
      %v636 = vpop.f32.mrb[0].mxu0
      %v637 = vpop.f32.mrb[0].mxu0
      %638 = vdwg.mxu0
      %s639 = scalar_lea.vmem %s1, 8
      %v640 = vld [vmem:[%s639] sm:$0x7]
      %641 = vrot.lane.b32.xlu0 %v213, 126
      %v642 = vpop.permute.xlu0 %641
      %643 = vrot.lane.b32.xlu0 %v221, 126
      %v644 = vpop.permute.xlu0 %643
      %645 = vrot.lane.b32.xlu0 %v220, 126
      %v646 = vpop.permute.xlu0 %645
      %647 = vrot.lane.b32.xlu0 %v222, 126
      %v648 = vpop.permute.xlu0 %647
      %649 = vrot.lane.b32.xlu0 %v230, 126
      %v650 = vpop.permute.xlu0 %649
      %651 = vrot.lane.b32.xlu0 %v238, 126
      %v652 = vpop.permute.xlu0 %651
      %653 = vrot.lane.b32.xlu0 %v237, 126
      %v654 = vpop.permute.xlu0 %653
      %vm655 = vcmask 1031168
      %v656 = vsel %vm655, %v642, %v644
      %v657 = vsel %vm655, %v644, %v646
      %v658 = vsel %vm655, %v646, %v648
      %v659 = vsel %vm655, %v648, %v650
      %v660 = vsel %vm655, %v650, %v652
      %v661 = vsel %vm655, %v652, %v654
      %v663 = vsel %vm260, %v640, 0
      %v666 = vand.u32 %v656, %v267
      %v669 = vand.u32 %v657, %v267
      %v672 = vand.u32 %v658, %v267
      %v675 = vand.u32 %v659, %v267
      %v678 = vand.u32 %v660, %v267
      %v681 = vand.u32 %v661, %v267
      %v684 = vand.u32 %v654, %v267
      %686 = vmatprep.subr.bf16.mxu0 %v669
      %687 = vmatpush1.bf16.msra.mxu0 %v666
      %688 = vmatprep.subr.bf16.mxu0 0
      %689 = vmatpush1.bf16.msra.mxu0 0
      %690 = vmatprep.subr.bf16.mxu0 0
      %691 = vmatpush1.bf16.msra.mxu0 0
      %692 = vmatprep.subr.bf16.mxu0 0
      %693 = vmatpush1.bf16.msra.mxu0 0
      %694 = vmatprep.subr.bf16.mxu0 0
      %695 = vmatpush1.bf16.msra.mxu0 0
      %696 = vmatprep.subr.bf16.mxu0 0
      %697 = vmatpush1.bf16.msra.mxu0 0
      %698 = vmatprep.subr.bf16.mxu0 0
      %699 = vmatpush1.bf16.msra.mxu0 0
      %700 = vmatprep.subr.bf16.mxu0 0
      %701 = vmatpush1.bf16.msra.mxu0 0
      %702 = vmatprep.subr.bf16.mxu0 0
      %703 = vmatpush1.bf16.msra.mxu0 0
      %704 = vmatprep.subr.bf16.mxu0 0
      %705 = vmatpush1.bf16.msra.mxu0 0
      %706 = vmatprep.subr.bf16.mxu0 0
      %707 = vmatpush1.bf16.msra.mxu0 0
      %708 = vmatprep.subr.bf16.mxu0 0
      %709 = vmatpush1.bf16.msra.mxu0 0
      %710 = vmatprep.subr.bf16.mxu0 0
      %711 = vmatpush1.bf16.msra.mxu0 0
      %712 = vmatprep.subr.bf16.mxu0 0
      %713 = vmatpush1.bf16.msra.mxu0 0
      %714 = vmatprep.subr.bf16.mxu0 0
      %715 = vmatpush1.bf16.msra.mxu0 0
      %716 = vmatprep.subr.bf16.mxu0 0
      %717 = vmatpush1.bf16.msra.mxu0 0
      %718 = vmatprep.mubr.bf16.mxu0 0
      %719 = vmatmul.mubr.bf16.gmra.mrb[0].mxu0 %v663
      %v720 = vpop.f32.mrb[0].mxu0
      %v721 = vadd.f32 0.0, %v720
      %v722 = vpop.f32.mrb[0].mxu0
      %v723 = vadd.f32 0.0, %v722
      %v724 = vpop.f32.mrb[0].mxu0
      %v725 = vpop.f32.mrb[0].mxu0
      %726 = vdwg.mxu0
      %727 = vmatprep.subr.bf16.mxu0 %v675
      %728 = vmatpush1.bf16.msra.mxu0 %v672
      %729 = vmatprep.subr.bf16.mxu0 0
      %730 = vmatpush1.bf16.msra.mxu0 0
      %731 = vmatprep.subr.bf16.mxu0 0
      %732 = vmatpush1.bf16.msra.mxu0 0
      %733 = vmatprep.subr.bf16.mxu0 0
      %734 = vmatpush1.bf16.msra.mxu0 0
      %735 = vmatprep.subr.bf16.mxu0 0
      %736 = vmatpush1.bf16.msra.mxu0 0
      %737 = vmatprep.subr.bf16.mxu0 0
      %738 = vmatpush1.bf16.msra.mxu0 0
      %739 = vmatprep.subr.bf16.mxu0 0
      %740 = vmatpush1.bf16.msra.mxu0 0
      %741 = vmatprep.subr.bf16.mxu0 0
      %742 = vmatpush1.bf16.msra.mxu0 0
      %743 = vmatprep.subr.bf16.mxu0 0
      %744 = vmatpush1.bf16.msra.mxu0 0
      %745 = vmatprep.subr.bf16.mxu0 0
      %746 = vmatpush1.bf16.msra.mxu0 0
      %747 = vmatprep.subr.bf16.mxu0 0
      %748 = vmatpush1.bf16.msra.mxu0 0
      %749 = vmatprep.subr.bf16.mxu0 0
      %750 = vmatpush1.bf16.msra.mxu0 0
      %751 = vmatprep.subr.bf16.mxu0 0
      %752 = vmatpush1.bf16.msra.mxu0 0
      %753 = vmatprep.subr.bf16.mxu0 0
      %754 = vmatpush1.bf16.msra.mxu0 0
      %755 = vmatprep.subr.bf16.mxu0 0
      %756 = vmatpush1.bf16.msra.mxu0 0
      %757 = vmatprep.subr.bf16.mxu0 0
      %758 = vmatpush1.bf16.msra.mxu0 0
      %759 = vmatprep.mubr.bf16.mxu0 0
      %760 = vmatmul.mubr.bf16.gmra.mrb[0].mxu0 %v663
      %v761 = vpop.f32.mrb[0].mxu0
      %v762 = vadd.f32 0.0, %v761
      %v763 = vpop.f32.mrb[0].mxu0
      %v764 = vadd.f32 0.0, %v763
      %v765 = vpop.f32.mrb[0].mxu0
      %v766 = vpop.f32.mrb[0].mxu0
      %767 = vdwg.mxu0
      %768 = vmatprep.subr.bf16.mxu0 %v681
      %769 = vmatpush1.bf16.msra.mxu0 %v678
      %770 = vmatprep.subr.bf16.mxu0 0
      %771 = vmatpush1.bf16.msra.mxu0 0
      %772 = vmatprep.subr.bf16.mxu0 0
      %773 = vmatpush1.bf16.msra.mxu0 0
      %774 = vmatprep.subr.bf16.mxu0 0
      %775 = vmatpush1.bf16.msra.mxu0 0
      %776 = vmatprep.subr.bf16.mxu0 0
      %777 = vmatpush1.bf16.msra.mxu0 0
      %778 = vmatprep.subr.bf16.mxu0 0
      %779 = vmatpush1.bf16.msra.mxu0 0
      %780 = vmatprep.subr.bf16.mxu0 0
      %781 = vmatpush1.bf16.msra.mxu0 0
      %782 = vmatprep.subr.bf16.mxu0 0
      %783 = vmatpush1.bf16.msra.mxu0 0
      %784 = vmatprep.subr.bf16.mxu0 0
      %785 = vmatpush1.bf16.msra.mxu0 0
      %786 = vmatprep.subr.bf16.mxu0 0
      %787 = vmatpush1.bf16.msra.mxu0 0
      %788 = vmatprep.subr.bf16.mxu0 0
      %789 = vmatpush1.bf16.msra.mxu0 0
      %790 = vmatprep.subr.bf16.mxu0 0
      %791 = vmatpush1.bf16.msra.mxu0 0
      %792 = vmatprep.subr.bf16.mxu0 0
      %793 = vmatpush1.bf16.msra.mxu0 0
      %794 = vmatprep.subr.bf16.mxu0 0
      %795 = vmatpush1.bf16.msra.mxu0 0
      %796 = vmatprep.subr.bf16.mxu0 0
      %797 = vmatpush1.bf16.msra.mxu0 0
      %798 = vmatprep.subr.bf16.mxu0 0
      %799 = vmatpush1.bf16.msra.mxu0 0
      %800 = vmatprep.mubr.bf16.mxu0 0
      %801 = vmatmul.mubr.bf16.gmra.mrb[0].mxu0 %v663
      %v802 = vpop.f32.mrb[0].mxu0
      %v803 = vadd.f32 0.0, %v802
      %v804 = vpop.f32.mrb[0].mxu0
      %v805 = vadd.f32 0.0, %v804
      %v806 = vpop.f32.mrb[0].mxu0
      %v807 = vpop.f32.mrb[0].mxu0
      %808 = vdwg.mxu0
      %809 = vmatprep.subr.bf16.mxu0 0
      %810 = vmatpush1.bf16.msra.mxu0 %v684
      %811 = vmatprep.subr.bf16.mxu0 0
      %812 = vmatpush1.bf16.msra.mxu0 0
      %813 = vmatprep.subr.bf16.mxu0 0
      %814 = vmatpush1.bf16.msra.mxu0 0
      %815 = vmatprep.subr.bf16.mxu0 0
      %816 = vmatpush1.bf16.msra.mxu0 0
      %817 = vmatprep.subr.bf16.mxu0 0
      %818 = vmatpush1.bf16.msra.mxu0 0
      %819 = vmatprep.subr.bf16.mxu0 0
      %820 = vmatpush1.bf16.msra.mxu0 0
      %821 = vmatprep.subr.bf16.mxu0 0
      %822 = vmatpush1.bf16.msra.mxu0 0
      %823 = vmatprep.subr.bf16.mxu0 0
      %824 = vmatpush1.bf16.msra.mxu0 0
      %825 = vmatprep.subr.bf16.mxu0 0
      %826 = vmatpush1.bf16.msra.mxu0 0
      %827 = vmatprep.subr.bf16.mxu0 0
      %828 = vmatpush1.bf16.msra.mxu0 0
      %829 = vmatprep.subr.bf16.mxu0 0
      %830 = vmatpush1.bf16.msra.mxu0 0
      %831 = vmatprep.subr.bf16.mxu0 0
      %832 = vmatpush1.bf16.msra.mxu0 0
      %833 = vmatprep.subr.bf16.mxu0 0
      %834 = vmatpush1.bf16.msra.mxu0 0
      %835 = vmatprep.subr.bf16.mxu0 0
      %836 = vmatpush1.bf16.msra.mxu0 0
      %837 = vmatprep.subr.bf16.mxu0 0
      %838 = vmatpush1.bf16.msra.mxu0 0
      %839 = vmatprep.subr.bf16.mxu0 0
      %840 = vmatpush1.bf16.msra.mxu0 0
      %841 = vmatprep.mubr.bf16.mxu0 0
      %842 = vmatmul.mubr.bf16.gmra.mrb[0].mxu0 %v663
      %v843 = vpop.f32.mrb[0].mxu0
      %v844 = vadd.f32 0.0, %v843
      %v845 = vpop.f32.mrb[0].mxu0
      %v846 = vpop.f32.mrb[0].mxu0
      %v847 = vpop.f32.mrb[0].mxu0
      %848 = vdwg.mxu0
      %v849 = vadd.f32 %v511, %v721
      %v850 = vadd.f32 %v513, %v723
      %v851 = vadd.f32 %v552, %v762
      %v852 = vadd.f32 %v554, %v764
      %v853 = vadd.f32 %v593, %v803
      %v854 = vadd.f32 %v595, %v805
      %v855 = vadd.f32 %v634, %v844
      %s856 = scalar_lea.vmem %s1, 12
      %v857 = vld [vmem:[%s856] sm:$0x7]
      %858 = vrot.lane.b32.xlu0 %v213, 125
      %v859 = vpop.permute.xlu0 %858
      %860 = vrot.lane.b32.xlu0 %v221, 125
      %v861 = vpop.permute.xlu0 %860
      %862 = vrot.lane.b32.xlu0 %v220, 125
      %v863 = vpop.permute.xlu0 %862
      %864 = vrot.lane.b32.xlu0 %v222, 125
      %v865 = vpop.permute.xlu0 %864
      %866 = vrot.lane.b32.xlu0 %v230, 125
      %v867 = vpop.permute.xlu0 %866
      %868 = vrot.lane.b32.xlu0 %v238, 125
      %v869 = vpop.permute.xlu0 %868
      %870 = vrot.lane.b32.xlu0 %v237, 125
      %v871 = vpop.permute.xlu0 %870
      %vm872 = vcmask 1022976
      %v873 = vsel %vm872, %v859, %v861
      %v874 = vsel %vm872, %v861, %v863
      %v875 = vsel %vm872, %v863, %v865
      %v876 = vsel %vm872, %v865, %v867
      %v877 = vsel %vm872, %v867, %v869
      %v878 = vsel %vm872, %v869, %v871
      %v880 = vsel %vm260, %v857, 0
      %v883 = vand.u32 %v873, %v267
      %v886 = vand.u32 %v874, %v267
      %v889 = vand.u32 %v875, %v267
      %v892 = vand.u32 %v876, %v267
      %v895 = vand.u32 %v877, %v267
      %v898 = vand.u32 %v878, %v267
      %v901 = vand.u32 %v871, %v267
      %903 = vmatprep.subr.bf16.mxu0 %v886
      %904 = vmatpush1.bf16.msra.mxu0 %v883
      %905 = vmatprep.subr.bf16.mxu0 0
      %906 = vmatpush1.bf16.msra.mxu0 0
      %907 = vmatprep.subr.bf16.mxu0 0
      %908 = vmatpush1.bf16.msra.mxu0 0
      %909 = vmatprep.subr.bf16.mxu0 0
      %910 = vmatpush1.bf16.msra.mxu0 0
      %911 = vmatprep.subr.bf16.mxu0 0
      %912 = vmatpush1.bf16.msra.mxu0 0
      %913 = vmatprep.subr.bf16.mxu0 0
      %914 = vmatpush1.bf16.msra.mxu0 0
      %915 = vmatprep.subr.bf16.mxu0 0
      %916 = vmatpush1.bf16.msra.mxu0 0
      %917 = vmatprep.subr.bf16.mxu0 0
      %918 = vmatpush1.bf16.msra.mxu0 0
      %919 = vmatprep.subr.bf16.mxu0 0
      %920 = vmatpush1.bf16.msra.mxu0 0
      %921 = vmatprep.subr.bf16.mxu0 0
      %922 = vmatpush1.bf16.msra.mxu0 0
      %923 = vmatprep.subr.bf16.mxu0 0
      %924 = vmatpush1.bf16.msra.mxu0 0
      %925 = vmatprep.subr.bf16.mxu0 0
      %926 = vmatpush1.bf16.msra.mxu0 0
      %927 = vmatprep.subr.bf16.mxu0 0
      %928 = vmatpush1.bf16.msra.mxu0 0
      %929 = vmatprep.subr.bf16.mxu0 0
      %930 = vmatpush1.bf16.msra.mxu0 0
      %931 = vmatprep.subr.bf16.mxu0 0
      %932 = vmatpush1.bf16.msra.mxu0 0
      %933 = vmatprep.subr.bf16.mxu0 0
      %934 = vmatpush1.bf16.msra.mxu0 0
      %935 = vmatprep.mubr.bf16.mxu0 0
      %936 = vmatmul.mubr.bf16.gmra.mrb[0].mxu0 %v880
      %v937 = vpop.f32.mrb[0].mxu0
      %v938 = vadd.f32 0.0, %v937
      %v939 = vpop.f32.mrb[0].mxu0
      %v940 = vadd.f32 0.0, %v939
      %v941 = vpop.f32.mrb[0].mxu0
      %v942 = vpop.f32.mrb[0].mxu0
      %943 = vdwg.mxu0
      %944 = vmatprep.subr.bf16.mxu0 %v892
      %945 = vmatpush1.bf16.msra.mxu0 %v889
      %946 = vmatprep.subr.bf16.mxu0 0
      %947 = vmatpush1.bf16.msra.mxu0 0
      %948 = vmatprep.subr.bf16.mxu0 0
      %949 = vmatpush1.bf16.msra.mxu0 0
      %950 = vmatprep.subr.bf16.mxu0 0
      %951 = vmatpush1.bf16.msra.mxu0 0
      %952 = vmatprep.subr.bf16.mxu0 0
      %953 = vmatpush1.bf16.msra.mxu0 0
      %954 = vmatprep.subr.bf16.mxu0 0
      %955 = vmatpush1.bf16.msra.mxu0 0
      %956 = vmatprep.subr.bf16.mxu0 0
      %957 = vmatpush1.bf16.msra.mxu0 0
      %958 = vmatprep.subr.bf16.mxu0 0
      %959 = vmatpush1.bf16.msra.mxu0 0
      %960 = vmatprep.subr.bf16.mxu0 0
      %961 = vmatpush1.bf16.msra.mxu0 0
      %962 = vmatprep.subr.bf16.mxu0 0
      %963 = vmatpush1.bf16.msra.mxu0 0
      %964 = vmatprep.subr.bf16.mxu0 0
      %965 = vmatpush1.bf16.msra.mxu0 0
      %966 = vmatprep.subr.bf16.mxu0 0
      %967 = vmatpush1.bf16.msra.mxu0 0
      %968 = vmatprep.subr.bf16.mxu0 0
      %969 = vmatpush1.bf16.msra.mxu0 0
      %970 = vmatprep.subr.bf16.mxu0 0
      %971 = vmatpush1.bf16.msra.mxu0 0
      %972 = vmatprep.subr.bf16.mxu0 0
      %973 = vmatpush1.bf16.msra.mxu0 0
      %974 = vmatprep.subr.bf16.mxu0 0
      %975 = vmatpush1.bf16.msra.mxu0 0
      %976 = vmatprep.mubr.bf16.mxu0 0
      %977 = vmatmul.mubr.bf16.gmra.mrb[0].mxu0 %v880
      %v978 = vpop.f32.mrb[0].mxu0
      %v979 = vadd.f32 0.0, %v978
      %v980 = vpop.f32.mrb[0].mxu0
      %v981 = vadd.f32 0.0, %v980
      %v982 = vpop.f32.mrb[0].mxu0
      %v983 = vpop.f32.mrb[0].mxu0
      %984 = vdwg.mxu0
      %985 = vmatprep.subr.bf16.mxu0 %v898
      %986 = vmatpush1.bf16.msra.mxu0 %v895
      %987 = vmatprep.subr.bf16.mxu0 0
      %988 = vmatpush1.bf16.msra.mxu0 0
      %989 = vmatprep.subr.bf16.mxu0 0
      %990 = vmatpush1.bf16.msra.mxu0 0
      %991 = vmatprep.subr.bf16.mxu0 0
      %992 = vmatpush1.bf16.msra.mxu0 0
      %993 = vmatprep.subr.bf16.mxu0 0
      %994 = vmatpush1.bf16.msra.mxu0 0
      %995 = vmatprep.subr.bf16.mxu0 0
      %996 = vmatpush1.bf16.msra.mxu0 0
      %997 = vmatprep.subr.bf16.mxu0 0
      %998 = vmatpush1.bf16.msra.mxu0 0
      %999 = vmatprep.subr.bf16.mxu0 0
      %1000 = vmatpush1.bf16.msra.mxu0 0
      %1001 = vmatprep.subr.bf16.mxu0 0
      %1002 = vmatpush1.bf16.msra.mxu0 0
      %1003 = vmatprep.subr.bf16.mxu0 0
      %1004 = vmatpush1.bf16.msra.mxu0 0
      %1005 = vmatprep.subr.bf16.mxu0 0
      %1006 = vmatpush1.bf16.msra.mxu0 0
      %1007 = vmatprep.subr.bf16.mxu0 0
      %1008 = vmatpush1.bf16.msra.mxu0 0
      %1009 = vmatprep.subr.bf16.mxu0 0
      %1010 = vmatpush1.bf16.msra.mxu0 0
      %1011 = vmatprep.subr.bf16.mxu0 0
      %1012 = vmatpush1.bf16.msra.mxu0 0
      %1013 = vmatprep.subr.bf16.mxu0 0
      %1014 = vmatpush1.bf16.msra.mxu0 0
      %1015 = vmatprep.subr.bf16.mxu0 0
      %1016 = vmatpush1.bf16.msra.mxu0 0
      %1017 = vmatprep.mubr.bf16.mxu0 0
      %1018 = vmatmul.mubr.bf16.gmra.mrb[0].mxu0 %v880
      %v1019 = vpop.f32.mrb[0].mxu0
      %v1020 = vadd.f32 0.0, %v1019
      %v1021 = vpop.f32.mrb[0].mxu0
      %v1022 = vadd.f32 0.0, %v1021
      %v1023 = vpop.f32.mrb[0].mxu0
      %v1024 = vpop.f32.mrb[0].mxu0
      %1025 = vdwg.mxu0
      %1026 = vmatprep.subr.bf16.mxu0 0
      %1027 = vmatpush1.bf16.msra.mxu0 %v901
      %1028 = vmatprep.subr.bf16.mxu0 0
      %1029 = vmatpush1.bf16.msra.mxu0 0
      %1030 = vmatprep.subr.bf16.mxu0 0
      %1031 = vmatpush1.bf16.msra.mxu0 0
      %1032 = vmatprep.subr.bf16.mxu0 0
      %1033 = vmatpush1.bf16.msra.mxu0 0
      %1034 = vmatprep.subr.bf16.mxu0 0
      %1035 = vmatpush1.bf16.msra.mxu0 0
      %1036 = vmatprep.subr.bf16.mxu0 0
      %1037 = vmatpush1.bf16.msra.mxu0 0
      %1038 = vmatprep.subr.bf16.mxu0 0
      %1039 = vmatpush1.bf16.msra.mxu0 0
      %1040 = vmatprep.subr.bf16.mxu0 0
      %1041 = vmatpush1.bf16.msra.mxu0 0
      %1042 = vmatprep.subr.bf16.mxu0 0
      %1043 = vmatpush1.bf16.msra.mxu0 0
      %1044 = vmatprep.subr.bf16.mxu0 0
      %1045 = vmatpush1.bf16.msra.mxu0 0
      %1046 = vmatprep.subr.bf16.mxu0 0
      %1047 = vmatpush1.bf16.msra.mxu0 0
      %1048 = vmatprep.subr.bf16.mxu0 0
      %1049 = vmatpush1.bf16.msra.mxu0 0
      %1050 = vmatprep.subr.bf16.mxu0 0
      %1051 = vmatpush1.bf16.msra.mxu0 0
      %1052 = vmatprep.subr.bf16.mxu0 0
      %1053 = vmatpush1.bf16.msra.mxu0 0
      %1054 = vmatprep.subr.bf16.mxu0 0
      %1055 = vmatpush1.bf16.msra.mxu0 0
      %1056 = vmatprep.subr.bf16.mxu0 0
      %1057 = vmatpush1.bf16.msra.mxu0 0
      %1058 = vmatprep.mubr.bf16.mxu0 0
      %1059 = vmatmul.mubr.bf16.gmra.mrb[0].mxu0 %v880
      %v1060 = vpop.f32.mrb[0].mxu0
      %v1061 = vadd.f32 0.0, %v1060
      %v1062 = vpop.f32.mrb[0].mxu0
      %v1063 = vpop.f32.mrb[0].mxu0
      %v1064 = vpop.f32.mrb[0].mxu0
      %1065 = vdwg.mxu0
      %v1066 = vadd.f32 %v849, %v938
      %v1067 = vadd.f32 %v850, %v940
      %v1068 = vadd.f32 %v851, %v979
      %v1069 = vadd.f32 %v852, %v981
      %v1070 = vadd.f32 %v853, %v1020
      %v1071 = vadd.f32 %v854, %v1022
      %v1072 = vadd.f32 %v855, %v1061
      %s1073 = scalar_lea.vmem %s1, 16
      %v1074 = vld [vmem:[%s1073] sm:$0x7]
      %1075 = vrot.lane.b32.xlu0 %v213, 124
      %v1076 = vpop.permute.xlu0 %1075
      %1077 = vrot.lane.b32.xlu0 %v221, 124
      %v1078 = vpop.permute.xlu0 %1077
      %1079 = vrot.lane.b32.xlu0 %v220, 124
      %v1080 = vpop.permute.xlu0 %1079
      %1081 = vrot.lane.b32.xlu0 %v222, 124
      %v1082 = vpop.permute.xlu0 %1081
      %1083 = vrot.lane.b32.xlu0 %v230, 124
      %v1084 = vpop.permute.xlu0 %1083
      %1085 = vrot.lane.b32.xlu0 %v238, 124
      %v1086 = vpop.permute.xlu0 %1085
      %1087 = vrot.lane.b32.xlu0 %v237, 124
      %v1088 = vpop.permute.xlu0 %1087
      %vm1089 = vcmask 1014784
      %v1090 = vsel %vm1089, %v1076, %v1078
      %v1091 = vsel %vm1089, %v1078, %v1080
      %v1092 = vsel %vm1089, %v1080, %v1082
      %v1093 = vsel %vm1089, %v1082, %v1084
      %v1094 = vsel %vm1089, %v1084, %v1086
      %v1095 = vsel %vm1089, %v1086, %v1088
      %v1097 = vsel %vm260, %v1074, 0
      %v1100 = vand.u32 %v1090, %v267
      %v1103 = vand.u32 %v1091, %v267
      %v1106 = vand.u32 %v1092, %v267
      %v1109 = vand.u32 %v1093, %v267
      %v1112 = vand.u32 %v1094, %v267
      %v1115 = vand.u32 %v1095, %v267
      %v1118 = vand.u32 %v1088, %v267
      %1120 = vmatprep.subr.bf16.mxu0 %v1103
      %1121 = vmatpush1.bf16.msra.mxu0 %v1100
      %1122 = vmatprep.subr.bf16.mxu0 0
      %1123 = vmatpush1.bf16.msra.mxu0 0
      %1124 = vmatprep.subr.bf16.mxu0 0
      %1125 = vmatpush1.bf16.msra.mxu0 0
      %1126 = vmatprep.subr.bf16.mxu0 0
      %1127 = vmatpush1.bf16.msra.mxu0 0
      %1128 = vmatprep.subr.bf16.mxu0 0
      %1129 = vmatpush1.bf16.msra.mxu0 0
      %1130 = vmatprep.subr.bf16.mxu0 0
      %1131 = vmatpush1.bf16.msra.mxu0 0
      %1132 = vmatprep.subr.bf16.mxu0 0
      %1133 = vmatpush1.bf16.msra.mxu0 0
      %1134 = vmatprep.subr.bf16.mxu0 0
      %1135 = vmatpush1.bf16.msra.mxu0 0
      %1136 = vmatprep.subr.bf16.mxu0 0
      %1137 = vmatpush1.bf16.msra.mxu0 0
      %1138 = vmatprep.subr.bf16.mxu0 0
      %1139 = vmatpush1.bf16.msra.mxu0 0
      %1140 = vmatprep.subr.bf16.mxu0 0
      %1141 = vmatpush1.bf16.msra.mxu0 0
      %1142 = vmatprep.subr.bf16.mxu0 0
      %1143 = vmatpush1.bf16.msra.mxu0 0
      %1144 = vmatprep.subr.bf16.mxu0 0
      %1145 = vmatpush1.bf16.msra.mxu0 0
      %1146 = vmatprep.subr.bf16.mxu0 0
      %1147 = vmatpush1.bf16.msra.mxu0 0
      %1148 = vmatprep.subr.bf16.mxu0 0
      %1149 = vmatpush1.bf16.msra.mxu0 0
      %1150 = vmatprep.subr.bf16.mxu0 0
      %1151 = vmatpush1.bf16.msra.mxu0 0
      %1152 = vmatprep.mubr.bf16.mxu0 0
      %1153 = vmatmul.mubr.bf16.gmra.mrb[0].mxu0 %v1097
      %v1154 = vpop.f32.mrb[0].mxu0
      %v1155 = vadd.f32 0.0, %v1154
      %v1156 = vpop.f32.mrb[0].mxu0
      %v1157 = vadd.f32 0.0, %v1156
      %v1158 = vpop.f32.mrb[0].mxu0
      %v1159 = vpop.f32.mrb[0].mxu0
      %1160 = vdwg.mxu0
      %1161 = vmatprep.subr.bf16.mxu0 %v1109
      %1162 = vmatpush1.bf16.msra.mxu0 %v1106
      %1163 = vmatprep.subr.bf16.mxu0 0
      %1164 = vmatpush1.bf16.msra.mxu0 0
      %1165 = vmatprep.subr.bf16.mxu0 0
      %1166 = vmatpush1.bf16.msra.mxu0 0
      %1167 = vmatprep.subr.bf16.mxu0 0
      %1168 = vmatpush1.bf16.msra.mxu0 0
      %1169 = vmatprep.subr.bf16.mxu0 0
      %1170 = vmatpush1.bf16.msra.mxu0 0
      %1171 = vmatprep.subr.bf16.mxu0 0
      %1172 = vmatpush1.bf16.msra.mxu0 0
      %1173 = vmatprep.subr.bf16.mxu0 0
      %1174 = vmatpush1.bf16.msra.mxu0 0
      %1175 = vmatprep.subr.bf16.mxu0 0
      %1176 = vmatpush1.bf16.msra.mxu0 0
      %1177 = vmatprep.subr.bf16.mxu0 0
      %1178 = vmatpush1.bf16.msra.mxu0 0
      %1179 = vmatprep.subr.bf16.mxu0 0
      %1180 = vmatpush1.bf16.msra.mxu0 0
      %1181 = vmatprep.subr.bf16.mxu0 0
      %1182 = vmatpush1.bf16.msra.mxu0 0
      %1183 = vmatprep.subr.bf16.mxu0 0
      %1184 = vmatpush1.bf16.msra.mxu0 0
      %1185 = vmatprep.subr.bf16.mxu0 0
      %1186 = vmatpush1.bf16.msra.mxu0 0
      %1187 = vmatprep.subr.bf16.mxu0 0
      %1188 = vmatpush1.bf16.msra.mxu0 0
      %1189 = vmatprep.subr.bf16.mxu0 0
      %1190 = vmatpush1.bf16.msra.mxu0 0
      %1191 = vmatprep.subr.bf16.mxu0 0
      %1192 = vmatpush1.bf16.msra.mxu0 0
      %1193 = vmatprep.mubr.bf16.mxu0 0
      %1194 = vmatmul.mubr.bf16.gmra.mrb[0].mxu0 %v1097
      %v1195 = vpop.f32.mrb[0].mxu0
      %v1196 = vadd.f32 0.0, %v1195
      %v1197 = vpop.f32.mrb[0].mxu0
      %v1198 = vadd.f32 0.0, %v1197
      %v1199 = vpop.f32.mrb[0].mxu0
      %v1200 = vpop.f32.mrb[0].mxu0
      %1201 = vdwg.mxu0
      %1202 = vmatprep.subr.bf16.mxu0 %v1115
      %1203 = vmatpush1.bf16.msra.mxu0 %v1112
      %1204 = vmatprep.subr.bf16.mxu0 0
      %1205 = vmatpush1.bf16.msra.mxu0 0
      %1206 = vmatprep.subr.bf16.mxu0 0
      %1207 = vmatpush1.bf16.msra.mxu0 0
      %1208 = vmatprep.subr.bf16.mxu0 0
      %1209 = vmatpush1.bf16.msra.mxu0 0
      %1210 = vmatprep.subr.bf16.mxu0 0
      %1211 = vmatpush1.bf16.msra.mxu0 0
      %1212 = vmatprep.subr.bf16.mxu0 0
      %1213 = vmatpush1.bf16.msra.mxu0 0
      %1214 = vmatprep.subr.bf16.mxu0 0
      %1215 = vmatpush1.bf16.msra.mxu0 0
      %1216 = vmatprep.subr.bf16.mxu0 0
      %1217 = vmatpush1.bf16.msra.mxu0 0
      %1218 = vmatprep.subr.bf16.mxu0 0
      %1219 = vmatpush1.bf16.msra.mxu0 0
      %1220 = vmatprep.subr.bf16.mxu0 0
      %1221 = vmatpush1.bf16.msra.mxu0 0
      %1222 = vmatprep.subr.bf16.mxu0 0
      %1223 = vmatpush1.bf16.msra.mxu0 0
      %1224 = vmatprep.subr.bf16.mxu0 0
      %1225 = vmatpush1.bf16.msra.mxu0 0
      %1226 = vmatprep.subr.bf16.mxu0 0
      %1227 = vmatpush1.bf16.msra.mxu0 0
      %1228 = vmatprep.subr.bf16.mxu0 0
      %1229 = vmatpush1.bf16.msra.mxu0 0
      %1230 = vmatprep.subr.bf16.mxu0 0
      %1231 = vmatpush1.bf16.msra.mxu0 0
      %1232 = vmatprep.subr.bf16.mxu0 0
      %1233 = vmatpush1.bf16.msra.mxu0 0
      %1234 = vmatprep.mubr.bf16.mxu0 0
      %1235 = vmatmul.mubr.bf16.gmra.mrb[0].mxu0 %v1097
      %v1236 = vpop.f32.mrb[0].mxu0
      %v1237 = vadd.f32 0.0, %v1236
      %v1238 = vpop.f32.mrb[0].mxu0
      %v1239 = vadd.f32 0.0, %v1238
      %v1240 = vpop.f32.mrb[0].mxu0
      %v1241 = vpop.f32.mrb[0].mxu0
      %1242 = vdwg.mxu0
      %1243 = vmatprep.subr.bf16.mxu0 0
      %1244 = vmatpush1.bf16.msra.mxu0 %v1118
      %1245 = vmatprep.subr.bf16.mxu0 0
      %1246 = vmatpush1.bf16.msra.mxu0 0
      %1247 = vmatprep.subr.bf16.mxu0 0
      %1248 = vmatpush1.bf16.msra.mxu0 0
      %1249 = vmatprep.subr.bf16.mxu0 0
      %1250 = vmatpush1.bf16.msra.mxu0 0
      %1251 = vmatprep.subr.bf16.mxu0 0
      %1252 = vmatpush1.bf16.msra.mxu0 0
      %1253 = vmatprep.subr.bf16.mxu0 0
      %1254 = vmatpush1.bf16.msra.mxu0 0
      %1255 = vmatprep.subr.bf16.mxu0 0
      %1256 = vmatpush1.bf16.msra.mxu0 0
      %1257 = vmatprep.subr.bf16.mxu0 0
      %1258 = vmatpush1.bf16.msra.mxu0 0
      %1259 = vmatprep.subr.bf16.mxu0 0
      %1260 = vmatpush1.bf16.msra.mxu0 0
      %1261 = vmatprep.subr.bf16.mxu0 0
      %1262 = vmatpush1.bf16.msra.mxu0 0
      %1263 = vmatprep.subr.bf16.mxu0 0
      %1264 = vmatpush1.bf16.msra.mxu0 0
      %1265 = vmatprep.subr.bf16.mxu0 0
      %1266 = vmatpush1.bf16.msra.mxu0 0
      %1267 = vmatprep.subr.bf16.mxu0 0
      %1268 = vmatpush1.bf16.msra.mxu0 0
      %1269 = vmatprep.subr.bf16.mxu0 0
      %1270 = vmatpush1.bf16.msra.mxu0 0
      %1271 = vmatprep.subr.bf16.mxu0 0
      %1272 = vmatpush1.bf16.msra.mxu0 0
      %1273 = vmatprep.subr.bf16.mxu0 0
      %1274 = vmatpush1.bf16.msra.mxu0 0
      %1275 = vmatprep.mubr.bf16.mxu0 0
      %1276 = vmatmul.mubr.bf16.gmra.mrb[0].mxu0 %v1097
      %v1277 = vpop.f32.mrb[0].mxu0
      %v1278 = vadd.f32 0.0, %v1277
      %v1279 = vpop.f32.mrb[0].mxu0
      %v1280 = vpop.f32.mrb[0].mxu0
      %v1281 = vpop.f32.mrb[0].mxu0
      %1282 = vdwg.mxu0
      %v1283 = vadd.f32 %v1066, %v1155
      %v1284 = vadd.f32 %v1067, %v1157
      %v1285 = vadd.f32 %v1068, %v1196
      %v1286 = vadd.f32 %v1069, %v1198
      %v1287 = vadd.f32 %v1070, %v1237
      %v1288 = vadd.f32 %v1071, %v1239
      %v1289 = vadd.f32 %v1072, %v1278
      %s1290 = scalar_lea.vmem %s1, 20
      %v1291 = vld [vmem:[%s1290] sm:$0x7]
      %v1292 = vcombine.high %v237, %v237
      %1293 = vrot.lane.b32.xlu0 %v213, 96
      %v1294 = vpop.permute.xlu0 %1293
      %1295 = vrot.lane.b32.xlu0 %v221, 96
      %v1296 = vpop.permute.xlu0 %1295
      %1297 = vrot.lane.b32.xlu0 %v220, 96
      %v1298 = vpop.permute.xlu0 %1297
      %1299 = vrot.lane.b32.xlu0 %v222, 96
      %v1300 = vpop.permute.xlu0 %1299
      %1301 = vrot.lane.b32.xlu0 %v230, 96
      %v1302 = vpop.permute.xlu0 %1301
      %1303 = vrot.lane.b32.xlu0 %v238, 96
      %v1304 = vpop.permute.xlu0 %1303
      %1305 = vrot.lane.b32.xlu0 %v237, 96
      %v1306 = vpop.permute.xlu0 %1305
      %1307 = vrot.lane.b32.xlu0 %v1292, 96
      %v1308 = vpop.permute.xlu0 %1307
      %vm1309 = vcmask 785408
      %v1310 = vsel %vm1309, %v1294, %v1296
      %v1311 = vsel %vm1309, %v1296, %v1298
      %v1312 = vsel %vm1309, %v1298, %v1300
      %v1313 = vsel %vm1309, %v1300, %v1302
      %v1314 = vsel %vm1309, %v1302, %v1304
      %v1315 = vsel %vm1309, %v1304, %v1306
      %v1316 = vsel %vm1309, %v1306, %v1308
      %v1318 = vsel %vm260, %v1291, 0
      %v1321 = vand.u32 %v1310, %v267
      %v1324 = vand.u32 %v1311, %v267
      %v1327 = vand.u32 %v1312, %v267
      %v1330 = vand.u32 %v1313, %v267
      %v1333 = vand.u32 %v1314, %v267
      %v1336 = vand.u32 %v1315, %v267
      %v1339 = vand.u32 %v1316, %v267
      %1341 = vmatprep.subr.bf16.mxu0 %v1324
      %1342 = vmatpush1.bf16.msra.mxu0 %v1321
      %1343 = vmatprep.subr.bf16.mxu0 0
      %1344 = vmatpush1.bf16.msra.mxu0 0
      %1345 = vmatprep.subr.bf16.mxu0 0
      %1346 = vmatpush1.bf16.msra.mxu0 0
      %1347 = vmatprep.subr.bf16.mxu0 0
      %1348 = vmatpush1.bf16.msra.mxu0 0
      %1349 = vmatprep.subr.bf16.mxu0 0
      %1350 = vmatpush1.bf16.msra.mxu0 0
      %1351 = vmatprep.subr.bf16.mxu0 0
      %1352 = vmatpush1.bf16.msra.mxu0 0
      %1353 = vmatprep.subr.bf16.mxu0 0
      %1354 = vmatpush1.bf16.msra.mxu0 0
      %1355 = vmatprep.subr.bf16.mxu0 0
      %1356 = vmatpush1.bf16.msra.mxu0 0
      %1357 = vmatprep.subr.bf16.mxu0 0
      %1358 = vmatpush1.bf16.msra.mxu0 0
      %1359 = vmatprep.subr.bf16.mxu0 0
      %1360 = vmatpush1.bf16.msra.mxu0 0
      %1361 = vmatprep.subr.bf16.mxu0 0
      %1362 = vmatpush1.bf16.msra.mxu0 0
      %1363 = vmatprep.subr.bf16.mxu0 0
      %1364 = vmatpush1.bf16.msra.mxu0 0
      %1365 = vmatprep.subr.bf16.mxu0 0
      %1366 = vmatpush1.bf16.msra.mxu0 0
      %1367 = vmatprep.subr.bf16.mxu0 0
      %1368 = vmatpush1.bf16.msra.mxu0 0
      %1369 = vmatprep.subr.bf16.mxu0 0
      %1370 = vmatpush1.bf16.msra.mxu0 0
      %1371 = vmatprep.subr.bf16.mxu0 0
      %1372 = vmatpush1.bf16.msra.mxu0 0
      %1373 = vmatprep.mubr.bf16.mxu0 0
      %1374 = vmatmul.mubr.bf16.gmra.mrb[0].mxu0 %v1318
      %v1375 = vpop.f32.mrb[0].mxu0
      %v1376 = vadd.f32 0.0, %v1375
      %v1377 = vpop.f32.mrb[0].mxu0
      %v1378 = vadd.f32 0.0, %v1377
      %v1379 = vpop.f32.mrb[0].mxu0
      %v1380 = vpop.f32.mrb[0].mxu0
      %1381 = vdwg.mxu0
      %1382 = vmatprep.subr.bf16.mxu0 %v1330
      %1383 = vmatpush1.bf16.msra.mxu0 %v1327
      %1384 = vmatprep.subr.bf16.mxu0 0
      %1385 = vmatpush1.bf16.msra.mxu0 0
      %1386 = vmatprep.subr.bf16.mxu0 0
      %1387 = vmatpush1.bf16.msra.mxu0 0
      %1388 = vmatprep.subr.bf16.mxu0 0
      %1389 = vmatpush1.bf16.msra.mxu0 0
      %1390 = vmatprep.subr.bf16.mxu0 0
      %1391 = vmatpush1.bf16.msra.mxu0 0
      %1392 = vmatprep.subr.bf16.mxu0 0
      %1393 = vmatpush1.bf16.msra.mxu0 0
      %1394 = vmatprep.subr.bf16.mxu0 0
      %1395 = vmatpush1.bf16.msra.mxu0 0
      %1396 = vmatprep.subr.bf16.mxu0 0
      %1397 = vmatpush1.bf16.msra.mxu0 0
      %1398 = vmatprep.subr.bf16.mxu0 0
      %1399 = vmatpush1.bf16.msra.mxu0 0
      %1400 = vmatprep.subr.bf16.mxu0 0
      %1401 = vmatpush1.bf16.msra.mxu0 0
      %1402 = vmatprep.subr.bf16.mxu0 0
      %1403 = vmatpush1.bf16.msra.mxu0 0
      %1404 = vmatprep.subr.bf16.mxu0 0
      %1405 = vmatpush1.bf16.msra.mxu0 0
      %1406 = vmatprep.subr.bf16.mxu0 0
      %1407 = vmatpush1.bf16.msra.mxu0 0
      %1408 = vmatprep.subr.bf16.mxu0 0
      %1409 = vmatpush1.bf16.msra.mxu0 0
      %1410 = vmatprep.subr.bf16.mxu0 0
      %1411 = vmatpush1.bf16.msra.mxu0 0
      %1412 = vmatprep.subr.bf16.mxu0 0
      %1413 = vmatpush1.bf16.msra.mxu0 0
      %1414 = vmatprep.mubr.bf16.mxu0 0
      %1415 = vmatmul.mubr.bf16.gmra.mrb[0].mxu0 %v1318
      %v1416 = vpop.f32.mrb[0].mxu0
      %v1417 = vadd.f32 0.0, %v1416
      %v1418 = vpop.f32.mrb[0].mxu0
      %v1419 = vadd.f32 0.0, %v1418
      %v1420 = vpop.f32.mrb[0].mxu0
      %v1421 = vpop.f32.mrb[0].mxu0
      %1422 = vdwg.mxu0
      %1423 = vmatprep.subr.bf16.mxu0 %v1336
      %1424 = vmatpush1.bf16.msra.mxu0 %v1333
      %1425 = vmatprep.subr.bf16.mxu0 0
      %1426 = vmatpush1.bf16.msra.mxu0 0
      %1427 = vmatprep.subr.bf16.mxu0 0
      %1428 = vmatpush1.bf16.msra.mxu0 0
      %1429 = vmatprep.subr.bf16.mxu0 0
      %1430 = vmatpush1.bf16.msra.mxu0 0
      %1431 = vmatprep.subr.bf16.mxu0 0
      %1432 = vmatpush1.bf16.msra.mxu0 0
      %1433 = vmatprep.subr.bf16.mxu0 0
      %1434 = vmatpush1.bf16.msra.mxu0 0
      %1435 = vmatprep.subr.bf16.mxu0 0
      %1436 = vmatpush1.bf16.msra.mxu0 0
      %1437 = vmatprep.subr.bf16.mxu0 0
      %1438 = vmatpush1.bf16.msra.mxu0 0
      %1439 = vmatprep.subr.bf16.mxu0 0
      %1440 = vmatpush1.bf16.msra.mxu0 0
      %1441 = vmatprep.subr.bf16.mxu0 0
      %1442 = vmatpush1.bf16.msra.mxu0 0
      %1443 = vmatprep.subr.bf16.mxu0 0
      %1444 = vmatpush1.bf16.msra.mxu0 0
      %1445 = vmatprep.subr.bf16.mxu0 0
      %1446 = vmatpush1.bf16.msra.mxu0 0
      %1447 = vmatprep.subr.bf16.mxu0 0
      %1448 = vmatpush1.bf16.msra.mxu0 0
      %1449 = vmatprep.subr.bf16.mxu0 0
      %1450 = vmatpush1.bf16.msra.mxu0 0
      %1451 = vmatprep.subr.bf16.mxu0 0
      %1452 = vmatpush1.bf16.msra.mxu0 0
      %1453 = vmatprep.subr.bf16.mxu0 0
      %1454 = vmatpush1.bf16.msra.mxu0 0
      %1455 = vmatprep.mubr.bf16.mxu0 0
      %1456 = vmatmul.mubr.bf16.gmra.mrb[0].mxu0 %v1318
      %v1457 = vpop.f32.mrb[0].mxu0
      %v1458 = vadd.f32 0.0, %v1457
      %v1459 = vpop.f32.mrb[0].mxu0
      %v1460 = vadd.f32 0.0, %v1459
      %v1461 = vpop.f32.mrb[0].mxu0
      %v1462 = vpop.f32.mrb[0].mxu0
      %1463 = vdwg.mxu0
      %1464 = vmatprep.subr.bf16.mxu0 0
      %1465 = vmatpush1.bf16.msra.mxu0 %v1339
      %1466 = vmatprep.subr.bf16.mxu0 0
      %1467 = vmatpush1.bf16.msra.mxu0 0
      %1468 = vmatprep.subr.bf16.mxu0 0
      %1469 = vmatpush1.bf16.msra.mxu0 0
      %1470 = vmatprep.subr.bf16.mxu0 0
      %1471 = vmatpush1.bf16.msra.mxu0 0
      %1472 = vmatprep.subr.bf16.mxu0 0
      %1473 = vmatpush1.bf16.msra.mxu0 0
      %1474 = vmatprep.subr.bf16.mxu0 0
      %1475 = vmatpush1.bf16.msra.mxu0 0
      %1476 = vmatprep.subr.bf16.mxu0 0
      %1477 = vmatpush1.bf16.msra.mxu0 0
      %1478 = vmatprep.subr.bf16.mxu0 0
      %1479 = vmatpush1.bf16.msra.mxu0 0
      %1480 = vmatprep.subr.bf16.mxu0 0
      %1481 = vmatpush1.bf16.msra.mxu0 0
      %1482 = vmatprep.subr.bf16.mxu0 0
      %1483 = vmatpush1.bf16.msra.mxu0 0
      %1484 = vmatprep.subr.bf16.mxu0 0
      %1485 = vmatpush1.bf16.msra.mxu0 0
      %1486 = vmatprep.subr.bf16.mxu0 0
      %1487 = vmatpush1.bf16.msra.mxu0 0
      %1488 = vmatprep.subr.bf16.mxu0 0
      %1489 = vmatpush1.bf16.msra.mxu0 0
      %1490 = vmatprep.subr.bf16.mxu0 0
      %1491 = vmatpush1.bf16.msra.mxu0 0
      %1492 = vmatprep.subr.bf16.mxu0 0
      %1493 = vmatpush1.bf16.msra.mxu0 0
      %1494 = vmatprep.subr.bf16.mxu0 0
      %1495 = vmatpush1.bf16.msra.mxu0 0
      %1496 = vmatprep.mubr.bf16.mxu0 0
      %1497 = vmatmul.mubr.bf16.gmra.mrb[0].mxu0 %v1318
      %v1498 = vpop.f32.mrb[0].mxu0
      %v1499 = vadd.f32 0.0, %v1498
      %v1500 = vpop.f32.mrb[0].mxu0
      %v1501 = vpop.f32.mrb[0].mxu0
      %v1502 = vpop.f32.mrb[0].mxu0
      %1503 = vdwg.mxu0
      %v1504 = vadd.f32 %v1283, %v1376
      %v1505 = vadd.f32 %v1284, %v1378
      %v1506 = vadd.f32 %v1285, %v1417
      %v1507 = vadd.f32 %v1286, %v1419
      %v1508 = vadd.f32 %v1287, %v1458
      %v1509 = vadd.f32 %v1288, %v1460
      %v1510 = vadd.f32 %v1289, %v1499
      %s1511 = scalar_lea.vmem %s1, 24
      %v1512 = vld [vmem:[%s1511] sm:$0x7]
      %1513 = vrot.lane.b32.xlu0 %v213, 95
      %v1514 = vpop.permute.xlu0 %1513
      %1515 = vrot.lane.b32.xlu0 %v221, 95
      %v1516 = vpop.permute.xlu0 %1515
      %1517 = vrot.lane.b32.xlu0 %v220, 95
      %v1518 = vpop.permute.xlu0 %1517
      %1519 = vrot.lane.b32.xlu0 %v222, 95
      %v1520 = vpop.permute.xlu0 %1519
      %1521 = vrot.lane.b32.xlu0 %v230, 95
      %v1522 = vpop.permute.xlu0 %1521
      %1523 = vrot.lane.b32.xlu0 %v238, 95
      %v1524 = vpop.permute.xlu0 %1523
      %1525 = vrot.lane.b32.xlu0 %v237, 95
      %v1526 = vpop.permute.xlu0 %1525
      %1527 = vrot.lane.b32.xlu0 %v1292, 95
      %v1528 = vpop.permute.xlu0 %1527
      %vm1529 = vcmask 777216
      %v1530 = vsel %vm1529, %v1514, %v1516
      %v1531 = vsel %vm1529, %v1516, %v1518
      %v1532 = vsel %vm1529, %v1518, %v1520
      %v1533 = vsel %vm1529, %v1520, %v1522
      %v1534 = vsel %vm1529, %v1522, %v1524
      %v1535 = vsel %vm1529, %v1524, %v1526
      %v1536 = vsel %vm1529, %v1526, %v1528
      %v1538 = vsel %vm260, %v1512, 0
      %v1541 = vand.u32 %v1530, %v267
      %v1544 = vand.u32 %v1531, %v267
      %v1547 = vand.u32 %v1532, %v267
      %v1550 = vand.u32 %v1533, %v267
      %v1553 = vand.u32 %v1534, %v267
      %v1556 = vand.u32 %v1535, %v267
      %v1559 = vand.u32 %v1536, %v267
      %1561 = vmatprep.subr.bf16.mxu0 %v1544
      %1562 = vmatpush1.bf16.msra.mxu0 %v1541
      %1563 = vmatprep.subr.bf16.mxu0 0
      %1564 = vmatpush1.bf16.msra.mxu0 0
      %1565 = vmatprep.subr.bf16.mxu0 0
      %1566 = vmatpush1.bf16.msra.mxu0 0
      %1567 = vmatprep.subr.bf16.mxu0 0
      %1568 = vmatpush1.bf16.msra.mxu0 0
      %1569 = vmatprep.subr.bf16.mxu0 0
      %1570 = vmatpush1.bf16.msra.mxu0 0
      %1571 = vmatprep.subr.bf16.mxu0 0
      %1572 = vmatpush1.bf16.msra.mxu0 0
      %1573 = vmatprep.subr.bf16.mxu0 0
      %1574 = vmatpush1.bf16.msra.mxu0 0
      %1575 = vmatprep.subr.bf16.mxu0 0
      %1576 = vmatpush1.bf16.msra.mxu0 0
      %1577 = vmatprep.subr.bf16.mxu0 0
      %1578 = vmatpush1.bf16.msra.mxu0 0
      %1579 = vmatprep.subr.bf16.mxu0 0
      %1580 = vmatpush1.bf16.msra.mxu0 0
      %1581 = vmatprep.subr.bf16.mxu0 0
      %1582 = vmatpush1.bf16.msra.mxu0 0
      %1583 = vmatprep.subr.bf16.mxu0 0
      %1584 = vmatpush1.bf16.msra.mxu0 0
      %1585 = vmatprep.subr.bf16.mxu0 0
      %1586 = vmatpush1.bf16.msra.mxu0 0
      %1587 = vmatprep.subr.bf16.mxu0 0
      %1588 = vmatpush1.bf16.msra.mxu0 0
      %1589 = vmatprep.subr.bf16.mxu0 0
      %1590 = vmatpush1.bf16.msra.mxu0 0
      %1591 = vmatprep.subr.bf16.mxu0 0
      %1592 = vmatpush1.bf16.msra.mxu0 0
      %1593 = vmatprep.mubr.bf16.mxu0 0
      %1594 = vmatmul.mubr.bf16.gmra.mrb[0].mxu0 %v1538
      %v1595 = vpop.f32.mrb[0].mxu0
      %v1596 = vadd.f32 0.0, %v1595
      %v1597 = vpop.f32.mrb[0].mxu0
      %v1598 = vadd.f32 0.0, %v1597
      %v1599 = vpop.f32.mrb[0].mxu0
      %v1600 = vpop.f32.mrb[0].mxu0
      %1601 = vdwg.mxu0
      %1602 = vmatprep.subr.bf16.mxu0 %v1550
      %1603 = vmatpush1.bf16.msra.mxu0 %v1547
      %1604 = vmatprep.subr.bf16.mxu0 0
      %1605 = vmatpush1.bf16.msra.mxu0 0
      %1606 = vmatprep.subr.bf16.mxu0 0
      %1607 = vmatpush1.bf16.msra.mxu0 0
      %1608 = vmatprep.subr.bf16.mxu0 0
      %1609 = vmatpush1.bf16.msra.mxu0 0
      %1610 = vmatprep.subr.bf16.mxu0 0
      %1611 = vmatpush1.bf16.msra.mxu0 0
      %1612 = vmatprep.subr.bf16.mxu0 0
      %1613 = vmatpush1.bf16.msra.mxu0 0
      %1614 = vmatprep.subr.bf16.mxu0 0
      %1615 = vmatpush1.bf16.msra.mxu0 0
      %1616 = vmatprep.subr.bf16.mxu0 0
      %1617 = vmatpush1.bf16.msra.mxu0 0
      %1618 = vmatprep.subr.bf16.mxu0 0
      %1619 = vmatpush1.bf16.msra.mxu0 0
      %1620 = vmatprep.subr.bf16.mxu0 0
      %1621 = vmatpush1.bf16.msra.mxu0 0
      %1622 = vmatprep.subr.bf16.mxu0 0
      %1623 = vmatpush1.bf16.msra.mxu0 0
      %1624 = vmatprep.subr.bf16.mxu0 0
      %1625 = vmatpush1.bf16.msra.mxu0 0
      %1626 = vmatprep.subr.bf16.mxu0 0
      %1627 = vmatpush1.bf16.msra.mxu0 0
      %1628 = vmatprep.subr.bf16.mxu0 0
      %1629 = vmatpush1.bf16.msra.mxu0 0
      %1630 = vmatprep.subr.bf16.mxu0 0
      %1631 = vmatpush1.bf16.msra.mxu0 0
      %1632 = vmatprep.subr.bf16.mxu0 0
      %1633 = vmatpush1.bf16.msra.mxu0 0
      %1634 = vmatprep.mubr.bf16.mxu0 0
      %1635 = vmatmul.mubr.bf16.gmra.mrb[0].mxu0 %v1538
      %v1636 = vpop.f32.mrb[0].mxu0
      %v1637 = vadd.f32 0.0, %v1636
      %v1638 = vpop.f32.mrb[0].mxu0
      %v1639 = vadd.f32 0.0, %v1638
      %v1640 = vpop.f32.mrb[0].mxu0
      %v1641 = vpop.f32.mrb[0].mxu0
      %1642 = vdwg.mxu0
      %1643 = vmatprep.subr.bf16.mxu0 %v1556
      %1644 = vmatpush1.bf16.msra.mxu0 %v1553
      %1645 = vmatprep.subr.bf16.mxu0 0
      %1646 = vmatpush1.bf16.msra.mxu0 0
      %1647 = vmatprep.subr.bf16.mxu0 0
      %1648 = vmatpush1.bf16.msra.mxu0 0
      %1649 = vmatprep.subr.bf16.mxu0 0
      %1650 = vmatpush1.bf16.msra.mxu0 0
      %1651 = vmatprep.subr.bf16.mxu0 0
      %1652 = vmatpush1.bf16.msra.mxu0 0
      %1653 = vmatprep.subr.bf16.mxu0 0
      %1654 = vmatpush1.bf16.msra.mxu0 0
      %1655 = vmatprep.subr.bf16.mxu0 0
      %1656 = vmatpush1.bf16.msra.mxu0 0
      %1657 = vmatprep.subr.bf16.mxu0 0
      %1658 = vmatpush1.bf16.msra.mxu0 0
      %1659 = vmatprep.subr.bf16.mxu0 0
      %1660 = vmatpush1.bf16.msra.mxu0 0
      %1661 = vmatprep.subr.bf16.mxu0 0
      %1662 = vmatpush1.bf16.msra.mxu0 0
      %1663 = vmatprep.subr.bf16.mxu0 0
      %1664 = vmatpush1.bf16.msra.mxu0 0
      %1665 = vmatprep.subr.bf16.mxu0 0
      %1666 = vmatpush1.bf16.msra.mxu0 0
      %1667 = vmatprep.subr.bf16.mxu0 0
      %1668 = vmatpush1.bf16.msra.mxu0 0
      %1669 = vmatprep.subr.bf16.mxu0 0
      %1670 = vmatpush1.bf16.msra.mxu0 0
      %1671 = vmatprep.subr.bf16.mxu0 0
      %1672 = vmatpush1.bf16.msra.mxu0 0
      %1673 = vmatprep.subr.bf16.mxu0 0
      %1674 = vmatpush1.bf16.msra.mxu0 0
      %1675 = vmatprep.mubr.bf16.mxu0 0
      %1676 = vmatmul.mubr.bf16.gmra.mrb[0].mxu0 %v1538
      %v1677 = vpop.f32.mrb[0].mxu0
      %v1678 = vadd.f32 0.0, %v1677
      %v1679 = vpop.f32.mrb[0].mxu0
      %v1680 = vadd.f32 0.0, %v1679
      %v1681 = vpop.f32.mrb[0].mxu0
      %v1682 = vpop.f32.mrb[0].mxu0
      %1683 = vdwg.mxu0
      %1684 = vmatprep.subr.bf16.mxu0 0
      %1685 = vmatpush1.bf16.msra.mxu0 %v1559
      %1686 = vmatprep.subr.bf16.mxu0 0
      %1687 = vmatpush1.bf16.msra.mxu0 0
      %1688 = vmatprep.subr.bf16.mxu0 0
      %1689 = vmatpush1.bf16.msra.mxu0 0
      %1690 = vmatprep.subr.bf16.mxu0 0
      %1691 = vmatpush1.bf16.msra.mxu0 0
      %1692 = vmatprep.subr.bf16.mxu0 0
      %1693 = vmatpush1.bf16.msra.mxu0 0
      %1694 = vmatprep.subr.bf16.mxu0 0
      %1695 = vmatpush1.bf16.msra.mxu0 0
      %1696 = vmatprep.subr.bf16.mxu0 0
      %1697 = vmatpush1.bf16.msra.mxu0 0
      %1698 = vmatprep.subr.bf16.mxu0 0
      %1699 = vmatpush1.bf16.msra.mxu0 0
      %1700 = vmatprep.subr.bf16.mxu0 0
      %1701 = vmatpush1.bf16.msra.mxu0 0
      %1702 = vmatprep.subr.bf16.mxu0 0
      %1703 = vmatpush1.bf16.msra.mxu0 0
      %1704 = vmatprep.subr.bf16.mxu0 0
      %1705 = vmatpush1.bf16.msra.mxu0 0
      %1706 = vmatprep.subr.bf16.mxu0 0
      %1707 = vmatpush1.bf16.msra.mxu0 0
      %1708 = vmatprep.subr.bf16.mxu0 0
      %1709 = vmatpush1.bf16.msra.mxu0 0
      %1710 = vmatprep.subr.bf16.mxu0 0
      %1711 = vmatpush1.bf16.msra.mxu0 0
      %1712 = vmatprep.subr.bf16.mxu0 0
      %1713 = vmatpush1.bf16.msra.mxu0 0
      %1714 = vmatprep.subr.bf16.mxu0 0
      %1715 = vmatpush1.bf16.msra.mxu0 0
      %1716 = vmatprep.mubr.bf16.mxu0 0
      %1717 = vmatmul.mubr.bf16.gmra.mrb[0].mxu0 %v1538
      %v1718 = vpop.f32.mrb[0].mxu0
      %v1719 = vadd.f32 0.0, %v1718
      %v1720 = vpop.f32.mrb[0].mxu0
      %v1721 = vpop.f32.mrb[0].mxu0
      %v1722 = vpop.f32.mrb[0].mxu0
      %1723 = vdwg.mxu0
      %v1724 = vadd.f32 %v1504, %v1596
      %v1725 = vadd.f32 %v1505, %v1598
      %v1726 = vadd.f32 %v1506, %v1637
      %v1727 = vadd.f32 %v1507, %v1639
      %v1728 = vadd.f32 %v1508, %v1678
      %v1729 = vadd.f32 %v1509, %v1680
      %v1730 = vadd.f32 %v1510, %v1719
      %s1731 = scalar_lea.vmem %s1, 28
      %v1732 = vld [vmem:[%s1731] sm:$0x7]
      %1733 = vrot.lane.b32.xlu0 %v213, 94
      %v1734 = vpop.permute.xlu0 %1733
      %1735 = vrot.lane.b32.xlu0 %v221, 94
      %v1736 = vpop.permute.xlu0 %1735
      %1737 = vrot.lane.b32.xlu0 %v220, 94
      %v1738 = vpop.permute.xlu0 %1737
      %1739 = vrot.lane.b32.xlu0 %v222, 94
      %v1740 = vpop.permute.xlu0 %1739
      %1741 = vrot.lane.b32.xlu0 %v230, 94
      %v1742 = vpop.permute.xlu0 %1741
      %1743 = vrot.lane.b32.xlu0 %v238, 94
      %v1744 = vpop.permute.xlu0 %1743
      %1745 = vrot.lane.b32.xlu0 %v237, 94
      %v1746 = vpop.permute.xlu0 %1745
      %1747 = vrot.lane.b32.xlu0 %v1292, 94
      %v1748 = vpop.permute.xlu0 %1747
      %vm1749 = vcmask 769024
      %v1750 = vsel %vm1749, %v1734, %v1736
      %v1751 = vsel %vm1749, %v1736, %v1738
      %v1752 = vsel %vm1749, %v1738, %v1740
      %v1753 = vsel %vm1749, %v1740, %v1742
      %v1754 = vsel %vm1749, %v1742, %v1744
      %v1755 = vsel %vm1749, %v1744, %v1746
      %v1756 = vsel %vm1749, %v1746, %v1748
      %v1758 = vsel %vm260, %v1732, 0
      %v1761 = vand.u32 %v1750, %v267
      %v1764 = vand.u32 %v1751, %v267
      %v1767 = vand.u32 %v1752, %v267
      %v1770 = vand.u32 %v1753, %v267
      %v1773 = vand.u32 %v1754, %v267
      %v1776 = vand.u32 %v1755, %v267
      %v1779 = vand.u32 %v1756, %v267
      %1781 = vmatprep.subr.bf16.mxu0 %v1764
      %1782 = vmatpush1.bf16.msra.mxu0 %v1761
      %1783 = vmatprep.subr.bf16.mxu0 0
      %1784 = vmatpush1.bf16.msra.mxu0 0
      %1785 = vmatprep.subr.bf16.mxu0 0
      %1786 = vmatpush1.bf16.msra.mxu0 0
      %1787 = vmatprep.subr.bf16.mxu0 0
      %1788 = vmatpush1.bf16.msra.mxu0 0
      %1789 = vmatprep.subr.bf16.mxu0 0
      %1790 = vmatpush1.bf16.msra.mxu0 0
      %1791 = vmatprep.subr.bf16.mxu0 0
      %1792 = vmatpush1.bf16.msra.mxu0 0
      %1793 = vmatprep.subr.bf16.mxu0 0
      %1794 = vmatpush1.bf16.msra.mxu0 0
      %1795 = vmatprep.subr.bf16.mxu0 0
      %1796 = vmatpush1.bf16.msra.mxu0 0
      %1797 = vmatprep.subr.bf16.mxu0 0
      %1798 = vmatpush1.bf16.msra.mxu0 0
      %1799 = vmatprep.subr.bf16.mxu0 0
      %1800 = vmatpush1.bf16.msra.mxu0 0
      %1801 = vmatprep.subr.bf16.mxu0 0
      %1802 = vmatpush1.bf16.msra.mxu0 0
      %1803 = vmatprep.subr.bf16.mxu0 0
      %1804 = vmatpush1.bf16.msra.mxu0 0
      %1805 = vmatprep.subr.bf16.mxu0 0
      %1806 = vmatpush1.bf16.msra.mxu0 0
      %1807 = vmatprep.subr.bf16.mxu0 0
      %1808 = vmatpush1.bf16.msra.mxu0 0
      %1809 = vmatprep.subr.bf16.mxu0 0
      %1810 = vmatpush1.bf16.msra.mxu0 0
      %1811 = vmatprep.subr.bf16.mxu0 0
      %1812 = vmatpush1.bf16.msra.mxu0 0
      %1813 = vmatprep.mubr.bf16.mxu0 0
      %1814 = vmatmul.mubr.bf16.gmra.mrb[0].mxu0 %v1758
      %v1815 = vpop.f32.mrb[0].mxu0
      %v1816 = vadd.f32 0.0, %v1815
      %v1817 = vpop.f32.mrb[0].mxu0
      %v1818 = vadd.f32 0.0, %v1817
      %v1819 = vpop.f32.mrb[0].mxu0
      %v1820 = vpop.f32.mrb[0].mxu0
      %1821 = vdwg.mxu0
      %1822 = vmatprep.subr.bf16.mxu0 %v1770
      %1823 = vmatpush1.bf16.msra.mxu0 %v1767
      %1824 = vmatprep.subr.bf16.mxu0 0
      %1825 = vmatpush1.bf16.msra.mxu0 0
      %1826 = vmatprep.subr.bf16.mxu0 0
      %1827 = vmatpush1.bf16.msra.mxu0 0
      %1828 = vmatprep.subr.bf16.mxu0 0
      %1829 = vmatpush1.bf16.msra.mxu0 0
      %1830 = vmatprep.subr.bf16.mxu0 0
      %1831 = vmatpush1.bf16.msra.mxu0 0
      %1832 = vmatprep.subr.bf16.mxu0 0
      %1833 = vmatpush1.bf16.msra.mxu0 0
      %1834 = vmatprep.subr.bf16.mxu0 0
      %1835 = vmatpush1.bf16.msra.mxu0 0
      %1836 = vmatprep.subr.bf16.mxu0 0
      %1837 = vmatpush1.bf16.msra.mxu0 0
      %1838 = vmatprep.subr.bf16.mxu0 0
      %1839 = vmatpush1.bf16.msra.mxu0 0
      %1840 = vmatprep.subr.bf16.mxu0 0
      %1841 = vmatpush1.bf16.msra.mxu0 0
      %1842 = vmatprep.subr.bf16.mxu0 0
      %1843 = vmatpush1.bf16.msra.mxu0 0
      %1844 = vmatprep.subr.bf16.mxu0 0
      %1845 = vmatpush1.bf16.msra.mxu0 0
      %1846 = vmatprep.subr.bf16.mxu0 0
      %1847 = vmatpush1.bf16.msra.mxu0 0
      %1848 = vmatprep.subr.bf16.mxu0 0
      %1849 = vmatpush1.bf16.msra.mxu0 0
      %1850 = vmatprep.subr.bf16.mxu0 0
      %1851 = vmatpush1.bf16.msra.mxu0 0
      %1852 = vmatprep.subr.bf16.mxu0 0
      %1853 = vmatpush1.bf16.msra.mxu0 0
      %1854 = vmatprep.mubr.bf16.mxu0 0
      %1855 = vmatmul.mubr.bf16.gmra.mrb[0].mxu0 %v1758
      %v1856 = vpop.f32.mrb[0].mxu0
      %v1857 = vadd.f32 0.0, %v1856
      %v1858 = vpop.f32.mrb[0].mxu0
      %v1859 = vadd.f32 0.0, %v1858
      %v1860 = vpop.f32.mrb[0].mxu0
      %v1861 = vpop.f32.mrb[0].mxu0
      %1862 = vdwg.mxu0
      %1863 = vmatprep.subr.bf16.mxu0 %v1776
      %1864 = vmatpush1.bf16.msra.mxu0 %v1773
      %1865 = vmatprep.subr.bf16.mxu0 0
      %1866 = vmatpush1.bf16.msra.mxu0 0
      %1867 = vmatprep.subr.bf16.mxu0 0
      %1868 = vmatpush1.bf16.msra.mxu0 0
      %1869 = vmatprep.subr.bf16.mxu0 0
      %1870 = vmatpush1.bf16.msra.mxu0 0
      %1871 = vmatprep.subr.bf16.mxu0 0
      %1872 = vmatpush1.bf16.msra.mxu0 0
      %1873 = vmatprep.subr.bf16.mxu0 0
      %1874 = vmatpush1.bf16.msra.mxu0 0
      %1875 = vmatprep.subr.bf16.mxu0 0
      %1876 = vmatpush1.bf16.msra.mxu0 0
      %1877 = vmatprep.subr.bf16.mxu0 0
      %1878 = vmatpush1.bf16.msra.mxu0 0
      %1879 = vmatprep.subr.bf16.mxu0 0
      %1880 = vmatpush1.bf16.msra.mxu0 0
      %1881 = vmatprep.subr.bf16.mxu0 0
      %1882 = vmatpush1.bf16.msra.mxu0 0
      %1883 = vmatprep.subr.bf16.mxu0 0
      %1884 = vmatpush1.bf16.msra.mxu0 0
      %1885 = vmatprep.subr.bf16.mxu0 0
      %1886 = vmatpush1.bf16.msra.mxu0 0
      %1887 = vmatprep.subr.bf16.mxu0 0
      %1888 = vmatpush1.bf16.msra.mxu0 0
      %1889 = vmatprep.subr.bf16.mxu0 0
      %1890 = vmatpush1.bf16.msra.mxu0 0
      %1891 = vmatprep.subr.bf16.mxu0 0
      %1892 = vmatpush1.bf16.msra.mxu0 0
      %1893 = vmatprep.subr.bf16.mxu0 0
      %1894 = vmatpush1.bf16.msra.mxu0 0
      %1895 = vmatprep.mubr.bf16.mxu0 0
      %1896 = vmatmul.mubr.bf16.gmra.mrb[0].mxu0 %v1758
      %v1897 = vpop.f32.mrb[0].mxu0
      %v1898 = vadd.f32 0.0, %v1897
      %v1899 = vpop.f32.mrb[0].mxu0
      %v1900 = vadd.f32 0.0, %v1899
      %v1901 = vpop.f32.mrb[0].mxu0
      %v1902 = vpop.f32.mrb[0].mxu0
      %1903 = vdwg.mxu0
      %1904 = vmatprep.subr.bf16.mxu0 0
      %1905 = vmatpush1.bf16.msra.mxu0 %v1779
      %1906 = vmatprep.subr.bf16.mxu0 0
      %1907 = vmatpush1.bf16.msra.mxu0 0
      %1908 = vmatprep.subr.bf16.mxu0 0
      %1909 = vmatpush1.bf16.msra.mxu0 0
      %1910 = vmatprep.subr.bf16.mxu0 0
      %1911 = vmatpush1.bf16.msra.mxu0 0
      %1912 = vmatprep.subr.bf16.mxu0 0
      %1913 = vmatpush1.bf16.msra.mxu0 0
      %1914 = vmatprep.subr.bf16.mxu0 0
      %1915 = vmatpush1.bf16.msra.mxu0 0
      %1916 = vmatprep.subr.bf16.mxu0 0
      %1917 = vmatpush1.bf16.msra.mxu0 0
      %1918 = vmatprep.subr.bf16.mxu0 0
      %1919 = vmatpush1.bf16.msra.mxu0 0
      %1920 = vmatprep.subr.bf16.mxu0 0
      %1921 = vmatpush1.bf16.msra.mxu0 0
      %1922 = vmatprep.subr.bf16.mxu0 0
      %1923 = vmatpush1.bf16.msra.mxu0 0
      %1924 = vmatprep.subr.bf16.mxu0 0
      %1925 = vmatpush1.bf16.msra.mxu0 0
      %1926 = vmatprep.subr.bf16.mxu0 0
      %1927 = vmatpush1.bf16.msra.mxu0 0
      %1928 = vmatprep.subr.bf16.mxu0 0
      %1929 = vmatpush1.bf16.msra.mxu0 0
      %1930 = vmatprep.subr.bf16.mxu0 0
      %1931 = vmatpush1.bf16.msra.mxu0 0
      %1932 = vmatprep.subr.bf16.mxu0 0
      %1933 = vmatpush1.bf16.msra.mxu0 0
      %1934 = vmatprep.subr.bf16.mxu0 0
      %1935 = vmatpush1.bf16.msra.mxu0 0
      %1936 = vmatprep.mubr.bf16.mxu0 0
      %1937 = vmatmul.mubr.bf16.gmra.mrb[0].mxu0 %v1758
      %v1938 = vpop.f32.mrb[0].mxu0
      %v1939 = vadd.f32 0.0, %v1938
      %v1940 = vpop.f32.mrb[0].mxu0
      %v1941 = vpop.f32.mrb[0].mxu0
      %v1942 = vpop.f32.mrb[0].mxu0
      %1943 = vdwg.mxu0
      %v1944 = vadd.f32 %v1724, %v1816
      %v1945 = vadd.f32 %v1725, %v1818
      %v1946 = vadd.f32 %v1726, %v1857
      %v1947 = vadd.f32 %v1727, %v1859
      %v1948 = vadd.f32 %v1728, %v1898
      %v1949 = vadd.f32 %v1729, %v1900
      %v1950 = vadd.f32 %v1730, %v1939
      %s1951 = scalar_lea.vmem %s1, 32
      %v1952 = vld [vmem:[%s1951] sm:$0x7]
      %1953 = vrot.lane.b32.xlu0 %v213, 93
      %v1954 = vpop.permute.xlu0 %1953
      %1955 = vrot.lane.b32.xlu0 %v221, 93
      %v1956 = vpop.permute.xlu0 %1955
      %1957 = vrot.lane.b32.xlu0 %v220, 93
      %v1958 = vpop.permute.xlu0 %1957
      %1959 = vrot.lane.b32.xlu0 %v222, 93
      %v1960 = vpop.permute.xlu0 %1959
      %1961 = vrot.lane.b32.xlu0 %v230, 93
      %v1962 = vpop.permute.xlu0 %1961
      %1963 = vrot.lane.b32.xlu0 %v238, 93
      %v1964 = vpop.permute.xlu0 %1963
      %1965 = vrot.lane.b32.xlu0 %v237, 93
      %v1966 = vpop.permute.xlu0 %1965
      %1967 = vrot.lane.b32.xlu0 %v1292, 93
      %v1968 = vpop.permute.xlu0 %1967
      %vm1969 = vcmask 760832
      %v1970 = vsel %vm1969, %v1954, %v1956
      %v1971 = vsel %vm1969, %v1956, %v1958
      %v1972 = vsel %vm1969, %v1958, %v1960
      %v1973 = vsel %vm1969, %v1960, %v1962
      %v1974 = vsel %vm1969, %v1962, %v1964
      %v1975 = vsel %vm1969, %v1964, %v1966
      %v1976 = vsel %vm1969, %v1966, %v1968
      %v1978 = vsel %vm260, %v1952, 0
      %v1981 = vand.u32 %v1970, %v267
      %v1984 = vand.u32 %v1971, %v267
      %v1987 = vand.u32 %v1972, %v267
      %v1990 = vand.u32 %v1973, %v267
      %v1993 = vand.u32 %v1974, %v267
      %v1996 = vand.u32 %v1975, %v267
      %v1999 = vand.u32 %v1976, %v267
      %2001 = vmatprep.subr.bf16.mxu0 %v1984
      %2002 = vmatpush1.bf16.msra.mxu0 %v1981
      %2003 = vmatprep.subr.bf16.mxu0 0
      %2004 = vmatpush1.bf16.msra.mxu0 0
      %2005 = vmatprep.subr.bf16.mxu0 0
      %2006 = vmatpush1.bf16.msra.mxu0 0
      %2007 = vmatprep.subr.bf16.mxu0 0
      %2008 = vmatpush1.bf16.msra.mxu0 0
      %2009 = vmatprep.subr.bf16.mxu0 0
      %2010 = vmatpush1.bf16.msra.mxu0 0
      %2011 = vmatprep.subr.bf16.mxu0 0
      %2012 = vmatpush1.bf16.msra.mxu0 0
      %2013 = vmatprep.subr.bf16.mxu0 0
      %2014 = vmatpush1.bf16.msra.mxu0 0
      %2015 = vmatprep.subr.bf16.mxu0 0
      %2016 = vmatpush1.bf16.msra.mxu0 0
      %2017 = vmatprep.subr.bf16.mxu0 0
      %2018 = vmatpush1.bf16.msra.mxu0 0
      %2019 = vmatprep.subr.bf16.mxu0 0
      %2020 = vmatpush1.bf16.msra.mxu0 0
      %2021 = vmatprep.subr.bf16.mxu0 0
      %2022 = vmatpush1.bf16.msra.mxu0 0
      %2023 = vmatprep.subr.bf16.mxu0 0
      %2024 = vmatpush1.bf16.msra.mxu0 0
      %2025 = vmatprep.subr.bf16.mxu0 0
      %2026 = vmatpush1.bf16.msra.mxu0 0
      %2027 = vmatprep.subr.bf16.mxu0 0
      %2028 = vmatpush1.bf16.msra.mxu0 0
      %2029 = vmatprep.subr.bf16.mxu0 0
      %2030 = vmatpush1.bf16.msra.mxu0 0
      %2031 = vmatprep.subr.bf16.mxu0 0
      %2032 = vmatpush1.bf16.msra.mxu0 0
      %2033 = vmatprep.mubr.bf16.mxu0 0
      %2034 = vmatmul.mubr.bf16.gmra.mrb[0].mxu0 %v1978
      %v2035 = vpop.f32.mrb[0].mxu0
      %v2036 = vadd.f32 0.0, %v2035
      %v2037 = vpop.f32.mrb[0].mxu0
      %v2038 = vadd.f32 0.0, %v2037
      %v2039 = vpop.f32.mrb[0].mxu0
      %v2040 = vpop.f32.mrb[0].mxu0
      %2041 = vdwg.mxu0
      %2042 = vmatprep.subr.bf16.mxu0 %v1990
      %2043 = vmatpush1.bf16.msra.mxu0 %v1987
      %2044 = vmatprep.subr.bf16.mxu0 0
      %2045 = vmatpush1.bf16.msra.mxu0 0
      %2046 = vmatprep.subr.bf16.mxu0 0
      %2047 = vmatpush1.bf16.msra.mxu0 0
      %2048 = vmatprep.subr.bf16.mxu0 0
      %2049 = vmatpush1.bf16.msra.mxu0 0
      %2050 = vmatprep.subr.bf16.mxu0 0
      %2051 = vmatpush1.bf16.msra.mxu0 0
      %2052 = vmatprep.subr.bf16.mxu0 0
      %2053 = vmatpush1.bf16.msra.mxu0 0
      %2054 = vmatprep.subr.bf16.mxu0 0
      %2055 = vmatpush1.bf16.msra.mxu0 0
      %2056 = vmatprep.subr.bf16.mxu0 0
      %2057 = vmatpush1.bf16.msra.mxu0 0
      %2058 = vmatprep.subr.bf16.mxu0 0
      %2059 = vmatpush1.bf16.msra.mxu0 0
      %2060 = vmatprep.subr.bf16.mxu0 0
      %2061 = vmatpush1.bf16.msra.mxu0 0
      %2062 = vmatprep.subr.bf16.mxu0 0
      %2063 = vmatpush1.bf16.msra.mxu0 0
      %2064 = vmatprep.subr.bf16.mxu0 0
      %2065 = vmatpush1.bf16.msra.mxu0 0
      %2066 = vmatprep.subr.bf16.mxu0 0
      %2067 = vmatpush1.bf16.msra.mxu0 0
      %2068 = vmatprep.subr.bf16.mxu0 0
      %2069 = vmatpush1.bf16.msra.mxu0 0
      %2070 = vmatprep.subr.bf16.mxu0 0
      %2071 = vmatpush1.bf16.msra.mxu0 0
      %2072 = vmatprep.subr.bf16.mxu0 0
      %2073 = vmatpush1.bf16.msra.mxu0 0
      %2074 = vmatprep.mubr.bf16.mxu0 0
      %2075 = vmatmul.mubr.bf16.gmra.mrb[0].mxu0 %v1978
      %v2076 = vpop.f32.mrb[0].mxu0
      %v2077 = vadd.f32 0.0, %v2076
      %v2078 = vpop.f32.mrb[0].mxu0
      %v2079 = vadd.f32 0.0, %v2078
      %v2080 = vpop.f32.mrb[0].mxu0
      %v2081 = vpop.f32.mrb[0].mxu0
      %2082 = vdwg.mxu0
      %2083 = vmatprep.subr.bf16.mxu0 %v1996
      %2084 = vmatpush1.bf16.msra.mxu0 %v1993
      %2085 = vmatprep.subr.bf16.mxu0 0
      %2086 = vmatpush1.bf16.msra.mxu0 0
      %2087 = vmatprep.subr.bf16.mxu0 0
      %2088 = vmatpush1.bf16.msra.mxu0 0
      %2089 = vmatprep.subr.bf16.mxu0 0
      %2090 = vmatpush1.bf16.msra.mxu0 0
      %2091 = vmatprep.subr.bf16.mxu0 0
      %2092 = vmatpush1.bf16.msra.mxu0 0
      %2093 = vmatprep.subr.bf16.mxu0 0
      %2094 = vmatpush1.bf16.msra.mxu0 0
      %2095 = vmatprep.subr.bf16.mxu0 0
      %2096 = vmatpush1.bf16.msra.mxu0 0
      %2097 = vmatprep.subr.bf16.mxu0 0
      %2098 = vmatpush1.bf16.msra.mxu0 0
      %2099 = vmatprep.subr.bf16.mxu0 0
      %2100 = vmatpush1.bf16.msra.mxu0 0
      %2101 = vmatprep.subr.bf16.mxu0 0
      %2102 = vmatpush1.bf16.msra.mxu0 0
      %2103 = vmatprep.subr.bf16.mxu0 0
      %2104 = vmatpush1.bf16.msra.mxu0 0
      %2105 = vmatprep.subr.bf16.mxu0 0
      %2106 = vmatpush1.bf16.msra.mxu0 0
      %2107 = vmatprep.subr.bf16.mxu0 0
      %2108 = vmatpush1.bf16.msra.mxu0 0
      %2109 = vmatprep.subr.bf16.mxu0 0
      %2110 = vmatpush1.bf16.msra.mxu0 0
      %2111 = vmatprep.subr.bf16.mxu0 0
      %2112 = vmatpush1.bf16.msra.mxu0 0
      %2113 = vmatprep.subr.bf16.mxu0 0
      %2114 = vmatpush1.bf16.msra.mxu0 0
      %2115 = vmatprep.mubr.bf16.mxu0 0
      %2116 = vmatmul.mubr.bf16.gmra.mrb[0].mxu0 %v1978
      %v2117 = vpop.f32.mrb[0].mxu0
      %v2118 = vadd.f32 0.0, %v2117
      %v2119 = vpop.f32.mrb[0].mxu0
      %v2120 = vadd.f32 0.0, %v2119
      %v2121 = vpop.f32.mrb[0].mxu0
      %v2122 = vpop.f32.mrb[0].mxu0
      %2123 = vdwg.mxu0
      %2124 = vmatprep.subr.bf16.mxu0 0
      %2125 = vmatpush1.bf16.msra.mxu0 %v1999
      %2126 = vmatprep.subr.bf16.mxu0 0
      %2127 = vmatpush1.bf16.msra.mxu0 0
      %2128 = vmatprep.subr.bf16.mxu0 0
      %2129 = vmatpush1.bf16.msra.mxu0 0
      %2130 = vmatprep.subr.bf16.mxu0 0
      %2131 = vmatpush1.bf16.msra.mxu0 0
      %2132 = vmatprep.subr.bf16.mxu0 0
      %2133 = vmatpush1.bf16.msra.mxu0 0
      %2134 = vmatprep.subr.bf16.mxu0 0
      %2135 = vmatpush1.bf16.msra.mxu0 0
      %2136 = vmatprep.subr.bf16.mxu0 0
      %2137 = vmatpush1.bf16.msra.mxu0 0
      %2138 = vmatprep.subr.bf16.mxu0 0
      %2139 = vmatpush1.bf16.msra.mxu0 0
      %2140 = vmatprep.subr.bf16.mxu0 0
      %2141 = vmatpush1.bf16.msra.mxu0 0
      %2142 = vmatprep.subr.bf16.mxu0 0
      %2143 = vmatpush1.bf16.msra.mxu0 0
      %2144 = vmatprep.subr.bf16.mxu0 0
      %2145 = vmatpush1.bf16.msra.mxu0 0
      %2146 = vmatprep.subr.bf16.mxu0 0
      %2147 = vmatpush1.bf16.msra.mxu0 0
      %2148 = vmatprep.subr.bf16.mxu0 0
      %2149 = vmatpush1.bf16.msra.mxu0 0
      %2150 = vmatprep.subr.bf16.mxu0 0
      %2151 = vmatpush1.bf16.msra.mxu0 0
      %2152 = vmatprep.subr.bf16.mxu0 0
      %2153 = vmatpush1.bf16.msra.mxu0 0
      %2154 = vmatprep.subr.bf16.mxu0 0
      %2155 = vmatpush1.bf16.msra.mxu0 0
      %2156 = vmatprep.mubr.bf16.mxu0 0
      %2157 = vmatmul.mubr.bf16.gmra.mrb[0].mxu0 %v1978
      %v2158 = vpop.f32.mrb[0].mxu0
      %v2159 = vadd.f32 0.0, %v2158
      %v2160 = vpop.f32.mrb[0].mxu0
      %v2161 = vpop.f32.mrb[0].mxu0
      %v2162 = vpop.f32.mrb[0].mxu0
      %2163 = vdwg.mxu0
      %v2164 = vadd.f32 %v1944, %v2036
      %v2165 = vadd.f32 %v1945, %v2038
      %v2166 = vadd.f32 %v1946, %v2077
      %v2167 = vadd.f32 %v1947, %v2079
      %v2168 = vadd.f32 %v1948, %v2118
      %v2169 = vadd.f32 %v1949, %v2120
      %v2170 = vadd.f32 %v1950, %v2159
      %s2171 = scalar_lea.vmem %s1, 36
      %v2172 = vld [vmem:[%s2171] sm:$0x7]
      %2173 = vrot.lane.b32.xlu0 %v213, 92
      %v2174 = vpop.permute.xlu0 %2173
      %2175 = vrot.lane.b32.xlu0 %v221, 92
      %v2176 = vpop.permute.xlu0 %2175
      %2177 = vrot.lane.b32.xlu0 %v220, 92
      %v2178 = vpop.permute.xlu0 %2177
      %2179 = vrot.lane.b32.xlu0 %v222, 92
      %v2180 = vpop.permute.xlu0 %2179
      %2181 = vrot.lane.b32.xlu0 %v230, 92
      %v2182 = vpop.permute.xlu0 %2181
      %2183 = vrot.lane.b32.xlu0 %v238, 92
      %v2184 = vpop.permute.xlu0 %2183
      %2185 = vrot.lane.b32.xlu0 %v237, 92
      %v2186 = vpop.permute.xlu0 %2185
      %2187 = vrot.lane.b32.xlu0 %v1292, 92
      %v2188 = vpop.permute.xlu0 %2187
      %vm2189 = vcmask 752640
      %v2190 = vsel %vm2189, %v2174, %v2176
      %v2191 = vsel %vm2189, %v2176, %v2178
      %v2192 = vsel %vm2189, %v2178, %v2180
      %v2193 = vsel %vm2189, %v2180, %v2182
      %v2194 = vsel %vm2189, %v2182, %v2184
      %v2195 = vsel %vm2189, %v2184, %v2186
      %v2196 = vsel %vm2189, %v2186, %v2188
      %v2198 = vsel %vm260, %v2172, 0
      %v2201 = vand.u32 %v2190, %v267
      %v2204 = vand.u32 %v2191, %v267
      %v2207 = vand.u32 %v2192, %v267
      %v2210 = vand.u32 %v2193, %v267
      %v2213 = vand.u32 %v2194, %v267
      %v2216 = vand.u32 %v2195, %v267
      %v2219 = vand.u32 %v2196, %v267
      %2221 = vmatprep.subr.bf16.mxu0 %v2204
      %2222 = vmatpush1.bf16.msra.mxu0 %v2201
      %2223 = vmatprep.subr.bf16.mxu0 0
      %2224 = vmatpush1.bf16.msra.mxu0 0
      %2225 = vmatprep.subr.bf16.mxu0 0
      %2226 = vmatpush1.bf16.msra.mxu0 0
      %2227 = vmatprep.subr.bf16.mxu0 0
      %2228 = vmatpush1.bf16.msra.mxu0 0
      %2229 = vmatprep.subr.bf16.mxu0 0
      %2230 = vmatpush1.bf16.msra.mxu0 0
      %2231 = vmatprep.subr.bf16.mxu0 0
      %2232 = vmatpush1.bf16.msra.mxu0 0
      %2233 = vmatprep.subr.bf16.mxu0 0
      %2234 = vmatpush1.bf16.msra.mxu0 0
      %2235 = vmatprep.subr.bf16.mxu0 0
      %2236 = vmatpush1.bf16.msra.mxu0 0
      %2237 = vmatprep.subr.bf16.mxu0 0
      %2238 = vmatpush1.bf16.msra.mxu0 0
      %2239 = vmatprep.subr.bf16.mxu0 0
      %2240 = vmatpush1.bf16.msra.mxu0 0
      %2241 = vmatprep.subr.bf16.mxu0 0
      %2242 = vmatpush1.bf16.msra.mxu0 0
      %2243 = vmatprep.subr.bf16.mxu0 0
      %2244 = vmatpush1.bf16.msra.mxu0 0
      %2245 = vmatprep.subr.bf16.mxu0 0
      %2246 = vmatpush1.bf16.msra.mxu0 0
      %2247 = vmatprep.subr.bf16.mxu0 0
      %2248 = vmatpush1.bf16.msra.mxu0 0
      %2249 = vmatprep.subr.bf16.mxu0 0
      %2250 = vmatpush1.bf16.msra.mxu0 0
      %2251 = vmatprep.subr.bf16.mxu0 0
      %2252 = vmatpush1.bf16.msra.mxu0 0
      %2253 = vmatprep.mubr.bf16.mxu0 0
      %2254 = vmatmul.mubr.bf16.gmra.mrb[0].mxu0 %v2198
      %v2255 = vpop.f32.mrb[0].mxu0
      %v2256 = vadd.f32 0.0, %v2255
      %v2257 = vpop.f32.mrb[0].mxu0
      %v2258 = vadd.f32 0.0, %v2257
      %v2259 = vpop.f32.mrb[0].mxu0
      %v2260 = vpop.f32.mrb[0].mxu0
      %2261 = vdwg.mxu0
      %2262 = vmatprep.subr.bf16.mxu0 %v2210
      %2263 = vmatpush1.bf16.msra.mxu0 %v2207
      %2264 = vmatprep.subr.bf16.mxu0 0
      %2265 = vmatpush1.bf16.msra.mxu0 0
      %2266 = vmatprep.subr.bf16.mxu0 0
      %2267 = vmatpush1.bf16.msra.mxu0 0
      %2268 = vmatprep.subr.bf16.mxu0 0
      %2269 = vmatpush1.bf16.msra.mxu0 0
      %2270 = vmatprep.subr.bf16.mxu0 0
      %2271 = vmatpush1.bf16.msra.mxu0 0
      %2272 = vmatprep.subr.bf16.mxu0 0
      %2273 = vmatpush1.bf16.msra.mxu0 0
      %2274 = vmatprep.subr.bf16.mxu0 0
      %2275 = vmatpush1.bf16.msra.mxu0 0
      %2276 = vmatprep.subr.bf16.mxu0 0
      %2277 = vmatpush1.bf16.msra.mxu0 0
      %2278 = vmatprep.subr.bf16.mxu0 0
      %2279 = vmatpush1.bf16.msra.mxu0 0
      %2280 = vmatprep.subr.bf16.mxu0 0
      %2281 = vmatpush1.bf16.msra.mxu0 0
      %2282 = vmatprep.subr.bf16.mxu0 0
      %2283 = vmatpush1.bf16.msra.mxu0 0
      %2284 = vmatprep.subr.bf16.mxu0 0
      %2285 = vmatpush1.bf16.msra.mxu0 0
      %2286 = vmatprep.subr.bf16.mxu0 0
      %2287 = vmatpush1.bf16.msra.mxu0 0
      %2288 = vmatprep.subr.bf16.mxu0 0
      %2289 = vmatpush1.bf16.msra.mxu0 0
      %2290 = vmatprep.subr.bf16.mxu0 0
      %2291 = vmatpush1.bf16.msra.mxu0 0
      %2292 = vmatprep.subr.bf16.mxu0 0
      %2293 = vmatpush1.bf16.msra.mxu0 0
      %2294 = vmatprep.mubr.bf16.mxu0 0
      %2295 = vmatmul.mubr.bf16.gmra.mrb[0].mxu0 %v2198
      %v2296 = vpop.f32.mrb[0].mxu0
      %v2297 = vadd.f32 0.0, %v2296
      %v2298 = vpop.f32.mrb[0].mxu0
      %v2299 = vadd.f32 0.0, %v2298
      %v2300 = vpop.f32.mrb[0].mxu0
      %v2301 = vpop.f32.mrb[0].mxu0
      %2302 = vdwg.mxu0
      %2303 = vmatprep.subr.bf16.mxu0 %v2216
      %2304 = vmatpush1.bf16.msra.mxu0 %v2213
      %2305 = vmatprep.subr.bf16.mxu0 0
      %2306 = vmatpush1.bf16.msra.mxu0 0
      %2307 = vmatprep.subr.bf16.mxu0 0
      %2308 = vmatpush1.bf16.msra.mxu0 0
      %2309 = vmatprep.subr.bf16.mxu0 0
      %2310 = vmatpush1.bf16.msra.mxu0 0
      %2311 = vmatprep.subr.bf16.mxu0 0
      %2312 = vmatpush1.bf16.msra.mxu0 0
      %2313 = vmatprep.subr.bf16.mxu0 0
      %2314 = vmatpush1.bf16.msra.mxu0 0
      %2315 = vmatprep.subr.bf16.mxu0 0
      %2316 = vmatpush1.bf16.msra.mxu0 0
      %2317 = vmatprep.subr.bf16.mxu0 0
      %2318 = vmatpush1.bf16.msra.mxu0 0
      %2319 = vmatprep.subr.bf16.mxu0 0
      %2320 = vmatpush1.bf16.msra.mxu0 0
      %2321 = vmatprep.subr.bf16.mxu0 0
      %2322 = vmatpush1.bf16.msra.mxu0 0
      %2323 = vmatprep.subr.bf16.mxu0 0
      %2324 = vmatpush1.bf16.msra.mxu0 0
      %2325 = vmatprep.subr.bf16.mxu0 0
      %2326 = vmatpush1.bf16.msra.mxu0 0
      %2327 = vmatprep.subr.bf16.mxu0 0
      %2328 = vmatpush1.bf16.msra.mxu0 0
      %2329 = vmatprep.subr.bf16.mxu0 0
      %2330 = vmatpush1.bf16.msra.mxu0 0
      %2331 = vmatprep.subr.bf16.mxu0 0
      %2332 = vmatpush1.bf16.msra.mxu0 0
      %2333 = vmatprep.subr.bf16.mxu0 0
      %2334 = vmatpush1.bf16.msra.mxu0 0
      %2335 = vmatprep.mubr.bf16.mxu0 0
      %2336 = vmatmul.mubr.bf16.gmra.mrb[0].mxu0 %v2198
      %v2337 = vpop.f32.mrb[0].mxu0
      %v2338 = vadd.f32 0.0, %v2337
      %v2339 = vpop.f32.mrb[0].mxu0
      %v2340 = vadd.f32 0.0, %v2339
      %v2341 = vpop.f32.mrb[0].mxu0
      %v2342 = vpop.f32.mrb[0].mxu0
      %2343 = vdwg.mxu0
      %2344 = vmatprep.subr.bf16.mxu0 0
      %2345 = vmatpush1.bf16.msra.mxu0 %v2219
      %2346 = vmatprep.subr.bf16.mxu0 0
      %2347 = vmatpush1.bf16.msra.mxu0 0
      %2348 = vmatprep.subr.bf16.mxu0 0
      %2349 = vmatpush1.bf16.msra.mxu0 0
      %2350 = vmatprep.subr.bf16.mxu0 0
      %2351 = vmatpush1.bf16.msra.mxu0 0
      %2352 = vmatprep.subr.bf16.mxu0 0
      %2353 = vmatpush1.bf16.msra.mxu0 0
      %2354 = vmatprep.subr.bf16.mxu0 0
      %2355 = vmatpush1.bf16.msra.mxu0 0
      %2356 = vmatprep.subr.bf16.mxu0 0
      %2357 = vmatpush1.bf16.msra.mxu0 0
      %2358 = vmatprep.subr.bf16.mxu0 0
      %2359 = vmatpush1.bf16.msra.mxu0 0
      %2360 = vmatprep.subr.bf16.mxu0 0
      %2361 = vmatpush1.bf16.msra.mxu0 0
      %2362 = vmatprep.subr.bf16.mxu0 0
      %2363 = vmatpush1.bf16.msra.mxu0 0
      %2364 = vmatprep.subr.bf16.mxu0 0
      %2365 = vmatpush1.bf16.msra.mxu0 0
      %2366 = vmatprep.subr.bf16.mxu0 0
      %2367 = vmatpush1.bf16.msra.mxu0 0
      %2368 = vmatprep.subr.bf16.mxu0 0
      %2369 = vmatpush1.bf16.msra.mxu0 0
      %2370 = vmatprep.subr.bf16.mxu0 0
      %2371 = vmatpush1.bf16.msra.mxu0 0
      %2372 = vmatprep.subr.bf16.mxu0 0
      %2373 = vmatpush1.bf16.msra.mxu0 0
      %2374 = vmatprep.subr.bf16.mxu0 0
      %2375 = vmatpush1.bf16.msra.mxu0 0
      %2376 = vmatprep.mubr.bf16.mxu0 0
      %2377 = vmatmul.mubr.bf16.gmra.mrb[0].mxu0 %v2198
      %v2378 = vpop.f32.mrb[0].mxu0
      %v2379 = vadd.f32 0.0, %v2378
      %v2380 = vpop.f32.mrb[0].mxu0
      %v2381 = vpop.f32.mrb[0].mxu0
      %v2382 = vpop.f32.mrb[0].mxu0
      %2383 = vdwg.mxu0
      %v2384 = vadd.f32 %v2164, %v2256
      %v2385 = vadd.f32 %v2165, %v2258
      %v2386 = vadd.f32 %v2166, %v2297
      %v2387 = vadd.f32 %v2167, %v2299
      %v2388 = vadd.f32 %v2168, %v2338
      %v2389 = vadd.f32 %v2169, %v2340
      %v2390 = vadd.f32 %v2170, %v2379
      %s2391 = scalar_lea.vmem %s1, 40
      %v2392 = vld [vmem:[%s2391] sm:$0x7]
      %2393 = vrot.lane.b32.xlu0 %v213, 64
      %v2394 = vpop.permute.xlu0 %2393
      %2395 = vrot.lane.b32.xlu0 %v221, 64
      %v2396 = vpop.permute.xlu0 %2395
      %2397 = vrot.lane.b32.xlu0 %v220, 64
      %v2398 = vpop.permute.xlu0 %2397
      %2399 = vrot.lane.b32.xlu0 %v222, 64
      %v2400 = vpop.permute.xlu0 %2399
      %2401 = vrot.lane.b32.xlu0 %v230, 64
      %v2402 = vpop.permute.xlu0 %2401
      %2403 = vrot.lane.b32.xlu0 %v238, 64
      %v2404 = vpop.permute.xlu0 %2403
      %2405 = vrot.lane.b32.xlu0 %v237, 64
      %v2406 = vpop.permute.xlu0 %2405
      %2407 = vrot.lane.b32.xlu0 %v1292, 64
      %v2408 = vpop.permute.xlu0 %2407
      %vm2409 = vcmask 523264
      %v2410 = vsel %vm2409, %v2394, %v2396
      %v2411 = vsel %vm2409, %v2396, %v2398
      %v2412 = vsel %vm2409, %v2398, %v2400
      %v2413 = vsel %vm2409, %v2400, %v2402
      %v2414 = vsel %vm2409, %v2402, %v2404
      %v2415 = vsel %vm2409, %v2404, %v2406
      %v2416 = vsel %vm2409, %v2406, %v2408
      %v2418 = vsel %vm260, %v2392, 0
      %v2421 = vand.u32 %v2410, %v267
      %v2424 = vand.u32 %v2411, %v267
      %v2427 = vand.u32 %v2412, %v267
      %v2430 = vand.u32 %v2413, %v267
      %v2433 = vand.u32 %v2414, %v267
      %v2436 = vand.u32 %v2415, %v267
      %v2439 = vand.u32 %v2416, %v267
      %2441 = vmatprep.subr.bf16.mxu0 %v2424
      %2442 = vmatpush1.bf16.msra.mxu0 %v2421
      %2443 = vmatprep.subr.bf16.mxu0 0
      %2444 = vmatpush1.bf16.msra.mxu0 0
      %2445 = vmatprep.subr.bf16.mxu0 0
      %2446 = vmatpush1.bf16.msra.mxu0 0
      %2447 = vmatprep.subr.bf16.mxu0 0
      %2448 = vmatpush1.bf16.msra.mxu0 0
      %2449 = vmatprep.subr.bf16.mxu0 0
      %2450 = vmatpush1.bf16.msra.mxu0 0
      %2451 = vmatprep.subr.bf16.mxu0 0
      %2452 = vmatpush1.bf16.msra.mxu0 0
      %2453 = vmatprep.subr.bf16.mxu0 0
      %2454 = vmatpush1.bf16.msra.mxu0 0
      %2455 = vmatprep.subr.bf16.mxu0 0
      %2456 = vmatpush1.bf16.msra.mxu0 0
      %2457 = vmatprep.subr.bf16.mxu0 0
      %2458 = vmatpush1.bf16.msra.mxu0 0
      %2459 = vmatprep.subr.bf16.mxu0 0
      %2460 = vmatpush1.bf16.msra.mxu0 0
      %2461 = vmatprep.subr.bf16.mxu0 0
      %2462 = vmatpush1.bf16.msra.mxu0 0
      %2463 = vmatprep.subr.bf16.mxu0 0
      %2464 = vmatpush1.bf16.msra.mxu0 0
      %2465 = vmatprep.subr.bf16.mxu0 0
      %2466 = vmatpush1.bf16.msra.mxu0 0
      %2467 = vmatprep.subr.bf16.mxu0 0
      %2468 = vmatpush1.bf16.msra.mxu0 0
      %2469 = vmatprep.subr.bf16.mxu0 0
      %2470 = vmatpush1.bf16.msra.mxu0 0
      %2471 = vmatprep.subr.bf16.mxu0 0
      %2472 = vmatpush1.bf16.msra.mxu0 0
      %2473 = vmatprep.mubr.bf16.mxu0 0
      %2474 = vmatmul.mubr.bf16.gmra.mrb[0].mxu0 %v2418
      %v2475 = vpop.f32.mrb[0].mxu0
      %v2476 = vadd.f32 0.0, %v2475
      %v2477 = vpop.f32.mrb[0].mxu0
      %v2478 = vadd.f32 0.0, %v2477
      %v2479 = vpop.f32.mrb[0].mxu0
      %v2480 = vpop.f32.mrb[0].mxu0
      %2481 = vdwg.mxu0
      %2482 = vmatprep.subr.bf16.mxu0 %v2430
      %2483 = vmatpush1.bf16.msra.mxu0 %v2427
      %2484 = vmatprep.subr.bf16.mxu0 0
      %2485 = vmatpush1.bf16.msra.mxu0 0
      %2486 = vmatprep.subr.bf16.mxu0 0
      %2487 = vmatpush1.bf16.msra.mxu0 0
      %2488 = vmatprep.subr.bf16.mxu0 0
      %2489 = vmatpush1.bf16.msra.mxu0 0
      %2490 = vmatprep.subr.bf16.mxu0 0
      %2491 = vmatpush1.bf16.msra.mxu0 0
      %2492 = vmatprep.subr.bf16.mxu0 0
      %2493 = vmatpush1.bf16.msra.mxu0 0
      %2494 = vmatprep.subr.bf16.mxu0 0
      %2495 = vmatpush1.bf16.msra.mxu0 0
      %2496 = vmatprep.subr.bf16.mxu0 0
      %2497 = vmatpush1.bf16.msra.mxu0 0
      %2498 = vmatprep.subr.bf16.mxu0 0
      %2499 = vmatpush1.bf16.msra.mxu0 0
      %2500 = vmatprep.subr.bf16.mxu0 0
      %2501 = vmatpush1.bf16.msra.mxu0 0
      %2502 = vmatprep.subr.bf16.mxu0 0
      %2503 = vmatpush1.bf16.msra.mxu0 0
      %2504 = vmatprep.subr.bf16.mxu0 0
      %2505 = vmatpush1.bf16.msra.mxu0 0
      %2506 = vmatprep.subr.bf16.mxu0 0
      %2507 = vmatpush1.bf16.msra.mxu0 0
      %2508 = vmatprep.subr.bf16.mxu0 0
      %2509 = vmatpush1.bf16.msra.mxu0 0
      %2510 = vmatprep.subr.bf16.mxu0 0
      %2511 = vmatpush1.bf16.msra.mxu0 0
      %2512 = vmatprep.subr.bf16.mxu0 0
      %2513 = vmatpush1.bf16.msra.mxu0 0
      %2514 = vmatprep.mubr.bf16.mxu0 0
      %2515 = vmatmul.mubr.bf16.gmra.mrb[0].mxu0 %v2418
      %v2516 = vpop.f32.mrb[0].mxu0
      %v2517 = vadd.f32 0.0, %v2516
      %v2518 = vpop.f32.mrb[0].mxu0
      %v2519 = vadd.f32 0.0, %v2518
      %v2520 = vpop.f32.mrb[0].mxu0
      %v2521 = vpop.f32.mrb[0].mxu0
      %2522 = vdwg.mxu0
      %2523 = vmatprep.subr.bf16.mxu0 %v2436
      %2524 = vmatpush1.bf16.msra.mxu0 %v2433
      %2525 = vmatprep.subr.bf16.mxu0 0
      %2526 = vmatpush1.bf16.msra.mxu0 0
      %2527 = vmatprep.subr.bf16.mxu0 0
      %2528 = vmatpush1.bf16.msra.mxu0 0
      %2529 = vmatprep.subr.bf16.mxu0 0
      %2530 = vmatpush1.bf16.msra.mxu0 0
      %2531 = vmatprep.subr.bf16.mxu0 0
      %2532 = vmatpush1.bf16.msra.mxu0 0
      %2533 = vmatprep.subr.bf16.mxu0 0
      %2534 = vmatpush1.bf16.msra.mxu0 0
      %2535 = vmatprep.subr.bf16.mxu0 0
      %2536 = vmatpush1.bf16.msra.mxu0 0
      %2537 = vmatprep.subr.bf16.mxu0 0
      %2538 = vmatpush1.bf16.msra.mxu0 0
      %2539 = vmatprep.subr.bf16.mxu0 0
      %2540 = vmatpush1.bf16.msra.mxu0 0
      %2541 = vmatprep.subr.bf16.mxu0 0
      %2542 = vmatpush1.bf16.msra.mxu0 0
      %2543 = vmatprep.subr.bf16.mxu0 0
      %2544 = vmatpush1.bf16.msra.mxu0 0
      %2545 = vmatprep.subr.bf16.mxu0 0
      %2546 = vmatpush1.bf16.msra.mxu0 0
      %2547 = vmatprep.subr.bf16.mxu0 0
      %2548 = vmatpush1.bf16.msra.mxu0 0
      %2549 = vmatprep.subr.bf16.mxu0 0
      %2550 = vmatpush1.bf16.msra.mxu0 0
      %2551 = vmatprep.subr.bf16.mxu0 0
      %2552 = vmatpush1.bf16.msra.mxu0 0
      %2553 = vmatprep.subr.bf16.mxu0 0
      %2554 = vmatpush1.bf16.msra.mxu0 0
      %2555 = vmatprep.mubr.bf16.mxu0 0
      %2556 = vmatmul.mubr.bf16.gmra.mrb[0].mxu0 %v2418
      %v2557 = vpop.f32.mrb[0].mxu0
      %v2558 = vadd.f32 0.0, %v2557
      %v2559 = vpop.f32.mrb[0].mxu0
      %v2560 = vadd.f32 0.0, %v2559
      %v2561 = vpop.f32.mrb[0].mxu0
      %v2562 = vpop.f32.mrb[0].mxu0
      %2563 = vdwg.mxu0
      %2564 = vmatprep.subr.bf16.mxu0 0
      %2565 = vmatpush1.bf16.msra.mxu0 %v2439
      %2566 = vmatprep.subr.bf16.mxu0 0
      %2567 = vmatpush1.bf16.msra.mxu0 0
      %2568 = vmatprep.subr.bf16.mxu0 0
      %2569 = vmatpush1.bf16.msra.mxu0 0
      %2570 = vmatprep.subr.bf16.mxu0 0
      %2571 = vmatpush1.bf16.msra.mxu0 0
      %2572 = vmatprep.subr.bf16.mxu0 0
      %2573 = vmatpush1.bf16.msra.mxu0 0
      %2574 = vmatprep.subr.bf16.mxu0 0
      %2575 = vmatpush1.bf16.msra.mxu0 0
      %2576 = vmatprep.subr.bf16.mxu0 0
      %2577 = vmatpush1.bf16.msra.mxu0 0
      %2578 = vmatprep.subr.bf16.mxu0 0
      %2579 = vmatpush1.bf16.msra.mxu0 0
      %2580 = vmatprep.subr.bf16.mxu0 0
      %2581 = vmatpush1.bf16.msra.mxu0 0
      %2582 = vmatprep.subr.bf16.mxu0 0
      %2583 = vmatpush1.bf16.msra.mxu0 0
      %2584 = vmatprep.subr.bf16.mxu0 0
      %2585 = vmatpush1.bf16.msra.mxu0 0
      %2586 = vmatprep.subr.bf16.mxu0 0
      %2587 = vmatpush1.bf16.msra.mxu0 0
      %2588 = vmatprep.subr.bf16.mxu0 0
      %2589 = vmatpush1.bf16.msra.mxu0 0
      %2590 = vmatprep.subr.bf16.mxu0 0
      %2591 = vmatpush1.bf16.msra.mxu0 0
      %2592 = vmatprep.subr.bf16.mxu0 0
      %2593 = vmatpush1.bf16.msra.mxu0 0
      %2594 = vmatprep.subr.bf16.mxu0 0
      %2595 = vmatpush1.bf16.msra.mxu0 0
      %2596 = vmatprep.mubr.bf16.mxu0 0
      %2597 = vmatmul.mubr.bf16.gmra.mrb[0].mxu0 %v2418
      %v2598 = vpop.f32.mrb[0].mxu0
      %v2599 = vadd.f32 0.0, %v2598
      %v2600 = vpop.f32.mrb[0].mxu0
      %v2601 = vpop.f32.mrb[0].mxu0
      %v2602 = vpop.f32.mrb[0].mxu0
      %2603 = vdwg.mxu0
      %v2604 = vadd.f32 %v2384, %v2476
      %v2605 = vadd.f32 %v2385, %v2478
      %v2606 = vadd.f32 %v2386, %v2517
      %v2607 = vadd.f32 %v2387, %v2519
      %v2608 = vadd.f32 %v2388, %v2558
      %v2609 = vadd.f32 %v2389, %v2560
      %v2610 = vadd.f32 %v2390, %v2599
      %s2611 = scalar_lea.vmem %s1, 44
      %v2612 = vld [vmem:[%s2611] sm:$0x7]
      %2613 = vrot.lane.b32.xlu0 %v213, 63
      %v2614 = vpop.permute.xlu0 %2613
      %2615 = vrot.lane.b32.xlu0 %v221, 63
      %v2616 = vpop.permute.xlu0 %2615
      %2617 = vrot.lane.b32.xlu0 %v220, 63
      %v2618 = vpop.permute.xlu0 %2617
      %2619 = vrot.lane.b32.xlu0 %v222, 63
      %v2620 = vpop.permute.xlu0 %2619
      %2621 = vrot.lane.b32.xlu0 %v230, 63
      %v2622 = vpop.permute.xlu0 %2621
      %2623 = vrot.lane.b32.xlu0 %v238, 63
      %v2624 = vpop.permute.xlu0 %2623
      %2625 = vrot.lane.b32.xlu0 %v237, 63
      %v2626 = vpop.permute.xlu0 %2625
      %2627 = vrot.lane.b32.xlu0 %v1292, 63
      %v2628 = vpop.permute.xlu0 %2627
      %vm2629 = vcmask 515072
      %v2630 = vsel %vm2629, %v2614, %v2616
      %v2631 = vsel %vm2629, %v2616, %v2618
      %v2632 = vsel %vm2629, %v2618, %v2620
      %v2633 = vsel %vm2629, %v2620, %v2622
      %v2634 = vsel %vm2629, %v2622, %v2624
      %v2635 = vsel %vm2629, %v2624, %v2626
      %v2636 = vsel %vm2629, %v2626, %v2628
      %v2638 = vsel %vm260, %v2612, 0
      %v2641 = vand.u32 %v2630, %v267
      %v2644 = vand.u32 %v2631, %v267
      %v2647 = vand.u32 %v2632, %v267
      %v2650 = vand.u32 %v2633, %v267
      %v2653 = vand.u32 %v2634, %v267
      %v2656 = vand.u32 %v2635, %v267
      %v2659 = vand.u32 %v2636, %v267
      %2661 = vmatprep.subr.bf16.mxu0 %v2644
      %2662 = vmatpush1.bf16.msra.mxu0 %v2641
      %2663 = vmatprep.subr.bf16.mxu0 0
      %2664 = vmatpush1.bf16.msra.mxu0 0
      %2665 = vmatprep.subr.bf16.mxu0 0
      %2666 = vmatpush1.bf16.msra.mxu0 0
      %2667 = vmatprep.subr.bf16.mxu0 0
      %2668 = vmatpush1.bf16.msra.mxu0 0
      %2669 = vmatprep.subr.bf16.mxu0 0
      %2670 = vmatpush1.bf16.msra.mxu0 0
      %2671 = vmatprep.subr.bf16.mxu0 0
      %2672 = vmatpush1.bf16.msra.mxu0 0
      %2673 = vmatprep.subr.bf16.mxu0 0
      %2674 = vmatpush1.bf16.msra.mxu0 0
      %2675 = vmatprep.subr.bf16.mxu0 0
      %2676 = vmatpush1.bf16.msra.mxu0 0
      %2677 = vmatprep.subr.bf16.mxu0 0
      %2678 = vmatpush1.bf16.msra.mxu0 0
      %2679 = vmatprep.subr.bf16.mxu0 0
      %2680 = vmatpush1.bf16.msra.mxu0 0
      %2681 = vmatprep.subr.bf16.mxu0 0
      %2682 = vmatpush1.bf16.msra.mxu0 0
      %2683 = vmatprep.subr.bf16.mxu0 0
      %2684 = vmatpush1.bf16.msra.mxu0 0
      %2685 = vmatprep.subr.bf16.mxu0 0
      %2686 = vmatpush1.bf16.msra.mxu0 0
      %2687 = vmatprep.subr.bf16.mxu0 0
      %2688 = vmatpush1.bf16.msra.mxu0 0
      %2689 = vmatprep.subr.bf16.mxu0 0
      %2690 = vmatpush1.bf16.msra.mxu0 0
      %2691 = vmatprep.subr.bf16.mxu0 0
      %2692 = vmatpush1.bf16.msra.mxu0 0
      %2693 = vmatprep.mubr.bf16.mxu0 0
      %2694 = vmatmul.mubr.bf16.gmra.mrb[0].mxu0 %v2638
      %v2695 = vpop.f32.mrb[0].mxu0
      %v2696 = vadd.f32 0.0, %v2695
      %v2697 = vpop.f32.mrb[0].mxu0
      %v2698 = vadd.f32 0.0, %v2697
      %v2699 = vpop.f32.mrb[0].mxu0
      %v2700 = vpop.f32.mrb[0].mxu0
      %2701 = vdwg.mxu0
      %2702 = vmatprep.subr.bf16.mxu0 %v2650
      %2703 = vmatpush1.bf16.msra.mxu0 %v2647
      %2704 = vmatprep.subr.bf16.mxu0 0
      %2705 = vmatpush1.bf16.msra.mxu0 0
      %2706 = vmatprep.subr.bf16.mxu0 0
      %2707 = vmatpush1.bf16.msra.mxu0 0
      %2708 = vmatprep.subr.bf16.mxu0 0
      %2709 = vmatpush1.bf16.msra.mxu0 0
      %2710 = vmatprep.subr.bf16.mxu0 0
      %2711 = vmatpush1.bf16.msra.mxu0 0
      %2712 = vmatprep.subr.bf16.mxu0 0
      %2713 = vmatpush1.bf16.msra.mxu0 0
      %2714 = vmatprep.subr.bf16.mxu0 0
      %2715 = vmatpush1.bf16.msra.mxu0 0
      %2716 = vmatprep.subr.bf16.mxu0 0
      %2717 = vmatpush1.bf16.msra.mxu0 0
      %2718 = vmatprep.subr.bf16.mxu0 0
      %2719 = vmatpush1.bf16.msra.mxu0 0
      %2720 = vmatprep.subr.bf16.mxu0 0
      %2721 = vmatpush1.bf16.msra.mxu0 0
      %2722 = vmatprep.subr.bf16.mxu0 0
      %2723 = vmatpush1.bf16.msra.mxu0 0
      %2724 = vmatprep.subr.bf16.mxu0 0
      %2725 = vmatpush1.bf16.msra.mxu0 0
      %2726 = vmatprep.subr.bf16.mxu0 0
      %2727 = vmatpush1.bf16.msra.mxu0 0
      %2728 = vmatprep.subr.bf16.mxu0 0
      %2729 = vmatpush1.bf16.msra.mxu0 0
      %2730 = vmatprep.subr.bf16.mxu0 0
      %2731 = vmatpush1.bf16.msra.mxu0 0
      %2732 = vmatprep.subr.bf16.mxu0 0
      %2733 = vmatpush1.bf16.msra.mxu0 0
      %2734 = vmatprep.mubr.bf16.mxu0 0
      %2735 = vmatmul.mubr.bf16.gmra.mrb[0].mxu0 %v2638
      %v2736 = vpop.f32.mrb[0].mxu0
      %v2737 = vadd.f32 0.0, %v2736
      %v2738 = vpop.f32.mrb[0].mxu0
      %v2739 = vadd.f32 0.0, %v2738
      %v2740 = vpop.f32.mrb[0].mxu0
      %v2741 = vpop.f32.mrb[0].mxu0
      %2742 = vdwg.mxu0
      %2743 = vmatprep.subr.bf16.mxu0 %v2656
      %2744 = vmatpush1.bf16.msra.mxu0 %v2653
      %2745 = vmatprep.subr.bf16.mxu0 0
      %2746 = vmatpush1.bf16.msra.mxu0 0
      %2747 = vmatprep.subr.bf16.mxu0 0
      %2748 = vmatpush1.bf16.msra.mxu0 0
      %2749 = vmatprep.subr.bf16.mxu0 0
      %2750 = vmatpush1.bf16.msra.mxu0 0
      %2751 = vmatprep.subr.bf16.mxu0 0
      %2752 = vmatpush1.bf16.msra.mxu0 0
      %2753 = vmatprep.subr.bf16.mxu0 0
      %2754 = vmatpush1.bf16.msra.mxu0 0
      %2755 = vmatprep.subr.bf16.mxu0 0
      %2756 = vmatpush1.bf16.msra.mxu0 0
      %2757 = vmatprep.subr.bf16.mxu0 0
      %2758 = vmatpush1.bf16.msra.mxu0 0
      %2759 = vmatprep.subr.bf16.mxu0 0
      %2760 = vmatpush1.bf16.msra.mxu0 0
      %2761 = vmatprep.subr.bf16.mxu0 0
      %2762 = vmatpush1.bf16.msra.mxu0 0
      %2763 = vmatprep.subr.bf16.mxu0 0
      %2764 = vmatpush1.bf16.msra.mxu0 0
      %2765 = vmatprep.subr.bf16.mxu0 0
      %2766 = vmatpush1.bf16.msra.mxu0 0
      %2767 = vmatprep.subr.bf16.mxu0 0
      %2768 = vmatpush1.bf16.msra.mxu0 0
      %2769 = vmatprep.subr.bf16.mxu0 0
      %2770 = vmatpush1.bf16.msra.mxu0 0
      %2771 = vmatprep.subr.bf16.mxu0 0
      %2772 = vmatpush1.bf16.msra.mxu0 0
      %2773 = vmatprep.subr.bf16.mxu0 0
      %2774 = vmatpush1.bf16.msra.mxu0 0
      %2775 = vmatprep.mubr.bf16.mxu0 0
      %2776 = vmatmul.mubr.bf16.gmra.mrb[0].mxu0 %v2638
      %v2777 = vpop.f32.mrb[0].mxu0
      %v2778 = vadd.f32 0.0, %v2777
      %v2779 = vpop.f32.mrb[0].mxu0
      %v2780 = vadd.f32 0.0, %v2779
      %v2781 = vpop.f32.mrb[0].mxu0
      %v2782 = vpop.f32.mrb[0].mxu0
      %2783 = vdwg.mxu0
      %2784 = vmatprep.subr.bf16.mxu0 0
      %2785 = vmatpush1.bf16.msra.mxu0 %v2659
      %2786 = vmatprep.subr.bf16.mxu0 0
      %2787 = vmatpush1.bf16.msra.mxu0 0
      %2788 = vmatprep.subr.bf16.mxu0 0
      %2789 = vmatpush1.bf16.msra.mxu0 0
      %2790 = vmatprep.subr.bf16.mxu0 0
      %2791 = vmatpush1.bf16.msra.mxu0 0
      %2792 = vmatprep.subr.bf16.mxu0 0
      %2793 = vmatpush1.bf16.msra.mxu0 0
      %2794 = vmatprep.subr.bf16.mxu0 0
      %2795 = vmatpush1.bf16.msra.mxu0 0
      %2796 = vmatprep.subr.bf16.mxu0 0
      %2797 = vmatpush1.bf16.msra.mxu0 0
      %2798 = vmatprep.subr.bf16.mxu0 0
      %2799 = vmatpush1.bf16.msra.mxu0 0
      %2800 = vmatprep.subr.bf16.mxu0 0
      %2801 = vmatpush1.bf16.msra.mxu0 0
      %2802 = vmatprep.subr.bf16.mxu0 0
      %2803 = vmatpush1.bf16.msra.mxu0 0
      %2804 = vmatprep.subr.bf16.mxu0 0
      %2805 = vmatpush1.bf16.msra.mxu0 0
      %2806 = vmatprep.subr.bf16.mxu0 0
      %2807 = vmatpush1.bf16.msra.mxu0 0
      %2808 = vmatprep.subr.bf16.mxu0 0
      %2809 = vmatpush1.bf16.msra.mxu0 0
      %2810 = vmatprep.subr.bf16.mxu0 0
      %2811 = vmatpush1.bf16.msra.mxu0 0
      %2812 = vmatprep.subr.bf16.mxu0 0
      %2813 = vmatpush1.bf16.msra.mxu0 0
      %2814 = vmatprep.subr.bf16.mxu0 0
      %2815 = vmatpush1.bf16.msra.mxu0 0
      %2816 = vmatprep.mubr.bf16.mxu0 0
      %2817 = vmatmul.mubr.bf16.gmra.mrb[0].mxu0 %v2638
      %v2818 = vpop.f32.mrb[0].mxu0
      %v2819 = vadd.f32 0.0, %v2818
      %v2820 = vpop.f32.mrb[0].mxu0
      %v2821 = vpop.f32.mrb[0].mxu0
      %v2822 = vpop.f32.mrb[0].mxu0
      %2823 = vdwg.mxu0
      %v2824 = vadd.f32 %v2604, %v2696
      %v2825 = vadd.f32 %v2605, %v2698
      %v2826 = vadd.f32 %v2606, %v2737
      %v2827 = vadd.f32 %v2607, %v2739
      %v2828 = vadd.f32 %v2608, %v2778
      %v2829 = vadd.f32 %v2609, %v2780
      %v2830 = vadd.f32 %v2610, %v2819
      %s2831 = scalar_lea.vmem %s1, 48
      %v2832 = vld [vmem:[%s2831] sm:$0x7]
      %2833 = vrot.lane.b32.xlu0 %v213, 62
      %v2834 = vpop.permute.xlu0 %2833
      %2835 = vrot.lane.b32.xlu0 %v221, 62
      %v2836 = vpop.permute.xlu0 %2835
      %2837 = vrot.lane.b32.xlu0 %v220, 62
      %v2838 = vpop.permute.xlu0 %2837
      %2839 = vrot.lane.b32.xlu0 %v222, 62
      %v2840 = vpop.permute.xlu0 %2839
      %2841 = vrot.lane.b32.xlu0 %v230, 62
      %v2842 = vpop.permute.xlu0 %2841
      %2843 = vrot.lane.b32.xlu0 %v238, 62
      %v2844 = vpop.permute.xlu0 %2843
      %2845 = vrot.lane.b32.xlu0 %v237, 62
      %v2846 = vpop.permute.xlu0 %2845
      %2847 = vrot.lane.b32.xlu0 %v1292, 62
      %v2848 = vpop.permute.xlu0 %2847
      %vm2849 = vcmask 506880
      %v2850 = vsel %vm2849, %v2834, %v2836
      %v2851 = vsel %vm2849, %v2836, %v2838
      %v2852 = vsel %vm2849, %v2838, %v2840
      %v2853 = vsel %vm2849, %v2840, %v2842
      %v2854 = vsel %vm2849, %v2842, %v2844
      %v2855 = vsel %vm2849, %v2844, %v2846
      %v2856 = vsel %vm2849, %v2846, %v2848
      %v2858 = vsel %vm260, %v2832, 0
      %v2861 = vand.u32 %v2850, %v267
      %v2864 = vand.u32 %v2851, %v267
      %v2867 = vand.u32 %v2852, %v267
      %v2870 = vand.u32 %v2853, %v267
      %v2873 = vand.u32 %v2854, %v267
      %v2876 = vand.u32 %v2855, %v267
      %v2879 = vand.u32 %v2856, %v267
      %2881 = vmatprep.subr.bf16.mxu0 %v2864
      %2882 = vmatpush1.bf16.msra.mxu0 %v2861
      %2883 = vmatprep.subr.bf16.mxu0 0
      %2884 = vmatpush1.bf16.msra.mxu0 0
      %2885 = vmatprep.subr.bf16.mxu0 0
      %2886 = vmatpush1.bf16.msra.mxu0 0
      %2887 = vmatprep.subr.bf16.mxu0 0
      %2888 = vmatpush1.bf16.msra.mxu0 0
      %2889 = vmatprep.subr.bf16.mxu0 0
      %2890 = vmatpush1.bf16.msra.mxu0 0
      %2891 = vmatprep.subr.bf16.mxu0 0
      %2892 = vmatpush1.bf16.msra.mxu0 0
      %2893 = vmatprep.subr.bf16.mxu0 0
      %2894 = vmatpush1.bf16.msra.mxu0 0
      %2895 = vmatprep.subr.bf16.mxu0 0
      %2896 = vmatpush1.bf16.msra.mxu0 0
      %2897 = vmatprep.subr.bf16.mxu0 0
      %2898 = vmatpush1.bf16.msra.mxu0 0
      %2899 = vmatprep.subr.bf16.mxu0 0
      %2900 = vmatpush1.bf16.msra.mxu0 0
      %2901 = vmatprep.subr.bf16.mxu0 0
      %2902 = vmatpush1.bf16.msra.mxu0 0
      %2903 = vmatprep.subr.bf16.mxu0 0
      %2904 = vmatpush1.bf16.msra.mxu0 0
      %2905 = vmatprep.subr.bf16.mxu0 0
      %2906 = vmatpush1.bf16.msra.mxu0 0
      %2907 = vmatprep.subr.bf16.mxu0 0
      %2908 = vmatpush1.bf16.msra.mxu0 0
      %2909 = vmatprep.subr.bf16.mxu0 0
      %2910 = vmatpush1.bf16.msra.mxu0 0
      %2911 = vmatprep.subr.bf16.mxu0 0
      %2912 = vmatpush1.bf16.msra.mxu0 0
      %2913 = vmatprep.mubr.bf16.mxu0 0
      %2914 = vmatmul.mubr.bf16.gmra.mrb[0].mxu0 %v2858
      %v2915 = vpop.f32.mrb[0].mxu0
      %v2916 = vadd.f32 0.0, %v2915
      %v2917 = vpop.f32.mrb[0].mxu0
      %v2918 = vadd.f32 0.0, %v2917
      %v2919 = vpop.f32.mrb[0].mxu0
      %v2920 = vpop.f32.mrb[0].mxu0
      %2921 = vdwg.mxu0
      %2922 = vmatprep.subr.bf16.mxu0 %v2870
      %2923 = vmatpush1.bf16.msra.mxu0 %v2867
      %2924 = vmatprep.subr.bf16.mxu0 0
      %2925 = vmatpush1.bf16.msra.mxu0 0
      %2926 = vmatprep.subr.bf16.mxu0 0
      %2927 = vmatpush1.bf16.msra.mxu0 0
      %2928 = vmatprep.subr.bf16.mxu0 0
      %2929 = vmatpush1.bf16.msra.mxu0 0
      %2930 = vmatprep.subr.bf16.mxu0 0
      %2931 = vmatpush1.bf16.msra.mxu0 0
      %2932 = vmatprep.subr.bf16.mxu0 0
      %2933 = vmatpush1.bf16.msra.mxu0 0
      %2934 = vmatprep.subr.bf16.mxu0 0
      %2935 = vmatpush1.bf16.msra.mxu0 0
      %2936 = vmatprep.subr.bf16.mxu0 0
      %2937 = vmatpush1.bf16.msra.mxu0 0
      %2938 = vmatprep.subr.bf16.mxu0 0
      %2939 = vmatpush1.bf16.msra.mxu0 0
      %2940 = vmatprep.subr.bf16.mxu0 0
      %2941 = vmatpush1.bf16.msra.mxu0 0
      %2942 = vmatprep.subr.bf16.mxu0 0
      %2943 = vmatpush1.bf16.msra.mxu0 0
      %2944 = vmatprep.subr.bf16.mxu0 0
      %2945 = vmatpush1.bf16.msra.mxu0 0
      %2946 = vmatprep.subr.bf16.mxu0 0
      %2947 = vmatpush1.bf16.msra.mxu0 0
      %2948 = vmatprep.subr.bf16.mxu0 0
      %2949 = vmatpush1.bf16.msra.mxu0 0
      %2950 = vmatprep.subr.bf16.mxu0 0
      %2951 = vmatpush1.bf16.msra.mxu0 0
      %2952 = vmatprep.subr.bf16.mxu0 0
      %2953 = vmatpush1.bf16.msra.mxu0 0
      %2954 = vmatprep.mubr.bf16.mxu0 0
      %2955 = vmatmul.mubr.bf16.gmra.mrb[0].mxu0 %v2858
      %v2956 = vpop.f32.mrb[0].mxu0
      %v2957 = vadd.f32 0.0, %v2956
      %v2958 = vpop.f32.mrb[0].mxu0
      %v2959 = vadd.f32 0.0, %v2958
      %v2960 = vpop.f32.mrb[0].mxu0
      %v2961 = vpop.f32.mrb[0].mxu0
      %2962 = vdwg.mxu0
      %2963 = vmatprep.subr.bf16.mxu0 %v2876
      %2964 = vmatpush1.bf16.msra.mxu0 %v2873
      %2965 = vmatprep.subr.bf16.mxu0 0
      %2966 = vmatpush1.bf16.msra.mxu0 0
      %2967 = vmatprep.subr.bf16.mxu0 0
      %2968 = vmatpush1.bf16.msra.mxu0 0
      %2969 = vmatprep.subr.bf16.mxu0 0
      %2970 = vmatpush1.bf16.msra.mxu0 0
      %2971 = vmatprep.subr.bf16.mxu0 0
      %2972 = vmatpush1.bf16.msra.mxu0 0
      %2973 = vmatprep.subr.bf16.mxu0 0
      %2974 = vmatpush1.bf16.msra.mxu0 0
      %2975 = vmatprep.subr.bf16.mxu0 0
      %2976 = vmatpush1.bf16.msra.mxu0 0
      %2977 = vmatprep.subr.bf16.mxu0 0
      %2978 = vmatpush1.bf16.msra.mxu0 0
      %2979 = vmatprep.subr.bf16.mxu0 0
      %2980 = vmatpush1.bf16.msra.mxu0 0
      %2981 = vmatprep.subr.bf16.mxu0 0
      %2982 = vmatpush1.bf16.msra.mxu0 0
      %2983 = vmatprep.subr.bf16.mxu0 0
      %2984 = vmatpush1.bf16.msra.mxu0 0
      %2985 = vmatprep.subr.bf16.mxu0 0
      %2986 = vmatpush1.bf16.msra.mxu0 0
      %2987 = vmatprep.subr.bf16.mxu0 0
      %2988 = vmatpush1.bf16.msra.mxu0 0
      %2989 = vmatprep.subr.bf16.mxu0 0
      %2990 = vmatpush1.bf16.msra.mxu0 0
      %2991 = vmatprep.subr.bf16.mxu0 0
      %2992 = vmatpush1.bf16.msra.mxu0 0
      %2993 = vmatprep.subr.bf16.mxu0 0
      %2994 = vmatpush1.bf16.msra.mxu0 0
      %2995 = vmatprep.mubr.bf16.mxu0 0
      %2996 = vmatmul.mubr.bf16.gmra.mrb[0].mxu0 %v2858
      %v2997 = vpop.f32.mrb[0].mxu0
      %v2998 = vadd.f32 0.0, %v2997
      %v2999 = vpop.f32.mrb[0].mxu0
      %v3000 = vadd.f32 0.0, %v2999
      %v3001 = vpop.f32.mrb[0].mxu0
      %v3002 = vpop.f32.mrb[0].mxu0
      %3003 = vdwg.mxu0
      %3004 = vmatprep.subr.bf16.mxu0 0
      %3005 = vmatpush1.bf16.msra.mxu0 %v2879
      %3006 = vmatprep.subr.bf16.mxu0 0
      %3007 = vmatpush1.bf16.msra.mxu0 0
      %3008 = vmatprep.subr.bf16.mxu0 0
      %3009 = vmatpush1.bf16.msra.mxu0 0
      %3010 = vmatprep.subr.bf16.mxu0 0
      %3011 = vmatpush1.bf16.msra.mxu0 0
      %3012 = vmatprep.subr.bf16.mxu0 0
      %3013 = vmatpush1.bf16.msra.mxu0 0
      %3014 = vmatprep.subr.bf16.mxu0 0
      %3015 = vmatpush1.bf16.msra.mxu0 0
      %3016 = vmatprep.subr.bf16.mxu0 0
      %3017 = vmatpush1.bf16.msra.mxu0 0
      %3018 = vmatprep.subr.bf16.mxu0 0
      %3019 = vmatpush1.bf16.msra.mxu0 0
      %3020 = vmatprep.subr.bf16.mxu0 0
      %3021 = vmatpush1.bf16.msra.mxu0 0
      %3022 = vmatprep.subr.bf16.mxu0 0
      %3023 = vmatpush1.bf16.msra.mxu0 0
      %3024 = vmatprep.subr.bf16.mxu0 0
      %3025 = vmatpush1.bf16.msra.mxu0 0
      %3026 = vmatprep.subr.bf16.mxu0 0
      %3027 = vmatpush1.bf16.msra.mxu0 0
      %3028 = vmatprep.subr.bf16.mxu0 0
      %3029 = vmatpush1.bf16.msra.mxu0 0
      %3030 = vmatprep.subr.bf16.mxu0 0
      %3031 = vmatpush1.bf16.msra.mxu0 0
      %3032 = vmatprep.subr.bf16.mxu0 0
      %3033 = vmatpush1.bf16.msra.mxu0 0
      %3034 = vmatprep.subr.bf16.mxu0 0
      %3035 = vmatpush1.bf16.msra.mxu0 0
      %3036 = vmatprep.mubr.bf16.mxu0 0
      %3037 = vmatmul.mubr.bf16.gmra.mrb[0].mxu0 %v2858
      %v3038 = vpop.f32.mrb[0].mxu0
      %v3039 = vadd.f32 0.0, %v3038
      %v3040 = vpop.f32.mrb[0].mxu0
      %v3041 = vpop.f32.mrb[0].mxu0
      %v3042 = vpop.f32.mrb[0].mxu0
      %3043 = vdwg.mxu0
      %v3044 = vadd.f32 %v2824, %v2916
      %v3045 = vadd.f32 %v2825, %v2918
      %v3046 = vadd.f32 %v2826, %v2957
      %v3047 = vadd.f32 %v2827, %v2959
      %v3048 = vadd.f32 %v2828, %v2998
      %v3049 = vadd.f32 %v2829, %v3000
      %v3050 = vadd.f32 %v2830, %v3039
      %s3051 = scalar_lea.vmem %s1, 52
      %v3052 = vld [vmem:[%s3051] sm:$0x7]
      %3053 = vrot.lane.b32.xlu0 %v213, 61
      %v3054 = vpop.permute.xlu0 %3053
      %3055 = vrot.lane.b32.xlu0 %v221, 61
      %v3056 = vpop.permute.xlu0 %3055
      %3057 = vrot.lane.b32.xlu0 %v220, 61
      %v3058 = vpop.permute.xlu0 %3057
      %3059 = vrot.lane.b32.xlu0 %v222, 61
      %v3060 = vpop.permute.xlu0 %3059
      %3061 = vrot.lane.b32.xlu0 %v230, 61
      %v3062 = vpop.permute.xlu0 %3061
      %3063 = vrot.lane.b32.xlu0 %v238, 61
      %v3064 = vpop.permute.xlu0 %3063
      %3065 = vrot.lane.b32.xlu0 %v237, 61
      %v3066 = vpop.permute.xlu0 %3065
      %3067 = vrot.lane.b32.xlu0 %v1292, 61
      %v3068 = vpop.permute.xlu0 %3067
      %vm3069 = vcmask 498688
      %v3070 = vsel %vm3069, %v3054, %v3056
      %v3071 = vsel %vm3069, %v3056, %v3058
      %v3072 = vsel %vm3069, %v3058, %v3060
      %v3073 = vsel %vm3069, %v3060, %v3062
      %v3074 = vsel %vm3069, %v3062, %v3064
      %v3075 = vsel %vm3069, %v3064, %v3066
      %v3076 = vsel %vm3069, %v3066, %v3068
      %v3078 = vsel %vm260, %v3052, 0
      %v3081 = vand.u32 %v3070, %v267
      %v3084 = vand.u32 %v3071, %v267
      %v3087 = vand.u32 %v3072, %v267
      %v3090 = vand.u32 %v3073, %v267
      %v3093 = vand.u32 %v3074, %v267
      %v3096 = vand.u32 %v3075, %v267
      %v3099 = vand.u32 %v3076, %v267
      %3101 = vmatprep.subr.bf16.mxu0 %v3084
      %3102 = vmatpush1.bf16.msra.mxu0 %v3081
      %3103 = vmatprep.subr.bf16.mxu0 0
      %3104 = vmatpush1.bf16.msra.mxu0 0
      %3105 = vmatprep.subr.bf16.mxu0 0
      %3106 = vmatpush1.bf16.msra.mxu0 0
      %3107 = vmatprep.subr.bf16.mxu0 0
      %3108 = vmatpush1.bf16.msra.mxu0 0
      %3109 = vmatprep.subr.bf16.mxu0 0
      %3110 = vmatpush1.bf16.msra.mxu0 0
      %3111 = vmatprep.subr.bf16.mxu0 0
      %3112 = vmatpush1.bf16.msra.mxu0 0
      %3113 = vmatprep.subr.bf16.mxu0 0
      %3114 = vmatpush1.bf16.msra.mxu0 0
      %3115 = vmatprep.subr.bf16.mxu0 0
      %3116 = vmatpush1.bf16.msra.mxu0 0
      %3117 = vmatprep.subr.bf16.mxu0 0
      %3118 = vmatpush1.bf16.msra.mxu0 0
      %3119 = vmatprep.subr.bf16.mxu0 0
      %3120 = vmatpush1.bf16.msra.mxu0 0
      %3121 = vmatprep.subr.bf16.mxu0 0
      %3122 = vmatpush1.bf16.msra.mxu0 0
      %3123 = vmatprep.subr.bf16.mxu0 0
      %3124 = vmatpush1.bf16.msra.mxu0 0
      %3125 = vmatprep.subr.bf16.mxu0 0
      %3126 = vmatpush1.bf16.msra.mxu0 0
      %3127 = vmatprep.subr.bf16.mxu0 0
      %3128 = vmatpush1.bf16.msra.mxu0 0
      %3129 = vmatprep.subr.bf16.mxu0 0
      %3130 = vmatpush1.bf16.msra.mxu0 0
      %3131 = vmatprep.subr.bf16.mxu0 0
      %3132 = vmatpush1.bf16.msra.mxu0 0
      %3133 = vmatprep.mubr.bf16.mxu0 0
      %3134 = vmatmul.mubr.bf16.gmra.mrb[0].mxu0 %v3078
      %v3135 = vpop.f32.mrb[0].mxu0
      %v3136 = vadd.f32 0.0, %v3135
      %v3137 = vpop.f32.mrb[0].mxu0
      %v3138 = vadd.f32 0.0, %v3137
      %v3139 = vpop.f32.mrb[0].mxu0
      %v3140 = vpop.f32.mrb[0].mxu0
      %3141 = vdwg.mxu0
      %3142 = vmatprep.subr.bf16.mxu0 %v3090
      %3143 = vmatpush1.bf16.msra.mxu0 %v3087
      %3144 = vmatprep.subr.bf16.mxu0 0
      %3145 = vmatpush1.bf16.msra.mxu0 0
      %3146 = vmatprep.subr.bf16.mxu0 0
      %3147 = vmatpush1.bf16.msra.mxu0 0
      %3148 = vmatprep.subr.bf16.mxu0 0
      %3149 = vmatpush1.bf16.msra.mxu0 0
      %3150 = vmatprep.subr.bf16.mxu0 0
      %3151 = vmatpush1.bf16.msra.mxu0 0
      %3152 = vmatprep.subr.bf16.mxu0 0
      %3153 = vmatpush1.bf16.msra.mxu0 0
      %3154 = vmatprep.subr.bf16.mxu0 0
      %3155 = vmatpush1.bf16.msra.mxu0 0
      %3156 = vmatprep.subr.bf16.mxu0 0
      %3157 = vmatpush1.bf16.msra.mxu0 0
      %3158 = vmatprep.subr.bf16.mxu0 0
      %3159 = vmatpush1.bf16.msra.mxu0 0
      %3160 = vmatprep.subr.bf16.mxu0 0
      %3161 = vmatpush1.bf16.msra.mxu0 0
      %3162 = vmatprep.subr.bf16.mxu0 0
      %3163 = vmatpush1.bf16.msra.mxu0 0
      %3164 = vmatprep.subr.bf16.mxu0 0
      %3165 = vmatpush1.bf16.msra.mxu0 0
      %3166 = vmatprep.subr.bf16.mxu0 0
      %3167 = vmatpush1.bf16.msra.mxu0 0
      %3168 = vmatprep.subr.bf16.mxu0 0
      %3169 = vmatpush1.bf16.msra.mxu0 0
      %3170 = vmatprep.subr.bf16.mxu0 0
      %3171 = vmatpush1.bf16.msra.mxu0 0
      %3172 = vmatprep.subr.bf16.mxu0 0
      %3173 = vmatpush1.bf16.msra.mxu0 0
      %3174 = vmatprep.mubr.bf16.mxu0 0
      %3175 = vmatmul.mubr.bf16.gmra.mrb[0].mxu0 %v3078
      %v3176 = vpop.f32.mrb[0].mxu0
      %v3177 = vadd.f32 0.0, %v3176
      %v3178 = vpop.f32.mrb[0].mxu0
      %v3179 = vadd.f32 0.0, %v3178
      %v3180 = vpop.f32.mrb[0].mxu0
      %v3181 = vpop.f32.mrb[0].mxu0
      %3182 = vdwg.mxu0
      %3183 = vmatprep.subr.bf16.mxu0 %v3096
      %3184 = vmatpush1.bf16.msra.mxu0 %v3093
      %3185 = vmatprep.subr.bf16.mxu0 0
      %3186 = vmatpush1.bf16.msra.mxu0 0
      %3187 = vmatprep.subr.bf16.mxu0 0
      %3188 = vmatpush1.bf16.msra.mxu0 0
      %3189 = vmatprep.subr.bf16.mxu0 0
      %3190 = vmatpush1.bf16.msra.mxu0 0
      %3191 = vmatprep.subr.bf16.mxu0 0
      %3192 = vmatpush1.bf16.msra.mxu0 0
      %3193 = vmatprep.subr.bf16.mxu0 0
      %3194 = vmatpush1.bf16.msra.mxu0 0
      %3195 = vmatprep.subr.bf16.mxu0 0
      %3196 = vmatpush1.bf16.msra.mxu0 0
      %3197 = vmatprep.subr.bf16.mxu0 0
      %3198 = vmatpush1.bf16.msra.mxu0 0
      %3199 = vmatprep.subr.bf16.mxu0 0
      %3200 = vmatpush1.bf16.msra.mxu0 0
      %3201 = vmatprep.subr.bf16.mxu0 0
      %3202 = vmatpush1.bf16.msra.mxu0 0
      %3203 = vmatprep.subr.bf16.mxu0 0
      %3204 = vmatpush1.bf16.msra.mxu0 0
      %3205 = vmatprep.subr.bf16.mxu0 0
      %3206 = vmatpush1.bf16.msra.mxu0 0
      %3207 = vmatprep.subr.bf16.mxu0 0
      %3208 = vmatpush1.bf16.msra.mxu0 0
      %3209 = vmatprep.subr.bf16.mxu0 0
      %3210 = vmatpush1.bf16.msra.mxu0 0
      %3211 = vmatprep.subr.bf16.mxu0 0
      %3212 = vmatpush1.bf16.msra.mxu0 0
      %3213 = vmatprep.subr.bf16.mxu0 0
      %3214 = vmatpush1.bf16.msra.mxu0 0
      %3215 = vmatprep.mubr.bf16.mxu0 0
      %3216 = vmatmul.mubr.bf16.gmra.mrb[0].mxu0 %v3078
      %v3217 = vpop.f32.mrb[0].mxu0
      %v3218 = vadd.f32 0.0, %v3217
      %v3219 = vpop.f32.mrb[0].mxu0
      %v3220 = vadd.f32 0.0, %v3219
      %v3221 = vpop.f32.mrb[0].mxu0
      %v3222 = vpop.f32.mrb[0].mxu0
      %3223 = vdwg.mxu0
      %3224 = vmatprep.subr.bf16.mxu0 0
      %3225 = vmatpush1.bf16.msra.mxu0 %v3099
      %3226 = vmatprep.subr.bf16.mxu0 0
      %3227 = vmatpush1.bf16.msra.mxu0 0
      %3228 = vmatprep.subr.bf16.mxu0 0
      %3229 = vmatpush1.bf16.msra.mxu0 0
      %3230 = vmatprep.subr.bf16.mxu0 0
      %3231 = vmatpush1.bf16.msra.mxu0 0
      %3232 = vmatprep.subr.bf16.mxu0 0
      %3233 = vmatpush1.bf16.msra.mxu0 0
      %3234 = vmatprep.subr.bf16.mxu0 0
      %3235 = vmatpush1.bf16.msra.mxu0 0
      %3236 = vmatprep.subr.bf16.mxu0 0
      %3237 = vmatpush1.bf16.msra.mxu0 0
      %3238 = vmatprep.subr.bf16.mxu0 0
      %3239 = vmatpush1.bf16.msra.mxu0 0
      %3240 = vmatprep.subr.bf16.mxu0 0
      %3241 = vmatpush1.bf16.msra.mxu0 0
      %3242 = vmatprep.subr.bf16.mxu0 0
      %3243 = vmatpush1.bf16.msra.mxu0 0
      %3244 = vmatprep.subr.bf16.mxu0 0
      %3245 = vmatpush1.bf16.msra.mxu0 0
      %3246 = vmatprep.subr.bf16.mxu0 0
      %3247 = vmatpush1.bf16.msra.mxu0 0
      %3248 = vmatprep.subr.bf16.mxu0 0
      %3249 = vmatpush1.bf16.msra.mxu0 0
      %3250 = vmatprep.subr.bf16.mxu0 0
      %3251 = vmatpush1.bf16.msra.mxu0 0
      %3252 = vmatprep.subr.bf16.mxu0 0
      %3253 = vmatpush1.bf16.msra.mxu0 0
      %3254 = vmatprep.subr.bf16.mxu0 0
      %3255 = vmatpush1.bf16.msra.mxu0 0
      %3256 = vmatprep.mubr.bf16.mxu0 0
      %3257 = vmatmul.mubr.bf16.gmra.mrb[0].mxu0 %v3078
      %v3258 = vpop.f32.mrb[0].mxu0
      %v3259 = vadd.f32 0.0, %v3258
      %v3260 = vpop.f32.mrb[0].mxu0
      %v3261 = vpop.f32.mrb[0].mxu0
      %v3262 = vpop.f32.mrb[0].mxu0
      %3263 = vdwg.mxu0
      %v3264 = vadd.f32 %v3044, %v3136
      %v3265 = vadd.f32 %v3045, %v3138
      %v3266 = vadd.f32 %v3046, %v3177
      %v3267 = vadd.f32 %v3047, %v3179
      %v3268 = vadd.f32 %v3048, %v3218
      %v3269 = vadd.f32 %v3049, %v3220
      %v3270 = vadd.f32 %v3050, %v3259
      %s3271 = scalar_lea.vmem %s1, 56
      %v3272 = vld [vmem:[%s3271] sm:$0x7]
      %3273 = vrot.lane.b32.xlu0 %v213, 60
      %v3274 = vpop.permute.xlu0 %3273
      %3275 = vrot.lane.b32.xlu0 %v221, 60
      %v3276 = vpop.permute.xlu0 %3275
      %3277 = vrot.lane.b32.xlu0 %v220, 60
      %v3278 = vpop.permute.xlu0 %3277
      %3279 = vrot.lane.b32.xlu0 %v222, 60
      %v3280 = vpop.permute.xlu0 %3279
      %3281 = vrot.lane.b32.xlu0 %v230, 60
      %v3282 = vpop.permute.xlu0 %3281
      %3283 = vrot.lane.b32.xlu0 %v238, 60
      %v3284 = vpop.permute.xlu0 %3283
      %3285 = vrot.lane.b32.xlu0 %v237, 60
      %v3286 = vpop.permute.xlu0 %3285
      %3287 = vrot.lane.b32.xlu0 %v1292, 60
      %v3288 = vpop.permute.xlu0 %3287
      %vm3289 = vcmask 490496
      %v3290 = vsel %vm3289, %v3274, %v3276
      %v3291 = vsel %vm3289, %v3276, %v3278
      %v3292 = vsel %vm3289, %v3278, %v3280
      %v3293 = vsel %vm3289, %v3280, %v3282
      %v3294 = vsel %vm3289, %v3282, %v3284
      %v3295 = vsel %vm3289, %v3284, %v3286
      %v3296 = vsel %vm3289, %v3286, %v3288
      %v3298 = vsel %vm260, %v3272, 0
      %v3301 = vand.u32 %v3290, %v267
      %v3304 = vand.u32 %v3291, %v267
      %v3307 = vand.u32 %v3292, %v267
      %v3310 = vand.u32 %v3293, %v267
      %v3313 = vand.u32 %v3294, %v267
      %v3316 = vand.u32 %v3295, %v267
      %v3319 = vand.u32 %v3296, %v267
      %3321 = vmatprep.subr.bf16.mxu0 %v3304
      %3322 = vmatpush1.bf16.msra.mxu0 %v3301
      %3323 = vmatprep.subr.bf16.mxu0 0
      %3324 = vmatpush1.bf16.msra.mxu0 0
      %3325 = vmatprep.subr.bf16.mxu0 0
      %3326 = vmatpush1.bf16.msra.mxu0 0
      %3327 = vmatprep.subr.bf16.mxu0 0
      %3328 = vmatpush1.bf16.msra.mxu0 0
      %3329 = vmatprep.subr.bf16.mxu0 0
      %3330 = vmatpush1.bf16.msra.mxu0 0
      %3331 = vmatprep.subr.bf16.mxu0 0
      %3332 = vmatpush1.bf16.msra.mxu0 0
      %3333 = vmatprep.subr.bf16.mxu0 0
      %3334 = vmatpush1.bf16.msra.mxu0 0
      %3335 = vmatprep.subr.bf16.mxu0 0
      %3336 = vmatpush1.bf16.msra.mxu0 0
      %3337 = vmatprep.subr.bf16.mxu0 0
      %3338 = vmatpush1.bf16.msra.mxu0 0
      %3339 = vmatprep.subr.bf16.mxu0 0
      %3340 = vmatpush1.bf16.msra.mxu0 0
      %3341 = vmatprep.subr.bf16.mxu0 0
      %3342 = vmatpush1.bf16.msra.mxu0 0
      %3343 = vmatprep.subr.bf16.mxu0 0
      %3344 = vmatpush1.bf16.msra.mxu0 0
      %3345 = vmatprep.subr.bf16.mxu0 0
      %3346 = vmatpush1.bf16.msra.mxu0 0
      %3347 = vmatprep.subr.bf16.mxu0 0
      %3348 = vmatpush1.bf16.msra.mxu0 0
      %3349 = vmatprep.subr.bf16.mxu0 0
      %3350 = vmatpush1.bf16.msra.mxu0 0
      %3351 = vmatprep.subr.bf16.mxu0 0
      %3352 = vmatpush1.bf16.msra.mxu0 0
      %3353 = vmatprep.mubr.bf16.mxu0 0
      %3354 = vmatmul.mubr.bf16.gmra.mrb[0].mxu0 %v3298
      %v3355 = vpop.f32.mrb[0].mxu0
      %v3356 = vadd.f32 0.0, %v3355
      %v3357 = vpop.f32.mrb[0].mxu0
      %v3358 = vadd.f32 0.0, %v3357
      %v3359 = vpop.f32.mrb[0].mxu0
      %v3360 = vpop.f32.mrb[0].mxu0
      %3361 = vdwg.mxu0
      %3362 = vmatprep.subr.bf16.mxu0 %v3310
      %3363 = vmatpush1.bf16.msra.mxu0 %v3307
      %3364 = vmatprep.subr.bf16.mxu0 0
      %3365 = vmatpush1.bf16.msra.mxu0 0
      %3366 = vmatprep.subr.bf16.mxu0 0
      %3367 = vmatpush1.bf16.msra.mxu0 0
      %3368 = vmatprep.subr.bf16.mxu0 0
      %3369 = vmatpush1.bf16.msra.mxu0 0
      %3370 = vmatprep.subr.bf16.mxu0 0
      %3371 = vmatpush1.bf16.msra.mxu0 0
      %3372 = vmatprep.subr.bf16.mxu0 0
      %3373 = vmatpush1.bf16.msra.mxu0 0
      %3374 = vmatprep.subr.bf16.mxu0 0
      %3375 = vmatpush1.bf16.msra.mxu0 0
      %3376 = vmatprep.subr.bf16.mxu0 0
      %3377 = vmatpush1.bf16.msra.mxu0 0
      %3378 = vmatprep.subr.bf16.mxu0 0
      %3379 = vmatpush1.bf16.msra.mxu0 0
      %3380 = vmatprep.subr.bf16.mxu0 0
      %3381 = vmatpush1.bf16.msra.mxu0 0
      %3382 = vmatprep.subr.bf16.mxu0 0
      %3383 = vmatpush1.bf16.msra.mxu0 0
      %3384 = vmatprep.subr.bf16.mxu0 0
      %3385 = vmatpush1.bf16.msra.mxu0 0
      %3386 = vmatprep.subr.bf16.mxu0 0
      %3387 = vmatpush1.bf16.msra.mxu0 0
      %3388 = vmatprep.subr.bf16.mxu0 0
      %3389 = vmatpush1.bf16.msra.mxu0 0
      %3390 = vmatprep.subr.bf16.mxu0 0
      %3391 = vmatpush1.bf16.msra.mxu0 0
      %3392 = vmatprep.subr.bf16.mxu0 0
      %3393 = vmatpush1.bf16.msra.mxu0 0
      %3394 = vmatprep.mubr.bf16.mxu0 0
      %3395 = vmatmul.mubr.bf16.gmra.mrb[0].mxu0 %v3298
      %v3396 = vpop.f32.mrb[0].mxu0
      %v3397 = vadd.f32 0.0, %v3396
      %v3398 = vpop.f32.mrb[0].mxu0
      %v3399 = vadd.f32 0.0, %v3398
      %v3400 = vpop.f32.mrb[0].mxu0
      %v3401 = vpop.f32.mrb[0].mxu0
      %3402 = vdwg.mxu0
      %3403 = vmatprep.subr.bf16.mxu0 %v3316
      %3404 = vmatpush1.bf16.msra.mxu0 %v3313
      %3405 = vmatprep.subr.bf16.mxu0 0
      %3406 = vmatpush1.bf16.msra.mxu0 0
      %3407 = vmatprep.subr.bf16.mxu0 0
      %3408 = vmatpush1.bf16.msra.mxu0 0
      %3409 = vmatprep.subr.bf16.mxu0 0
      %3410 = vmatpush1.bf16.msra.mxu0 0
      %3411 = vmatprep.subr.bf16.mxu0 0
      %3412 = vmatpush1.bf16.msra.mxu0 0
      %3413 = vmatprep.subr.bf16.mxu0 0
      %3414 = vmatpush1.bf16.msra.mxu0 0
      %3415 = vmatprep.subr.bf16.mxu0 0
      %3416 = vmatpush1.bf16.msra.mxu0 0
      %3417 = vmatprep.subr.bf16.mxu0 0
      %3418 = vmatpush1.bf16.msra.mxu0 0
      %3419 = vmatprep.subr.bf16.mxu0 0
      %3420 = vmatpush1.bf16.msra.mxu0 0
      %3421 = vmatprep.subr.bf16.mxu0 0
      %3422 = vmatpush1.bf16.msra.mxu0 0
      %3423 = vmatprep.subr.bf16.mxu0 0
      %3424 = vmatpush1.bf16.msra.mxu0 0
      %3425 = vmatprep.subr.bf16.mxu0 0
      %3426 = vmatpush1.bf16.msra.mxu0 0
      %3427 = vmatprep.subr.bf16.mxu0 0
      %3428 = vmatpush1.bf16.msra.mxu0 0
      %3429 = vmatprep.subr.bf16.mxu0 0
      %3430 = vmatpush1.bf16.msra.mxu0 0
      %3431 = vmatprep.subr.bf16.mxu0 0
      %3432 = vmatpush1.bf16.msra.mxu0 0
      %3433 = vmatprep.subr.bf16.mxu0 0
      %3434 = vmatpush1.bf16.msra.mxu0 0
      %3435 = vmatprep.mubr.bf16.mxu0 0
      %3436 = vmatmul.mubr.bf16.gmra.mrb[0].mxu0 %v3298
      %v3437 = vpop.f32.mrb[0].mxu0
      %v3438 = vadd.f32 0.0, %v3437
      %v3439 = vpop.f32.mrb[0].mxu0
      %v3440 = vadd.f32 0.0, %v3439
      %v3441 = vpop.f32.mrb[0].mxu0
      %v3442 = vpop.f32.mrb[0].mxu0
      %3443 = vdwg.mxu0
      %3444 = vmatprep.subr.bf16.mxu0 0
      %3445 = vmatpush1.bf16.msra.mxu0 %v3319
      %3446 = vmatprep.subr.bf16.mxu0 0
      %3447 = vmatpush1.bf16.msra.mxu0 0
      %3448 = vmatprep.subr.bf16.mxu0 0
      %3449 = vmatpush1.bf16.msra.mxu0 0
      %3450 = vmatprep.subr.bf16.mxu0 0
      %3451 = vmatpush1.bf16.msra.mxu0 0
      %3452 = vmatprep.subr.bf16.mxu0 0
      %3453 = vmatpush1.bf16.msra.mxu0 0
      %3454 = vmatprep.subr.bf16.mxu0 0
      %3455 = vmatpush1.bf16.msra.mxu0 0
      %3456 = vmatprep.subr.bf16.mxu0 0
      %3457 = vmatpush1.bf16.msra.mxu0 0
      %3458 = vmatprep.subr.bf16.mxu0 0
      %3459 = vmatpush1.bf16.msra.mxu0 0
      %3460 = vmatprep.subr.bf16.mxu0 0
      %3461 = vmatpush1.bf16.msra.mxu0 0
      %3462 = vmatprep.subr.bf16.mxu0 0
      %3463 = vmatpush1.bf16.msra.mxu0 0
      %3464 = vmatprep.subr.bf16.mxu0 0
      %3465 = vmatpush1.bf16.msra.mxu0 0
      %3466 = vmatprep.subr.bf16.mxu0 0
      %3467 = vmatpush1.bf16.msra.mxu0 0
      %3468 = vmatprep.subr.bf16.mxu0 0
      %3469 = vmatpush1.bf16.msra.mxu0 0
      %3470 = vmatprep.subr.bf16.mxu0 0
      %3471 = vmatpush1.bf16.msra.mxu0 0
      %3472 = vmatprep.subr.bf16.mxu0 0
      %3473 = vmatpush1.bf16.msra.mxu0 0
      %3474 = vmatprep.subr.bf16.mxu0 0
      %3475 = vmatpush1.bf16.msra.mxu0 0
      %3476 = vmatprep.mubr.bf16.mxu0 0
      %3477 = vmatmul.mubr.bf16.gmra.mrb[0].mxu0 %v3298
      %v3478 = vpop.f32.mrb[0].mxu0
      %v3479 = vadd.f32 0.0, %v3478
      %v3480 = vpop.f32.mrb[0].mxu0
      %v3481 = vpop.f32.mrb[0].mxu0
      %v3482 = vpop.f32.mrb[0].mxu0
      %3483 = vdwg.mxu0
      %v3484 = vadd.f32 %v3264, %v3356
      %v3485 = vadd.f32 %v3265, %v3358
      %v3486 = vadd.f32 %v3266, %v3397
      %v3487 = vadd.f32 %v3267, %v3399
      %v3488 = vadd.f32 %v3268, %v3438
      %v3489 = vadd.f32 %v3269, %v3440
      %v3490 = vadd.f32 %v3270, %v3479
      %s3491 = scalar_lea.vmem %s1, 60
      %v3492 = vld [vmem:[%s3491] sm:$0x7]
      %3493 = vrot.lane.b32.xlu0 %v213, 32
      %v3494 = vpop.permute.xlu0 %3493
      %3495 = vrot.lane.b32.xlu0 %v221, 32
      %v3496 = vpop.permute.xlu0 %3495
      %3497 = vrot.lane.b32.xlu0 %v220, 32
      %v3498 = vpop.permute.xlu0 %3497
      %3499 = vrot.lane.b32.xlu0 %v222, 32
      %v3500 = vpop.permute.xlu0 %3499
      %3501 = vrot.lane.b32.xlu0 %v230, 32
      %v3502 = vpop.permute.xlu0 %3501
      %3503 = vrot.lane.b32.xlu0 %v238, 32
      %v3504 = vpop.permute.xlu0 %3503
      %3505 = vrot.lane.b32.xlu0 %v237, 32
      %v3506 = vpop.permute.xlu0 %3505
      %3507 = vrot.lane.b32.xlu0 %v1292, 32
      %v3508 = vpop.permute.xlu0 %3507
      %vm3509 = vcmask 261120
      %v3510 = vsel %vm3509, %v3494, %v3496
      %v3511 = vsel %vm3509, %v3496, %v3498
      %v3512 = vsel %vm3509, %v3498, %v3500
      %v3513 = vsel %vm3509, %v3500, %v3502
      %v3514 = vsel %vm3509, %v3502, %v3504
      %v3515 = vsel %vm3509, %v3504, %v3506
      %v3516 = vsel %vm3509, %v3506, %v3508
      %v3518 = vsel %vm260, %v3492, 0
      %v3521 = vand.u32 %v3510, %v267
      %v3524 = vand.u32 %v3511, %v267
      %v3527 = vand.u32 %v3512, %v267
      %v3530 = vand.u32 %v3513, %v267
      %v3533 = vand.u32 %v3514, %v267
      %v3536 = vand.u32 %v3515, %v267
      %v3539 = vand.u32 %v3516, %v267
      %3541 = vmatprep.subr.bf16.mxu0 %v3524
      %3542 = vmatpush1.bf16.msra.mxu0 %v3521
      %3543 = vmatprep.subr.bf16.mxu0 0
      %3544 = vmatpush1.bf16.msra.mxu0 0
      %3545 = vmatprep.subr.bf16.mxu0 0
      %3546 = vmatpush1.bf16.msra.mxu0 0
      %3547 = vmatprep.subr.bf16.mxu0 0
      %3548 = vmatpush1.bf16.msra.mxu0 0
      %3549 = vmatprep.subr.bf16.mxu0 0
      %3550 = vmatpush1.bf16.msra.mxu0 0
      %3551 = vmatprep.subr.bf16.mxu0 0
      %3552 = vmatpush1.bf16.msra.mxu0 0
      %3553 = vmatprep.subr.bf16.mxu0 0
      %3554 = vmatpush1.bf16.msra.mxu0 0
      %3555 = vmatprep.subr.bf16.mxu0 0
      %3556 = vmatpush1.bf16.msra.mxu0 0
      %3557 = vmatprep.subr.bf16.mxu0 0
      %3558 = vmatpush1.bf16.msra.mxu0 0
      %3559 = vmatprep.subr.bf16.mxu0 0
      %3560 = vmatpush1.bf16.msra.mxu0 0
      %3561 = vmatprep.subr.bf16.mxu0 0
      %3562 = vmatpush1.bf16.msra.mxu0 0
      %3563 = vmatprep.subr.bf16.mxu0 0
      %3564 = vmatpush1.bf16.msra.mxu0 0
      %3565 = vmatprep.subr.bf16.mxu0 0
      %3566 = vmatpush1.bf16.msra.mxu0 0
      %3567 = vmatprep.subr.bf16.mxu0 0
      %3568 = vmatpush1.bf16.msra.mxu0 0
      %3569 = vmatprep.subr.bf16.mxu0 0
      %3570 = vmatpush1.bf16.msra.mxu0 0
      %3571 = vmatprep.subr.bf16.mxu0 0
      %3572 = vmatpush1.bf16.msra.mxu0 0
      %3573 = vmatprep.mubr.bf16.mxu0 0
      %3574 = vmatmul.mubr.bf16.gmra.mrb[0].mxu0 %v3518
      %v3575 = vpop.f32.mrb[0].mxu0
      %v3576 = vadd.f32 0.0, %v3575
      %v3577 = vpop.f32.mrb[0].mxu0
      %v3578 = vadd.f32 0.0, %v3577
      %v3579 = vpop.f32.mrb[0].mxu0
      %v3580 = vpop.f32.mrb[0].mxu0
      %3581 = vdwg.mxu0
      %3582 = vmatprep.subr.bf16.mxu0 %v3530
      %3583 = vmatpush1.bf16.msra.mxu0 %v3527
      %3584 = vmatprep.subr.bf16.mxu0 0
      %3585 = vmatpush1.bf16.msra.mxu0 0
      %3586 = vmatprep.subr.bf16.mxu0 0
      %3587 = vmatpush1.bf16.msra.mxu0 0
      %3588 = vmatprep.subr.bf16.mxu0 0
      %3589 = vmatpush1.bf16.msra.mxu0 0
      %3590 = vmatprep.subr.bf16.mxu0 0
      %3591 = vmatpush1.bf16.msra.mxu0 0
      %3592 = vmatprep.subr.bf16.mxu0 0
      %3593 = vmatpush1.bf16.msra.mxu0 0
      %3594 = vmatprep.subr.bf16.mxu0 0
      %3595 = vmatpush1.bf16.msra.mxu0 0
      %3596 = vmatprep.subr.bf16.mxu0 0
      %3597 = vmatpush1.bf16.msra.mxu0 0
      %3598 = vmatprep.subr.bf16.mxu0 0
      %3599 = vmatpush1.bf16.msra.mxu0 0
      %3600 = vmatprep.subr.bf16.mxu0 0
      %3601 = vmatpush1.bf16.msra.mxu0 0
      %3602 = vmatprep.subr.bf16.mxu0 0
      %3603 = vmatpush1.bf16.msra.mxu0 0
      %3604 = vmatprep.subr.bf16.mxu0 0
      %3605 = vmatpush1.bf16.msra.mxu0 0
      %3606 = vmatprep.subr.bf16.mxu0 0
      %3607 = vmatpush1.bf16.msra.mxu0 0
      %3608 = vmatprep.subr.bf16.mxu0 0
      %3609 = vmatpush1.bf16.msra.mxu0 0
      %3610 = vmatprep.subr.bf16.mxu0 0
      %3611 = vmatpush1.bf16.msra.mxu0 0
      %3612 = vmatprep.subr.bf16.mxu0 0
      %3613 = vmatpush1.bf16.msra.mxu0 0
      %3614 = vmatprep.mubr.bf16.mxu0 0
      %3615 = vmatmul.mubr.bf16.gmra.mrb[0].mxu0 %v3518
      %v3616 = vpop.f32.mrb[0].mxu0
      %v3617 = vadd.f32 0.0, %v3616
      %v3618 = vpop.f32.mrb[0].mxu0
      %v3619 = vadd.f32 0.0, %v3618
      %v3620 = vpop.f32.mrb[0].mxu0
      %v3621 = vpop.f32.mrb[0].mxu0
      %3622 = vdwg.mxu0
      %3623 = vmatprep.subr.bf16.mxu0 %v3536
      %3624 = vmatpush1.bf16.msra.mxu0 %v3533
      %3625 = vmatprep.subr.bf16.mxu0 0
      %3626 = vmatpush1.bf16.msra.mxu0 0
      %3627 = vmatprep.subr.bf16.mxu0 0
      %3628 = vmatpush1.bf16.msra.mxu0 0
      %3629 = vmatprep.subr.bf16.mxu0 0
      %3630 = vmatpush1.bf16.msra.mxu0 0
      %3631 = vmatprep.subr.bf16.mxu0 0
      %3632 = vmatpush1.bf16.msra.mxu0 0
      %3633 = vmatprep.subr.bf16.mxu0 0
      %3634 = vmatpush1.bf16.msra.mxu0 0
      %3635 = vmatprep.subr.bf16.mxu0 0
      %3636 = vmatpush1.bf16.msra.mxu0 0
      %3637 = vmatprep.subr.bf16.mxu0 0
      %3638 = vmatpush1.bf16.msra.mxu0 0
      %3639 = vmatprep.subr.bf16.mxu0 0
      %3640 = vmatpush1.bf16.msra.mxu0 0
      %3641 = vmatprep.subr.bf16.mxu0 0
      %3642 = vmatpush1.bf16.msra.mxu0 0
      %3643 = vmatprep.subr.bf16.mxu0 0
      %3644 = vmatpush1.bf16.msra.mxu0 0
      %3645 = vmatprep.subr.bf16.mxu0 0
      %3646 = vmatpush1.bf16.msra.mxu0 0
      %3647 = vmatprep.subr.bf16.mxu0 0
      %3648 = vmatpush1.bf16.msra.mxu0 0
      %3649 = vmatprep.subr.bf16.mxu0 0
      %3650 = vmatpush1.bf16.msra.mxu0 0
      %3651 = vmatprep.subr.bf16.mxu0 0
      %3652 = vmatpush1.bf16.msra.mxu0 0
      %3653 = vmatprep.subr.bf16.mxu0 0
      %3654 = vmatpush1.bf16.msra.mxu0 0
      %3655 = vmatprep.mubr.bf16.mxu0 0
      %3656 = vmatmul.mubr.bf16.gmra.mrb[0].mxu0 %v3518
      %v3657 = vpop.f32.mrb[0].mxu0
      %v3658 = vadd.f32 0.0, %v3657
      %v3659 = vpop.f32.mrb[0].mxu0
      %v3660 = vadd.f32 0.0, %v3659
      %v3661 = vpop.f32.mrb[0].mxu0
      %v3662 = vpop.f32.mrb[0].mxu0
      %3663 = vdwg.mxu0
      %3664 = vmatprep.subr.bf16.mxu0 0
      %3665 = vmatpush1.bf16.msra.mxu0 %v3539
      %3666 = vmatprep.subr.bf16.mxu0 0
      %3667 = vmatpush1.bf16.msra.mxu0 0
      %3668 = vmatprep.subr.bf16.mxu0 0
      %3669 = vmatpush1.bf16.msra.mxu0 0
      %3670 = vmatprep.subr.bf16.mxu0 0
      %3671 = vmatpush1.bf16.msra.mxu0 0
      %3672 = vmatprep.subr.bf16.mxu0 0
      %3673 = vmatpush1.bf16.msra.mxu0 0
      %3674 = vmatprep.subr.bf16.mxu0 0
      %3675 = vmatpush1.bf16.msra.mxu0 0
      %3676 = vmatprep.subr.bf16.mxu0 0
      %3677 = vmatpush1.bf16.msra.mxu0 0
      %3678 = vmatprep.subr.bf16.mxu0 0
      %3679 = vmatpush1.bf16.msra.mxu0 0
      %3680 = vmatprep.subr.bf16.mxu0 0
      %3681 = vmatpush1.bf16.msra.mxu0 0
      %3682 = vmatprep.subr.bf16.mxu0 0
      %3683 = vmatpush1.bf16.msra.mxu0 0
      %3684 = vmatprep.subr.bf16.mxu0 0
      %3685 = vmatpush1.bf16.msra.mxu0 0
      %3686 = vmatprep.subr.bf16.mxu0 0
      %3687 = vmatpush1.bf16.msra.mxu0 0
      %3688 = vmatprep.subr.bf16.mxu0 0
      %3689 = vmatpush1.bf16.msra.mxu0 0
      %3690 = vmatprep.subr.bf16.mxu0 0
      %3691 = vmatpush1.bf16.msra.mxu0 0
      %3692 = vmatprep.subr.bf16.mxu0 0
      %3693 = vmatpush1.bf16.msra.mxu0 0
      %3694 = vmatprep.subr.bf16.mxu0 0
      %3695 = vmatpush1.bf16.msra.mxu0 0
      %3696 = vmatprep.mubr.bf16.mxu0 0
      %3697 = vmatmul.mubr.bf16.gmra.mrb[0].mxu0 %v3518
      %v3698 = vpop.f32.mrb[0].mxu0
      %v3699 = vadd.f32 0.0, %v3698
      %v3700 = vpop.f32.mrb[0].mxu0
      %v3701 = vpop.f32.mrb[0].mxu0
      %v3702 = vpop.f32.mrb[0].mxu0
      %3703 = vdwg.mxu0
      %v3704 = vadd.f32 %v3484, %v3576
      %v3705 = vadd.f32 %v3485, %v3578
      %v3706 = vadd.f32 %v3486, %v3617
      %v3707 = vadd.f32 %v3487, %v3619
      %v3708 = vadd.f32 %v3488, %v3658
      %v3709 = vadd.f32 %v3489, %v3660
      %v3710 = vadd.f32 %v3490, %v3699
      %s3711 = scalar_lea.vmem %s1, 64
      %v3712 = vld [vmem:[%s3711] sm:$0x7]
      %3713 = vrot.lane.b32.xlu0 %v213, 31
      %v3714 = vpop.permute.xlu0 %3713
      %3715 = vrot.lane.b32.xlu0 %v221, 31
      %v3716 = vpop.permute.xlu0 %3715
      %3717 = vrot.lane.b32.xlu0 %v220, 31
      %v3718 = vpop.permute.xlu0 %3717
      %3719 = vrot.lane.b32.xlu0 %v222, 31
      %v3720 = vpop.permute.xlu0 %3719
      %3721 = vrot.lane.b32.xlu0 %v230, 31
      %v3722 = vpop.permute.xlu0 %3721
      %3723 = vrot.lane.b32.xlu0 %v238, 31
      %v3724 = vpop.permute.xlu0 %3723
      %3725 = vrot.lane.b32.xlu0 %v237, 31
      %v3726 = vpop.permute.xlu0 %3725
      %3727 = vrot.lane.b32.xlu0 %v1292, 31
      %v3728 = vpop.permute.xlu0 %3727
      %vm3729 = vcmask 252928
      %v3730 = vsel %vm3729, %v3714, %v3716
      %v3731 = vsel %vm3729, %v3716, %v3718
      %v3732 = vsel %vm3729, %v3718, %v3720
      %v3733 = vsel %vm3729, %v3720, %v3722
      %v3734 = vsel %vm3729, %v3722, %v3724
      %v3735 = vsel %vm3729, %v3724, %v3726
      %v3736 = vsel %vm3729, %v3726, %v3728
      %v3738 = vsel %vm260, %v3712, 0
      %v3741 = vand.u32 %v3730, %v267
      %v3744 = vand.u32 %v3731, %v267
      %v3747 = vand.u32 %v3732, %v267
      %v3750 = vand.u32 %v3733, %v267
      %v3753 = vand.u32 %v3734, %v267
      %v3756 = vand.u32 %v3735, %v267
      %v3759 = vand.u32 %v3736, %v267
      %3761 = vmatprep.subr.bf16.mxu0 %v3744
      %3762 = vmatpush1.bf16.msra.mxu0 %v3741
      %3763 = vmatprep.subr.bf16.mxu0 0
      %3764 = vmatpush1.bf16.msra.mxu0 0
      %3765 = vmatprep.subr.bf16.mxu0 0
      %3766 = vmatpush1.bf16.msra.mxu0 0
      %3767 = vmatprep.subr.bf16.mxu0 0
      %3768 = vmatpush1.bf16.msra.mxu0 0
      %3769 = vmatprep.subr.bf16.mxu0 0
      %3770 = vmatpush1.bf16.msra.mxu0 0
      %3771 = vmatprep.subr.bf16.mxu0 0
      %3772 = vmatpush1.bf16.msra.mxu0 0
      %3773 = vmatprep.subr.bf16.mxu0 0
      %3774 = vmatpush1.bf16.msra.mxu0 0
      %3775 = vmatprep.subr.bf16.mxu0 0
      %3776 = vmatpush1.bf16.msra.mxu0 0
      %3777 = vmatprep.subr.bf16.mxu0 0
      %3778 = vmatpush1.bf16.msra.mxu0 0
      %3779 = vmatprep.subr.bf16.mxu0 0
      %3780 = vmatpush1.bf16.msra.mxu0 0
      %3781 = vmatprep.subr.bf16.mxu0 0
      %3782 = vmatpush1.bf16.msra.mxu0 0
      %3783 = vmatprep.subr.bf16.mxu0 0
      %3784 = vmatpush1.bf16.msra.mxu0 0
      %3785 = vmatprep.subr.bf16.mxu0 0
      %3786 = vmatpush1.bf16.msra.mxu0 0
      %3787 = vmatprep.subr.bf16.mxu0 0
      %3788 = vmatpush1.bf16.msra.mxu0 0
      %3789 = vmatprep.subr.bf16.mxu0 0
      %3790 = vmatpush1.bf16.msra.mxu0 0
      %3791 = vmatprep.subr.bf16.mxu0 0
      %3792 = vmatpush1.bf16.msra.mxu0 0
      %3793 = vmatprep.mubr.bf16.mxu0 0
      %3794 = vmatmul.mubr.bf16.gmra.mrb[0].mxu0 %v3738
      %v3795 = vpop.f32.mrb[0].mxu0
      %v3796 = vadd.f32 0.0, %v3795
      %v3797 = vpop.f32.mrb[0].mxu0
      %v3798 = vadd.f32 0.0, %v3797
      %v3799 = vpop.f32.mrb[0].mxu0
      %v3800 = vpop.f32.mrb[0].mxu0
      %3801 = vdwg.mxu0
      %3802 = vmatprep.subr.bf16.mxu0 %v3750
      %3803 = vmatpush1.bf16.msra.mxu0 %v3747
      %3804 = vmatprep.subr.bf16.mxu0 0
      %3805 = vmatpush1.bf16.msra.mxu0 0
      %3806 = vmatprep.subr.bf16.mxu0 0
      %3807 = vmatpush1.bf16.msra.mxu0 0
      %3808 = vmatprep.subr.bf16.mxu0 0
      %3809 = vmatpush1.bf16.msra.mxu0 0
      %3810 = vmatprep.subr.bf16.mxu0 0
      %3811 = vmatpush1.bf16.msra.mxu0 0
      %3812 = vmatprep.subr.bf16.mxu0 0
      %3813 = vmatpush1.bf16.msra.mxu0 0
      %3814 = vmatprep.subr.bf16.mxu0 0
      %3815 = vmatpush1.bf16.msra.mxu0 0
      %3816 = vmatprep.subr.bf16.mxu0 0
      %3817 = vmatpush1.bf16.msra.mxu0 0
      %3818 = vmatprep.subr.bf16.mxu0 0
      %3819 = vmatpush1.bf16.msra.mxu0 0
      %3820 = vmatprep.subr.bf16.mxu0 0
      %3821 = vmatpush1.bf16.msra.mxu0 0
      %3822 = vmatprep.subr.bf16.mxu0 0
      %3823 = vmatpush1.bf16.msra.mxu0 0
      %3824 = vmatprep.subr.bf16.mxu0 0
      %3825 = vmatpush1.bf16.msra.mxu0 0
      %3826 = vmatprep.subr.bf16.mxu0 0
      %3827 = vmatpush1.bf16.msra.mxu0 0
      %3828 = vmatprep.subr.bf16.mxu0 0
      %3829 = vmatpush1.bf16.msra.mxu0 0
      %3830 = vmatprep.subr.bf16.mxu0 0
      %3831 = vmatpush1.bf16.msra.mxu0 0
      %3832 = vmatprep.subr.bf16.mxu0 0
      %3833 = vmatpush1.bf16.msra.mxu0 0
      %3834 = vmatprep.mubr.bf16.mxu0 0
      %3835 = vmatmul.mubr.bf16.gmra.mrb[0].mxu0 %v3738
      %v3836 = vpop.f32.mrb[0].mxu0
      %v3837 = vadd.f32 0.0, %v3836
      %v3838 = vpop.f32.mrb[0].mxu0
      %v3839 = vadd.f32 0.0, %v3838
      %v3840 = vpop.f32.mrb[0].mxu0
      %v3841 = vpop.f32.mrb[0].mxu0
      %3842 = vdwg.mxu0
      %3843 = vmatprep.subr.bf16.mxu0 %v3756
      %3844 = vmatpush1.bf16.msra.mxu0 %v3753
      %3845 = vmatprep.subr.bf16.mxu0 0
      %3846 = vmatpush1.bf16.msra.mxu0 0
      %3847 = vmatprep.subr.bf16.mxu0 0
      %3848 = vmatpush1.bf16.msra.mxu0 0
      %3849 = vmatprep.subr.bf16.mxu0 0
      %3850 = vmatpush1.bf16.msra.mxu0 0
      %3851 = vmatprep.subr.bf16.mxu0 0
      %3852 = vmatpush1.bf16.msra.mxu0 0
      %3853 = vmatprep.subr.bf16.mxu0 0
      %3854 = vmatpush1.bf16.msra.mxu0 0
      %3855 = vmatprep.subr.bf16.mxu0 0
      %3856 = vmatpush1.bf16.msra.mxu0 0
      %3857 = vmatprep.subr.bf16.mxu0 0
      %3858 = vmatpush1.bf16.msra.mxu0 0
      %3859 = vmatprep.subr.bf16.mxu0 0
      %3860 = vmatpush1.bf16.msra.mxu0 0
      %3861 = vmatprep.subr.bf16.mxu0 0
      %3862 = vmatpush1.bf16.msra.mxu0 0
      %3863 = vmatprep.subr.bf16.mxu0 0
      %3864 = vmatpush1.bf16.msra.mxu0 0
      %3865 = vmatprep.subr.bf16.mxu0 0
      %3866 = vmatpush1.bf16.msra.mxu0 0
      %3867 = vmatprep.subr.bf16.mxu0 0
      %3868 = vmatpush1.bf16.msra.mxu0 0
      %3869 = vmatprep.subr.bf16.mxu0 0
      %3870 = vmatpush1.bf16.msra.mxu0 0
      %3871 = vmatprep.subr.bf16.mxu0 0
      %3872 = vmatpush1.bf16.msra.mxu0 0
      %3873 = vmatprep.subr.bf16.mxu0 0
      %3874 = vmatpush1.bf16.msra.mxu0 0
      %3875 = vmatprep.mubr.bf16.mxu0 0
      %3876 = vmatmul.mubr.bf16.gmra.mrb[0].mxu0 %v3738
      %v3877 = vpop.f32.mrb[0].mxu0
      %v3878 = vadd.f32 0.0, %v3877
      %v3879 = vpop.f32.mrb[0].mxu0
      %v3880 = vadd.f32 0.0, %v3879
      %v3881 = vpop.f32.mrb[0].mxu0
      %v3882 = vpop.f32.mrb[0].mxu0
      %3883 = vdwg.mxu0
      %3884 = vmatprep.subr.bf16.mxu0 0
      %3885 = vmatpush1.bf16.msra.mxu0 %v3759
      %3886 = vmatprep.subr.bf16.mxu0 0
      %3887 = vmatpush1.bf16.msra.mxu0 0
      %3888 = vmatprep.subr.bf16.mxu0 0
      %3889 = vmatpush1.bf16.msra.mxu0 0
      %3890 = vmatprep.subr.bf16.mxu0 0
      %3891 = vmatpush1.bf16.msra.mxu0 0
      %3892 = vmatprep.subr.bf16.mxu0 0
      %3893 = vmatpush1.bf16.msra.mxu0 0
      %3894 = vmatprep.subr.bf16.mxu0 0
      %3895 = vmatpush1.bf16.msra.mxu0 0
      %3896 = vmatprep.subr.bf16.mxu0 0
      %3897 = vmatpush1.bf16.msra.mxu0 0
      %3898 = vmatprep.subr.bf16.mxu0 0
      %3899 = vmatpush1.bf16.msra.mxu0 0
      %3900 = vmatprep.subr.bf16.mxu0 0
      %3901 = vmatpush1.bf16.msra.mxu0 0
      %3902 = vmatprep.subr.bf16.mxu0 0
      %3903 = vmatpush1.bf16.msra.mxu0 0
      %3904 = vmatprep.subr.bf16.mxu0 0
      %3905 = vmatpush1.bf16.msra.mxu0 0
      %3906 = vmatprep.subr.bf16.mxu0 0
      %3907 = vmatpush1.bf16.msra.mxu0 0
      %3908 = vmatprep.subr.bf16.mxu0 0
      %3909 = vmatpush1.bf16.msra.mxu0 0
      %3910 = vmatprep.subr.bf16.mxu0 0
      %3911 = vmatpush1.bf16.msra.mxu0 0
      %3912 = vmatprep.subr.bf16.mxu0 0
      %3913 = vmatpush1.bf16.msra.mxu0 0
      %3914 = vmatprep.subr.bf16.mxu0 0
      %3915 = vmatpush1.bf16.msra.mxu0 0
      %3916 = vmatprep.mubr.bf16.mxu0 0
      %3917 = vmatmul.mubr.bf16.gmra.mrb[0].mxu0 %v3738
      %v3918 = vpop.f32.mrb[0].mxu0
      %v3919 = vadd.f32 0.0, %v3918
      %v3920 = vpop.f32.mrb[0].mxu0
      %v3921 = vpop.f32.mrb[0].mxu0
      %v3922 = vpop.f32.mrb[0].mxu0
      %3923 = vdwg.mxu0
      %v3924 = vadd.f32 %v3704, %v3796
      %v3925 = vadd.f32 %v3705, %v3798
      %v3926 = vadd.f32 %v3706, %v3837
      %v3927 = vadd.f32 %v3707, %v3839
      %v3928 = vadd.f32 %v3708, %v3878
      %v3929 = vadd.f32 %v3709, %v3880
      %v3930 = vadd.f32 %v3710, %v3919
      %s3931 = scalar_lea.vmem %s1, 68
      %v3932 = vld [vmem:[%s3931] sm:$0x7]
      %3933 = vrot.lane.b32.xlu0 %v213, 30
      %v3934 = vpop.permute.xlu0 %3933
      %3935 = vrot.lane.b32.xlu0 %v221, 30
      %v3936 = vpop.permute.xlu0 %3935
      %3937 = vrot.lane.b32.xlu0 %v220, 30
      %v3938 = vpop.permute.xlu0 %3937
      %3939 = vrot.lane.b32.xlu0 %v222, 30
      %v3940 = vpop.permute.xlu0 %3939
      %3941 = vrot.lane.b32.xlu0 %v230, 30
      %v3942 = vpop.permute.xlu0 %3941
      %3943 = vrot.lane.b32.xlu0 %v238, 30
      %v3944 = vpop.permute.xlu0 %3943
      %3945 = vrot.lane.b32.xlu0 %v237, 30
      %v3946 = vpop.permute.xlu0 %3945
      %3947 = vrot.lane.b32.xlu0 %v1292, 30
      %v3948 = vpop.permute.xlu0 %3947
      %vm3949 = vcmask 244736
      %v3950 = vsel %vm3949, %v3934, %v3936
      %v3951 = vsel %vm3949, %v3936, %v3938
      %v3952 = vsel %vm3949, %v3938, %v3940
      %v3953 = vsel %vm3949, %v3940, %v3942
      %v3954 = vsel %vm3949, %v3942, %v3944
      %v3955 = vsel %vm3949, %v3944, %v3946
      %v3956 = vsel %vm3949, %v3946, %v3948
      %v3958 = vsel %vm260, %v3932, 0
      %v3961 = vand.u32 %v3950, %v267
      %v3964 = vand.u32 %v3951, %v267
      %v3967 = vand.u32 %v3952, %v267
      %v3970 = vand.u32 %v3953, %v267
      %v3973 = vand.u32 %v3954, %v267
      %v3976 = vand.u32 %v3955, %v267
      %v3979 = vand.u32 %v3956, %v267
      %3981 = vmatprep.subr.bf16.mxu0 %v3964
      %3982 = vmatpush1.bf16.msra.mxu0 %v3961
      %3983 = vmatprep.subr.bf16.mxu0 0
      %3984 = vmatpush1.bf16.msra.mxu0 0
      %3985 = vmatprep.subr.bf16.mxu0 0
      %3986 = vmatpush1.bf16.msra.mxu0 0
      %3987 = vmatprep.subr.bf16.mxu0 0
      %3988 = vmatpush1.bf16.msra.mxu0 0
      %3989 = vmatprep.subr.bf16.mxu0 0
      %3990 = vmatpush1.bf16.msra.mxu0 0
      %3991 = vmatprep.subr.bf16.mxu0 0
      %3992 = vmatpush1.bf16.msra.mxu0 0
      %3993 = vmatprep.subr.bf16.mxu0 0
      %3994 = vmatpush1.bf16.msra.mxu0 0
      %3995 = vmatprep.subr.bf16.mxu0 0
      %3996 = vmatpush1.bf16.msra.mxu0 0
      %3997 = vmatprep.subr.bf16.mxu0 0
      %3998 = vmatpush1.bf16.msra.mxu0 0
      %3999 = vmatprep.subr.bf16.mxu0 0
      %4000 = vmatpush1.bf16.msra.mxu0 0
      %4001 = vmatprep.subr.bf16.mxu0 0
      %4002 = vmatpush1.bf16.msra.mxu0 0
      %4003 = vmatprep.subr.bf16.mxu0 0
      %4004 = vmatpush1.bf16.msra.mxu0 0
      %4005 = vmatprep.subr.bf16.mxu0 0
      %4006 = vmatpush1.bf16.msra.mxu0 0
      %4007 = vmatprep.subr.bf16.mxu0 0
      %4008 = vmatpush1.bf16.msra.mxu0 0
      %4009 = vmatprep.subr.bf16.mxu0 0
      %4010 = vmatpush1.bf16.msra.mxu0 0
      %4011 = vmatprep.subr.bf16.mxu0 0
      %4012 = vmatpush1.bf16.msra.mxu0 0
      %4013 = vmatprep.mubr.bf16.mxu0 0
      %4014 = vmatmul.mubr.bf16.gmra.mrb[0].mxu0 %v3958
      %v4015 = vpop.f32.mrb[0].mxu0
      %v4016 = vadd.f32 0.0, %v4015
      %v4017 = vpop.f32.mrb[0].mxu0
      %v4018 = vadd.f32 0.0, %v4017
      %v4019 = vpop.f32.mrb[0].mxu0
      %v4020 = vpop.f32.mrb[0].mxu0
      %4021 = vdwg.mxu0
      %4022 = vmatprep.subr.bf16.mxu0 %v3970
      %4023 = vmatpush1.bf16.msra.mxu0 %v3967
      %4024 = vmatprep.subr.bf16.mxu0 0
      %4025 = vmatpush1.bf16.msra.mxu0 0
      %4026 = vmatprep.subr.bf16.mxu0 0
      %4027 = vmatpush1.bf16.msra.mxu0 0
      %4028 = vmatprep.subr.bf16.mxu0 0
      %4029 = vmatpush1.bf16.msra.mxu0 0
      %4030 = vmatprep.subr.bf16.mxu0 0
      %4031 = vmatpush1.bf16.msra.mxu0 0
      %4032 = vmatprep.subr.bf16.mxu0 0
      %4033 = vmatpush1.bf16.msra.mxu0 0
      %4034 = vmatprep.subr.bf16.mxu0 0
      %4035 = vmatpush1.bf16.msra.mxu0 0
      %4036 = vmatprep.subr.bf16.mxu0 0
      %4037 = vmatpush1.bf16.msra.mxu0 0
      %4038 = vmatprep.subr.bf16.mxu0 0
      %4039 = vmatpush1.bf16.msra.mxu0 0
      %4040 = vmatprep.subr.bf16.mxu0 0
      %4041 = vmatpush1.bf16.msra.mxu0 0
      %4042 = vmatprep.subr.bf16.mxu0 0
      %4043 = vmatpush1.bf16.msra.mxu0 0
      %4044 = vmatprep.subr.bf16.mxu0 0
      %4045 = vmatpush1.bf16.msra.mxu0 0
      %4046 = vmatprep.subr.bf16.mxu0 0
      %4047 = vmatpush1.bf16.msra.mxu0 0
      %4048 = vmatprep.subr.bf16.mxu0 0
      %4049 = vmatpush1.bf16.msra.mxu0 0
      %4050 = vmatprep.subr.bf16.mxu0 0
      %4051 = vmatpush1.bf16.msra.mxu0 0
      %4052 = vmatprep.subr.bf16.mxu0 0
      %4053 = vmatpush1.bf16.msra.mxu0 0
      %4054 = vmatprep.mubr.bf16.mxu0 0
      %4055 = vmatmul.mubr.bf16.gmra.mrb[0].mxu0 %v3958
      %v4056 = vpop.f32.mrb[0].mxu0
      %v4057 = vadd.f32 0.0, %v4056
      %v4058 = vpop.f32.mrb[0].mxu0
      %v4059 = vadd.f32 0.0, %v4058
      %v4060 = vpop.f32.mrb[0].mxu0
      %v4061 = vpop.f32.mrb[0].mxu0
      %4062 = vdwg.mxu0
      %4063 = vmatprep.subr.bf16.mxu0 %v3976
      %4064 = vmatpush1.bf16.msra.mxu0 %v3973
      %4065 = vmatprep.subr.bf16.mxu0 0
      %4066 = vmatpush1.bf16.msra.mxu0 0
      %4067 = vmatprep.subr.bf16.mxu0 0
      %4068 = vmatpush1.bf16.msra.mxu0 0
      %4069 = vmatprep.subr.bf16.mxu0 0
      %4070 = vmatpush1.bf16.msra.mxu0 0
      %4071 = vmatprep.subr.bf16.mxu0 0
      %4072 = vmatpush1.bf16.msra.mxu0 0
      %4073 = vmatprep.subr.bf16.mxu0 0
      %4074 = vmatpush1.bf16.msra.mxu0 0
      %4075 = vmatprep.subr.bf16.mxu0 0
      %4076 = vmatpush1.bf16.msra.mxu0 0
      %4077 = vmatprep.subr.bf16.mxu0 0
      %4078 = vmatpush1.bf16.msra.mxu0 0
      %4079 = vmatprep.subr.bf16.mxu0 0
      %4080 = vmatpush1.bf16.msra.mxu0 0
      %4081 = vmatprep.subr.bf16.mxu0 0
      %4082 = vmatpush1.bf16.msra.mxu0 0
      %4083 = vmatprep.subr.bf16.mxu0 0
      %4084 = vmatpush1.bf16.msra.mxu0 0
      %4085 = vmatprep.subr.bf16.mxu0 0
      %4086 = vmatpush1.bf16.msra.mxu0 0
      %4087 = vmatprep.subr.bf16.mxu0 0
      %4088 = vmatpush1.bf16.msra.mxu0 0
      %4089 = vmatprep.subr.bf16.mxu0 0
      %4090 = vmatpush1.bf16.msra.mxu0 0
      %4091 = vmatprep.subr.bf16.mxu0 0
      %4092 = vmatpush1.bf16.msra.mxu0 0
      %4093 = vmatprep.subr.bf16.mxu0 0
      %4094 = vmatpush1.bf16.msra.mxu0 0
      %4095 = vmatprep.mubr.bf16.mxu0 0
      %4096 = vmatmul.mubr.bf16.gmra.mrb[0].mxu0 %v3958
      %v4097 = vpop.f32.mrb[0].mxu0
      %v4098 = vadd.f32 0.0, %v4097
      %v4099 = vpop.f32.mrb[0].mxu0
      %v4100 = vadd.f32 0.0, %v4099
      %v4101 = vpop.f32.mrb[0].mxu0
      %v4102 = vpop.f32.mrb[0].mxu0
      %4103 = vdwg.mxu0
      %4104 = vmatprep.subr.bf16.mxu0 0
      %4105 = vmatpush1.bf16.msra.mxu0 %v3979
      %4106 = vmatprep.subr.bf16.mxu0 0
      %4107 = vmatpush1.bf16.msra.mxu0 0
      %4108 = vmatprep.subr.bf16.mxu0 0
      %4109 = vmatpush1.bf16.msra.mxu0 0
      %4110 = vmatprep.subr.bf16.mxu0 0
      %4111 = vmatpush1.bf16.msra.mxu0 0
      %4112 = vmatprep.subr.bf16.mxu0 0
      %4113 = vmatpush1.bf16.msra.mxu0 0
      %4114 = vmatprep.subr.bf16.mxu0 0
      %4115 = vmatpush1.bf16.msra.mxu0 0
      %4116 = vmatprep.subr.bf16.mxu0 0
      %4117 = vmatpush1.bf16.msra.mxu0 0
      %4118 = vmatprep.subr.bf16.mxu0 0
      %4119 = vmatpush1.bf16.msra.mxu0 0
      %4120 = vmatprep.subr.bf16.mxu0 0
      %4121 = vmatpush1.bf16.msra.mxu0 0
      %4122 = vmatprep.subr.bf16.mxu0 0
      %4123 = vmatpush1.bf16.msra.mxu0 0
      %4124 = vmatprep.subr.bf16.mxu0 0
      %4125 = vmatpush1.bf16.msra.mxu0 0
      %4126 = vmatprep.subr.bf16.mxu0 0
      %4127 = vmatpush1.bf16.msra.mxu0 0
      %4128 = vmatprep.subr.bf16.mxu0 0
      %4129 = vmatpush1.bf16.msra.mxu0 0
      %4130 = vmatprep.subr.bf16.mxu0 0
      %4131 = vmatpush1.bf16.msra.mxu0 0
      %4132 = vmatprep.subr.bf16.mxu0 0
      %4133 = vmatpush1.bf16.msra.mxu0 0
      %4134 = vmatprep.subr.bf16.mxu0 0
      %4135 = vmatpush1.bf16.msra.mxu0 0
      %4136 = vmatprep.mubr.bf16.mxu0 0
      %4137 = vmatmul.mubr.bf16.gmra.mrb[0].mxu0 %v3958
      %v4138 = vpop.f32.mrb[0].mxu0
      %v4139 = vadd.f32 0.0, %v4138
      %v4140 = vpop.f32.mrb[0].mxu0
      %v4141 = vpop.f32.mrb[0].mxu0
      %v4142 = vpop.f32.mrb[0].mxu0
      %4143 = vdwg.mxu0
      %v4144 = vadd.f32 %v3924, %v4016
      %v4145 = vadd.f32 %v3925, %v4018
      %v4146 = vadd.f32 %v3926, %v4057
      %v4147 = vadd.f32 %v3927, %v4059
      %v4148 = vadd.f32 %v3928, %v4098
      %v4149 = vadd.f32 %v3929, %v4100
      %v4150 = vadd.f32 %v3930, %v4139
      %s4151 = scalar_lea.vmem %s1, 72
      %v4152 = vld [vmem:[%s4151] sm:$0x7]
      %4153 = vrot.lane.b32.xlu0 %v213, 29
      %v4154 = vpop.permute.xlu0 %4153
      %4155 = vrot.lane.b32.xlu0 %v221, 29
      %v4156 = vpop.permute.xlu0 %4155
      %4157 = vrot.lane.b32.xlu0 %v220, 29
      %v4158 = vpop.permute.xlu0 %4157
      %4159 = vrot.lane.b32.xlu0 %v222, 29
      %v4160 = vpop.permute.xlu0 %4159
      %4161 = vrot.lane.b32.xlu0 %v230, 29
      %v4162 = vpop.permute.xlu0 %4161
      %4163 = vrot.lane.b32.xlu0 %v238, 29
      %v4164 = vpop.permute.xlu0 %4163
      %4165 = vrot.lane.b32.xlu0 %v237, 29
      %v4166 = vpop.permute.xlu0 %4165
      %4167 = vrot.lane.b32.xlu0 %v1292, 29
      %v4168 = vpop.permute.xlu0 %4167
      %vm4169 = vcmask 236544
      %v4170 = vsel %vm4169, %v4154, %v4156
      %v4171 = vsel %vm4169, %v4156, %v4158
      %v4172 = vsel %vm4169, %v4158, %v4160
      %v4173 = vsel %vm4169, %v4160, %v4162
      %v4174 = vsel %vm4169, %v4162, %v4164
      %v4175 = vsel %vm4169, %v4164, %v4166
      %v4176 = vsel %vm4169, %v4166, %v4168
      %v4178 = vsel %vm260, %v4152, 0
      %v4181 = vand.u32 %v4170, %v267
      %v4184 = vand.u32 %v4171, %v267
      %v4187 = vand.u32 %v4172, %v267
      %v4190 = vand.u32 %v4173, %v267
      %v4193 = vand.u32 %v4174, %v267
      %v4196 = vand.u32 %v4175, %v267
      %v4199 = vand.u32 %v4176, %v267
      %4201 = vmatprep.subr.bf16.mxu0 %v4184
      %4202 = vmatpush1.bf16.msra.mxu0 %v4181
      %4203 = vmatprep.subr.bf16.mxu0 0
      %4204 = vmatpush1.bf16.msra.mxu0 0
      %4205 = vmatprep.subr.bf16.mxu0 0
      %4206 = vmatpush1.bf16.msra.mxu0 0
      %4207 = vmatprep.subr.bf16.mxu0 0
      %4208 = vmatpush1.bf16.msra.mxu0 0
      %4209 = vmatprep.subr.bf16.mxu0 0
      %4210 = vmatpush1.bf16.msra.mxu0 0
      %4211 = vmatprep.subr.bf16.mxu0 0
      %4212 = vmatpush1.bf16.msra.mxu0 0
      %4213 = vmatprep.subr.bf16.mxu0 0
      %4214 = vmatpush1.bf16.msra.mxu0 0
      %4215 = vmatprep.subr.bf16.mxu0 0
      %4216 = vmatpush1.bf16.msra.mxu0 0
      %4217 = vmatprep.subr.bf16.mxu0 0
      %4218 = vmatpush1.bf16.msra.mxu0 0
      %4219 = vmatprep.subr.bf16.mxu0 0
      %4220 = vmatpush1.bf16.msra.mxu0 0
      %4221 = vmatprep.subr.bf16.mxu0 0
      %4222 = vmatpush1.bf16.msra.mxu0 0
      %4223 = vmatprep.subr.bf16.mxu0 0
      %4224 = vmatpush1.bf16.msra.mxu0 0
      %4225 = vmatprep.subr.bf16.mxu0 0
      %4226 = vmatpush1.bf16.msra.mxu0 0
      %4227 = vmatprep.subr.bf16.mxu0 0
      %4228 = vmatpush1.bf16.msra.mxu0 0
      %4229 = vmatprep.subr.bf16.mxu0 0
      %4230 = vmatpush1.bf16.msra.mxu0 0
      %4231 = vmatprep.subr.bf16.mxu0 0
      %4232 = vmatpush1.bf16.msra.mxu0 0
      %4233 = vmatprep.mubr.bf16.mxu0 0
      %4234 = vmatmul.mubr.bf16.gmra.mrb[0].mxu0 %v4178
      %v4235 = vpop.f32.mrb[0].mxu0
      %v4236 = vadd.f32 0.0, %v4235
      %v4237 = vpop.f32.mrb[0].mxu0
      %v4238 = vadd.f32 0.0, %v4237
      %v4239 = vpop.f32.mrb[0].mxu0
      %v4240 = vpop.f32.mrb[0].mxu0
      %4241 = vdwg.mxu0
      %4242 = vmatprep.subr.bf16.mxu0 %v4190
      %4243 = vmatpush1.bf16.msra.mxu0 %v4187
      %4244 = vmatprep.subr.bf16.mxu0 0
      %4245 = vmatpush1.bf16.msra.mxu0 0
      %4246 = vmatprep.subr.bf16.mxu0 0
      %4247 = vmatpush1.bf16.msra.mxu0 0
      %4248 = vmatprep.subr.bf16.mxu0 0
      %4249 = vmatpush1.bf16.msra.mxu0 0
      %4250 = vmatprep.subr.bf16.mxu0 0
      %4251 = vmatpush1.bf16.msra.mxu0 0
      %4252 = vmatprep.subr.bf16.mxu0 0
      %4253 = vmatpush1.bf16.msra.mxu0 0
      %4254 = vmatprep.subr.bf16.mxu0 0
      %4255 = vmatpush1.bf16.msra.mxu0 0
      %4256 = vmatprep.subr.bf16.mxu0 0
      %4257 = vmatpush1.bf16.msra.mxu0 0
      %4258 = vmatprep.subr.bf16.mxu0 0
      %4259 = vmatpush1.bf16.msra.mxu0 0
      %4260 = vmatprep.subr.bf16.mxu0 0
      %4261 = vmatpush1.bf16.msra.mxu0 0
      %4262 = vmatprep.subr.bf16.mxu0 0
      %4263 = vmatpush1.bf16.msra.mxu0 0
      %4264 = vmatprep.subr.bf16.mxu0 0
      %4265 = vmatpush1.bf16.msra.mxu0 0
      %4266 = vmatprep.subr.bf16.mxu0 0
      %4267 = vmatpush1.bf16.msra.mxu0 0
      %4268 = vmatprep.subr.bf16.mxu0 0
      %4269 = vmatpush1.bf16.msra.mxu0 0
      %4270 = vmatprep.subr.bf16.mxu0 0
      %4271 = vmatpush1.bf16.msra.mxu0 0
      %4272 = vmatprep.subr.bf16.mxu0 0
      %4273 = vmatpush1.bf16.msra.mxu0 0
      %4274 = vmatprep.mubr.bf16.mxu0 0
      %4275 = vmatmul.mubr.bf16.gmra.mrb[0].mxu0 %v4178
      %v4276 = vpop.f32.mrb[0].mxu0
      %v4277 = vadd.f32 0.0, %v4276
      %v4278 = vpop.f32.mrb[0].mxu0
      %v4279 = vadd.f32 0.0, %v4278
      %v4280 = vpop.f32.mrb[0].mxu0
      %v4281 = vpop.f32.mrb[0].mxu0
      %4282 = vdwg.mxu0
      %4283 = vmatprep.subr.bf16.mxu0 %v4196
      %4284 = vmatpush1.bf16.msra.mxu0 %v4193
      %4285 = vmatprep.subr.bf16.mxu0 0
      %4286 = vmatpush1.bf16.msra.mxu0 0
      %4287 = vmatprep.subr.bf16.mxu0 0
      %4288 = vmatpush1.bf16.msra.mxu0 0
      %4289 = vmatprep.subr.bf16.mxu0 0
      %4290 = vmatpush1.bf16.msra.mxu0 0
      %4291 = vmatprep.subr.bf16.mxu0 0
      %4292 = vmatpush1.bf16.msra.mxu0 0
      %4293 = vmatprep.subr.bf16.mxu0 0
      %4294 = vmatpush1.bf16.msra.mxu0 0
      %4295 = vmatprep.subr.bf16.mxu0 0
      %4296 = vmatpush1.bf16.msra.mxu0 0
      %4297 = vmatprep.subr.bf16.mxu0 0
      %4298 = vmatpush1.bf16.msra.mxu0 0
      %4299 = vmatprep.subr.bf16.mxu0 0
      %4300 = vmatpush1.bf16.msra.mxu0 0
      %4301 = vmatprep.subr.bf16.mxu0 0
      %4302 = vmatpush1.bf16.msra.mxu0 0
      %4303 = vmatprep.subr.bf16.mxu0 0
      %4304 = vmatpush1.bf16.msra.mxu0 0
      %4305 = vmatprep.subr.bf16.mxu0 0
      %4306 = vmatpush1.bf16.msra.mxu0 0
      %4307 = vmatprep.subr.bf16.mxu0 0
      %4308 = vmatpush1.bf16.msra.mxu0 0
      %4309 = vmatprep.subr.bf16.mxu0 0
      %4310 = vmatpush1.bf16.msra.mxu0 0
      %4311 = vmatprep.subr.bf16.mxu0 0
      %4312 = vmatpush1.bf16.msra.mxu0 0
      %4313 = vmatprep.subr.bf16.mxu0 0
      %4314 = vmatpush1.bf16.msra.mxu0 0
      %4315 = vmatprep.mubr.bf16.mxu0 0
      %4316 = vmatmul.mubr.bf16.gmra.mrb[0].mxu0 %v4178
      %v4317 = vpop.f32.mrb[0].mxu0
      %v4318 = vadd.f32 0.0, %v4317
      %v4319 = vpop.f32.mrb[0].mxu0
      %v4320 = vadd.f32 0.0, %v4319
      %v4321 = vpop.f32.mrb[0].mxu0
      %v4322 = vpop.f32.mrb[0].mxu0
      %4323 = vdwg.mxu0
      %4324 = vmatprep.subr.bf16.mxu0 0
      %4325 = vmatpush1.bf16.msra.mxu0 %v4199
      %4326 = vmatprep.subr.bf16.mxu0 0
      %4327 = vmatpush1.bf16.msra.mxu0 0
      %4328 = vmatprep.subr.bf16.mxu0 0
      %4329 = vmatpush1.bf16.msra.mxu0 0
      %4330 = vmatprep.subr.bf16.mxu0 0
      %4331 = vmatpush1.bf16.msra.mxu0 0
      %4332 = vmatprep.subr.bf16.mxu0 0
      %4333 = vmatpush1.bf16.msra.mxu0 0
      %4334 = vmatprep.subr.bf16.mxu0 0
      %4335 = vmatpush1.bf16.msra.mxu0 0
      %4336 = vmatprep.subr.bf16.mxu0 0
      %4337 = vmatpush1.bf16.msra.mxu0 0
      %4338 = vmatprep.subr.bf16.mxu0 0
      %4339 = vmatpush1.bf16.msra.mxu0 0
      %4340 = vmatprep.subr.bf16.mxu0 0
      %4341 = vmatpush1.bf16.msra.mxu0 0
      %4342 = vmatprep.subr.bf16.mxu0 0
      %4343 = vmatpush1.bf16.msra.mxu0 0
      %4344 = vmatprep.subr.bf16.mxu0 0
      %4345 = vmatpush1.bf16.msra.mxu0 0
      %4346 = vmatprep.subr.bf16.mxu0 0
      %4347 = vmatpush1.bf16.msra.mxu0 0
      %4348 = vmatprep.subr.bf16.mxu0 0
      %4349 = vmatpush1.bf16.msra.mxu0 0
      %4350 = vmatprep.subr.bf16.mxu0 0
      %4351 = vmatpush1.bf16.msra.mxu0 0
      %4352 = vmatprep.subr.bf16.mxu0 0
      %4353 = vmatpush1.bf16.msra.mxu0 0
      %4354 = vmatprep.subr.bf16.mxu0 0
      %4355 = vmatpush1.bf16.msra.mxu0 0
      %4356 = vmatprep.mubr.bf16.mxu0 0
      %4357 = vmatmul.mubr.bf16.gmra.mrb[0].mxu0 %v4178
      %v4358 = vpop.f32.mrb[0].mxu0
      %v4359 = vadd.f32 0.0, %v4358
      %v4360 = vpop.f32.mrb[0].mxu0
      %v4361 = vpop.f32.mrb[0].mxu0
      %v4362 = vpop.f32.mrb[0].mxu0
      %4363 = vdwg.mxu0
      %v4364 = vadd.f32 %v4144, %v4236
      %v4365 = vadd.f32 %v4145, %v4238
      %v4366 = vadd.f32 %v4146, %v4277
      %v4367 = vadd.f32 %v4147, %v4279
      %v4368 = vadd.f32 %v4148, %v4318
      %v4369 = vadd.f32 %v4149, %v4320
      %v4370 = vadd.f32 %v4150, %v4359
      %s4371 = scalar_lea.vmem %s1, 76
      %v4372 = vld [vmem:[%s4371] sm:$0x7]
      %4373 = vrot.lane.b32.xlu0 %v213, 28
      %v4374 = vpop.permute.xlu0 %4373
      %4375 = vrot.lane.b32.xlu0 %v221, 28
      %v4376 = vpop.permute.xlu0 %4375
      %4377 = vrot.lane.b32.xlu0 %v220, 28
      %v4378 = vpop.permute.xlu0 %4377
      %4379 = vrot.lane.b32.xlu0 %v222, 28
      %v4380 = vpop.permute.xlu0 %4379
      %4381 = vrot.lane.b32.xlu0 %v230, 28
      %v4382 = vpop.permute.xlu0 %4381
      %4383 = vrot.lane.b32.xlu0 %v238, 28
      %v4384 = vpop.permute.xlu0 %4383
      %4385 = vrot.lane.b32.xlu0 %v237, 28
      %v4386 = vpop.permute.xlu0 %4385
      %4387 = vrot.lane.b32.xlu0 %v1292, 28
      %v4388 = vpop.permute.xlu0 %4387
      %vm4389 = vcmask 228352
      %v4390 = vsel %vm4389, %v4374, %v4376
      %v4391 = vsel %vm4389, %v4376, %v4378
      %v4392 = vsel %vm4389, %v4378, %v4380
      %v4393 = vsel %vm4389, %v4380, %v4382
      %v4394 = vsel %vm4389, %v4382, %v4384
      %v4395 = vsel %vm4389, %v4384, %v4386
      %v4396 = vsel %vm4389, %v4386, %v4388
      %v4398 = vsel %vm260, %v4372, 0
      %v4401 = vand.u32 %v4390, %v267
      %v4404 = vand.u32 %v4391, %v267
      %v4407 = vand.u32 %v4392, %v267
      %v4410 = vand.u32 %v4393, %v267
      %v4413 = vand.u32 %v4394, %v267
      %v4416 = vand.u32 %v4395, %v267
      %v4419 = vand.u32 %v4396, %v267
      %4421 = vmatprep.subr.bf16.mxu0 %v4404
      %4422 = vmatpush1.bf16.msra.mxu0 %v4401
      %4423 = vmatprep.subr.bf16.mxu0 0
      %4424 = vmatpush1.bf16.msra.mxu0 0
      %4425 = vmatprep.subr.bf16.mxu0 0
      %4426 = vmatpush1.bf16.msra.mxu0 0
      %4427 = vmatprep.subr.bf16.mxu0 0
      %4428 = vmatpush1.bf16.msra.mxu0 0
      %4429 = vmatprep.subr.bf16.mxu0 0
      %4430 = vmatpush1.bf16.msra.mxu0 0
      %4431 = vmatprep.subr.bf16.mxu0 0
      %4432 = vmatpush1.bf16.msra.mxu0 0
      %4433 = vmatprep.subr.bf16.mxu0 0
      %4434 = vmatpush1.bf16.msra.mxu0 0
      %4435 = vmatprep.subr.bf16.mxu0 0
      %4436 = vmatpush1.bf16.msra.mxu0 0
      %4437 = vmatprep.subr.bf16.mxu0 0
      %4438 = vmatpush1.bf16.msra.mxu0 0
      %4439 = vmatprep.subr.bf16.mxu0 0
      %4440 = vmatpush1.bf16.msra.mxu0 0
      %4441 = vmatprep.subr.bf16.mxu0 0
      %4442 = vmatpush1.bf16.msra.mxu0 0
      %4443 = vmatprep.subr.bf16.mxu0 0
      %4444 = vmatpush1.bf16.msra.mxu0 0
      %4445 = vmatprep.subr.bf16.mxu0 0
      %4446 = vmatpush1.bf16.msra.mxu0 0
      %4447 = vmatprep.subr.bf16.mxu0 0
      %4448 = vmatpush1.bf16.msra.mxu0 0
      %4449 = vmatprep.subr.bf16.mxu0 0
      %4450 = vmatpush1.bf16.msra.mxu0 0
      %4451 = vmatprep.subr.bf16.mxu0 0
      %4452 = vmatpush1.bf16.msra.mxu0 0
      %4453 = vmatprep.mubr.bf16.mxu0 0
      %4454 = vmatmul.mubr.bf16.gmra.mrb[0].mxu0 %v4398
      %v4455 = vpop.f32.mrb[0].mxu0
      %v4456 = vadd.f32 0.0, %v4455
      %v4457 = vpop.f32.mrb[0].mxu0
      %v4458 = vadd.f32 0.0, %v4457
      %v4459 = vpop.f32.mrb[0].mxu0
      %v4460 = vpop.f32.mrb[0].mxu0
      %4461 = vdwg.mxu0
      %4462 = vmatprep.subr.bf16.mxu0 %v4410
      %4463 = vmatpush1.bf16.msra.mxu0 %v4407
      %4464 = vmatprep.subr.bf16.mxu0 0
      %4465 = vmatpush1.bf16.msra.mxu0 0
      %4466 = vmatprep.subr.bf16.mxu0 0
      %4467 = vmatpush1.bf16.msra.mxu0 0
      %4468 = vmatprep.subr.bf16.mxu0 0
      %4469 = vmatpush1.bf16.msra.mxu0 0
      %4470 = vmatprep.subr.bf16.mxu0 0
      %4471 = vmatpush1.bf16.msra.mxu0 0
      %4472 = vmatprep.subr.bf16.mxu0 0
      %4473 = vmatpush1.bf16.msra.mxu0 0
      %4474 = vmatprep.subr.bf16.mxu0 0
      %4475 = vmatpush1.bf16.msra.mxu0 0
      %4476 = vmatprep.subr.bf16.mxu0 0
      %4477 = vmatpush1.bf16.msra.mxu0 0
      %4478 = vmatprep.subr.bf16.mxu0 0
      %4479 = vmatpush1.bf16.msra.mxu0 0
      %4480 = vmatprep.subr.bf16.mxu0 0
      %4481 = vmatpush1.bf16.msra.mxu0 0
      %4482 = vmatprep.subr.bf16.mxu0 0
      %4483 = vmatpush1.bf16.msra.mxu0 0
      %4484 = vmatprep.subr.bf16.mxu0 0
      %4485 = vmatpush1.bf16.msra.mxu0 0
      %4486 = vmatprep.subr.bf16.mxu0 0
      %4487 = vmatpush1.bf16.msra.mxu0 0
      %4488 = vmatprep.subr.bf16.mxu0 0
      %4489 = vmatpush1.bf16.msra.mxu0 0
      %4490 = vmatprep.subr.bf16.mxu0 0
      %4491 = vmatpush1.bf16.msra.mxu0 0
      %4492 = vmatprep.subr.bf16.mxu0 0
      %4493 = vmatpush1.bf16.msra.mxu0 0
      %4494 = vmatprep.mubr.bf16.mxu0 0
      %4495 = vmatmul.mubr.bf16.gmra.mrb[0].mxu0 %v4398
      %v4496 = vpop.f32.mrb[0].mxu0
      %v4497 = vadd.f32 0.0, %v4496
      %v4498 = vpop.f32.mrb[0].mxu0
      %v4499 = vadd.f32 0.0, %v4498
      %v4500 = vpop.f32.mrb[0].mxu0
      %v4501 = vpop.f32.mrb[0].mxu0
      %4502 = vdwg.mxu0
      %4503 = vmatprep.subr.bf16.mxu0 %v4416
      %4504 = vmatpush1.bf16.msra.mxu0 %v4413
      %4505 = vmatprep.subr.bf16.mxu0 0
      %4506 = vmatpush1.bf16.msra.mxu0 0
      %4507 = vmatprep.subr.bf16.mxu0 0
      %4508 = vmatpush1.bf16.msra.mxu0 0
      %4509 = vmatprep.subr.bf16.mxu0 0
      %4510 = vmatpush1.bf16.msra.mxu0 0
      %4511 = vmatprep.subr.bf16.mxu0 0
      %4512 = vmatpush1.bf16.msra.mxu0 0
      %4513 = vmatprep.subr.bf16.mxu0 0
      %4514 = vmatpush1.bf16.msra.mxu0 0
      %4515 = vmatprep.subr.bf16.mxu0 0
      %4516 = vmatpush1.bf16.msra.mxu0 0
      %4517 = vmatprep.subr.bf16.mxu0 0
      %4518 = vmatpush1.bf16.msra.mxu0 0
      %4519 = vmatprep.subr.bf16.mxu0 0
      %4520 = vmatpush1.bf16.msra.mxu0 0
      %4521 = vmatprep.subr.bf16.mxu0 0
      %4522 = vmatpush1.bf16.msra.mxu0 0
      %4523 = vmatprep.subr.bf16.mxu0 0
      %4524 = vmatpush1.bf16.msra.mxu0 0
      %4525 = vmatprep.subr.bf16.mxu0 0
      %4526 = vmatpush1.bf16.msra.mxu0 0
      %4527 = vmatprep.subr.bf16.mxu0 0
      %4528 = vmatpush1.bf16.msra.mxu0 0
      %4529 = vmatprep.subr.bf16.mxu0 0
      %4530 = vmatpush1.bf16.msra.mxu0 0
      %4531 = vmatprep.subr.bf16.mxu0 0
      %4532 = vmatpush1.bf16.msra.mxu0 0
      %4533 = vmatprep.subr.bf16.mxu0 0
      %4534 = vmatpush1.bf16.msra.mxu0 0
      %4535 = vmatprep.mubr.bf16.mxu0 0
      %4536 = vmatmul.mubr.bf16.gmra.mrb[0].mxu0 %v4398
      %v4537 = vpop.f32.mrb[0].mxu0
      %v4538 = vadd.f32 0.0, %v4537
      %v4539 = vpop.f32.mrb[0].mxu0
      %v4540 = vadd.f32 0.0, %v4539
      %v4541 = vpop.f32.mrb[0].mxu0
      %v4542 = vpop.f32.mrb[0].mxu0
      %4543 = vdwg.mxu0
      %4544 = vmatprep.subr.bf16.mxu0 0
      %4545 = vmatpush1.bf16.msra.mxu0 %v4419
      %4546 = vmatprep.subr.bf16.mxu0 0
      %4547 = vmatpush1.bf16.msra.mxu0 0
      %4548 = vmatprep.subr.bf16.mxu0 0
      %4549 = vmatpush1.bf16.msra.mxu0 0
      %4550 = vmatprep.subr.bf16.mxu0 0
      %4551 = vmatpush1.bf16.msra.mxu0 0
      %4552 = vmatprep.subr.bf16.mxu0 0
      %4553 = vmatpush1.bf16.msra.mxu0 0
      %4554 = vmatprep.subr.bf16.mxu0 0
      %4555 = vmatpush1.bf16.msra.mxu0 0
      %4556 = vmatprep.subr.bf16.mxu0 0
      %4557 = vmatpush1.bf16.msra.mxu0 0
      %4558 = vmatprep.subr.bf16.mxu0 0
      %4559 = vmatpush1.bf16.msra.mxu0 0
      %4560 = vmatprep.subr.bf16.mxu0 0
      %4561 = vmatpush1.bf16.msra.mxu0 0
      %4562 = vmatprep.subr.bf16.mxu0 0
      %4563 = vmatpush1.bf16.msra.mxu0 0
      %4564 = vmatprep.subr.bf16.mxu0 0
      %4565 = vmatpush1.bf16.msra.mxu0 0
      %4566 = vmatprep.subr.bf16.mxu0 0
      %4567 = vmatpush1.bf16.msra.mxu0 0
      %4568 = vmatprep.subr.bf16.mxu0 0
      %4569 = vmatpush1.bf16.msra.mxu0 0
      %4570 = vmatprep.subr.bf16.mxu0 0
      %4571 = vmatpush1.bf16.msra.mxu0 0
      %4572 = vmatprep.subr.bf16.mxu0 0
      %4573 = vmatpush1.bf16.msra.mxu0 0
      %4574 = vmatprep.subr.bf16.mxu0 0
      %4575 = vmatpush1.bf16.msra.mxu0 0
      %4576 = vmatprep.mubr.bf16.mxu0 0
      %4577 = vmatmul.mubr.bf16.gmra.mrb[0].mxu0 %v4398
      %v4578 = vpop.f32.mrb[0].mxu0
      %v4579 = vadd.f32 0.0, %v4578
      %v4580 = vpop.f32.mrb[0].mxu0
      %v4581 = vpop.f32.mrb[0].mxu0
      %v4582 = vpop.f32.mrb[0].mxu0
      %4583 = vdwg.mxu0
      %v4584 = vadd.f32 %v4364, %v4456
      %v4585 = vadd.f32 %v4365, %v4458
      %v4586 = vadd.f32 %v4366, %v4497
      %v4587 = vadd.f32 %v4367, %v4499
      %v4588 = vadd.f32 %v4368, %v4538
      %v4589 = vadd.f32 %v4369, %v4540
      %v4590 = vadd.f32 %v4370, %v4579
      %s4591 = scalar_lea.vmem %s1, 80
      %v4592 = vld [vmem:[%s4591] sm:$0x7]
      %v4594 = vsel %vm260, %v4592, 0
      %v4597 = vand.u32 %v1292, %v267
      %4599 = vmatprep.subr.bf16.mxu0 %v462
      %4600 = vmatpush1.bf16.msra.mxu0 %v459
      %4601 = vmatprep.subr.bf16.mxu0 0
      %4602 = vmatpush1.bf16.msra.mxu0 0
      %4603 = vmatprep.subr.bf16.mxu0 0
      %4604 = vmatpush1.bf16.msra.mxu0 0
      %4605 = vmatprep.subr.bf16.mxu0 0
      %4606 = vmatpush1.bf16.msra.mxu0 0
      %4607 = vmatprep.subr.bf16.mxu0 0
      %4608 = vmatpush1.bf16.msra.mxu0 0
      %4609 = vmatprep.subr.bf16.mxu0 0
      %4610 = vmatpush1.bf16.msra.mxu0 0
      %4611 = vmatprep.subr.bf16.mxu0 0
      %4612 = vmatpush1.bf16.msra.mxu0 0
      %4613 = vmatprep.subr.bf16.mxu0 0
      %4614 = vmatpush1.bf16.msra.mxu0 0
      %4615 = vmatprep.subr.bf16.mxu0 0
      %4616 = vmatpush1.bf16.msra.mxu0 0
      %4617 = vmatprep.subr.bf16.mxu0 0
      %4618 = vmatpush1.bf16.msra.mxu0 0
      %4619 = vmatprep.subr.bf16.mxu0 0
      %4620 = vmatpush1.bf16.msra.mxu0 0
      %4621 = vmatprep.subr.bf16.mxu0 0
      %4622 = vmatpush1.bf16.msra.mxu0 0
      %4623 = vmatprep.subr.bf16.mxu0 0
      %4624 = vmatpush1.bf16.msra.mxu0 0
      %4625 = vmatprep.subr.bf16.mxu0 0
      %4626 = vmatpush1.bf16.msra.mxu0 0
      %4627 = vmatprep.subr.bf16.mxu0 0
      %4628 = vmatpush1.bf16.msra.mxu0 0
      %4629 = vmatprep.subr.bf16.mxu0 0
      %4630 = vmatpush1.bf16.msra.mxu0 0
      %4631 = vmatprep.mubr.bf16.mxu0 0
      %4632 = vmatmul.mubr.bf16.gmra.mrb[0].mxu0 %v4594
      %v4633 = vpop.f32.mrb[0].mxu0
      %v4634 = vadd.f32 0.0, %v4633
      %v4635 = vpop.f32.mrb[0].mxu0
      %v4636 = vadd.f32 0.0, %v4635
      %v4637 = vpop.f32.mrb[0].mxu0
      %v4638 = vpop.f32.mrb[0].mxu0
      %4639 = vdwg.mxu0
      %4640 = vmatprep.subr.bf16.mxu0 %v468
      %4641 = vmatpush1.bf16.msra.mxu0 %v465
      %4642 = vmatprep.subr.bf16.mxu0 0
      %4643 = vmatpush1.bf16.msra.mxu0 0
      %4644 = vmatprep.subr.bf16.mxu0 0
      %4645 = vmatpush1.bf16.msra.mxu0 0
      %4646 = vmatprep.subr.bf16.mxu0 0
      %4647 = vmatpush1.bf16.msra.mxu0 0
      %4648 = vmatprep.subr.bf16.mxu0 0
      %4649 = vmatpush1.bf16.msra.mxu0 0
      %4650 = vmatprep.subr.bf16.mxu0 0
      %4651 = vmatpush1.bf16.msra.mxu0 0
      %4652 = vmatprep.subr.bf16.mxu0 0
      %4653 = vmatpush1.bf16.msra.mxu0 0
      %4654 = vmatprep.subr.bf16.mxu0 0
      %4655 = vmatpush1.bf16.msra.mxu0 0
      %4656 = vmatprep.subr.bf16.mxu0 0
      %4657 = vmatpush1.bf16.msra.mxu0 0
      %4658 = vmatprep.subr.bf16.mxu0 0
      %4659 = vmatpush1.bf16.msra.mxu0 0
      %4660 = vmatprep.subr.bf16.mxu0 0
      %4661 = vmatpush1.bf16.msra.mxu0 0
      %4662 = vmatprep.subr.bf16.mxu0 0
      %4663 = vmatpush1.bf16.msra.mxu0 0
      %4664 = vmatprep.subr.bf16.mxu0 0
      %4665 = vmatpush1.bf16.msra.mxu0 0
      %4666 = vmatprep.subr.bf16.mxu0 0
      %4667 = vmatpush1.bf16.msra.mxu0 0
      %4668 = vmatprep.subr.bf16.mxu0 0
      %4669 = vmatpush1.bf16.msra.mxu0 0
      %4670 = vmatprep.subr.bf16.mxu0 0
      %4671 = vmatpush1.bf16.msra.mxu0 0
      %4672 = vmatprep.mubr.bf16.mxu0 0
      %4673 = vmatmul.mubr.bf16.gmra.mrb[0].mxu0 %v4594
      %v4674 = vpop.f32.mrb[0].mxu0
      %v4675 = vadd.f32 0.0, %v4674
      %v4676 = vpop.f32.mrb[0].mxu0
      %v4677 = vadd.f32 0.0, %v4676
      %v4678 = vpop.f32.mrb[0].mxu0
      %v4679 = vpop.f32.mrb[0].mxu0
      %4680 = vdwg.mxu0
      %4681 = vmatprep.subr.bf16.mxu0 %v474
      %4682 = vmatpush1.bf16.msra.mxu0 %v471
      %4683 = vmatprep.subr.bf16.mxu0 0
      %4684 = vmatpush1.bf16.msra.mxu0 0
      %4685 = vmatprep.subr.bf16.mxu0 0
      %4686 = vmatpush1.bf16.msra.mxu0 0
      %4687 = vmatprep.subr.bf16.mxu0 0
      %4688 = vmatpush1.bf16.msra.mxu0 0
      %4689 = vmatprep.subr.bf16.mxu0 0
      %4690 = vmatpush1.bf16.msra.mxu0 0
      %4691 = vmatprep.subr.bf16.mxu0 0
      %4692 = vmatpush1.bf16.msra.mxu0 0
      %4693 = vmatprep.subr.bf16.mxu0 0
      %4694 = vmatpush1.bf16.msra.mxu0 0
      %4695 = vmatprep.subr.bf16.mxu0 0
      %4696 = vmatpush1.bf16.msra.mxu0 0
      %4697 = vmatprep.subr.bf16.mxu0 0
      %4698 = vmatpush1.bf16.msra.mxu0 0
      %4699 = vmatprep.subr.bf16.mxu0 0
      %4700 = vmatpush1.bf16.msra.mxu0 0
      %4701 = vmatprep.subr.bf16.mxu0 0
      %4702 = vmatpush1.bf16.msra.mxu0 0
      %4703 = vmatprep.subr.bf16.mxu0 0
      %4704 = vmatpush1.bf16.msra.mxu0 0
      %4705 = vmatprep.subr.bf16.mxu0 0
      %4706 = vmatpush1.bf16.msra.mxu0 0
      %4707 = vmatprep.subr.bf16.mxu0 0
      %4708 = vmatpush1.bf16.msra.mxu0 0
      %4709 = vmatprep.subr.bf16.mxu0 0
      %4710 = vmatpush1.bf16.msra.mxu0 0
      %4711 = vmatprep.subr.bf16.mxu0 0
      %4712 = vmatpush1.bf16.msra.mxu0 0
      %4713 = vmatprep.mubr.bf16.mxu0 0
      %4714 = vmatmul.mubr.bf16.gmra.mrb[0].mxu0 %v4594
      %v4715 = vpop.f32.mrb[0].mxu0
      %v4716 = vadd.f32 0.0, %v4715
      %v4717 = vpop.f32.mrb[0].mxu0
      %v4718 = vadd.f32 0.0, %v4717
      %v4719 = vpop.f32.mrb[0].mxu0
      %v4720 = vpop.f32.mrb[0].mxu0
      %4721 = vdwg.mxu0
      %4722 = vmatprep.subr.bf16.mxu0 0
      %4723 = vmatpush1.bf16.msra.mxu0 %v4597
      %4724 = vmatprep.subr.bf16.mxu0 0
      %4725 = vmatpush1.bf16.msra.mxu0 0
      %4726 = vmatprep.subr.bf16.mxu0 0
      %4727 = vmatpush1.bf16.msra.mxu0 0
      %4728 = vmatprep.subr.bf16.mxu0 0
      %4729 = vmatpush1.bf16.msra.mxu0 0
      %4730 = vmatprep.subr.bf16.mxu0 0
      %4731 = vmatpush1.bf16.msra.mxu0 0
      %4732 = vmatprep.subr.bf16.mxu0 0
      %4733 = vmatpush1.bf16.msra.mxu0 0
      %4734 = vmatprep.subr.bf16.mxu0 0
      %4735 = vmatpush1.bf16.msra.mxu0 0
      %4736 = vmatprep.subr.bf16.mxu0 0
      %4737 = vmatpush1.bf16.msra.mxu0 0
      %4738 = vmatprep.subr.bf16.mxu0 0
      %4739 = vmatpush1.bf16.msra.mxu0 0
      %4740 = vmatprep.subr.bf16.mxu0 0
      %4741 = vmatpush1.bf16.msra.mxu0 0
      %4742 = vmatprep.subr.bf16.mxu0 0
      %4743 = vmatpush1.bf16.msra.mxu0 0
      %4744 = vmatprep.subr.bf16.mxu0 0
      %4745 = vmatpush1.bf16.msra.mxu0 0
      %4746 = vmatprep.subr.bf16.mxu0 0
      %4747 = vmatpush1.bf16.msra.mxu0 0
      %4748 = vmatprep.subr.bf16.mxu0 0
      %4749 = vmatpush1.bf16.msra.mxu0 0
      %4750 = vmatprep.subr.bf16.mxu0 0
      %4751 = vmatpush1.bf16.msra.mxu0 0
      %4752 = vmatprep.subr.bf16.mxu0 0
      %4753 = vmatpush1.bf16.msra.mxu0 0
      %4754 = vmatprep.mubr.bf16.mxu0 0
      %4755 = vmatmul.mubr.bf16.gmra.mrb[0].mxu0 %v4594
      %v4756 = vpop.f32.mrb[0].mxu0
      %v4757 = vadd.f32 0.0, %v4756
      %v4758 = vpop.f32.mrb[0].mxu0
      %v4759 = vpop.f32.mrb[0].mxu0
      %v4760 = vpop.f32.mrb[0].mxu0
      %4761 = vdwg.mxu0
      %v4762 = vadd.f32 %v4584, %v4634
      %v4763 = vadd.f32 %v4585, %v4636
      %v4764 = vadd.f32 %v4586, %v4675
      %v4765 = vadd.f32 %v4587, %v4677
      %v4766 = vadd.f32 %v4588, %v4716
      %v4767 = vadd.f32 %v4589, %v4718
      %v4768 = vadd.f32 %v4590, %v4757
      %s4769 = scalar_lea.vmem %s1, 84
      %v4770 = vld [vmem:[%s4769] sm:$0x7]
      %4771 = vrot.lane.b32.xlu0 %v1292, 127
      %v4772 = vpop.permute.xlu0 %4771
      %v4773 = vsel %vm253, %v252, %v4772
      %v4775 = vsel %vm260, %v4770, 0
      %v4778 = vand.u32 %v4773, %v267
      %v4781 = vand.u32 %v4772, %v267
      %4783 = vmatprep.subr.bf16.mxu0 %v275
      %4784 = vmatpush1.bf16.msra.mxu0 %v272
      %4785 = vmatprep.subr.bf16.mxu0 0
      %4786 = vmatpush1.bf16.msra.mxu0 0
      %4787 = vmatprep.subr.bf16.mxu0 0
      %4788 = vmatpush1.bf16.msra.mxu0 0
      %4789 = vmatprep.subr.bf16.mxu0 0
      %4790 = vmatpush1.bf16.msra.mxu0 0
      %4791 = vmatprep.subr.bf16.mxu0 0
      %4792 = vmatpush1.bf16.msra.mxu0 0
      %4793 = vmatprep.subr.bf16.mxu0 0
      %4794 = vmatpush1.bf16.msra.mxu0 0
      %4795 = vmatprep.subr.bf16.mxu0 0
      %4796 = vmatpush1.bf16.msra.mxu0 0
      %4797 = vmatprep.subr.bf16.mxu0 0
      %4798 = vmatpush1.bf16.msra.mxu0 0
      %4799 = vmatprep.subr.bf16.mxu0 0
      %4800 = vmatpush1.bf16.msra.mxu0 0
      %4801 = vmatprep.subr.bf16.mxu0 0
      %4802 = vmatpush1.bf16.msra.mxu0 0
      %4803 = vmatprep.subr.bf16.mxu0 0
      %4804 = vmatpush1.bf16.msra.mxu0 0
      %4805 = vmatprep.subr.bf16.mxu0 0
      %4806 = vmatpush1.bf16.msra.mxu0 0
      %4807 = vmatprep.subr.bf16.mxu0 0
      %4808 = vmatpush1.bf16.msra.mxu0 0
      %4809 = vmatprep.subr.bf16.mxu0 0
      %4810 = vmatpush1.bf16.msra.mxu0 0
      %4811 = vmatprep.subr.bf16.mxu0 0
      %4812 = vmatpush1.bf16.msra.mxu0 0
      %4813 = vmatprep.subr.bf16.mxu0 0
      %4814 = vmatpush1.bf16.msra.mxu0 0
      %4815 = vmatprep.mubr.bf16.mxu0 0
      %4816 = vmatmul.mubr.bf16.gmra.mrb[0].mxu0 %v4775
      %v4817 = vpop.f32.mrb[0].mxu0
      %v4818 = vadd.f32 0.0, %v4817
      %v4819 = vpop.f32.mrb[0].mxu0
      %v4820 = vadd.f32 0.0, %v4819
      %v4821 = vpop.f32.mrb[0].mxu0
      %v4822 = vpop.f32.mrb[0].mxu0
      %4823 = vdwg.mxu0
      %4824 = vmatprep.subr.bf16.mxu0 %v281
      %4825 = vmatpush1.bf16.msra.mxu0 %v278
      %4826 = vmatprep.subr.bf16.mxu0 0
      %4827 = vmatpush1.bf16.msra.mxu0 0
      %4828 = vmatprep.subr.bf16.mxu0 0
      %4829 = vmatpush1.bf16.msra.mxu0 0
      %4830 = vmatprep.subr.bf16.mxu0 0
      %4831 = vmatpush1.bf16.msra.mxu0 0
      %4832 = vmatprep.subr.bf16.mxu0 0
      %4833 = vmatpush1.bf16.msra.mxu0 0
      %4834 = vmatprep.subr.bf16.mxu0 0
      %4835 = vmatpush1.bf16.msra.mxu0 0
      %4836 = vmatprep.subr.bf16.mxu0 0
      %4837 = vmatpush1.bf16.msra.mxu0 0
      %4838 = vmatprep.subr.bf16.mxu0 0
      %4839 = vmatpush1.bf16.msra.mxu0 0
      %4840 = vmatprep.subr.bf16.mxu0 0
      %4841 = vmatpush1.bf16.msra.mxu0 0
      %4842 = vmatprep.subr.bf16.mxu0 0
      %4843 = vmatpush1.bf16.msra.mxu0 0
      %4844 = vmatprep.subr.bf16.mxu0 0
      %4845 = vmatpush1.bf16.msra.mxu0 0
      %4846 = vmatprep.subr.bf16.mxu0 0
      %4847 = vmatpush1.bf16.msra.mxu0 0
      %4848 = vmatprep.subr.bf16.mxu0 0
      %4849 = vmatpush1.bf16.msra.mxu0 0
      %4850 = vmatprep.subr.bf16.mxu0 0
      %4851 = vmatpush1.bf16.msra.mxu0 0
      %4852 = vmatprep.subr.bf16.mxu0 0
      %4853 = vmatpush1.bf16.msra.mxu0 0
      %4854 = vmatprep.subr.bf16.mxu0 0
      %4855 = vmatpush1.bf16.msra.mxu0 0
      %4856 = vmatprep.mubr.bf16.mxu0 0
      %4857 = vmatmul.mubr.bf16.gmra.mrb[0].mxu0 %v4775
      %v4858 = vpop.f32.mrb[0].mxu0
      %v4859 = vadd.f32 0.0, %v4858
      %v4860 = vpop.f32.mrb[0].mxu0
      %v4861 = vadd.f32 0.0, %v4860
      %v4862 = vpop.f32.mrb[0].mxu0
      %v4863 = vpop.f32.mrb[0].mxu0
      %4864 = vdwg.mxu0
      %4865 = vmatprep.subr.bf16.mxu0 %v4778
      %4866 = vmatpush1.bf16.msra.mxu0 %v284
      %4867 = vmatprep.subr.bf16.mxu0 0
      %4868 = vmatpush1.bf16.msra.mxu0 0
      %4869 = vmatprep.subr.bf16.mxu0 0
      %4870 = vmatpush1.bf16.msra.mxu0 0
      %4871 = vmatprep.subr.bf16.mxu0 0
      %4872 = vmatpush1.bf16.msra.mxu0 0
      %4873 = vmatprep.subr.bf16.mxu0 0
      %4874 = vmatpush1.bf16.msra.mxu0 0
      %4875 = vmatprep.subr.bf16.mxu0 0
      %4876 = vmatpush1.bf16.msra.mxu0 0
      %4877 = vmatprep.subr.bf16.mxu0 0
      %4878 = vmatpush1.bf16.msra.mxu0 0
      %4879 = vmatprep.subr.bf16.mxu0 0
      %4880 = vmatpush1.bf16.msra.mxu0 0
      %4881 = vmatprep.subr.bf16.mxu0 0
      %4882 = vmatpush1.bf16.msra.mxu0 0
      %4883 = vmatprep.subr.bf16.mxu0 0
      %4884 = vmatpush1.bf16.msra.mxu0 0
      %4885 = vmatprep.subr.bf16.mxu0 0
      %4886 = vmatpush1.bf16.msra.mxu0 0
      %4887 = vmatprep.subr.bf16.mxu0 0
      %4888 = vmatpush1.bf16.msra.mxu0 0
      %4889 = vmatprep.subr.bf16.mxu0 0
      %4890 = vmatpush1.bf16.msra.mxu0 0
      %4891 = vmatprep.subr.bf16.mxu0 0
      %4892 = vmatpush1.bf16.msra.mxu0 0
      %4893 = vmatprep.subr.bf16.mxu0 0
      %4894 = vmatpush1.bf16.msra.mxu0 0
      %4895 = vmatprep.subr.bf16.mxu0 0
      %4896 = vmatpush1.bf16.msra.mxu0 0
      %4897 = vmatprep.mubr.bf16.mxu0 0
      %4898 = vmatmul.mubr.bf16.gmra.mrb[0].mxu0 %v4775
      %v4899 = vpop.f32.mrb[0].mxu0
      %v4900 = vadd.f32 0.0, %v4899
      %v4901 = vpop.f32.mrb[0].mxu0
      %v4902 = vadd.f32 0.0, %v4901
      %v4903 = vpop.f32.mrb[0].mxu0
      %v4904 = vpop.f32.mrb[0].mxu0
      %4905 = vdwg.mxu0
      %4906 = vmatprep.subr.bf16.mxu0 0
      %4907 = vmatpush1.bf16.msra.mxu0 %v4781
      %4908 = vmatprep.subr.bf16.mxu0 0
      %4909 = vmatpush1.bf16.msra.mxu0 0
      %4910 = vmatprep.subr.bf16.mxu0 0
      %4911 = vmatpush1.bf16.msra.mxu0 0
      %4912 = vmatprep.subr.bf16.mxu0 0
      %4913 = vmatpush1.bf16.msra.mxu0 0
      %4914 = vmatprep.subr.bf16.mxu0 0
      %4915 = vmatpush1.bf16.msra.mxu0 0
      %4916 = vmatprep.subr.bf16.mxu0 0
      %4917 = vmatpush1.bf16.msra.mxu0 0
      %4918 = vmatprep.subr.bf16.mxu0 0
      %4919 = vmatpush1.bf16.msra.mxu0 0
      %4920 = vmatprep.subr.bf16.mxu0 0
      %4921 = vmatpush1.bf16.msra.mxu0 0
      %4922 = vmatprep.subr.bf16.mxu0 0
      %4923 = vmatpush1.bf16.msra.mxu0 0
      %4924 = vmatprep.subr.bf16.mxu0 0
      %4925 = vmatpush1.bf16.msra.mxu0 0
      %4926 = vmatprep.subr.bf16.mxu0 0
      %4927 = vmatpush1.bf16.msra.mxu0 0
      %4928 = vmatprep.subr.bf16.mxu0 0
      %4929 = vmatpush1.bf16.msra.mxu0 0
      %4930 = vmatprep.subr.bf16.mxu0 0
      %4931 = vmatpush1.bf16.msra.mxu0 0
      %4932 = vmatprep.subr.bf16.mxu0 0
      %4933 = vmatpush1.bf16.msra.mxu0 0
      %4934 = vmatprep.subr.bf16.mxu0 0
      %4935 = vmatpush1.bf16.msra.mxu0 0
      %4936 = vmatprep.subr.bf16.mxu0 0
      %4937 = vmatpush1.bf16.msra.mxu0 0
      %4938 = vmatprep.mubr.bf16.mxu0 0
      %4939 = vmatmul.mubr.bf16.gmra.mrb[0].mxu0 %v4775
      %v4940 = vpop.f32.mrb[0].mxu0
      %v4941 = vadd.f32 0.0, %v4940
      %v4942 = vpop.f32.mrb[0].mxu0
      %v4943 = vpop.f32.mrb[0].mxu0
      %v4944 = vpop.f32.mrb[0].mxu0
      %4945 = vdwg.mxu0
      %v4946 = vadd.f32 %v4762, %v4818
      %v4947 = vadd.f32 %v4763, %v4820
      %v4948 = vadd.f32 %v4764, %v4859
      %v4949 = vadd.f32 %v4765, %v4861
      %v4950 = vadd.f32 %v4766, %v4900
      %v4951 = vadd.f32 %v4767, %v4902
      %v4952 = vadd.f32 %v4768, %v4941
      %s4953 = scalar_lea.vmem %s1, 88
      %v4954 = vld [vmem:[%s4953] sm:$0x7]
      %4955 = vrot.lane.b32.xlu0 %v1292, 126
      %v4956 = vpop.permute.xlu0 %4955
      %v4957 = vsel %vm655, %v654, %v4956
      %v4959 = vsel %vm260, %v4954, 0
      %v4962 = vand.u32 %v4957, %v267
      %v4965 = vand.u32 %v4956, %v267
      %4967 = vmatprep.subr.bf16.mxu0 %v672
      %4968 = vmatpush1.bf16.msra.mxu0 %v669
      %4969 = vmatprep.subr.bf16.mxu0 0
      %4970 = vmatpush1.bf16.msra.mxu0 0
      %4971 = vmatprep.subr.bf16.mxu0 0
      %4972 = vmatpush1.bf16.msra.mxu0 0
      %4973 = vmatprep.subr.bf16.mxu0 0
      %4974 = vmatpush1.bf16.msra.mxu0 0
      %4975 = vmatprep.subr.bf16.mxu0 0
      %4976 = vmatpush1.bf16.msra.mxu0 0
      %4977 = vmatprep.subr.bf16.mxu0 0
      %4978 = vmatpush1.bf16.msra.mxu0 0
      %4979 = vmatprep.subr.bf16.mxu0 0
      %4980 = vmatpush1.bf16.msra.mxu0 0
      %4981 = vmatprep.subr.bf16.mxu0 0
      %4982 = vmatpush1.bf16.msra.mxu0 0
      %4983 = vmatprep.subr.bf16.mxu0 0
      %4984 = vmatpush1.bf16.msra.mxu0 0
      %4985 = vmatprep.subr.bf16.mxu0 0
      %4986 = vmatpush1.bf16.msra.mxu0 0
      %4987 = vmatprep.subr.bf16.mxu0 0
      %4988 = vmatpush1.bf16.msra.mxu0 0
      %4989 = vmatprep.subr.bf16.mxu0 0
      %4990 = vmatpush1.bf16.msra.mxu0 0
      %4991 = vmatprep.subr.bf16.mxu0 0
      %4992 = vmatpush1.bf16.msra.mxu0 0
      %4993 = vmatprep.subr.bf16.mxu0 0
      %4994 = vmatpush1.bf16.msra.mxu0 0
      %4995 = vmatprep.subr.bf16.mxu0 0
      %4996 = vmatpush1.bf16.msra.mxu0 0
      %4997 = vmatprep.subr.bf16.mxu0 0
      %4998 = vmatpush1.bf16.msra.mxu0 0
      %4999 = vmatprep.mubr.bf16.mxu0 0
      %5000 = vmatmul.mubr.bf16.gmra.mrb[0].mxu0 %v4959
      %v5001 = vpop.f32.mrb[0].mxu0
      %v5002 = vadd.f32 0.0, %v5001
      %v5003 = vpop.f32.mrb[0].mxu0
      %v5004 = vadd.f32 0.0, %v5003
      %v5005 = vpop.f32.mrb[0].mxu0
      %v5006 = vpop.f32.mrb[0].mxu0
      %5007 = vdwg.mxu0
      %5008 = vmatprep.subr.bf16.mxu0 %v678
      %5009 = vmatpush1.bf16.msra.mxu0 %v675
      %5010 = vmatprep.subr.bf16.mxu0 0
      %5011 = vmatpush1.bf16.msra.mxu0 0
      %5012 = vmatprep.subr.bf16.mxu0 0
      %5013 = vmatpush1.bf16.msra.mxu0 0
      %5014 = vmatprep.subr.bf16.mxu0 0
      %5015 = vmatpush1.bf16.msra.mxu0 0
      %5016 = vmatprep.subr.bf16.mxu0 0
      %5017 = vmatpush1.bf16.msra.mxu0 0
      %5018 = vmatprep.subr.bf16.mxu0 0
      %5019 = vmatpush1.bf16.msra.mxu0 0
      %5020 = vmatprep.subr.bf16.mxu0 0
      %5021 = vmatpush1.bf16.msra.mxu0 0
      %5022 = vmatprep.subr.bf16.mxu0 0
      %5023 = vmatpush1.bf16.msra.mxu0 0
      %5024 = vmatprep.subr.bf16.mxu0 0
      %5025 = vmatpush1.bf16.msra.mxu0 0
      %5026 = vmatprep.subr.bf16.mxu0 0
      %5027 = vmatpush1.bf16.msra.mxu0 0
      %5028 = vmatprep.subr.bf16.mxu0 0
      %5029 = vmatpush1.bf16.msra.mxu0 0
      %5030 = vmatprep.subr.bf16.mxu0 0
      %5031 = vmatpush1.bf16.msra.mxu0 0
      %5032 = vmatprep.subr.bf16.mxu0 0
      %5033 = vmatpush1.bf16.msra.mxu0 0
      %5034 = vmatprep.subr.bf16.mxu0 0
      %5035 = vmatpush1.bf16.msra.mxu0 0
      %5036 = vmatprep.subr.bf16.mxu0 0
      %5037 = vmatpush1.bf16.msra.mxu0 0
      %5038 = vmatprep.subr.bf16.mxu0 0
      %5039 = vmatpush1.bf16.msra.mxu0 0
      %5040 = vmatprep.mubr.bf16.mxu0 0
      %5041 = vmatmul.mubr.bf16.gmra.mrb[0].mxu0 %v4959
      %v5042 = vpop.f32.mrb[0].mxu0
      %v5043 = vadd.f32 0.0, %v5042
      %v5044 = vpop.f32.mrb[0].mxu0
      %v5045 = vadd.f32 0.0, %v5044
      %v5046 = vpop.f32.mrb[0].mxu0
      %v5047 = vpop.f32.mrb[0].mxu0
      %5048 = vdwg.mxu0
      %5049 = vmatprep.subr.bf16.mxu0 %v4962
      %5050 = vmatpush1.bf16.msra.mxu0 %v681
      %5051 = vmatprep.subr.bf16.mxu0 0
      %5052 = vmatpush1.bf16.msra.mxu0 0
      %5053 = vmatprep.subr.bf16.mxu0 0
      %5054 = vmatpush1.bf16.msra.mxu0 0
      %5055 = vmatprep.subr.bf16.mxu0 0
      %5056 = vmatpush1.bf16.msra.mxu0 0
      %5057 = vmatprep.subr.bf16.mxu0 0
      %5058 = vmatpush1.bf16.msra.mxu0 0
      %5059 = vmatprep.subr.bf16.mxu0 0
      %5060 = vmatpush1.bf16.msra.mxu0 0
      %5061 = vmatprep.subr.bf16.mxu0 0
      %5062 = vmatpush1.bf16.msra.mxu0 0
      %5063 = vmatprep.subr.bf16.mxu0 0
      %5064 = vmatpush1.bf16.msra.mxu0 0
      %5065 = vmatprep.subr.bf16.mxu0 0
      %5066 = vmatpush1.bf16.msra.mxu0 0
      %5067 = vmatprep.subr.bf16.mxu0 0
      %5068 = vmatpush1.bf16.msra.mxu0 0
      %5069 = vmatprep.subr.bf16.mxu0 0
      %5070 = vmatpush1.bf16.msra.mxu0 0
      %5071 = vmatprep.subr.bf16.mxu0 0
      %5072 = vmatpush1.bf16.msra.mxu0 0
      %5073 = vmatprep.subr.bf16.mxu0 0
      %5074 = vmatpush1.bf16.msra.mxu0 0
      %5075 = vmatprep.subr.bf16.mxu0 0
      %5076 = vmatpush1.bf16.msra.mxu0 0
      %5077 = vmatprep.subr.bf16.mxu0 0
      %5078 = vmatpush1.bf16.msra.mxu0 0
      %5079 = vmatprep.subr.bf16.mxu0 0
      %5080 = vmatpush1.bf16.msra.mxu0 0
      %5081 = vmatprep.mubr.bf16.mxu0 0
      %5082 = vmatmul.mubr.bf16.gmra.mrb[0].mxu0 %v4959
      %v5083 = vpop.f32.mrb[0].mxu0
      %v5084 = vadd.f32 0.0, %v5083
      %v5085 = vpop.f32.mrb[0].mxu0
      %v5086 = vadd.f32 0.0, %v5085
      %v5087 = vpop.f32.mrb[0].mxu0
      %v5088 = vpop.f32.mrb[0].mxu0
      %5089 = vdwg.mxu0
      %5090 = vmatprep.subr.bf16.mxu0 0
      %5091 = vmatpush1.bf16.msra.mxu0 %v4965
      %5092 = vmatprep.subr.bf16.mxu0 0
      %5093 = vmatpush1.bf16.msra.mxu0 0
      %5094 = vmatprep.subr.bf16.mxu0 0
      %5095 = vmatpush1.bf16.msra.mxu0 0
      %5096 = vmatprep.subr.bf16.mxu0 0
      %5097 = vmatpush1.bf16.msra.mxu0 0
      %5098 = vmatprep.subr.bf16.mxu0 0
      %5099 = vmatpush1.bf16.msra.mxu0 0
      %5100 = vmatprep.subr.bf16.mxu0 0
      %5101 = vmatpush1.bf16.msra.mxu0 0
      %5102 = vmatprep.subr.bf16.mxu0 0
      %5103 = vmatpush1.bf16.msra.mxu0 0
      %5104 = vmatprep.subr.bf16.mxu0 0
      %5105 = vmatpush1.bf16.msra.mxu0 0
      %5106 = vmatprep.subr.bf16.mxu0 0
      %5107 = vmatpush1.bf16.msra.mxu0 0
      %5108 = vmatprep.subr.bf16.mxu0 0
      %5109 = vmatpush1.bf16.msra.mxu0 0
      %5110 = vmatprep.subr.bf16.mxu0 0
      %5111 = vmatpush1.bf16.msra.mxu0 0
      %5112 = vmatprep.subr.bf16.mxu0 0
      %5113 = vmatpush1.bf16.msra.mxu0 0
      %5114 = vmatprep.subr.bf16.mxu0 0
      %5115 = vmatpush1.bf16.msra.mxu0 0
      %5116 = vmatprep.subr.bf16.mxu0 0
      %5117 = vmatpush1.bf16.msra.mxu0 0
      %5118 = vmatprep.subr.bf16.mxu0 0
      %5119 = vmatpush1.bf16.msra.mxu0 0
      %5120 = vmatprep.subr.bf16.mxu0 0
      %5121 = vmatpush1.bf16.msra.mxu0 0
      %5122 = vmatprep.mubr.bf16.mxu0 0
      %5123 = vmatmul.mubr.bf16.gmra.mrb[0].mxu0 %v4959
      %v5124 = vpop.f32.mrb[0].mxu0
      %v5125 = vadd.f32 0.0, %v5124
      %v5126 = vpop.f32.mrb[0].mxu0
      %v5127 = vpop.f32.mrb[0].mxu0
      %v5128 = vpop.f32.mrb[0].mxu0
      %5129 = vdwg.mxu0
      %v5130 = vadd.f32 %v4946, %v5002
      %v5131 = vadd.f32 %v4947, %v5004
      %v5132 = vadd.f32 %v4948, %v5043
      %v5133 = vadd.f32 %v4949, %v5045
      %v5134 = vadd.f32 %v4950, %v5084
      %v5135 = vadd.f32 %v4951, %v5086
      %v5136 = vadd.f32 %v4952, %v5125
      %s5137 = scalar_lea.vmem %s1, 92
      %v5138 = vld [vmem:[%s5137] sm:$0x7]
      %5139 = vrot.lane.b32.xlu0 %v1292, 125
      %v5140 = vpop.permute.xlu0 %5139
      %v5141 = vsel %vm872, %v871, %v5140
      %v5143 = vsel %vm260, %v5138, 0
      %v5146 = vand.u32 %v5141, %v267
      %v5149 = vand.u32 %v5140, %v267
      %5151 = vmatprep.subr.bf16.mxu0 %v889
      %5152 = vmatpush1.bf16.msra.mxu0 %v886
      %5153 = vmatprep.subr.bf16.mxu0 0
      %5154 = vmatpush1.bf16.msra.mxu0 0
      %5155 = vmatprep.subr.bf16.mxu0 0
      %5156 = vmatpush1.bf16.msra.mxu0 0
      %5157 = vmatprep.subr.bf16.mxu0 0
      %5158 = vmatpush1.bf16.msra.mxu0 0
      %5159 = vmatprep.subr.bf16.mxu0 0
      %5160 = vmatpush1.bf16.msra.mxu0 0
      %5161 = vmatprep.subr.bf16.mxu0 0
      %5162 = vmatpush1.bf16.msra.mxu0 0
      %5163 = vmatprep.subr.bf16.mxu0 0
      %5164 = vmatpush1.bf16.msra.mxu0 0
      %5165 = vmatprep.subr.bf16.mxu0 0
      %5166 = vmatpush1.bf16.msra.mxu0 0
      %5167 = vmatprep.subr.bf16.mxu0 0
      %5168 = vmatpush1.bf16.msra.mxu0 0
      %5169 = vmatprep.subr.bf16.mxu0 0
      %5170 = vmatpush1.bf16.msra.mxu0 0
      %5171 = vmatprep.subr.bf16.mxu0 0
      %5172 = vmatpush1.bf16.msra.mxu0 0
      %5173 = vmatprep.subr.bf16.mxu0 0
      %5174 = vmatpush1.bf16.msra.mxu0 0
      %5175 = vmatprep.subr.bf16.mxu0 0
      %5176 = vmatpush1.bf16.msra.mxu0 0
      %5177 = vmatprep.subr.bf16.mxu0 0
      %5178 = vmatpush1.bf16.msra.mxu0 0
      %5179 = vmatprep.subr.bf16.mxu0 0
      %5180 = vmatpush1.bf16.msra.mxu0 0
      %5181 = vmatprep.subr.bf16.mxu0 0
      %5182 = vmatpush1.bf16.msra.mxu0 0
      %5183 = vmatprep.mubr.bf16.mxu0 0
      %5184 = vmatmul.mubr.bf16.gmra.mrb[0].mxu0 %v5143
      %v5185 = vpop.f32.mrb[0].mxu0
      %v5186 = vadd.f32 0.0, %v5185
      %v5187 = vpop.f32.mrb[0].mxu0
      %v5188 = vadd.f32 0.0, %v5187
      %v5189 = vpop.f32.mrb[0].mxu0
      %v5190 = vpop.f32.mrb[0].mxu0
      %5191 = vdwg.mxu0
      %5192 = vmatprep.subr.bf16.mxu0 %v895
      %5193 = vmatpush1.bf16.msra.mxu0 %v892
      %5194 = vmatprep.subr.bf16.mxu0 0
      %5195 = vmatpush1.bf16.msra.mxu0 0
      %5196 = vmatprep.subr.bf16.mxu0 0
      %5197 = vmatpush1.bf16.msra.mxu0 0
      %5198 = vmatprep.subr.bf16.mxu0 0
      %5199 = vmatpush1.bf16.msra.mxu0 0
      %5200 = vmatprep.subr.bf16.mxu0 0
      %5201 = vmatpush1.bf16.msra.mxu0 0
      %5202 = vmatprep.subr.bf16.mxu0 0
      %5203 = vmatpush1.bf16.msra.mxu0 0
      %5204 = vmatprep.subr.bf16.mxu0 0
      %5205 = vmatpush1.bf16.msra.mxu0 0
      %5206 = vmatprep.subr.bf16.mxu0 0
      %5207 = vmatpush1.bf16.msra.mxu0 0
      %5208 = vmatprep.subr.bf16.mxu0 0
      %5209 = vmatpush1.bf16.msra.mxu0 0
      %5210 = vmatprep.subr.bf16.mxu0 0
      %5211 = vmatpush1.bf16.msra.mxu0 0
      %5212 = vmatprep.subr.bf16.mxu0 0
      %5213 = vmatpush1.bf16.msra.mxu0 0
      %5214 = vmatprep.subr.bf16.mxu0 0
      %5215 = vmatpush1.bf16.msra.mxu0 0
      %5216 = vmatprep.subr.bf16.mxu0 0
      %5217 = vmatpush1.bf16.msra.mxu0 0
      %5218 = vmatprep.subr.bf16.mxu0 0
      %5219 = vmatpush1.bf16.msra.mxu0 0
      %5220 = vmatprep.subr.bf16.mxu0 0
      %5221 = vmatpush1.bf16.msra.mxu0 0
      %5222 = vmatprep.subr.bf16.mxu0 0
      %5223 = vmatpush1.bf16.msra.mxu0 0
      %5224 = vmatprep.mubr.bf16.mxu0 0
      %5225 = vmatmul.mubr.bf16.gmra.mrb[0].mxu0 %v5143
      %v5226 = vpop.f32.mrb[0].mxu0
      %v5227 = vadd.f32 0.0, %v5226
      %v5228 = vpop.f32.mrb[0].mxu0
      %v5229 = vadd.f32 0.0, %v5228
      %v5230 = vpop.f32.mrb[0].mxu0
      %v5231 = vpop.f32.mrb[0].mxu0
      %5232 = vdwg.mxu0
      %5233 = vmatprep.subr.bf16.mxu0 %v5146
      %5234 = vmatpush1.bf16.msra.mxu0 %v898
      %5235 = vmatprep.subr.bf16.mxu0 0
      %5236 = vmatpush1.bf16.msra.mxu0 0
      %5237 = vmatprep.subr.bf16.mxu0 0
      %5238 = vmatpush1.bf16.msra.mxu0 0
      %5239 = vmatprep.subr.bf16.mxu0 0
      %5240 = vmatpush1.bf16.msra.mxu0 0
      %5241 = vmatprep.subr.bf16.mxu0 0
      %5242 = vmatpush1.bf16.msra.mxu0 0
      %5243 = vmatprep.subr.bf16.mxu0 0
      %5244 = vmatpush1.bf16.msra.mxu0 0
      %5245 = vmatprep.subr.bf16.mxu0 0
      %5246 = vmatpush1.bf16.msra.mxu0 0
      %5247 = vmatprep.subr.bf16.mxu0 0
      %5248 = vmatpush1.bf16.msra.mxu0 0
      %5249 = vmatprep.subr.bf16.mxu0 0
      %5250 = vmatpush1.bf16.msra.mxu0 0
      %5251 = vmatprep.subr.bf16.mxu0 0
      %5252 = vmatpush1.bf16.msra.mxu0 0
      %5253 = vmatprep.subr.bf16.mxu0 0
      %5254 = vmatpush1.bf16.msra.mxu0 0
      %5255 = vmatprep.subr.bf16.mxu0 0
      %5256 = vmatpush1.bf16.msra.mxu0 0
      %5257 = vmatprep.subr.bf16.mxu0 0
      %5258 = vmatpush1.bf16.msra.mxu0 0
      %5259 = vmatprep.subr.bf16.mxu0 0
      %5260 = vmatpush1.bf16.msra.mxu0 0
      %5261 = vmatprep.subr.bf16.mxu0 0
      %5262 = vmatpush1.bf16.msra.mxu0 0
      %5263 = vmatprep.subr.bf16.mxu0 0
      %5264 = vmatpush1.bf16.msra.mxu0 0
      %5265 = vmatprep.mubr.bf16.mxu0 0
      %5266 = vmatmul.mubr.bf16.gmra.mrb[0].mxu0 %v5143
      %v5267 = vpop.f32.mrb[0].mxu0
      %v5268 = vadd.f32 0.0, %v5267
      %v5269 = vpop.f32.mrb[0].mxu0
      %v5270 = vadd.f32 0.0, %v5269
      %v5271 = vpop.f32.mrb[0].mxu0
      %v5272 = vpop.f32.mrb[0].mxu0
      %5273 = vdwg.mxu0
      %5274 = vmatprep.subr.bf16.mxu0 0
      %5275 = vmatpush1.bf16.msra.mxu0 %v5149
      %5276 = vmatprep.subr.bf16.mxu0 0
      %5277 = vmatpush1.bf16.msra.mxu0 0
      %5278 = vmatprep.subr.bf16.mxu0 0
      %5279 = vmatpush1.bf16.msra.mxu0 0
      %5280 = vmatprep.subr.bf16.mxu0 0
      %5281 = vmatpush1.bf16.msra.mxu0 0
      %5282 = vmatprep.subr.bf16.mxu0 0
      %5283 = vmatpush1.bf16.msra.mxu0 0
      %5284 = vmatprep.subr.bf16.mxu0 0
      %5285 = vmatpush1.bf16.msra.mxu0 0
      %5286 = vmatprep.subr.bf16.mxu0 0
      %5287 = vmatpush1.bf16.msra.mxu0 0
      %5288 = vmatprep.subr.bf16.mxu0 0
      %5289 = vmatpush1.bf16.msra.mxu0 0
      %5290 = vmatprep.subr.bf16.mxu0 0
      %5291 = vmatpush1.bf16.msra.mxu0 0
      %5292 = vmatprep.subr.bf16.mxu0 0
      %5293 = vmatpush1.bf16.msra.mxu0 0
      %5294 = vmatprep.subr.bf16.mxu0 0
      %5295 = vmatpush1.bf16.msra.mxu0 0
      %5296 = vmatprep.subr.bf16.mxu0 0
      %5297 = vmatpush1.bf16.msra.mxu0 0
      %5298 = vmatprep.subr.bf16.mxu0 0
      %5299 = vmatpush1.bf16.msra.mxu0 0
      %5300 = vmatprep.subr.bf16.mxu0 0
      %5301 = vmatpush1.bf16.msra.mxu0 0
      %5302 = vmatprep.subr.bf16.mxu0 0
      %5303 = vmatpush1.bf16.msra.mxu0 0
      %5304 = vmatprep.subr.bf16.mxu0 0
      %5305 = vmatpush1.bf16.msra.mxu0 0
      %5306 = vmatprep.mubr.bf16.mxu0 0
      %5307 = vmatmul.mubr.bf16.gmra.mrb[0].mxu0 %v5143
      %v5308 = vpop.f32.mrb[0].mxu0
      %v5309 = vadd.f32 0.0, %v5308
      %v5310 = vpop.f32.mrb[0].mxu0
      %v5311 = vpop.f32.mrb[0].mxu0
      %v5312 = vpop.f32.mrb[0].mxu0
      %5313 = vdwg.mxu0
      %v5314 = vadd.f32 %v5130, %v5186
      %v5315 = vadd.f32 %v5131, %v5188
      %v5316 = vadd.f32 %v5132, %v5227
      %v5317 = vadd.f32 %v5133, %v5229
      %v5318 = vadd.f32 %v5134, %v5268
      %v5319 = vadd.f32 %v5135, %v5270
      %v5320 = vadd.f32 %v5136, %v5309
      %s5321 = scalar_lea.vmem %s1, 96
      %v5322 = vld [vmem:[%s5321] sm:$0x7]
      %5323 = vrot.lane.b32.xlu0 %v1292, 124
      %v5324 = vpop.permute.xlu0 %5323
      %v5325 = vsel %vm1089, %v1088, %v5324
      %v5327 = vsel %vm260, %v5322, 0
      %v5330 = vand.u32 %v5325, %v267
      %v5333 = vand.u32 %v5324, %v267
      %5335 = vmatprep.subr.bf16.mxu0 %v1106
      %5336 = vmatpush1.bf16.msra.mxu0 %v1103
      %5337 = vmatprep.subr.bf16.mxu0 0
      %5338 = vmatpush1.bf16.msra.mxu0 0
      %5339 = vmatprep.subr.bf16.mxu0 0
      %5340 = vmatpush1.bf16.msra.mxu0 0
      %5341 = vmatprep.subr.bf16.mxu0 0
      %5342 = vmatpush1.bf16.msra.mxu0 0
      %5343 = vmatprep.subr.bf16.mxu0 0
      %5344 = vmatpush1.bf16.msra.mxu0 0
      %5345 = vmatprep.subr.bf16.mxu0 0
      %5346 = vmatpush1.bf16.msra.mxu0 0
      %5347 = vmatprep.subr.bf16.mxu0 0
      %5348 = vmatpush1.bf16.msra.mxu0 0
      %5349 = vmatprep.subr.bf16.mxu0 0
      %5350 = vmatpush1.bf16.msra.mxu0 0
      %5351 = vmatprep.subr.bf16.mxu0 0
      %5352 = vmatpush1.bf16.msra.mxu0 0
      %5353 = vmatprep.subr.bf16.mxu0 0
      %5354 = vmatpush1.bf16.msra.mxu0 0
      %5355 = vmatprep.subr.bf16.mxu0 0
      %5356 = vmatpush1.bf16.msra.mxu0 0
      %5357 = vmatprep.subr.bf16.mxu0 0
      %5358 = vmatpush1.bf16.msra.mxu0 0
      %5359 = vmatprep.subr.bf16.mxu0 0
      %5360 = vmatpush1.bf16.msra.mxu0 0
      %5361 = vmatprep.subr.bf16.mxu0 0
      %5362 = vmatpush1.bf16.msra.mxu0 0
      %5363 = vmatprep.subr.bf16.mxu0 0
      %5364 = vmatpush1.bf16.msra.mxu0 0
      %5365 = vmatprep.subr.bf16.mxu0 0
      %5366 = vmatpush1.bf16.msra.mxu0 0
      %5367 = vmatprep.mubr.bf16.mxu0 0
      %5368 = vmatmul.mubr.bf16.gmra.mrb[0].mxu0 %v5327
      %v5369 = vpop.f32.mrb[0].mxu0
      %v5370 = vadd.f32 0.0, %v5369
      %v5371 = vpop.f32.mrb[0].mxu0
      %v5372 = vadd.f32 0.0, %v5371
      %v5373 = vpop.f32.mrb[0].mxu0
      %v5374 = vpop.f32.mrb[0].mxu0
      %5375 = vdwg.mxu0
      %5376 = vmatprep.subr.bf16.mxu0 %v1112
      %5377 = vmatpush1.bf16.msra.mxu0 %v1109
      %5378 = vmatprep.subr.bf16.mxu0 0
      %5379 = vmatpush1.bf16.msra.mxu0 0
      %5380 = vmatprep.subr.bf16.mxu0 0
      %5381 = vmatpush1.bf16.msra.mxu0 0
      %5382 = vmatprep.subr.bf16.mxu0 0
      %5383 = vmatpush1.bf16.msra.mxu0 0
      %5384 = vmatprep.subr.bf16.mxu0 0
      %5385 = vmatpush1.bf16.msra.mxu0 0
      %5386 = vmatprep.subr.bf16.mxu0 0
      %5387 = vmatpush1.bf16.msra.mxu0 0
      %5388 = vmatprep.subr.bf16.mxu0 0
      %5389 = vmatpush1.bf16.msra.mxu0 0
      %5390 = vmatprep.subr.bf16.mxu0 0
      %5391 = vmatpush1.bf16.msra.mxu0 0
      %5392 = vmatprep.subr.bf16.mxu0 0
      %5393 = vmatpush1.bf16.msra.mxu0 0
      %5394 = vmatprep.subr.bf16.mxu0 0
      %5395 = vmatpush1.bf16.msra.mxu0 0
      %5396 = vmatprep.subr.bf16.mxu0 0
      %5397 = vmatpush1.bf16.msra.mxu0 0
      %5398 = vmatprep.subr.bf16.mxu0 0
      %5399 = vmatpush1.bf16.msra.mxu0 0
      %5400 = vmatprep.subr.bf16.mxu0 0
      %5401 = vmatpush1.bf16.msra.mxu0 0
      %5402 = vmatprep.subr.bf16.mxu0 0
      %5403 = vmatpush1.bf16.msra.mxu0 0
      %5404 = vmatprep.subr.bf16.mxu0 0
      %5405 = vmatpush1.bf16.msra.mxu0 0
      %5406 = vmatprep.subr.bf16.mxu0 0
      %5407 = vmatpush1.bf16.msra.mxu0 0
      %5408 = vmatprep.mubr.bf16.mxu0 0
      %5409 = vmatmul.mubr.bf16.gmra.mrb[0].mxu0 %v5327
      %v5410 = vpop.f32.mrb[0].mxu0
      %v5411 = vadd.f32 0.0, %v5410
      %v5412 = vpop.f32.mrb[0].mxu0
      %v5413 = vadd.f32 0.0, %v5412
      %v5414 = vpop.f32.mrb[0].mxu0
      %v5415 = vpop.f32.mrb[0].mxu0
      %5416 = vdwg.mxu0
      %5417 = vmatprep.subr.bf16.mxu0 %v5330
      %5418 = vmatpush1.bf16.msra.mxu0 %v1115
      %5419 = vmatprep.subr.bf16.mxu0 0
      %5420 = vmatpush1.bf16.msra.mxu0 0
      %5421 = vmatprep.subr.bf16.mxu0 0
      %5422 = vmatpush1.bf16.msra.mxu0 0
      %5423 = vmatprep.subr.bf16.mxu0 0
      %5424 = vmatpush1.bf16.msra.mxu0 0
      %5425 = vmatprep.subr.bf16.mxu0 0
      %5426 = vmatpush1.bf16.msra.mxu0 0
      %5427 = vmatprep.subr.bf16.mxu0 0
      %5428 = vmatpush1.bf16.msra.mxu0 0
      %5429 = vmatprep.subr.bf16.mxu0 0
      %5430 = vmatpush1.bf16.msra.mxu0 0
      %5431 = vmatprep.subr.bf16.mxu0 0
      %5432 = vmatpush1.bf16.msra.mxu0 0
      %5433 = vmatprep.subr.bf16.mxu0 0
      %5434 = vmatpush1.bf16.msra.mxu0 0
      %5435 = vmatprep.subr.bf16.mxu0 0
      %5436 = vmatpush1.bf16.msra.mxu0 0
      %5437 = vmatprep.subr.bf16.mxu0 0
      %5438 = vmatpush1.bf16.msra.mxu0 0
      %5439 = vmatprep.subr.bf16.mxu0 0
      %5440 = vmatpush1.bf16.msra.mxu0 0
      %5441 = vmatprep.subr.bf16.mxu0 0
      %5442 = vmatpush1.bf16.msra.mxu0 0
      %5443 = vmatprep.subr.bf16.mxu0 0
      %5444 = vmatpush1.bf16.msra.mxu0 0
      %5445 = vmatprep.subr.bf16.mxu0 0
      %5446 = vmatpush1.bf16.msra.mxu0 0
      %5447 = vmatprep.subr.bf16.mxu0 0
      %5448 = vmatpush1.bf16.msra.mxu0 0
      %5449 = vmatprep.mubr.bf16.mxu0 0
      %5450 = vmatmul.mubr.bf16.gmra.mrb[0].mxu0 %v5327
      %v5451 = vpop.f32.mrb[0].mxu0
      %v5452 = vadd.f32 0.0, %v5451
      %v5453 = vpop.f32.mrb[0].mxu0
      %v5454 = vadd.f32 0.0, %v5453
      %v5455 = vpop.f32.mrb[0].mxu0
      %v5456 = vpop.f32.mrb[0].mxu0
      %5457 = vdwg.mxu0
      %5458 = vmatprep.subr.bf16.mxu0 0
      %5459 = vmatpush1.bf16.msra.mxu0 %v5333
      %5460 = vmatprep.subr.bf16.mxu0 0
      %5461 = vmatpush1.bf16.msra.mxu0 0
      %5462 = vmatprep.subr.bf16.mxu0 0
      %5463 = vmatpush1.bf16.msra.mxu0 0
      %5464 = vmatprep.subr.bf16.mxu0 0
      %5465 = vmatpush1.bf16.msra.mxu0 0
      %5466 = vmatprep.subr.bf16.mxu0 0
      %5467 = vmatpush1.bf16.msra.mxu0 0
      %5468 = vmatprep.subr.bf16.mxu0 0
      %5469 = vmatpush1.bf16.msra.mxu0 0
      %5470 = vmatprep.subr.bf16.mxu0 0
      %5471 = vmatpush1.bf16.msra.mxu0 0
      %5472 = vmatprep.subr.bf16.mxu0 0
      %5473 = vmatpush1.bf16.msra.mxu0 0
      %5474 = vmatprep.subr.bf16.mxu0 0
      %5475 = vmatpush1.bf16.msra.mxu0 0
      %5476 = vmatprep.subr.bf16.mxu0 0
      %5477 = vmatpush1.bf16.msra.mxu0 0
      %5478 = vmatprep.subr.bf16.mxu0 0
      %5479 = vmatpush1.bf16.msra.mxu0 0
      %5480 = vmatprep.subr.bf16.mxu0 0
      %5481 = vmatpush1.bf16.msra.mxu0 0
      %5482 = vmatprep.subr.bf16.mxu0 0
      %5483 = vmatpush1.bf16.msra.mxu0 0
      %5484 = vmatprep.subr.bf16.mxu0 0
      %5485 = vmatpush1.bf16.msra.mxu0 0
      %5486 = vmatprep.subr.bf16.mxu0 0
      %5487 = vmatpush1.bf16.msra.mxu0 0
      %5488 = vmatprep.subr.bf16.mxu0 0
      %5489 = vmatpush1.bf16.msra.mxu0 0
      %5490 = vmatprep.mubr.bf16.mxu0 0
      %5491 = vmatmul.mubr.bf16.gmra.mrb[0].mxu0 %v5327
      %v5492 = vpop.f32.mrb[0].mxu0
      %v5493 = vadd.f32 0.0, %v5492
      %v5494 = vpop.f32.mrb[0].mxu0
      %v5495 = vpop.f32.mrb[0].mxu0
      %v5496 = vpop.f32.mrb[0].mxu0
      %5497 = vdwg.mxu0
      %v5498 = vadd.f32 %v5314, %v5370
      %v5499 = vadd.f32 %v5315, %v5372
      %v5500 = vadd.f32 %v5316, %v5411
      %v5501 = vadd.f32 %v5317, %v5413
      %v5502 = vadd.f32 %v5318, %v5452
      %v5503 = vadd.f32 %v5319, %v5454
      %v5504 = vadd.f32 %v5320, %v5493
      %v5505 = vld [vmem:[%s2] sm:$0x3f]
      %5507 = vset.pattern.permute.xlu0 0
      %5508 = vperm.xlu0 %5507, %v5505
      %v5509 = vpop.permute.xlu0 %5508
      %v5511 = vadd.f32 %v5498, %v5509
      %v5512 = vadd.f32 %v5499, %v5509
      %v5513 = vadd.f32 %v5500, %v5509
      %v5514 = vadd.f32 %v5501, %v5509
      %v5515 = vadd.f32 %v5502, %v5509
      %v5516 = vadd.f32 %v5503, %v5509
      %v5517 = vadd.f32 %v5504, %v5509
      %v5518 = vmax.f32 %v5511, 0.0
      %v5519 = vmax.f32 %v5512, 0.0
      %v5520 = vmax.f32 %v5513, 0.0
      %v5521 = vmax.f32 %v5514, 0.0
      %v5522 = vmax.f32 %v5515, 0.0
      %v5523 = vmax.f32 %v5516, 0.0
      %v5524 = vmax.f32 %v5517, 0.0
      %v5525 = vpack.c.bf16 %v5518, %v5518
      %v5526 = vpack.c.bf16 %v5519, %v5519
      %v5527 = vpack.c.bf16 %v5520, %v5520
      %v5528 = vpack.c.bf16 %v5521, %v5521
      %v5529 = vpack.c.bf16 %v5522, %v5522
      %v5530 = vpack.c.bf16 %v5523, %v5523
      %v5531 = vpack.c.bf16 %v5524, %v5524
      %v5532 = vld [vmem:[%s3] sm:$0xff]
      %v5533 = vld [vmem:[%s3 + $0x8] sm:$0xff]
      %v5534 = vld [vmem:[%s3 + $0x10] sm:$0xff]
      %v5535 = vld [vmem:[%s3 + $0x18] sm:$0xff]
      %v5536 = vld [vmem:[%s3 + $0x20] sm:$0xff]
      %v5537 = vld [vmem:[%s3 + $0x28] sm:$0xff]
      %v5538 = vld [vmem:[%s3 + $0x30] sm:$0xff]
      %v5539 = vld [vmem:[%s3 + $0x38] sm:$0xff]
      %v5540 = vld [vmem:[%s3 + $0x40] sm:$0xff]
      %v5541 = vld [vmem:[%s3 + $0x48] sm:$0xff]
      %v5542 = vld [vmem:[%s3 + $0x50] sm:$0xff]
      %v5543 = vld [vmem:[%s3 + $0x58] sm:$0xff]
      %v5544 = vld [vmem:[%s3 + $0x60] sm:$0xff]
      %v5545 = vld [vmem:[%s3 + $0x68] sm:$0xff]
      %v5546 = vld [vmem:[%s3 + $0x70] sm:$0xff]
      %v5547 = vld [vmem:[%s3 + $0x78] sm:$0xff]
      %v5548 = vld [vmem:[%s3 + $0x80] sm:$0xff]
      %v5549 = vld [vmem:[%s3 + $0x88] sm:$0xff]
      %v5550 = vld [vmem:[%s3 + $0x90] sm:$0xff]
      %v5551 = vld [vmem:[%s3 + $0x98] sm:$0xff]
      %v5552 = vld [vmem:[%s3 + $0xa0] sm:$0xff]
      %v5553 = vld [vmem:[%s3 + $0xa8] sm:$0xff]
      %v5554 = vld [vmem:[%s3 + $0xb0] sm:$0xff]
      %v5555 = vld [vmem:[%s3 + $0xb8] sm:$0xff]
      %v5556 = vld [vmem:[%s3 + $0xc0] sm:$0xff]
      %v5557 = vld [vmem:[%s3 + $0xc8] sm:$0xff]
      %v5558 = vld [vmem:[%s3 + $0xd0] sm:$0xff]
      %v5559 = vld [vmem:[%s3 + $0xd8] sm:$0xff]
      %v5560 = vld [vmem:[%s3 + $0xe0] sm:$0xff]
      %v5561 = vld [vmem:[%s3 + $0xe8] sm:$0xff]
      %v5562 = vld [vmem:[%s3 + $0xf0] sm:$0xff]
      %v5563 = vld [vmem:[%s3 + $0xf8] sm:$0xff]
      %v5564 = vld [vmem:[%s3 + $0x100] sm:$0xff]
      %v5565 = vld [vmem:[%s3 + $0x108] sm:$0xff]
      %v5566 = vld [vmem:[%s3 + $0x110] sm:$0xff]
      %v5567 = vld [vmem:[%s3 + $0x118] sm:$0xff]
      %v5568 = vld [vmem:[%s3 + $0x120] sm:$0xff]
      %v5569 = vld [vmem:[%s3 + $0x128] sm:$0xff]
      %v5570 = vld [vmem:[%s3 + $0x130] sm:$0xff]
      %v5571 = vld [vmem:[%s3 + $0x138] sm:$0xff]
      %v5572 = vld [vmem:[%s3 + $0x140] sm:$0xff]
      %v5573 = vld [vmem:[%s3 + $0x148] sm:$0xff]
      %v5574 = vld [vmem:[%s3 + $0x150] sm:$0xff]
      %v5575 = vld [vmem:[%s3 + $0x158] sm:$0xff]
      %v5576 = vld [vmem:[%s3 + $0x160] sm:$0xff]
      %v5577 = vld [vmem:[%s3 + $0x168] sm:$0xff]
      %v5578 = vld [vmem:[%s3 + $0x170] sm:$0xff]
      %v5579 = vld [vmem:[%s3 + $0x178] sm:$0xff]
      %v5580 = vld [vmem:[%s3 + $0x180] sm:$0xff]
      %v5581 = vld [vmem:[%s3 + $0x188] sm:$0xff]
      %v5582 = vld [vmem:[%s3 + $0x190] sm:$0xff]
      %v5583 = vld [vmem:[%s3 + $0x198] sm:$0xff]
      %v5584 = vld [vmem:[%s3 + $0x1a0] sm:$0xff]
      %v5585 = vld [vmem:[%s3 + $0x1a8] sm:$0xff]
      %v5586 = vld [vmem:[%s3 + $0x1b0] sm:$0xff]
      %v5587 = vld [vmem:[%s3 + $0x1b8] sm:$0xff]
      %v5588 = vld [vmem:[%s3 + $0x1c0] sm:$0xff]
      %v5589 = vld [vmem:[%s3 + $0x1c8] sm:$0xff]
      %v5590 = vld [vmem:[%s3 + $0x1d0] sm:$0xff]
      %v5591 = vld [vmem:[%s3 + $0x1d8] sm:$0xff]
      %v5592 = vld [vmem:[%s3 + $0x1e0] sm:$0xff]
      %v5593 = vld [vmem:[%s3 + $0x1e8] sm:$0xff]
      %v5594 = vld [vmem:[%s3 + $0x1f0] sm:$0xff]
      %v5595 = vld [vmem:[%s3 + $0x1f8] sm:$0xff]
      %v5596 = vld [vmem:[%s3 + $0x200] sm:$0xff]
      %v5597 = vld [vmem:[%s3 + $0x208] sm:$0xff]
      %v5598 = vld [vmem:[%s3 + $0x210] sm:$0xff]
      %v5599 = vld [vmem:[%s3 + $0x218] sm:$0xff]
      %v5600 = vld [vmem:[%s3 + $0x220] sm:$0xff]
      %v5601 = vld [vmem:[%s3 + $0x228] sm:$0xff]
      %v5602 = vld [vmem:[%s3 + $0x230] sm:$0xff]
      %v5603 = vld [vmem:[%s3 + $0x238] sm:$0xff]
      %v5604 = vld [vmem:[%s3 + $0x240] sm:$0xff]
      %v5605 = vld [vmem:[%s3 + $0x248] sm:$0xff]
      %v5606 = vld [vmem:[%s3 + $0x250] sm:$0xff]
      %v5607 = vld [vmem:[%s3 + $0x258] sm:$0xff]
      %v5608 = vld [vmem:[%s3 + $0x260] sm:$0xff]
      %v5609 = vld [vmem:[%s3 + $0x268] sm:$0xff]
      %v5610 = vld [vmem:[%s3 + $0x270] sm:$0xff]
      %v5611 = vld [vmem:[%s3 + $0x278] sm:$0xff]
      %v5612 = vld [vmem:[%s3 + $0x280] sm:$0xff]
      %v5613 = vld [vmem:[%s3 + $0x288] sm:$0xff]
      %v5614 = vld [vmem:[%s3 + $0x290] sm:$0xff]
      %v5615 = vld [vmem:[%s3 + $0x298] sm:$0xff]
      %v5616 = vld [vmem:[%s3 + $0x2a0] sm:$0xff]
      %v5617 = vld [vmem:[%s3 + $0x2a8] sm:$0xff]
      %v5618 = vld [vmem:[%s3 + $0x2b0] sm:$0xff]
      %v5619 = vld [vmem:[%s3 + $0x2b8] sm:$0xff]
      %v5620 = vld [vmem:[%s3 + $0x2c0] sm:$0xff]
      %v5621 = vld [vmem:[%s3 + $0x2c8] sm:$0xff]
      %v5622 = vld [vmem:[%s3 + $0x2d0] sm:$0xff]
      %v5623 = vld [vmem:[%s3 + $0x2d8] sm:$0xff]
      %v5624 = vld [vmem:[%s3 + $0x2e0] sm:$0xff]
      %v5625 = vld [vmem:[%s3 + $0x2e8] sm:$0xff]
      %v5626 = vld [vmem:[%s3 + $0x2f0] sm:$0xff]
      %v5627 = vld [vmem:[%s3 + $0x2f8] sm:$0xff]
      %v5628 = vld [vmem:[%s3 + $0x300] sm:$0xff]
      %v5629 = vld [vmem:[%s3 + $0x308] sm:$0xff]
      %v5630 = vld [vmem:[%s3 + $0x310] sm:$0xff]
      %v5631 = vld [vmem:[%s3 + $0x318] sm:$0xff]
      %v5632 = vld [vmem:[%s3 + $0x320] sm:$0xff]
      %v5633 = vld [vmem:[%s3 + $0x328] sm:$0xff]
      %v5634 = vld [vmem:[%s3 + $0x330] sm:$0xff]
      %v5635 = vld [vmem:[%s3 + $0x338] sm:$0xff]
      %v5636 = vld [vmem:[%s3 + $0x340] sm:$0xff]
      %v5637 = vld [vmem:[%s3 + $0x348] sm:$0xff]
      %v5638 = vld [vmem:[%s3 + $0x350] sm:$0xff]
      %v5639 = vld [vmem:[%s3 + $0x358] sm:$0xff]
      %v5640 = vld [vmem:[%s3 + $0x360] sm:$0xff]
      %v5641 = vld [vmem:[%s3 + $0x368] sm:$0xff]
      %v5642 = vld [vmem:[%s3 + $0x370] sm:$0xff]
      %v5643 = vld [vmem:[%s3 + $0x378] sm:$0x33]
      %v5756 = vunpack.c.l.b16 %v5532
      %v5757 = vunpack.c.h.b16 %v5532
      %v5758 = vunpack.c.l.b16 %v5533
      %v5759 = vunpack.c.h.b16 %v5533
      %v5760 = vunpack.c.l.b16 %v5534
      %v5761 = vunpack.c.h.b16 %v5534
      %v5762 = vunpack.c.l.b16 %v5535
      %v5763 = vunpack.c.h.b16 %v5535
      %v5764 = vunpack.c.l.b16 %v5536
      %v5765 = vunpack.c.h.b16 %v5536
      %v5766 = vunpack.c.l.b16 %v5537
      %v5767 = vunpack.c.h.b16 %v5537
      %v5768 = vunpack.c.l.b16 %v5538
      %v5769 = vunpack.c.h.b16 %v5538
      %v5770 = vunpack.c.l.b16 %v5539
      %v5771 = vunpack.c.h.b16 %v5539
      %v5772 = vunpack.c.l.b16 %v5540
      %v5773 = vunpack.c.h.b16 %v5540
      %v5774 = vunpack.c.l.b16 %v5541
      %v5775 = vunpack.c.h.b16 %v5541
      %v5776 = vunpack.c.l.b16 %v5542
      %v5777 = vunpack.c.h.b16 %v5542
      %v5778 = vunpack.c.l.b16 %v5543
      %v5779 = vunpack.c.h.b16 %v5543
      %v5780 = vunpack.c.l.b16 %v5544
      %v5781 = vunpack.c.h.b16 %v5544
      %v5782 = vunpack.c.l.b16 %v5545
      %v5783 = vunpack.c.h.b16 %v5545
      %v5784 = vunpack.c.l.b16 %v5546
      %v5785 = vunpack.c.h.b16 %v5546
      %v5786 = vunpack.c.l.b16 %v5547
      %v5787 = vunpack.c.h.b16 %v5547
      %v5788 = vunpack.c.l.b16 %v5548
      %v5789 = vunpack.c.h.b16 %v5548
      %v5790 = vunpack.c.l.b16 %v5549
      %v5791 = vunpack.c.h.b16 %v5549
      %v5792 = vunpack.c.l.b16 %v5550
      %v5793 = vunpack.c.h.b16 %v5550
      %v5794 = vunpack.c.l.b16 %v5551
      %v5795 = vunpack.c.h.b16 %v5551
      %v5796 = vunpack.c.l.b16 %v5552
      %v5797 = vunpack.c.h.b16 %v5552
      %v5798 = vunpack.c.l.b16 %v5553
      %v5799 = vunpack.c.h.b16 %v5553
      %v5800 = vunpack.c.l.b16 %v5554
      %v5801 = vunpack.c.h.b16 %v5554
      %v5802 = vunpack.c.l.b16 %v5555
      %v5803 = vunpack.c.h.b16 %v5555
      %v5804 = vunpack.c.l.b16 %v5556
      %v5805 = vunpack.c.h.b16 %v5556
      %v5806 = vunpack.c.l.b16 %v5557
      %v5807 = vunpack.c.h.b16 %v5557
      %v5808 = vunpack.c.l.b16 %v5558
      %v5809 = vunpack.c.h.b16 %v5558
      %v5810 = vunpack.c.l.b16 %v5559
      %v5811 = vunpack.c.h.b16 %v5559
      %v5812 = vunpack.c.l.b16 %v5560
      %v5813 = vunpack.c.h.b16 %v5560
      %v5814 = vunpack.c.l.b16 %v5561
      %v5815 = vunpack.c.h.b16 %v5561
      %v5816 = vunpack.c.l.b16 %v5562
      %v5817 = vunpack.c.h.b16 %v5562
      %v5818 = vunpack.c.l.b16 %v5563
      %v5819 = vunpack.c.h.b16 %v5563
      %v5820 = vunpack.c.l.b16 %v5564
      %v5821 = vunpack.c.h.b16 %v5564
      %v5822 = vunpack.c.l.b16 %v5565
      %v5823 = vunpack.c.h.b16 %v5565
      %v5824 = vunpack.c.l.b16 %v5566
      %v5825 = vunpack.c.h.b16 %v5566
      %v5826 = vunpack.c.l.b16 %v5567
      %v5827 = vunpack.c.h.b16 %v5567
      %v5828 = vunpack.c.l.b16 %v5568
      %v5829 = vunpack.c.h.b16 %v5568
      %v5830 = vunpack.c.l.b16 %v5569
      %v5831 = vunpack.c.h.b16 %v5569
      %v5832 = vunpack.c.l.b16 %v5570
      %v5833 = vunpack.c.h.b16 %v5570
      %v5834 = vunpack.c.l.b16 %v5571
      %v5835 = vunpack.c.h.b16 %v5571
      %v5836 = vunpack.c.l.b16 %v5572
      %v5837 = vunpack.c.h.b16 %v5572
      %v5838 = vunpack.c.l.b16 %v5573
      %v5839 = vunpack.c.h.b16 %v5573
      %v5840 = vunpack.c.l.b16 %v5574
      %v5841 = vunpack.c.h.b16 %v5574
      %v5842 = vunpack.c.l.b16 %v5575
      %v5843 = vunpack.c.h.b16 %v5575
      %v5844 = vunpack.c.l.b16 %v5576
      %v5845 = vunpack.c.h.b16 %v5576
      %v5846 = vunpack.c.l.b16 %v5577
      %v5847 = vunpack.c.h.b16 %v5577
      %v5848 = vunpack.c.l.b16 %v5578
      %v5849 = vunpack.c.h.b16 %v5578
      %v5850 = vunpack.c.l.b16 %v5579
      %v5851 = vunpack.c.h.b16 %v5579
      %v5852 = vunpack.c.l.b16 %v5580
      %v5853 = vunpack.c.h.b16 %v5580
      %v5854 = vunpack.c.l.b16 %v5581
      %v5855 = vunpack.c.h.b16 %v5581
      %v5856 = vunpack.c.l.b16 %v5582
      %v5857 = vunpack.c.h.b16 %v5582
      %v5858 = vunpack.c.l.b16 %v5583
      %v5859 = vunpack.c.h.b16 %v5583
      %v5860 = vunpack.c.l.b16 %v5584
      %v5861 = vunpack.c.h.b16 %v5584
      %v5862 = vunpack.c.l.b16 %v5585
      %v5863 = vunpack.c.h.b16 %v5585
      %v5864 = vunpack.c.l.b16 %v5586
      %v5865 = vunpack.c.h.b16 %v5586
      %v5866 = vunpack.c.l.b16 %v5587
      %v5867 = vunpack.c.h.b16 %v5587
      %v5868 = vunpack.c.l.b16 %v5588
      %v5869 = vunpack.c.h.b16 %v5588
      %v5870 = vunpack.c.l.b16 %v5589
      %v5871 = vunpack.c.h.b16 %v5589
      %v5872 = vunpack.c.l.b16 %v5590
      %v5873 = vunpack.c.h.b16 %v5590
      %v5874 = vunpack.c.l.b16 %v5591
      %v5875 = vunpack.c.h.b16 %v5591
      %v5876 = vunpack.c.l.b16 %v5592
      %v5877 = vunpack.c.h.b16 %v5592
      %v5878 = vunpack.c.l.b16 %v5593
      %v5879 = vunpack.c.h.b16 %v5593
      %v5880 = vunpack.c.l.b16 %v5594
      %v5881 = vunpack.c.h.b16 %v5594
      %v5882 = vunpack.c.l.b16 %v5595
      %v5883 = vunpack.c.h.b16 %v5595
      %v5884 = vunpack.c.l.b16 %v5596
      %v5885 = vunpack.c.h.b16 %v5596
      %v5886 = vunpack.c.l.b16 %v5597
      %v5887 = vunpack.c.h.b16 %v5597
      %v5888 = vunpack.c.l.b16 %v5598
      %v5889 = vunpack.c.h.b16 %v5598
      %v5890 = vunpack.c.l.b16 %v5599
      %v5891 = vunpack.c.h.b16 %v5599
      %v5892 = vunpack.c.l.b16 %v5600
      %v5893 = vunpack.c.h.b16 %v5600
      %v5894 = vunpack.c.l.b16 %v5601
      %v5895 = vunpack.c.h.b16 %v5601
      %v5896 = vunpack.c.l.b16 %v5602
      %v5897 = vunpack.c.h.b16 %v5602
      %v5898 = vunpack.c.l.b16 %v5603
      %v5899 = vunpack.c.h.b16 %v5603
      %v5900 = vunpack.c.l.b16 %v5604
      %v5901 = vunpack.c.h.b16 %v5604
      %v5902 = vunpack.c.l.b16 %v5605
      %v5903 = vunpack.c.h.b16 %v5605
      %v5904 = vunpack.c.l.b16 %v5606
      %v5905 = vunpack.c.h.b16 %v5606
      %v5906 = vunpack.c.l.b16 %v5607
      %v5907 = vunpack.c.h.b16 %v5607
      %v5908 = vunpack.c.l.b16 %v5608
      %v5909 = vunpack.c.h.b16 %v5608
      %v5910 = vunpack.c.l.b16 %v5609
      %v5911 = vunpack.c.h.b16 %v5609
      %v5912 = vunpack.c.l.b16 %v5610
      %v5913 = vunpack.c.h.b16 %v5610
      %v5914 = vunpack.c.l.b16 %v5611
      %v5915 = vunpack.c.h.b16 %v5611
      %v5916 = vunpack.c.l.b16 %v5612
      %v5917 = vunpack.c.h.b16 %v5612
      %v5918 = vunpack.c.l.b16 %v5613
      %v5919 = vunpack.c.h.b16 %v5613
      %v5920 = vunpack.c.l.b16 %v5614
      %v5921 = vunpack.c.h.b16 %v5614
      %v5922 = vunpack.c.l.b16 %v5615
      %v5923 = vunpack.c.h.b16 %v5615
      %v5924 = vunpack.c.l.b16 %v5616
      %v5925 = vunpack.c.h.b16 %v5616
      %v5926 = vunpack.c.l.b16 %v5617
      %v5927 = vunpack.c.h.b16 %v5617
      %v5928 = vunpack.c.l.b16 %v5618
      %v5929 = vunpack.c.h.b16 %v5618
      %v5930 = vunpack.c.l.b16 %v5619
      %v5931 = vunpack.c.h.b16 %v5619
      %v5932 = vunpack.c.l.b16 %v5620
      %v5933 = vunpack.c.h.b16 %v5620
      %v5934 = vunpack.c.l.b16 %v5621
      %v5935 = vunpack.c.h.b16 %v5621
      %v5936 = vunpack.c.l.b16 %v5622
      %v5937 = vunpack.c.h.b16 %v5622
      %v5938 = vunpack.c.l.b16 %v5623
      %v5939 = vunpack.c.h.b16 %v5623
      %v5940 = vunpack.c.l.b16 %v5624
      %v5941 = vunpack.c.h.b16 %v5624
      %v5942 = vunpack.c.l.b16 %v5625
      %v5943 = vunpack.c.h.b16 %v5625
      %v5944 = vunpack.c.l.b16 %v5626
      %v5945 = vunpack.c.h.b16 %v5626
      %v5946 = vunpack.c.l.b16 %v5627
      %v5947 = vunpack.c.h.b16 %v5627
      %v5948 = vunpack.c.l.b16 %v5628
      %v5949 = vunpack.c.h.b16 %v5628
      %v5950 = vunpack.c.l.b16 %v5629
      %v5951 = vunpack.c.h.b16 %v5629
      %v5952 = vunpack.c.l.b16 %v5630
      %v5953 = vunpack.c.h.b16 %v5630
      %v5954 = vunpack.c.l.b16 %v5631
      %v5955 = vunpack.c.h.b16 %v5631
      %v5956 = vunpack.c.l.b16 %v5632
      %v5957 = vunpack.c.h.b16 %v5632
      %v5958 = vunpack.c.l.b16 %v5633
      %v5959 = vunpack.c.h.b16 %v5633
      %v5960 = vunpack.c.l.b16 %v5634
      %v5961 = vunpack.c.h.b16 %v5634
      %v5962 = vunpack.c.l.b16 %v5635
      %v5963 = vunpack.c.h.b16 %v5635
      %v5964 = vunpack.c.l.b16 %v5636
      %v5965 = vunpack.c.h.b16 %v5636
      %v5966 = vunpack.c.l.b16 %v5637
      %v5967 = vunpack.c.h.b16 %v5637
      %v5968 = vunpack.c.l.b16 %v5638
      %v5969 = vunpack.c.h.b16 %v5638
      %v5970 = vunpack.c.l.b16 %v5639
      %v5971 = vunpack.c.h.b16 %v5639
      %v5972 = vunpack.c.l.b16 %v5640
      %v5973 = vunpack.c.h.b16 %v5640
      %v5974 = vunpack.c.l.b16 %v5641
      %v5975 = vunpack.c.h.b16 %v5641
      %v5976 = vunpack.c.l.b16 %v5642
      %v5977 = vunpack.c.h.b16 %v5642
      %v5978 = vunpack.c.l.b16 %v5643
      %v5979 = vunpack.c.h.b16 %v5643
      %v5980 = vpack.c.b16 %v5758, %v5756
      %v5981 = vpack.c.b16 %v5759, %v5757
      %v5982 = vpack.c.b16 %v5762, %v5760
      %v5983 = vpack.c.b16 %v5763, %v5761
      %v5984 = vpack.c.b16 %v5766, %v5764
      %v5985 = vpack.c.b16 %v5767, %v5765
      %v5986 = vpack.c.b16 %v5770, %v5768
      %v5987 = vpack.c.b16 %v5771, %v5769
      %v5988 = vpack.c.b16 %v5774, %v5772
      %v5989 = vpack.c.b16 %v5775, %v5773
      %v5990 = vpack.c.b16 %v5778, %v5776
      %v5991 = vpack.c.b16 %v5779, %v5777
      %v5992 = vpack.c.b16 %v5782, %v5780
      %v5993 = vpack.c.b16 %v5783, %v5781
      %v5994 = vpack.c.b16 %v5786, %v5784
      %v5995 = vpack.c.b16 %v5787, %v5785
      %v5996 = vpack.c.b16 %v5790, %v5788
      %v5997 = vpack.c.b16 %v5791, %v5789
      %v5998 = vpack.c.b16 %v5794, %v5792
      %v5999 = vpack.c.b16 %v5795, %v5793
      %v6000 = vpack.c.b16 %v5798, %v5796
      %v6001 = vpack.c.b16 %v5799, %v5797
      %v6002 = vpack.c.b16 %v5802, %v5800
      %v6003 = vpack.c.b16 %v5803, %v5801
      %v6004 = vpack.c.b16 %v5806, %v5804
      %v6005 = vpack.c.b16 %v5807, %v5805
      %v6006 = vpack.c.b16 %v5810, %v5808
      %v6007 = vpack.c.b16 %v5811, %v5809
      %v6008 = vpack.c.b16 %v5814, %v5812
      %v6009 = vpack.c.b16 %v5815, %v5813
      %v6010 = vpack.c.b16 %v5818, %v5816
      %v6011 = vpack.c.b16 %v5819, %v5817
      %v6012 = vpack.c.b16 %v5822, %v5820
      %v6013 = vpack.c.b16 %v5823, %v5821
      %v6014 = vpack.c.b16 %v5826, %v5824
      %v6015 = vpack.c.b16 %v5827, %v5825
      %v6016 = vpack.c.b16 %v5830, %v5828
      %v6017 = vpack.c.b16 %v5831, %v5829
      %v6018 = vpack.c.b16 %v5834, %v5832
      %v6019 = vpack.c.b16 %v5835, %v5833
      %v6020 = vpack.c.b16 %v5838, %v5836
      %v6021 = vpack.c.b16 %v5839, %v5837
      %v6022 = vpack.c.b16 %v5842, %v5840
      %v6023 = vpack.c.b16 %v5843, %v5841
      %v6024 = vpack.c.b16 %v5846, %v5844
      %v6025 = vpack.c.b16 %v5847, %v5845
      %v6026 = vpack.c.b16 %v5850, %v5848
      %v6027 = vpack.c.b16 %v5851, %v5849
      %v6028 = vpack.c.b16 %v5854, %v5852
      %v6029 = vpack.c.b16 %v5855, %v5853
      %v6030 = vpack.c.b16 %v5858, %v5856
      %v6031 = vpack.c.b16 %v5859, %v5857
      %v6032 = vpack.c.b16 %v5862, %v5860
      %v6033 = vpack.c.b16 %v5863, %v5861
      %v6034 = vpack.c.b16 %v5866, %v5864
      %v6035 = vpack.c.b16 %v5867, %v5865
      %v6036 = vpack.c.b16 %v5870, %v5868
      %v6037 = vpack.c.b16 %v5871, %v5869
      %v6038 = vpack.c.b16 %v5874, %v5872
      %v6039 = vpack.c.b16 %v5875, %v5873
      %v6040 = vpack.c.b16 %v5878, %v5876
      %v6041 = vpack.c.b16 %v5879, %v5877
      %v6042 = vpack.c.b16 %v5882, %v5880
      %v6043 = vpack.c.b16 %v5883, %v5881
      %v6044 = vpack.c.b16 %v5886, %v5884
      %v6045 = vpack.c.b16 %v5887, %v5885
      %v6046 = vpack.c.b16 %v5890, %v5888
      %v6047 = vpack.c.b16 %v5891, %v5889
      %v6048 = vpack.c.b16 %v5894, %v5892
      %v6049 = vpack.c.b16 %v5895, %v5893
      %v6050 = vpack.c.b16 %v5898, %v5896
      %v6051 = vpack.c.b16 %v5899, %v5897
      %v6052 = vpack.c.b16 %v5902, %v5900
      %v6053 = vpack.c.b16 %v5903, %v5901
      %v6054 = vpack.c.b16 %v5906, %v5904
      %v6055 = vpack.c.b16 %v5907, %v5905
      %v6056 = vpack.c.b16 %v5910, %v5908
      %v6057 = vpack.c.b16 %v5911, %v5909
      %v6058 = vpack.c.b16 %v5914, %v5912
      %v6059 = vpack.c.b16 %v5915, %v5913
      %v6060 = vpack.c.b16 %v5918, %v5916
      %v6061 = vpack.c.b16 %v5919, %v5917
      %v6062 = vpack.c.b16 %v5922, %v5920
      %v6063 = vpack.c.b16 %v5923, %v5921
      %v6064 = vpack.c.b16 %v5926, %v5924
      %v6065 = vpack.c.b16 %v5927, %v5925
      %v6066 = vpack.c.b16 %v5930, %v5928
      %v6067 = vpack.c.b16 %v5931, %v5929
      %v6068 = vpack.c.b16 %v5934, %v5932
      %v6069 = vpack.c.b16 %v5935, %v5933
      %v6070 = vpack.c.b16 %v5938, %v5936
      %v6071 = vpack.c.b16 %v5939, %v5937
      %v6072 = vpack.c.b16 %v5942, %v5940
      %v6073 = vpack.c.b16 %v5943, %v5941
      %v6074 = vpack.c.b16 %v5946, %v5944
      %v6075 = vpack.c.b16 %v5947, %v5945
      %v6076 = vpack.c.b16 %v5950, %v5948
      %v6077 = vpack.c.b16 %v5951, %v5949
      %v6078 = vpack.c.b16 %v5954, %v5952
      %v6079 = vpack.c.b16 %v5955, %v5953
      %v6080 = vpack.c.b16 %v5958, %v5956
      %v6081 = vpack.c.b16 %v5959, %v5957
      %v6082 = vpack.c.b16 %v5962, %v5960
      %v6083 = vpack.c.b16 %v5963, %v5961
      %v6084 = vpack.c.b16 %v5966, %v5964
      %v6085 = vpack.c.b16 %v5967, %v5965
      %v6086 = vpack.c.b16 %v5970, %v5968
      %v6087 = vpack.c.b16 %v5971, %v5969
      %v6088 = vpack.c.b16 %v5974, %v5972
      %v6089 = vpack.c.b16 %v5975, %v5973
      %v6090 = vpack.c.b16 %v5978, %v5976
      %v6091 = vpack.c.b16 %v5979, %v5977
      %vm6202 = vcmask 1014784
      %v6204 = vsel %vm6202, %v5531, 0
      %vm6206 = vcmask 1045504
      %v6208 = vsel %vm6206, %v6090, 0
      %v6211 = vsel %vm6206, %v6091, 0
      %6213 = vmatprep.subr.bf16.mxu0 %v5981
      %6214 = vmatpush1.bf16.msra.mxu0 %v5980
      %6215 = vmatprep.subr.bf16.mxu0 %v5983
      %6216 = vmatpush1.bf16.msra.mxu0 %v5982
      %6217 = vmatprep.subr.bf16.mxu0 %v5985
      %6218 = vmatpush1.bf16.msra.mxu0 %v5984
      %6219 = vmatprep.subr.bf16.mxu0 %v5987
      %6220 = vmatpush1.bf16.msra.mxu0 %v5986
      %6221 = vmatprep.subr.bf16.mxu0 %v5989
      %6222 = vmatpush1.bf16.msra.mxu0 %v5988
      %6223 = vmatprep.subr.bf16.mxu0 %v5991
      %6224 = vmatpush1.bf16.msra.mxu0 %v5990
      %6225 = vmatprep.subr.bf16.mxu0 %v5993
      %6226 = vmatpush1.bf16.msra.mxu0 %v5992
      %6227 = vmatprep.subr.bf16.mxu0 %v5995
      %6228 = vmatpush1.bf16.msra.mxu0 %v5994
      %6229 = vmatprep.subr.bf16.mxu0 %v5997
      %6230 = vmatpush1.bf16.msra.mxu0 %v5996
      %6231 = vmatprep.subr.bf16.mxu0 %v5999
      %6232 = vmatpush1.bf16.msra.mxu0 %v5998
      %6233 = vmatprep.subr.bf16.mxu0 %v6001
      %6234 = vmatpush1.bf16.msra.mxu0 %v6000
      %6235 = vmatprep.subr.bf16.mxu0 %v6003
      %6236 = vmatpush1.bf16.msra.mxu0 %v6002
      %6237 = vmatprep.subr.bf16.mxu0 %v6005
      %6238 = vmatpush1.bf16.msra.mxu0 %v6004
      %6239 = vmatprep.subr.bf16.mxu0 %v6007
      %6240 = vmatpush1.bf16.msra.mxu0 %v6006
      %6241 = vmatprep.subr.bf16.mxu0 %v6009
      %6242 = vmatpush1.bf16.msra.mxu0 %v6008
      %6243 = vmatprep.subr.bf16.mxu0 %v6011
      %6244 = vmatpush1.bf16.msra.mxu0 %v6010
      %6245 = vmatprep.mubr.bf16.mxu0 %v5526
      %6246 = vmatmul.mubr.bf16.gmra.mrb[0].mxu0 %v5525
      %v6247 = vpop.f32.mrb[0].mxu0
      %v6248 = vadd.f32 0.0, %v6247
      %v6249 = vpop.f32.mrb[0].mxu0
      %v6250 = vadd.f32 0.0, %v6249
      %v6251 = vpop.f32.mrb[0].mxu0
      %v6252 = vpop.f32.mrb[0].mxu0
      %6253 = vdwg.mxu0
      %6254 = vmatprep.subr.bf16.mxu0 %v6013
      %6255 = vmatpush1.bf16.msra.mxu0 %v6012
      %6256 = vmatprep.subr.bf16.mxu0 %v6015
      %6257 = vmatpush1.bf16.msra.mxu0 %v6014
      %6258 = vmatprep.subr.bf16.mxu0 %v6017
      %6259 = vmatpush1.bf16.msra.mxu0 %v6016
      %6260 = vmatprep.subr.bf16.mxu0 %v6019
      %6261 = vmatpush1.bf16.msra.mxu0 %v6018
      %6262 = vmatprep.subr.bf16.mxu0 %v6021
      %6263 = vmatpush1.bf16.msra.mxu0 %v6020
      %6264 = vmatprep.subr.bf16.mxu0 %v6023
      %6265 = vmatpush1.bf16.msra.mxu0 %v6022
      %6266 = vmatprep.subr.bf16.mxu0 %v6025
      %6267 = vmatpush1.bf16.msra.mxu0 %v6024
      %6268 = vmatprep.subr.bf16.mxu0 %v6027
      %6269 = vmatpush1.bf16.msra.mxu0 %v6026
      %6270 = vmatprep.subr.bf16.mxu0 %v6029
      %6271 = vmatpush1.bf16.msra.mxu0 %v6028
      %6272 = vmatprep.subr.bf16.mxu0 %v6031
      %6273 = vmatpush1.bf16.msra.mxu0 %v6030
      %6274 = vmatprep.subr.bf16.mxu0 %v6033
      %6275 = vmatpush1.bf16.msra.mxu0 %v6032
      %6276 = vmatprep.subr.bf16.mxu0 %v6035
      %6277 = vmatpush1.bf16.msra.mxu0 %v6034
      %6278 = vmatprep.subr.bf16.mxu0 %v6037
      %6279 = vmatpush1.bf16.msra.mxu0 %v6036
      %6280 = vmatprep.subr.bf16.mxu0 %v6039
      %6281 = vmatpush1.bf16.msra.mxu0 %v6038
      %6282 = vmatprep.subr.bf16.mxu0 %v6041
      %6283 = vmatpush1.bf16.msra.mxu0 %v6040
      %6284 = vmatprep.subr.bf16.mxu0 %v6043
      %6285 = vmatpush1.bf16.msra.mxu0 %v6042
      %6286 = vmatprep.mubr.bf16.mxu0 %v5528
      %6287 = vmatmul.mubr.bf16.gmra.mrb[0].mxu0 %v5527
      %v6288 = vpop.f32.mrb[0].mxu0
      %v6289 = vadd.f32 %v6248, %v6288
      %v6290 = vpop.f32.mrb[0].mxu0
      %v6291 = vadd.f32 %v6250, %v6290
      %v6292 = vpop.f32.mrb[0].mxu0
      %v6293 = vpop.f32.mrb[0].mxu0
      %6294 = vdwg.mxu0
      %6295 = vmatprep.subr.bf16.mxu0 %v6045
      %6296 = vmatpush1.bf16.msra.mxu0 %v6044
      %6297 = vmatprep.subr.bf16.mxu0 %v6047
      %6298 = vmatpush1.bf16.msra.mxu0 %v6046
      %6299 = vmatprep.subr.bf16.mxu0 %v6049
      %6300 = vmatpush1.bf16.msra.mxu0 %v6048
      %6301 = vmatprep.subr.bf16.mxu0 %v6051
      %6302 = vmatpush1.bf16.msra.mxu0 %v6050
      %6303 = vmatprep.subr.bf16.mxu0 %v6053
      %6304 = vmatpush1.bf16.msra.mxu0 %v6052
      %6305 = vmatprep.subr.bf16.mxu0 %v6055
      %6306 = vmatpush1.bf16.msra.mxu0 %v6054
      %6307 = vmatprep.subr.bf16.mxu0 %v6057
      %6308 = vmatpush1.bf16.msra.mxu0 %v6056
      %6309 = vmatprep.subr.bf16.mxu0 %v6059
      %6310 = vmatpush1.bf16.msra.mxu0 %v6058
      %6311 = vmatprep.subr.bf16.mxu0 %v6061
      %6312 = vmatpush1.bf16.msra.mxu0 %v6060
      %6313 = vmatprep.subr.bf16.mxu0 %v6063
      %6314 = vmatpush1.bf16.msra.mxu0 %v6062
      %6315 = vmatprep.subr.bf16.mxu0 %v6065
      %6316 = vmatpush1.bf16.msra.mxu0 %v6064
      %6317 = vmatprep.subr.bf16.mxu0 %v6067
      %6318 = vmatpush1.bf16.msra.mxu0 %v6066
      %6319 = vmatprep.subr.bf16.mxu0 %v6069
      %6320 = vmatpush1.bf16.msra.mxu0 %v6068
      %6321 = vmatprep.subr.bf16.mxu0 %v6071
      %6322 = vmatpush1.bf16.msra.mxu0 %v6070
      %6323 = vmatprep.subr.bf16.mxu0 %v6073
      %6324 = vmatpush1.bf16.msra.mxu0 %v6072
      %6325 = vmatprep.subr.bf16.mxu0 %v6075
      %6326 = vmatpush1.bf16.msra.mxu0 %v6074
      %6327 = vmatprep.mubr.bf16.mxu0 %v5530
      %6328 = vmatmul.mubr.bf16.gmra.mrb[0].mxu0 %v5529
      %v6329 = vpop.f32.mrb[0].mxu0
      %v6330 = vadd.f32 %v6289, %v6329
      %v6331 = vpop.f32.mrb[0].mxu0
      %v6332 = vadd.f32 %v6291, %v6331
      %v6333 = vpop.f32.mrb[0].mxu0
      %v6334 = vpop.f32.mrb[0].mxu0
      %6335 = vdwg.mxu0
      %6336 = vmatprep.subr.bf16.mxu0 %v6077
      %6337 = vmatpush1.bf16.msra.mxu0 %v6076
      %6338 = vmatprep.subr.bf16.mxu0 %v6079
      %6339 = vmatpush1.bf16.msra.mxu0 %v6078
      %6340 = vmatprep.subr.bf16.mxu0 %v6081
      %6341 = vmatpush1.bf16.msra.mxu0 %v6080
      %6342 = vmatprep.subr.bf16.mxu0 %v6083
      %6343 = vmatpush1.bf16.msra.mxu0 %v6082
      %6344 = vmatprep.subr.bf16.mxu0 %v6085
      %6345 = vmatpush1.bf16.msra.mxu0 %v6084
      %6346 = vmatprep.subr.bf16.mxu0 %v6087
      %6347 = vmatpush1.bf16.msra.mxu0 %v6086
      %6348 = vmatprep.subr.bf16.mxu0 %v6089
      %6349 = vmatpush1.bf16.msra.mxu0 %v6088
      %6350 = vmatprep.subr.bf16.mxu0 %v6211
      %6351 = vmatpush1.bf16.msra.mxu0 %v6208
      %6352 = vmatprep.subr.bf16.mxu0 0
      %6353 = vmatpush1.bf16.msra.mxu0 0
      %6354 = vmatprep.subr.bf16.mxu0 0
      %6355 = vmatpush1.bf16.msra.mxu0 0
      %6356 = vmatprep.subr.bf16.mxu0 0
      %6357 = vmatpush1.bf16.msra.mxu0 0
      %6358 = vmatprep.subr.bf16.mxu0 0
      %6359 = vmatpush1.bf16.msra.mxu0 0
      %6360 = vmatprep.subr.bf16.mxu0 0
      %6361 = vmatpush1.bf16.msra.mxu0 0
      %6362 = vmatprep.subr.bf16.mxu0 0
      %6363 = vmatpush1.bf16.msra.mxu0 0
      %6364 = vmatprep.subr.bf16.mxu0 0
      %6365 = vmatpush1.bf16.msra.mxu0 0
      %6366 = vmatprep.subr.bf16.mxu0 0
      %6367 = vmatpush1.bf16.msra.mxu0 0
      %6368 = vmatprep.mubr.bf16.mxu0 0
      %6369 = vmatmul.mubr.bf16.gmra.mrb[0].mxu0 %v6204
      %v6370 = vpop.f32.mrb[0].mxu0
      %v6371 = vadd.f32 %v6330, %v6370
      %v6372 = vpop.f32.mrb[0].mxu0
      %v6373 = vadd.f32 %v6332, %v6372
      %v6374 = vpop.f32.mrb[0].mxu0
      %v6375 = vpop.f32.mrb[0].mxu0
      %6376 = vdwg.mxu0
      %s6377 = scalar_lea.vmem %s3, 896
      %v6378 = vld [vmem:[%s6377] sm:$0xff]
      %v6379 = vld [vmem:[%s6377 + $0x8] sm:$0xff]
      %v6380 = vld [vmem:[%s6377 + $0x10] sm:$0xff]
      %v6381 = vld [vmem:[%s6377 + $0x18] sm:$0xff]
      %v6382 = vld [vmem:[%s6377 + $0x20] sm:$0xff]
      %v6383 = vld [vmem:[%s6377 + $0x28] sm:$0xff]
      %v6384 = vld [vmem:[%s6377 + $0x30] sm:$0xff]
      %v6385 = vld [vmem:[%s6377 + $0x38] sm:$0xff]
      %v6386 = vld [vmem:[%s6377 + $0x40] sm:$0xff]
      %v6387 = vld [vmem:[%s6377 + $0x48] sm:$0xff]
      %v6388 = vld [vmem:[%s6377 + $0x50] sm:$0xff]
      %v6389 = vld [vmem:[%s6377 + $0x58] sm:$0xff]
      %v6390 = vld [vmem:[%s6377 + $0x60] sm:$0xff]
      %v6391 = vld [vmem:[%s6377 + $0x68] sm:$0xff]
      %v6392 = vld [vmem:[%s6377 + $0x70] sm:$0xff]
      %v6393 = vld [vmem:[%s6377 + $0x78] sm:$0xff]
      %v6394 = vld [vmem:[%s6377 + $0x80] sm:$0xff]
      %v6395 = vld [vmem:[%s6377 + $0x88] sm:$0xff]
      %v6396 = vld [vmem:[%s6377 + $0x90] sm:$0xff]
      %v6397 = vld [vmem:[%s6377 + $0x98] sm:$0xff]
      %v6398 = vld [vmem:[%s6377 + $0xa0] sm:$0xff]
      %v6399 = vld [vmem:[%s6377 + $0xa8] sm:$0xff]
      %v6400 = vld [vmem:[%s6377 + $0xb0] sm:$0xff]
      %v6401 = vld [vmem:[%s6377 + $0xb8] sm:$0xff]
      %v6402 = vld [vmem:[%s6377 + $0xc0] sm:$0xff]
      %v6403 = vld [vmem:[%s6377 + $0xc8] sm:$0xff]
      %v6404 = vld [vmem:[%s6377 + $0xd0] sm:$0xff]
      %v6405 = vld [vmem:[%s6377 + $0xd8] sm:$0xff]
      %v6406 = vld [vmem:[%s6377 + $0xe0] sm:$0xff]
      %v6407 = vld [vmem:[%s6377 + $0xe8] sm:$0xff]
      %v6408 = vld [vmem:[%s6377 + $0xf0] sm:$0xff]
      %v6409 = vld [vmem:[%s6377 + $0xf8] sm:$0xff]
      %v6410 = vld [vmem:[%s6377 + $0x100] sm:$0xff]
      %v6411 = vld [vmem:[%s6377 + $0x108] sm:$0xff]
      %v6412 = vld [vmem:[%s6377 + $0x110] sm:$0xff]
      %v6413 = vld [vmem:[%s6377 + $0x118] sm:$0xff]
      %v6414 = vld [vmem:[%s6377 + $0x120] sm:$0xff]
      %v6415 = vld [vmem:[%s6377 + $0x128] sm:$0xff]
      %v6416 = vld [vmem:[%s6377 + $0x130] sm:$0xff]
      %v6417 = vld [vmem:[%s6377 + $0x138] sm:$0xff]
      %v6418 = vld [vmem:[%s6377 + $0x140] sm:$0xff]
      %v6419 = vld [vmem:[%s6377 + $0x148] sm:$0xff]
      %v6420 = vld [vmem:[%s6377 + $0x150] sm:$0xff]
      %v6421 = vld [vmem:[%s6377 + $0x158] sm:$0xff]
      %v6422 = vld [vmem:[%s6377 + $0x160] sm:$0xff]
      %v6423 = vld [vmem:[%s6377 + $0x168] sm:$0xff]
      %v6424 = vld [vmem:[%s6377 + $0x170] sm:$0xff]
      %v6425 = vld [vmem:[%s6377 + $0x178] sm:$0xff]
      %v6426 = vld [vmem:[%s6377 + $0x180] sm:$0xff]
      %v6427 = vld [vmem:[%s6377 + $0x188] sm:$0xff]
      %v6428 = vld [vmem:[%s6377 + $0x190] sm:$0xff]
      %v6429 = vld [vmem:[%s6377 + $0x198] sm:$0xff]
      %v6430 = vld [vmem:[%s6377 + $0x1a0] sm:$0xff]
      %v6431 = vld [vmem:[%s6377 + $0x1a8] sm:$0xff]
      %v6432 = vld [vmem:[%s6377 + $0x1b0] sm:$0xff]
      %v6433 = vld [vmem:[%s6377 + $0x1b8] sm:$0xff]
      %v6434 = vld [vmem:[%s6377 + $0x1c0] sm:$0xff]
      %v6435 = vld [vmem:[%s6377 + $0x1c8] sm:$0xff]
      %v6436 = vld [vmem:[%s6377 + $0x1d0] sm:$0xff]
      %v6437 = vld [vmem:[%s6377 + $0x1d8] sm:$0xff]
      %v6438 = vld [vmem:[%s6377 + $0x1e0] sm:$0xff]
      %v6439 = vld [vmem:[%s6377 + $0x1e8] sm:$0xff]
      %v6440 = vld [vmem:[%s6377 + $0x1f0] sm:$0xff]
      %v6441 = vld [vmem:[%s6377 + $0x1f8] sm:$0xff]
      %v6442 = vld [vmem:[%s6377 + $0x200] sm:$0xff]
      %v6443 = vld [vmem:[%s6377 + $0x208] sm:$0xff]
      %v6444 = vld [vmem:[%s6377 + $0x210] sm:$0xff]
      %v6445 = vld [vmem:[%s6377 + $0x218] sm:$0xff]
      %v6446 = vld [vmem:[%s6377 + $0x220] sm:$0xff]
      %v6447 = vld [vmem:[%s6377 + $0x228] sm:$0xff]
      %v6448 = vld [vmem:[%s6377 + $0x230] sm:$0xff]
      %v6449 = vld [vmem:[%s6377 + $0x238] sm:$0xff]
      %v6450 = vld [vmem:[%s6377 + $0x240] sm:$0xff]
      %v6451 = vld [vmem:[%s6377 + $0x248] sm:$0xff]
      %v6452 = vld [vmem:[%s6377 + $0x250] sm:$0xff]
      %v6453 = vld [vmem:[%s6377 + $0x258] sm:$0xff]
      %v6454 = vld [vmem:[%s6377 + $0x260] sm:$0xff]
      %v6455 = vld [vmem:[%s6377 + $0x268] sm:$0xff]
      %v6456 = vld [vmem:[%s6377 + $0x270] sm:$0xff]
      %v6457 = vld [vmem:[%s6377 + $0x278] sm:$0xff]
      %v6458 = vld [vmem:[%s6377 + $0x280] sm:$0xff]
      %v6459 = vld [vmem:[%s6377 + $0x288] sm:$0xff]
      %v6460 = vld [vmem:[%s6377 + $0x290] sm:$0xff]
      %v6461 = vld [vmem:[%s6377 + $0x298] sm:$0xff]
      %v6462 = vld [vmem:[%s6377 + $0x2a0] sm:$0xff]
      %v6463 = vld [vmem:[%s6377 + $0x2a8] sm:$0xff]
      %v6464 = vld [vmem:[%s6377 + $0x2b0] sm:$0xff]
      %v6465 = vld [vmem:[%s6377 + $0x2b8] sm:$0xff]
      %v6466 = vld [vmem:[%s6377 + $0x2c0] sm:$0xff]
      %v6467 = vld [vmem:[%s6377 + $0x2c8] sm:$0xff]
      %v6468 = vld [vmem:[%s6377 + $0x2d0] sm:$0xff]
      %v6469 = vld [vmem:[%s6377 + $0x2d8] sm:$0xff]
      %v6470 = vld [vmem:[%s6377 + $0x2e0] sm:$0xff]
      %v6471 = vld [vmem:[%s6377 + $0x2e8] sm:$0xff]
      %v6472 = vld [vmem:[%s6377 + $0x2f0] sm:$0xff]
      %v6473 = vld [vmem:[%s6377 + $0x2f8] sm:$0xff]
      %v6474 = vld [vmem:[%s6377 + $0x300] sm:$0xff]
      %v6475 = vld [vmem:[%s6377 + $0x308] sm:$0xff]
      %v6476 = vld [vmem:[%s6377 + $0x310] sm:$0xff]
      %v6477 = vld [vmem:[%s6377 + $0x318] sm:$0xff]
      %v6478 = vld [vmem:[%s6377 + $0x320] sm:$0xff]
      %v6479 = vld [vmem:[%s6377 + $0x328] sm:$0xff]
      %v6480 = vld [vmem:[%s6377 + $0x330] sm:$0xff]
      %v6481 = vld [vmem:[%s6377 + $0x338] sm:$0xff]
      %v6482 = vld [vmem:[%s6377 + $0x340] sm:$0xff]
      %v6483 = vld [vmem:[%s6377 + $0x348] sm:$0xff]
      %v6484 = vld [vmem:[%s6377 + $0x350] sm:$0xff]
      %v6485 = vld [vmem:[%s6377 + $0x358] sm:$0xff]
      %v6486 = vld [vmem:[%s6377 + $0x360] sm:$0xff]
      %v6487 = vld [vmem:[%s6377 + $0x368] sm:$0xff]
      %v6488 = vld [vmem:[%s6377 + $0x370] sm:$0xff]
      %v6489 = vld [vmem:[%s6377 + $0x378] sm:$0x33]
      %v6602 = vunpack.c.l.b16 %v6378
      %v6603 = vunpack.c.h.b16 %v6378
      %v6604 = vunpack.c.l.b16 %v6379
      %v6605 = vunpack.c.h.b16 %v6379
      %v6606 = vunpack.c.l.b16 %v6380
      %v6607 = vunpack.c.h.b16 %v6380
      %v6608 = vunpack.c.l.b16 %v6381
      %v6609 = vunpack.c.h.b16 %v6381
      %v6610 = vunpack.c.l.b16 %v6382
      %v6611 = vunpack.c.h.b16 %v6382
      %v6612 = vunpack.c.l.b16 %v6383
      %v6613 = vunpack.c.h.b16 %v6383
      %v6614 = vunpack.c.l.b16 %v6384
      %v6615 = vunpack.c.h.b16 %v6384
      %v6616 = vunpack.c.l.b16 %v6385
      %v6617 = vunpack.c.h.b16 %v6385
      %v6618 = vunpack.c.l.b16 %v6386
      %v6619 = vunpack.c.h.b16 %v6386
      %v6620 = vunpack.c.l.b16 %v6387
      %v6621 = vunpack.c.h.b16 %v6387
      %v6622 = vunpack.c.l.b16 %v6388
      %v6623 = vunpack.c.h.b16 %v6388
      %v6624 = vunpack.c.l.b16 %v6389
      %v6625 = vunpack.c.h.b16 %v6389
      %v6626 = vunpack.c.l.b16 %v6390
      %v6627 = vunpack.c.h.b16 %v6390
      %v6628 = vunpack.c.l.b16 %v6391
      %v6629 = vunpack.c.h.b16 %v6391
      %v6630 = vunpack.c.l.b16 %v6392
      %v6631 = vunpack.c.h.b16 %v6392
      %v6632 = vunpack.c.l.b16 %v6393
      %v6633 = vunpack.c.h.b16 %v6393
      %v6634 = vunpack.c.l.b16 %v6394
      %v6635 = vunpack.c.h.b16 %v6394
      %v6636 = vunpack.c.l.b16 %v6395
      %v6637 = vunpack.c.h.b16 %v6395
      %v6638 = vunpack.c.l.b16 %v6396
      %v6639 = vunpack.c.h.b16 %v6396
      %v6640 = vunpack.c.l.b16 %v6397
      %v6641 = vunpack.c.h.b16 %v6397
      %v6642 = vunpack.c.l.b16 %v6398
      %v6643 = vunpack.c.h.b16 %v6398
      %v6644 = vunpack.c.l.b16 %v6399
      %v6645 = vunpack.c.h.b16 %v6399
      %v6646 = vunpack.c.l.b16 %v6400
      %v6647 = vunpack.c.h.b16 %v6400
      %v6648 = vunpack.c.l.b16 %v6401
      %v6649 = vunpack.c.h.b16 %v6401
      %v6650 = vunpack.c.l.b16 %v6402
      %v6651 = vunpack.c.h.b16 %v6402
      %v6652 = vunpack.c.l.b16 %v6403
      %v6653 = vunpack.c.h.b16 %v6403
      %v6654 = vunpack.c.l.b16 %v6404
      %v6655 = vunpack.c.h.b16 %v6404
      %v6656 = vunpack.c.l.b16 %v6405
      %v6657 = vunpack.c.h.b16 %v6405
      %v6658 = vunpack.c.l.b16 %v6406
      %v6659 = vunpack.c.h.b16 %v6406
      %v6660 = vunpack.c.l.b16 %v6407
      %v6661 = vunpack.c.h.b16 %v6407
      %v6662 = vunpack.c.l.b16 %v6408
      %v6663 = vunpack.c.h.b16 %v6408
      %v6664 = vunpack.c.l.b16 %v6409
      %v6665 = vunpack.c.h.b16 %v6409
      %v6666 = vunpack.c.l.b16 %v6410
      %v6667 = vunpack.c.h.b16 %v6410
      %v6668 = vunpack.c.l.b16 %v6411
      %v6669 = vunpack.c.h.b16 %v6411
      %v6670 = vunpack.c.l.b16 %v6412
      %v6671 = vunpack.c.h.b16 %v6412
      %v6672 = vunpack.c.l.b16 %v6413
      %v6673 = vunpack.c.h.b16 %v6413
      %v6674 = vunpack.c.l.b16 %v6414
      %v6675 = vunpack.c.h.b16 %v6414
      %v6676 = vunpack.c.l.b16 %v6415
      %v6677 = vunpack.c.h.b16 %v6415
      %v6678 = vunpack.c.l.b16 %v6416
      %v6679 = vunpack.c.h.b16 %v6416
      %v6680 = vunpack.c.l.b16 %v6417
      %v6681 = vunpack.c.h.b16 %v6417
      %v6682 = vunpack.c.l.b16 %v6418
      %v6683 = vunpack.c.h.b16 %v6418
      %v6684 = vunpack.c.l.b16 %v6419
      %v6685 = vunpack.c.h.b16 %v6419
      %v6686 = vunpack.c.l.b16 %v6420
      %v6687 = vunpack.c.h.b16 %v6420
      %v6688 = vunpack.c.l.b16 %v6421
      %v6689 = vunpack.c.h.b16 %v6421
      %v6690 = vunpack.c.l.b16 %v6422
      %v6691 = vunpack.c.h.b16 %v6422
      %v6692 = vunpack.c.l.b16 %v6423
      %v6693 = vunpack.c.h.b16 %v6423
      %v6694 = vunpack.c.l.b16 %v6424
      %v6695 = vunpack.c.h.b16 %v6424
      %v6696 = vunpack.c.l.b16 %v6425
      %v6697 = vunpack.c.h.b16 %v6425
      %v6698 = vunpack.c.l.b16 %v6426
      %v6699 = vunpack.c.h.b16 %v6426
      %v6700 = vunpack.c.l.b16 %v6427
      %v6701 = vunpack.c.h.b16 %v6427
      %v6702 = vunpack.c.l.b16 %v6428
      %v6703 = vunpack.c.h.b16 %v6428
      %v6704 = vunpack.c.l.b16 %v6429
      %v6705 = vunpack.c.h.b16 %v6429
      %v6706 = vunpack.c.l.b16 %v6430
      %v6707 = vunpack.c.h.b16 %v6430
      %v6708 = vunpack.c.l.b16 %v6431
      %v6709 = vunpack.c.h.b16 %v6431
      %v6710 = vunpack.c.l.b16 %v6432
      %v6711 = vunpack.c.h.b16 %v6432
      %v6712 = vunpack.c.l.b16 %v6433
      %v6713 = vunpack.c.h.b16 %v6433
      %v6714 = vunpack.c.l.b16 %v6434
      %v6715 = vunpack.c.h.b16 %v6434
      %v6716 = vunpack.c.l.b16 %v6435
      %v6717 = vunpack.c.h.b16 %v6435
      %v6718 = vunpack.c.l.b16 %v6436
      %v6719 = vunpack.c.h.b16 %v6436
      %v6720 = vunpack.c.l.b16 %v6437
      %v6721 = vunpack.c.h.b16 %v6437
      %v6722 = vunpack.c.l.b16 %v6438
      %v6723 = vunpack.c.h.b16 %v6438
      %v6724 = vunpack.c.l.b16 %v6439
      %v6725 = vunpack.c.h.b16 %v6439
      %v6726 = vunpack.c.l.b16 %v6440
      %v6727 = vunpack.c.h.b16 %v6440
      %v6728 = vunpack.c.l.b16 %v6441
      %v6729 = vunpack.c.h.b16 %v6441
      %v6730 = vunpack.c.l.b16 %v6442
      %v6731 = vunpack.c.h.b16 %v6442
      %v6732 = vunpack.c.l.b16 %v6443
      %v6733 = vunpack.c.h.b16 %v6443
      %v6734 = vunpack.c.l.b16 %v6444
      %v6735 = vunpack.c.h.b16 %v6444
      %v6736 = vunpack.c.l.b16 %v6445
      %v6737 = vunpack.c.h.b16 %v6445
      %v6738 = vunpack.c.l.b16 %v6446
      %v6739 = vunpack.c.h.b16 %v6446
      %v6740 = vunpack.c.l.b16 %v6447
      %v6741 = vunpack.c.h.b16 %v6447
      %v6742 = vunpack.c.l.b16 %v6448
      %v6743 = vunpack.c.h.b16 %v6448
      %v6744 = vunpack.c.l.b16 %v6449
      %v6745 = vunpack.c.h.b16 %v6449
      %v6746 = vunpack.c.l.b16 %v6450
      %v6747 = vunpack.c.h.b16 %v6450
      %v6748 = vunpack.c.l.b16 %v6451
      %v6749 = vunpack.c.h.b16 %v6451
      %v6750 = vunpack.c.l.b16 %v6452
      %v6751 = vunpack.c.h.b16 %v6452
      %v6752 = vunpack.c.l.b16 %v6453
      %v6753 = vunpack.c.h.b16 %v6453
      %v6754 = vunpack.c.l.b16 %v6454
      %v6755 = vunpack.c.h.b16 %v6454
      %v6756 = vunpack.c.l.b16 %v6455
      %v6757 = vunpack.c.h.b16 %v6455
      %v6758 = vunpack.c.l.b16 %v6456
      %v6759 = vunpack.c.h.b16 %v6456
      %v6760 = vunpack.c.l.b16 %v6457
      %v6761 = vunpack.c.h.b16 %v6457
      %v6762 = vunpack.c.l.b16 %v6458
      %v6763 = vunpack.c.h.b16 %v6458
      %v6764 = vunpack.c.l.b16 %v6459
      %v6765 = vunpack.c.h.b16 %v6459
      %v6766 = vunpack.c.l.b16 %v6460
      %v6767 = vunpack.c.h.b16 %v6460
      %v6768 = vunpack.c.l.b16 %v6461
      %v6769 = vunpack.c.h.b16 %v6461
      %v6770 = vunpack.c.l.b16 %v6462
      %v6771 = vunpack.c.h.b16 %v6462
      %v6772 = vunpack.c.l.b16 %v6463
      %v6773 = vunpack.c.h.b16 %v6463
      %v6774 = vunpack.c.l.b16 %v6464
      %v6775 = vunpack.c.h.b16 %v6464
      %v6776 = vunpack.c.l.b16 %v6465
      %v6777 = vunpack.c.h.b16 %v6465
      %v6778 = vunpack.c.l.b16 %v6466
      %v6779 = vunpack.c.h.b16 %v6466
      %v6780 = vunpack.c.l.b16 %v6467
      %v6781 = vunpack.c.h.b16 %v6467
      %v6782 = vunpack.c.l.b16 %v6468
      %v6783 = vunpack.c.h.b16 %v6468
      %v6784 = vunpack.c.l.b16 %v6469
      %v6785 = vunpack.c.h.b16 %v6469
      %v6786 = vunpack.c.l.b16 %v6470
      %v6787 = vunpack.c.h.b16 %v6470
      %v6788 = vunpack.c.l.b16 %v6471
      %v6789 = vunpack.c.h.b16 %v6471
      %v6790 = vunpack.c.l.b16 %v6472
      %v6791 = vunpack.c.h.b16 %v6472
      %v6792 = vunpack.c.l.b16 %v6473
      %v6793 = vunpack.c.h.b16 %v6473
      %v6794 = vunpack.c.l.b16 %v6474
      %v6795 = vunpack.c.h.b16 %v6474
      %v6796 = vunpack.c.l.b16 %v6475
      %v6797 = vunpack.c.h.b16 %v6475
      %v6798 = vunpack.c.l.b16 %v6476
      %v6799 = vunpack.c.h.b16 %v6476
      %v6800 = vunpack.c.l.b16 %v6477
      %v6801 = vunpack.c.h.b16 %v6477
      %v6802 = vunpack.c.l.b16 %v6478
      %v6803 = vunpack.c.h.b16 %v6478
      %v6804 = vunpack.c.l.b16 %v6479
      %v6805 = vunpack.c.h.b16 %v6479
      %v6806 = vunpack.c.l.b16 %v6480
      %v6807 = vunpack.c.h.b16 %v6480
      %v6808 = vunpack.c.l.b16 %v6481
      %v6809 = vunpack.c.h.b16 %v6481
      %v6810 = vunpack.c.l.b16 %v6482
      %v6811 = vunpack.c.h.b16 %v6482
      %v6812 = vunpack.c.l.b16 %v6483
      %v6813 = vunpack.c.h.b16 %v6483
      %v6814 = vunpack.c.l.b16 %v6484
      %v6815 = vunpack.c.h.b16 %v6484
      %v6816 = vunpack.c.l.b16 %v6485
      %v6817 = vunpack.c.h.b16 %v6485
      %v6818 = vunpack.c.l.b16 %v6486
      %v6819 = vunpack.c.h.b16 %v6486
      %v6820 = vunpack.c.l.b16 %v6487
      %v6821 = vunpack.c.h.b16 %v6487
      %v6822 = vunpack.c.l.b16 %v6488
      %v6823 = vunpack.c.h.b16 %v6488
      %v6824 = vunpack.c.l.b16 %v6489
      %v6825 = vunpack.c.h.b16 %v6489
      %v6826 = vpack.c.b16 %v6604, %v6602
      %v6827 = vpack.c.b16 %v6605, %v6603
      %v6828 = vpack.c.b16 %v6608, %v6606
      %v6829 = vpack.c.b16 %v6609, %v6607
      %v6830 = vpack.c.b16 %v6612, %v6610
      %v6831 = vpack.c.b16 %v6613, %v6611
      %v6832 = vpack.c.b16 %v6616, %v6614
      %v6833 = vpack.c.b16 %v6617, %v6615
      %v6834 = vpack.c.b16 %v6620, %v6618
      %v6835 = vpack.c.b16 %v6621, %v6619
      %v6836 = vpack.c.b16 %v6624, %v6622
      %v6837 = vpack.c.b16 %v6625, %v6623
      %v6838 = vpack.c.b16 %v6628, %v6626
      %v6839 = vpack.c.b16 %v6629, %v6627
      %v6840 = vpack.c.b16 %v6632, %v6630
      %v6841 = vpack.c.b16 %v6633, %v6631
      %v6842 = vpack.c.b16 %v6636, %v6634
      %v6843 = vpack.c.b16 %v6637, %v6635
      %v6844 = vpack.c.b16 %v6640, %v6638
      %v6845 = vpack.c.b16 %v6641, %v6639
      %v6846 = vpack.c.b16 %v6644, %v6642
      %v6847 = vpack.c.b16 %v6645, %v6643
      %v6848 = vpack.c.b16 %v6648, %v6646
      %v6849 = vpack.c.b16 %v6649, %v6647
      %v6850 = vpack.c.b16 %v6652, %v6650
      %v6851 = vpack.c.b16 %v6653, %v6651
      %v6852 = vpack.c.b16 %v6656, %v6654
      %v6853 = vpack.c.b16 %v6657, %v6655
      %v6854 = vpack.c.b16 %v6660, %v6658
      %v6855 = vpack.c.b16 %v6661, %v6659
      %v6856 = vpack.c.b16 %v6664, %v6662
      %v6857 = vpack.c.b16 %v6665, %v6663
      %v6858 = vpack.c.b16 %v6668, %v6666
      %v6859 = vpack.c.b16 %v6669, %v6667
      %v6860 = vpack.c.b16 %v6672, %v6670
      %v6861 = vpack.c.b16 %v6673, %v6671
      %v6862 = vpack.c.b16 %v6676, %v6674
      %v6863 = vpack.c.b16 %v6677, %v6675
      %v6864 = vpack.c.b16 %v6680, %v6678
      %v6865 = vpack.c.b16 %v6681, %v6679
      %v6866 = vpack.c.b16 %v6684, %v6682
      %v6867 = vpack.c.b16 %v6685, %v6683
      %v6868 = vpack.c.b16 %v6688, %v6686
      %v6869 = vpack.c.b16 %v6689, %v6687
      %v6870 = vpack.c.b16 %v6692, %v6690
      %v6871 = vpack.c.b16 %v6693, %v6691
      %v6872 = vpack.c.b16 %v6696, %v6694
      %v6873 = vpack.c.b16 %v6697, %v6695
      %v6874 = vpack.c.b16 %v6700, %v6698
      %v6875 = vpack.c.b16 %v6701, %v6699
      %v6876 = vpack.c.b16 %v6704, %v6702
      %v6877 = vpack.c.b16 %v6705, %v6703
      %v6878 = vpack.c.b16 %v6708, %v6706
      %v6879 = vpack.c.b16 %v6709, %v6707
      %v6880 = vpack.c.b16 %v6712, %v6710
      %v6881 = vpack.c.b16 %v6713, %v6711
      %v6882 = vpack.c.b16 %v6716, %v6714
      %v6883 = vpack.c.b16 %v6717, %v6715
      %v6884 = vpack.c.b16 %v6720, %v6718
      %v6885 = vpack.c.b16 %v6721, %v6719
      %v6886 = vpack.c.b16 %v6724, %v6722
      %v6887 = vpack.c.b16 %v6725, %v6723
      %v6888 = vpack.c.b16 %v6728, %v6726
      %v6889 = vpack.c.b16 %v6729, %v6727
      %v6890 = vpack.c.b16 %v6732, %v6730
      %v6891 = vpack.c.b16 %v6733, %v6731
      %v6892 = vpack.c.b16 %v6736, %v6734
      %v6893 = vpack.c.b16 %v6737, %v6735
      %v6894 = vpack.c.b16 %v6740, %v6738
      %v6895 = vpack.c.b16 %v6741, %v6739
      %v6896 = vpack.c.b16 %v6744, %v6742
      %v6897 = vpack.c.b16 %v6745, %v6743
      %v6898 = vpack.c.b16 %v6748, %v6746
      %v6899 = vpack.c.b16 %v6749, %v6747
      %v6900 = vpack.c.b16 %v6752, %v6750
      %v6901 = vpack.c.b16 %v6753, %v6751
      %v6902 = vpack.c.b16 %v6756, %v6754
      %v6903 = vpack.c.b16 %v6757, %v6755
      %v6904 = vpack.c.b16 %v6760, %v6758
      %v6905 = vpack.c.b16 %v6761, %v6759
      %v6906 = vpack.c.b16 %v6764, %v6762
      %v6907 = vpack.c.b16 %v6765, %v6763
      %v6908 = vpack.c.b16 %v6768, %v6766
      %v6909 = vpack.c.b16 %v6769, %v6767
      %v6910 = vpack.c.b16 %v6772, %v6770
      %v6911 = vpack.c.b16 %v6773, %v6771
      %v6912 = vpack.c.b16 %v6776, %v6774
      %v6913 = vpack.c.b16 %v6777, %v6775
      %v6914 = vpack.c.b16 %v6780, %v6778
      %v6915 = vpack.c.b16 %v6781, %v6779
      %v6916 = vpack.c.b16 %v6784, %v6782
      %v6917 = vpack.c.b16 %v6785, %v6783
      %v6918 = vpack.c.b16 %v6788, %v6786
      %v6919 = vpack.c.b16 %v6789, %v6787
      %v6920 = vpack.c.b16 %v6792, %v6790
      %v6921 = vpack.c.b16 %v6793, %v6791
      %v6922 = vpack.c.b16 %v6796, %v6794
      %v6923 = vpack.c.b16 %v6797, %v6795
      %v6924 = vpack.c.b16 %v6800, %v6798
      %v6925 = vpack.c.b16 %v6801, %v6799
      %v6926 = vpack.c.b16 %v6804, %v6802
      %v6927 = vpack.c.b16 %v6805, %v6803
      %v6928 = vpack.c.b16 %v6808, %v6806
      %v6929 = vpack.c.b16 %v6809, %v6807
      %v6930 = vpack.c.b16 %v6812, %v6810
      %v6931 = vpack.c.b16 %v6813, %v6811
      %v6932 = vpack.c.b16 %v6816, %v6814
      %v6933 = vpack.c.b16 %v6817, %v6815
      %v6934 = vpack.c.b16 %v6820, %v6818
      %v6935 = vpack.c.b16 %v6821, %v6819
      %v6936 = vpack.c.b16 %v6824, %v6822
      %v6937 = vpack.c.b16 %v6825, %v6823
      %v7049 = vsel %vm6206, %v6936, 0
      %v7052 = vsel %vm6206, %v6937, 0
      %7054 = vmatprep.subr.bf16.mxu0 %v6827
      %7055 = vmatpush1.bf16.msra.mxu0 %v6826
      %7056 = vmatprep.subr.bf16.mxu0 %v6829
      %7057 = vmatpush1.bf16.msra.mxu0 %v6828
      %7058 = vmatprep.subr.bf16.mxu0 %v6831
      %7059 = vmatpush1.bf16.msra.mxu0 %v6830
      %7060 = vmatprep.subr.bf16.mxu0 %v6833
      %7061 = vmatpush1.bf16.msra.mxu0 %v6832
      %7062 = vmatprep.subr.bf16.mxu0 %v6835
      %7063 = vmatpush1.bf16.msra.mxu0 %v6834
      %7064 = vmatprep.subr.bf16.mxu0 %v6837
      %7065 = vmatpush1.bf16.msra.mxu0 %v6836
      %7066 = vmatprep.subr.bf16.mxu0 %v6839
      %7067 = vmatpush1.bf16.msra.mxu0 %v6838
      %7068 = vmatprep.subr.bf16.mxu0 %v6841
      %7069 = vmatpush1.bf16.msra.mxu0 %v6840
      %7070 = vmatprep.subr.bf16.mxu0 %v6843
      %7071 = vmatpush1.bf16.msra.mxu0 %v6842
      %7072 = vmatprep.subr.bf16.mxu0 %v6845
      %7073 = vmatpush1.bf16.msra.mxu0 %v6844
      %7074 = vmatprep.subr.bf16.mxu0 %v6847
      %7075 = vmatpush1.bf16.msra.mxu0 %v6846
      %7076 = vmatprep.subr.bf16.mxu0 %v6849
      %7077 = vmatpush1.bf16.msra.mxu0 %v6848
      %7078 = vmatprep.subr.bf16.mxu0 %v6851
      %7079 = vmatpush1.bf16.msra.mxu0 %v6850
      %7080 = vmatprep.subr.bf16.mxu0 %v6853
      %7081 = vmatpush1.bf16.msra.mxu0 %v6852
      %7082 = vmatprep.subr.bf16.mxu0 %v6855
      %7083 = vmatpush1.bf16.msra.mxu0 %v6854
      %7084 = vmatprep.subr.bf16.mxu0 %v6857
      %7085 = vmatpush1.bf16.msra.mxu0 %v6856
      %7086 = vmatprep.mubr.bf16.mxu0 %v5526
      %7087 = vmatmul.mubr.bf16.gmra.mrb[0].mxu0 %v5525
      %v7088 = vpop.f32.mrb[0].mxu0
      %v7089 = vadd.f32 0.0, %v7088
      %v7090 = vpop.f32.mrb[0].mxu0
      %v7091 = vadd.f32 0.0, %v7090
      %v7092 = vpop.f32.mrb[0].mxu0
      %v7093 = vpop.f32.mrb[0].mxu0
      %7094 = vdwg.mxu0
      %7095 = vmatprep.subr.bf16.mxu0 %v6859
      %7096 = vmatpush1.bf16.msra.mxu0 %v6858
      %7097 = vmatprep.subr.bf16.mxu0 %v6861
      %7098 = vmatpush1.bf16.msra.mxu0 %v6860
      %7099 = vmatprep.subr.bf16.mxu0 %v6863
      %7100 = vmatpush1.bf16.msra.mxu0 %v6862
      %7101 = vmatprep.subr.bf16.mxu0 %v6865
      %7102 = vmatpush1.bf16.msra.mxu0 %v6864
      %7103 = vmatprep.subr.bf16.mxu0 %v6867
      %7104 = vmatpush1.bf16.msra.mxu0 %v6866
      %7105 = vmatprep.subr.bf16.mxu0 %v6869
      %7106 = vmatpush1.bf16.msra.mxu0 %v6868
      %7107 = vmatprep.subr.bf16.mxu0 %v6871
      %7108 = vmatpush1.bf16.msra.mxu0 %v6870
      %7109 = vmatprep.subr.bf16.mxu0 %v6873
      %7110 = vmatpush1.bf16.msra.mxu0 %v6872
      %7111 = vmatprep.subr.bf16.mxu0 %v6875
      %7112 = vmatpush1.bf16.msra.mxu0 %v6874
      %7113 = vmatprep.subr.bf16.mxu0 %v6877
      %7114 = vmatpush1.bf16.msra.mxu0 %v6876
      %7115 = vmatprep.subr.bf16.mxu0 %v6879
      %7116 = vmatpush1.bf16.msra.mxu0 %v6878
      %7117 = vmatprep.subr.bf16.mxu0 %v6881
      %7118 = vmatpush1.bf16.msra.mxu0 %v6880
      %7119 = vmatprep.subr.bf16.mxu0 %v6883
      %7120 = vmatpush1.bf16.msra.mxu0 %v6882
      %7121 = vmatprep.subr.bf16.mxu0 %v6885
      %7122 = vmatpush1.bf16.msra.mxu0 %v6884
      %7123 = vmatprep.subr.bf16.mxu0 %v6887
      %7124 = vmatpush1.bf16.msra.mxu0 %v6886
      %7125 = vmatprep.subr.bf16.mxu0 %v6889
      %7126 = vmatpush1.bf16.msra.mxu0 %v6888
      %7127 = vmatprep.mubr.bf16.mxu0 %v5528
      %7128 = vmatmul.mubr.bf16.gmra.mrb[0].mxu0 %v5527
      %v7129 = vpop.f32.mrb[0].mxu0
      %v7130 = vadd.f32 %v7089, %v7129
      %v7131 = vpop.f32.mrb[0].mxu0
      %v7132 = vadd.f32 %v7091, %v7131
      %v7133 = vpop.f32.mrb[0].mxu0
      %v7134 = vpop.f32.mrb[0].mxu0
      %7135 = vdwg.mxu0
      %7136 = vmatprep.subr.bf16.mxu0 %v6891
      %7137 = vmatpush1.bf16.msra.mxu0 %v6890
      %7138 = vmatprep.subr.bf16.mxu0 %v6893
      %7139 = vmatpush1.bf16.msra.mxu0 %v6892
      %7140 = vmatprep.subr.bf16.mxu0 %v6895
      %7141 = vmatpush1.bf16.msra.mxu0 %v6894
      %7142 = vmatprep.subr.bf16.mxu0 %v6897
      %7143 = vmatpush1.bf16.msra.mxu0 %v6896
      %7144 = vmatprep.subr.bf16.mxu0 %v6899
      %7145 = vmatpush1.bf16.msra.mxu0 %v6898
      %7146 = vmatprep.subr.bf16.mxu0 %v6901
      %7147 = vmatpush1.bf16.msra.mxu0 %v6900
      %7148 = vmatprep.subr.bf16.mxu0 %v6903
      %7149 = vmatpush1.bf16.msra.mxu0 %v6902
      %7150 = vmatprep.subr.bf16.mxu0 %v6905
      %7151 = vmatpush1.bf16.msra.mxu0 %v6904
      %7152 = vmatprep.subr.bf16.mxu0 %v6907
      %7153 = vmatpush1.bf16.msra.mxu0 %v6906
      %7154 = vmatprep.subr.bf16.mxu0 %v6909
      %7155 = vmatpush1.bf16.msra.mxu0 %v6908
      %7156 = vmatprep.subr.bf16.mxu0 %v6911
      %7157 = vmatpush1.bf16.msra.mxu0 %v6910
      %7158 = vmatprep.subr.bf16.mxu0 %v6913
      %7159 = vmatpush1.bf16.msra.mxu0 %v6912
      %7160 = vmatprep.subr.bf16.mxu0 %v6915
      %7161 = vmatpush1.bf16.msra.mxu0 %v6914
      %7162 = vmatprep.subr.bf16.mxu0 %v6917
      %7163 = vmatpush1.bf16.msra.mxu0 %v6916
      %7164 = vmatprep.subr.bf16.mxu0 %v6919
      %7165 = vmatpush1.bf16.msra.mxu0 %v6918
      %7166 = vmatprep.subr.bf16.mxu0 %v6921
      %7167 = vmatpush1.bf16.msra.mxu0 %v6920
      %7168 = vmatprep.mubr.bf16.mxu0 %v5530
      %7169 = vmatmul.mubr.bf16.gmra.mrb[0].mxu0 %v5529
      %v7170 = vpop.f32.mrb[0].mxu0
      %v7171 = vadd.f32 %v7130, %v7170
      %v7172 = vpop.f32.mrb[0].mxu0
      %v7173 = vadd.f32 %v7132, %v7172
      %v7174 = vpop.f32.mrb[0].mxu0
      %v7175 = vpop.f32.mrb[0].mxu0
      %7176 = vdwg.mxu0
      %7177 = vmatprep.subr.bf16.mxu0 %v6923
      %7178 = vmatpush1.bf16.msra.mxu0 %v6922
      %7179 = vmatprep.subr.bf16.mxu0 %v6925
      %7180 = vmatpush1.bf16.msra.mxu0 %v6924
      %7181 = vmatprep.subr.bf16.mxu0 %v6927
      %7182 = vmatpush1.bf16.msra.mxu0 %v6926
      %7183 = vmatprep.subr.bf16.mxu0 %v6929
      %7184 = vmatpush1.bf16.msra.mxu0 %v6928
      %7185 = vmatprep.subr.bf16.mxu0 %v6931
      %7186 = vmatpush1.bf16.msra.mxu0 %v6930
      %7187 = vmatprep.subr.bf16.mxu0 %v6933
      %7188 = vmatpush1.bf16.msra.mxu0 %v6932
      %7189 = vmatprep.subr.bf16.mxu0 %v6935
      %7190 = vmatpush1.bf16.msra.mxu0 %v6934
      %7191 = vmatprep.subr.bf16.mxu0 %v7052
      %7192 = vmatpush1.bf16.msra.mxu0 %v7049
      %7193 = vmatprep.subr.bf16.mxu0 0
      %7194 = vmatpush1.bf16.msra.mxu0 0
      %7195 = vmatprep.subr.bf16.mxu0 0
      %7196 = vmatpush1.bf16.msra.mxu0 0
      %7197 = vmatprep.subr.bf16.mxu0 0
      %7198 = vmatpush1.bf16.msra.mxu0 0
      %7199 = vmatprep.subr.bf16.mxu0 0
      %7200 = vmatpush1.bf16.msra.mxu0 0
      %7201 = vmatprep.subr.bf16.mxu0 0
      %7202 = vmatpush1.bf16.msra.mxu0 0
      %7203 = vmatprep.subr.bf16.mxu0 0
      %7204 = vmatpush1.bf16.msra.mxu0 0
      %7205 = vmatprep.subr.bf16.mxu0 0
      %7206 = vmatpush1.bf16.msra.mxu0 0
      %7207 = vmatprep.subr.bf16.mxu0 0
      %7208 = vmatpush1.bf16.msra.mxu0 0
      %7209 = vmatprep.mubr.bf16.mxu0 0
      %7210 = vmatmul.mubr.bf16.gmra.mrb[0].mxu0 %v6204
      %v7211 = vpop.f32.mrb[0].mxu0
      %v7212 = vadd.f32 %v7171, %v7211
      %v7213 = vpop.f32.mrb[0].mxu0
      %v7214 = vadd.f32 %v7173, %v7213
      %v7215 = vpop.f32.mrb[0].mxu0
      %v7216 = vpop.f32.mrb[0].mxu0
      %7217 = vdwg.mxu0
      %v7218 = vmax.f32 %v6371, %v7212
      %v7219 = vmax.f32 %v6373, %v7214
      %s7220 = scalar_lea.vmem %s3, 1792
      %v7221 = vld [vmem:[%s7220] sm:$0xff]
      %v7222 = vld [vmem:[%s7220 + $0x8] sm:$0xff]
      %v7223 = vld [vmem:[%s7220 + $0x10] sm:$0xff]
      %v7224 = vld [vmem:[%s7220 + $0x18] sm:$0xff]
      %v7225 = vld [vmem:[%s7220 + $0x20] sm:$0xff]
      %v7226 = vld [vmem:[%s7220 + $0x28] sm:$0xff]
      %v7227 = vld [vmem:[%s7220 + $0x30] sm:$0xff]
      %v7228 = vld [vmem:[%s7220 + $0x38] sm:$0xff]
      %v7229 = vld [vmem:[%s7220 + $0x40] sm:$0xff]
      %v7230 = vld [vmem:[%s7220 + $0x48] sm:$0xff]
      %v7231 = vld [vmem:[%s7220 + $0x50] sm:$0xff]
      %v7232 = vld [vmem:[%s7220 + $0x58] sm:$0xff]
      %v7233 = vld [vmem:[%s7220 + $0x60] sm:$0xff]
      %v7234 = vld [vmem:[%s7220 + $0x68] sm:$0xff]
      %v7235 = vld [vmem:[%s7220 + $0x70] sm:$0xff]
      %v7236 = vld [vmem:[%s7220 + $0x78] sm:$0xff]
      %v7237 = vld [vmem:[%s7220 + $0x80] sm:$0xff]
      %v7238 = vld [vmem:[%s7220 + $0x88] sm:$0xff]
      %v7239 = vld [vmem:[%s7220 + $0x90] sm:$0xff]
      %v7240 = vld [vmem:[%s7220 + $0x98] sm:$0xff]
      %v7241 = vld [vmem:[%s7220 + $0xa0] sm:$0xff]
      %v7242 = vld [vmem:[%s7220 + $0xa8] sm:$0xff]
      %v7243 = vld [vmem:[%s7220 + $0xb0] sm:$0xff]
      %v7244 = vld [vmem:[%s7220 + $0xb8] sm:$0xff]
      %v7245 = vld [vmem:[%s7220 + $0xc0] sm:$0xff]
      %v7246 = vld [vmem:[%s7220 + $0xc8] sm:$0xff]
      %v7247 = vld [vmem:[%s7220 + $0xd0] sm:$0xff]
      %v7248 = vld [vmem:[%s7220 + $0xd8] sm:$0xff]
      %v7249 = vld [vmem:[%s7220 + $0xe0] sm:$0xff]
      %v7250 = vld [vmem:[%s7220 + $0xe8] sm:$0xff]
      %v7251 = vld [vmem:[%s7220 + $0xf0] sm:$0xff]
      %v7252 = vld [vmem:[%s7220 + $0xf8] sm:$0xff]
      %v7253 = vld [vmem:[%s7220 + $0x100] sm:$0xff]
      %v7254 = vld [vmem:[%s7220 + $0x108] sm:$0xff]
      %v7255 = vld [vmem:[%s7220 + $0x110] sm:$0xff]
      %v7256 = vld [vmem:[%s7220 + $0x118] sm:$0xff]
      %v7257 = vld [vmem:[%s7220 + $0x120] sm:$0xff]
      %v7258 = vld [vmem:[%s7220 + $0x128] sm:$0xff]
      %v7259 = vld [vmem:[%s7220 + $0x130] sm:$0xff]
      %v7260 = vld [vmem:[%s7220 + $0x138] sm:$0xff]
      %v7261 = vld [vmem:[%s7220 + $0x140] sm:$0xff]
      %v7262 = vld [vmem:[%s7220 + $0x148] sm:$0xff]
      %v7263 = vld [vmem:[%s7220 + $0x150] sm:$0xff]
      %v7264 = vld [vmem:[%s7220 + $0x158] sm:$0xff]
      %v7265 = vld [vmem:[%s7220 + $0x160] sm:$0xff]
      %v7266 = vld [vmem:[%s7220 + $0x168] sm:$0xff]
      %v7267 = vld [vmem:[%s7220 + $0x170] sm:$0xff]
      %v7268 = vld [vmem:[%s7220 + $0x178] sm:$0xff]
      %v7269 = vld [vmem:[%s7220 + $0x180] sm:$0xff]
      %v7270 = vld [vmem:[%s7220 + $0x188] sm:$0xff]
      %v7271 = vld [vmem:[%s7220 + $0x190] sm:$0xff]
      %v7272 = vld [vmem:[%s7220 + $0x198] sm:$0xff]
      %v7273 = vld [vmem:[%s7220 + $0x1a0] sm:$0xff]
      %v7274 = vld [vmem:[%s7220 + $0x1a8] sm:$0xff]
      %v7275 = vld [vmem:[%s7220 + $0x1b0] sm:$0xff]
      %v7276 = vld [vmem:[%s7220 + $0x1b8] sm:$0xff]
      %v7277 = vld [vmem:[%s7220 + $0x1c0] sm:$0xff]
      %v7278 = vld [vmem:[%s7220 + $0x1c8] sm:$0xff]
      %v7279 = vld [vmem:[%s7220 + $0x1d0] sm:$0xff]
      %v7280 = vld [vmem:[%s7220 + $0x1d8] sm:$0xff]
      %v7281 = vld [vmem:[%s7220 + $0x1e0] sm:$0xff]
      %v7282 = vld [vmem:[%s7220 + $0x1e8] sm:$0xff]
      %v7283 = vld [vmem:[%s7220 + $0x1f0] sm:$0xff]
      %v7284 = vld [vmem:[%s7220 + $0x1f8] sm:$0xff]
      %v7285 = vld [vmem:[%s7220 + $0x200] sm:$0xff]
      %v7286 = vld [vmem:[%s7220 + $0x208] sm:$0xff]
      %v7287 = vld [vmem:[%s7220 + $0x210] sm:$0xff]
      %v7288 = vld [vmem:[%s7220 + $0x218] sm:$0xff]
      %v7289 = vld [vmem:[%s7220 + $0x220] sm:$0xff]
      %v7290 = vld [vmem:[%s7220 + $0x228] sm:$0xff]
      %v7291 = vld [vmem:[%s7220 + $0x230] sm:$0xff]
      %v7292 = vld [vmem:[%s7220 + $0x238] sm:$0xff]
      %v7293 = vld [vmem:[%s7220 + $0x240] sm:$0xff]
      %v7294 = vld [vmem:[%s7220 + $0x248] sm:$0xff]
      %v7295 = vld [vmem:[%s7220 + $0x250] sm:$0xff]
      %v7296 = vld [vmem:[%s7220 + $0x258] sm:$0xff]
      %v7297 = vld [vmem:[%s7220 + $0x260] sm:$0xff]
      %v7298 = vld [vmem:[%s7220 + $0x268] sm:$0xff]
      %v7299 = vld [vmem:[%s7220 + $0x270] sm:$0xff]
      %v7300 = vld [vmem:[%s7220 + $0x278] sm:$0xff]
      %v7301 = vld [vmem:[%s7220 + $0x280] sm:$0xff]
      %v7302 = vld [vmem:[%s7220 + $0x288] sm:$0xff]
      %v7303 = vld [vmem:[%s7220 + $0x290] sm:$0xff]
      %v7304 = vld [vmem:[%s7220 + $0x298] sm:$0xff]
      %v7305 = vld [vmem:[%s7220 + $0x2a0] sm:$0xff]
      %v7306 = vld [vmem:[%s7220 + $0x2a8] sm:$0xff]
      %v7307 = vld [vmem:[%s7220 + $0x2b0] sm:$0xff]
      %v7308 = vld [vmem:[%s7220 + $0x2b8] sm:$0xff]
      %v7309 = vld [vmem:[%s7220 + $0x2c0] sm:$0xff]
      %v7310 = vld [vmem:[%s7220 + $0x2c8] sm:$0xff]
      %v7311 = vld [vmem:[%s7220 + $0x2d0] sm:$0xff]
      %v7312 = vld [vmem:[%s7220 + $0x2d8] sm:$0xff]
      %v7313 = vld [vmem:[%s7220 + $0x2e0] sm:$0xff]
      %v7314 = vld [vmem:[%s7220 + $0x2e8] sm:$0xff]
      %v7315 = vld [vmem:[%s7220 + $0x2f0] sm:$0xff]
      %v7316 = vld [vmem:[%s7220 + $0x2f8] sm:$0xff]
      %v7317 = vld [vmem:[%s7220 + $0x300] sm:$0xff]
      %v7318 = vld [vmem:[%s7220 + $0x308] sm:$0xff]
      %v7319 = vld [vmem:[%s7220 + $0x310] sm:$0xff]
      %v7320 = vld [vmem:[%s7220 + $0x318] sm:$0xff]
      %v7321 = vld [vmem:[%s7220 + $0x320] sm:$0xff]
      %v7322 = vld [vmem:[%s7220 + $0x328] sm:$0xff]
      %v7323 = vld [vmem:[%s7220 + $0x330] sm:$0xff]
      %v7324 = vld [vmem:[%s7220 + $0x338] sm:$0xff]
      %v7325 = vld [vmem:[%s7220 + $0x340] sm:$0xff]
      %v7326 = vld [vmem:[%s7220 + $0x348] sm:$0xff]
      %v7327 = vld [vmem:[%s7220 + $0x350] sm:$0xff]
      %v7328 = vld [vmem:[%s7220 + $0x358] sm:$0xff]
      %v7329 = vld [vmem:[%s7220 + $0x360] sm:$0xff]
      %v7330 = vld [vmem:[%s7220 + $0x368] sm:$0xff]
      %v7331 = vld [vmem:[%s7220 + $0x370] sm:$0xff]
      %v7332 = vld [vmem:[%s7220 + $0x378] sm:$0x33]
      %v7445 = vunpack.c.l.b16 %v7221
      %v7446 = vunpack.c.h.b16 %v7221
      %v7447 = vunpack.c.l.b16 %v7222
      %v7448 = vunpack.c.h.b16 %v7222
      %v7449 = vunpack.c.l.b16 %v7223
      %v7450 = vunpack.c.h.b16 %v7223
      %v7451 = vunpack.c.l.b16 %v7224
      %v7452 = vunpack.c.h.b16 %v7224
      %v7453 = vunpack.c.l.b16 %v7225
      %v7454 = vunpack.c.h.b16 %v7225
      %v7455 = vunpack.c.l.b16 %v7226
      %v7456 = vunpack.c.h.b16 %v7226
      %v7457 = vunpack.c.l.b16 %v7227
      %v7458 = vunpack.c.h.b16 %v7227
      %v7459 = vunpack.c.l.b16 %v7228
      %v7460 = vunpack.c.h.b16 %v7228
      %v7461 = vunpack.c.l.b16 %v7229
      %v7462 = vunpack.c.h.b16 %v7229
      %v7463 = vunpack.c.l.b16 %v7230
      %v7464 = vunpack.c.h.b16 %v7230
      %v7465 = vunpack.c.l.b16 %v7231
      %v7466 = vunpack.c.h.b16 %v7231
      %v7467 = vunpack.c.l.b16 %v7232
      %v7468 = vunpack.c.h.b16 %v7232
      %v7469 = vunpack.c.l.b16 %v7233
      %v7470 = vunpack.c.h.b16 %v7233
      %v7471 = vunpack.c.l.b16 %v7234
      %v7472 = vunpack.c.h.b16 %v7234
      %v7473 = vunpack.c.l.b16 %v7235
      %v7474 = vunpack.c.h.b16 %v7235
      %v7475 = vunpack.c.l.b16 %v7236
      %v7476 = vunpack.c.h.b16 %v7236
      %v7477 = vunpack.c.l.b16 %v7237
      %v7478 = vunpack.c.h.b16 %v7237
      %v7479 = vunpack.c.l.b16 %v7238
      %v7480 = vunpack.c.h.b16 %v7238
      %v7481 = vunpack.c.l.b16 %v7239
      %v7482 = vunpack.c.h.b16 %v7239
      %v7483 = vunpack.c.l.b16 %v7240
      %v7484 = vunpack.c.h.b16 %v7240
      %v7485 = vunpack.c.l.b16 %v7241
      %v7486 = vunpack.c.h.b16 %v7241
      %v7487 = vunpack.c.l.b16 %v7242
      %v7488 = vunpack.c.h.b16 %v7242
      %v7489 = vunpack.c.l.b16 %v7243
      %v7490 = vunpack.c.h.b16 %v7243
      %v7491 = vunpack.c.l.b16 %v7244
      %v7492 = vunpack.c.h.b16 %v7244
      %v7493 = vunpack.c.l.b16 %v7245
      %v7494 = vunpack.c.h.b16 %v7245
      %v7495 = vunpack.c.l.b16 %v7246
      %v7496 = vunpack.c.h.b16 %v7246
      %v7497 = vunpack.c.l.b16 %v7247
      %v7498 = vunpack.c.h.b16 %v7247
      %v7499 = vunpack.c.l.b16 %v7248
      %v7500 = vunpack.c.h.b16 %v7248
      %v7501 = vunpack.c.l.b16 %v7249
      %v7502 = vunpack.c.h.b16 %v7249
      %v7503 = vunpack.c.l.b16 %v7250
      %v7504 = vunpack.c.h.b16 %v7250
      %v7505 = vunpack.c.l.b16 %v7251
      %v7506 = vunpack.c.h.b16 %v7251
      %v7507 = vunpack.c.l.b16 %v7252
      %v7508 = vunpack.c.h.b16 %v7252
      %v7509 = vunpack.c.l.b16 %v7253
      %v7510 = vunpack.c.h.b16 %v7253
      %v7511 = vunpack.c.l.b16 %v7254
      %v7512 = vunpack.c.h.b16 %v7254
      %v7513 = vunpack.c.l.b16 %v7255
      %v7514 = vunpack.c.h.b16 %v7255
      %v7515 = vunpack.c.l.b16 %v7256
      %v7516 = vunpack.c.h.b16 %v7256
      %v7517 = vunpack.c.l.b16 %v7257
      %v7518 = vunpack.c.h.b16 %v7257
      %v7519 = vunpack.c.l.b16 %v7258
      %v7520 = vunpack.c.h.b16 %v7258
      %v7521 = vunpack.c.l.b16 %v7259
      %v7522 = vunpack.c.h.b16 %v7259
      %v7523 = vunpack.c.l.b16 %v7260
      %v7524 = vunpack.c.h.b16 %v7260
      %v7525 = vunpack.c.l.b16 %v7261
      %v7526 = vunpack.c.h.b16 %v7261
      %v7527 = vunpack.c.l.b16 %v7262
      %v7528 = vunpack.c.h.b16 %v7262
      %v7529 = vunpack.c.l.b16 %v7263
      %v7530 = vunpack.c.h.b16 %v7263
      %v7531 = vunpack.c.l.b16 %v7264
      %v7532 = vunpack.c.h.b16 %v7264
      %v7533 = vunpack.c.l.b16 %v7265
      %v7534 = vunpack.c.h.b16 %v7265
      %v7535 = vunpack.c.l.b16 %v7266
      %v7536 = vunpack.c.h.b16 %v7266
      %v7537 = vunpack.c.l.b16 %v7267
      %v7538 = vunpack.c.h.b16 %v7267
      %v7539 = vunpack.c.l.b16 %v7268
      %v7540 = vunpack.c.h.b16 %v7268
      %v7541 = vunpack.c.l.b16 %v7269
      %v7542 = vunpack.c.h.b16 %v7269
      %v7543 = vunpack.c.l.b16 %v7270
      %v7544 = vunpack.c.h.b16 %v7270
      %v7545 = vunpack.c.l.b16 %v7271
      %v7546 = vunpack.c.h.b16 %v7271
      %v7547 = vunpack.c.l.b16 %v7272
      %v7548 = vunpack.c.h.b16 %v7272
      %v7549 = vunpack.c.l.b16 %v7273
      %v7550 = vunpack.c.h.b16 %v7273
      %v7551 = vunpack.c.l.b16 %v7274
      %v7552 = vunpack.c.h.b16 %v7274
      %v7553 = vunpack.c.l.b16 %v7275
      %v7554 = vunpack.c.h.b16 %v7275
      %v7555 = vunpack.c.l.b16 %v7276
      %v7556 = vunpack.c.h.b16 %v7276
      %v7557 = vunpack.c.l.b16 %v7277
      %v7558 = vunpack.c.h.b16 %v7277
      %v7559 = vunpack.c.l.b16 %v7278
      %v7560 = vunpack.c.h.b16 %v7278
      %v7561 = vunpack.c.l.b16 %v7279
      %v7562 = vunpack.c.h.b16 %v7279
      %v7563 = vunpack.c.l.b16 %v7280
      %v7564 = vunpack.c.h.b16 %v7280
      %v7565 = vunpack.c.l.b16 %v7281
      %v7566 = vunpack.c.h.b16 %v7281
      %v7567 = vunpack.c.l.b16 %v7282
      %v7568 = vunpack.c.h.b16 %v7282
      %v7569 = vunpack.c.l.b16 %v7283
      %v7570 = vunpack.c.h.b16 %v7283
      %v7571 = vunpack.c.l.b16 %v7284
      %v7572 = vunpack.c.h.b16 %v7284
      %v7573 = vunpack.c.l.b16 %v7285
      %v7574 = vunpack.c.h.b16 %v7285
      %v7575 = vunpack.c.l.b16 %v7286
      %v7576 = vunpack.c.h.b16 %v7286
      %v7577 = vunpack.c.l.b16 %v7287
      %v7578 = vunpack.c.h.b16 %v7287
      %v7579 = vunpack.c.l.b16 %v7288
      %v7580 = vunpack.c.h.b16 %v7288
      %v7581 = vunpack.c.l.b16 %v7289
      %v7582 = vunpack.c.h.b16 %v7289
      %v7583 = vunpack.c.l.b16 %v7290
      %v7584 = vunpack.c.h.b16 %v7290
      %v7585 = vunpack.c.l.b16 %v7291
      %v7586 = vunpack.c.h.b16 %v7291
      %v7587 = vunpack.c.l.b16 %v7292
      %v7588 = vunpack.c.h.b16 %v7292
      %v7589 = vunpack.c.l.b16 %v7293
      %v7590 = vunpack.c.h.b16 %v7293
      %v7591 = vunpack.c.l.b16 %v7294
      %v7592 = vunpack.c.h.b16 %v7294
      %v7593 = vunpack.c.l.b16 %v7295
      %v7594 = vunpack.c.h.b16 %v7295
      %v7595 = vunpack.c.l.b16 %v7296
      %v7596 = vunpack.c.h.b16 %v7296
      %v7597 = vunpack.c.l.b16 %v7297
      %v7598 = vunpack.c.h.b16 %v7297
      %v7599 = vunpack.c.l.b16 %v7298
      %v7600 = vunpack.c.h.b16 %v7298
      %v7601 = vunpack.c.l.b16 %v7299
      %v7602 = vunpack.c.h.b16 %v7299
      %v7603 = vunpack.c.l.b16 %v7300
      %v7604 = vunpack.c.h.b16 %v7300
      %v7605 = vunpack.c.l.b16 %v7301
      %v7606 = vunpack.c.h.b16 %v7301
      %v7607 = vunpack.c.l.b16 %v7302
      %v7608 = vunpack.c.h.b16 %v7302
      %v7609 = vunpack.c.l.b16 %v7303
      %v7610 = vunpack.c.h.b16 %v7303
      %v7611 = vunpack.c.l.b16 %v7304
      %v7612 = vunpack.c.h.b16 %v7304
      %v7613 = vunpack.c.l.b16 %v7305
      %v7614 = vunpack.c.h.b16 %v7305
      %v7615 = vunpack.c.l.b16 %v7306
      %v7616 = vunpack.c.h.b16 %v7306
      %v7617 = vunpack.c.l.b16 %v7307
      %v7618 = vunpack.c.h.b16 %v7307
      %v7619 = vunpack.c.l.b16 %v7308
      %v7620 = vunpack.c.h.b16 %v7308
      %v7621 = vunpack.c.l.b16 %v7309
      %v7622 = vunpack.c.h.b16 %v7309
      %v7623 = vunpack.c.l.b16 %v7310
      %v7624 = vunpack.c.h.b16 %v7310
      %v7625 = vunpack.c.l.b16 %v7311
      %v7626 = vunpack.c.h.b16 %v7311
      %v7627 = vunpack.c.l.b16 %v7312
      %v7628 = vunpack.c.h.b16 %v7312
      %v7629 = vunpack.c.l.b16 %v7313
      %v7630 = vunpack.c.h.b16 %v7313
      %v7631 = vunpack.c.l.b16 %v7314
      %v7632 = vunpack.c.h.b16 %v7314
      %v7633 = vunpack.c.l.b16 %v7315
      %v7634 = vunpack.c.h.b16 %v7315
      %v7635 = vunpack.c.l.b16 %v7316
      %v7636 = vunpack.c.h.b16 %v7316
      %v7637 = vunpack.c.l.b16 %v7317
      %v7638 = vunpack.c.h.b16 %v7317
      %v7639 = vunpack.c.l.b16 %v7318
      %v7640 = vunpack.c.h.b16 %v7318
      %v7641 = vunpack.c.l.b16 %v7319
      %v7642 = vunpack.c.h.b16 %v7319
      %v7643 = vunpack.c.l.b16 %v7320
      %v7644 = vunpack.c.h.b16 %v7320
      %v7645 = vunpack.c.l.b16 %v7321
      %v7646 = vunpack.c.h.b16 %v7321
      %v7647 = vunpack.c.l.b16 %v7322
      %v7648 = vunpack.c.h.b16 %v7322
      %v7649 = vunpack.c.l.b16 %v7323
      %v7650 = vunpack.c.h.b16 %v7323
      %v7651 = vunpack.c.l.b16 %v7324
      %v7652 = vunpack.c.h.b16 %v7324
      %v7653 = vunpack.c.l.b16 %v7325
      %v7654 = vunpack.c.h.b16 %v7325
      %v7655 = vunpack.c.l.b16 %v7326
      %v7656 = vunpack.c.h.b16 %v7326
      %v7657 = vunpack.c.l.b16 %v7327
      %v7658 = vunpack.c.h.b16 %v7327
      %v7659 = vunpack.c.l.b16 %v7328
      %v7660 = vunpack.c.h.b16 %v7328
      %v7661 = vunpack.c.l.b16 %v7329
      %v7662 = vunpack.c.h.b16 %v7329
      %v7663 = vunpack.c.l.b16 %v7330
      %v7664 = vunpack.c.h.b16 %v7330
      %v7665 = vunpack.c.l.b16 %v7331
      %v7666 = vunpack.c.h.b16 %v7331
      %v7667 = vunpack.c.l.b16 %v7332
      %v7668 = vunpack.c.h.b16 %v7332
      %v7669 = vpack.c.b16 %v7447, %v7445
      %v7670 = vpack.c.b16 %v7448, %v7446
      %v7671 = vpack.c.b16 %v7451, %v7449
      %v7672 = vpack.c.b16 %v7452, %v7450
      %v7673 = vpack.c.b16 %v7455, %v7453
      %v7674 = vpack.c.b16 %v7456, %v7454
      %v7675 = vpack.c.b16 %v7459, %v7457
      %v7676 = vpack.c.b16 %v7460, %v7458
      %v7677 = vpack.c.b16 %v7463, %v7461
      %v7678 = vpack.c.b16 %v7464, %v7462
      %v7679 = vpack.c.b16 %v7467, %v7465
      %v7680 = vpack.c.b16 %v7468, %v7466
      %v7681 = vpack.c.b16 %v7471, %v7469
      %v7682 = vpack.c.b16 %v7472, %v7470
      %v7683 = vpack.c.b16 %v7475, %v7473
      %v7684 = vpack.c.b16 %v7476, %v7474
      %v7685 = vpack.c.b16 %v7479, %v7477
      %v7686 = vpack.c.b16 %v7480, %v7478
      %v7687 = vpack.c.b16 %v7483, %v7481
      %v7688 = vpack.c.b16 %v7484, %v7482
      %v7689 = vpack.c.b16 %v7487, %v7485
      %v7690 = vpack.c.b16 %v7488, %v7486
      %v7691 = vpack.c.b16 %v7491, %v7489
      %v7692 = vpack.c.b16 %v7492, %v7490
      %v7693 = vpack.c.b16 %v7495, %v7493
      %v7694 = vpack.c.b16 %v7496, %v7494
      %v7695 = vpack.c.b16 %v7499, %v7497
      %v7696 = vpack.c.b16 %v7500, %v7498
      %v7697 = vpack.c.b16 %v7503, %v7501
      %v7698 = vpack.c.b16 %v7504, %v7502
      %v7699 = vpack.c.b16 %v7507, %v7505
      %v7700 = vpack.c.b16 %v7508, %v7506
      %v7701 = vpack.c.b16 %v7511, %v7509
      %v7702 = vpack.c.b16 %v7512, %v7510
      %v7703 = vpack.c.b16 %v7515, %v7513
      %v7704 = vpack.c.b16 %v7516, %v7514
      %v7705 = vpack.c.b16 %v7519, %v7517
      %v7706 = vpack.c.b16 %v7520, %v7518
      %v7707 = vpack.c.b16 %v7523, %v7521
      %v7708 = vpack.c.b16 %v7524, %v7522
      %v7709 = vpack.c.b16 %v7527, %v7525
      %v7710 = vpack.c.b16 %v7528, %v7526
      %v7711 = vpack.c.b16 %v7531, %v7529
      %v7712 = vpack.c.b16 %v7532, %v7530
      %v7713 = vpack.c.b16 %v7535, %v7533
      %v7714 = vpack.c.b16 %v7536, %v7534
      %v7715 = vpack.c.b16 %v7539, %v7537
      %v7716 = vpack.c.b16 %v7540, %v7538
      %v7717 = vpack.c.b16 %v7543, %v7541
      %v7718 = vpack.c.b16 %v7544, %v7542
      %v7719 = vpack.c.b16 %v7547, %v7545
      %v7720 = vpack.c.b16 %v7548, %v7546
      %v7721 = vpack.c.b16 %v7551, %v7549
      %v7722 = vpack.c.b16 %v7552, %v7550
      %v7723 = vpack.c.b16 %v7555, %v7553
      %v7724 = vpack.c.b16 %v7556, %v7554
      %v7725 = vpack.c.b16 %v7559, %v7557
      %v7726 = vpack.c.b16 %v7560, %v7558
      %v7727 = vpack.c.b16 %v7563, %v7561
      %v7728 = vpack.c.b16 %v7564, %v7562
      %v7729 = vpack.c.b16 %v7567, %v7565
      %v7730 = vpack.c.b16 %v7568, %v7566
      %v7731 = vpack.c.b16 %v7571, %v7569
      %v7732 = vpack.c.b16 %v7572, %v7570
      %v7733 = vpack.c.b16 %v7575, %v7573
      %v7734 = vpack.c.b16 %v7576, %v7574
      %v7735 = vpack.c.b16 %v7579, %v7577
      %v7736 = vpack.c.b16 %v7580, %v7578
      %v7737 = vpack.c.b16 %v7583, %v7581
      %v7738 = vpack.c.b16 %v7584, %v7582
      %v7739 = vpack.c.b16 %v7587, %v7585
      %v7740 = vpack.c.b16 %v7588, %v7586
      %v7741 = vpack.c.b16 %v7591, %v7589
      %v7742 = vpack.c.b16 %v7592, %v7590
      %v7743 = vpack.c.b16 %v7595, %v7593
      %v7744 = vpack.c.b16 %v7596, %v7594
      %v7745 = vpack.c.b16 %v7599, %v7597
      %v7746 = vpack.c.b16 %v7600, %v7598
      %v7747 = vpack.c.b16 %v7603, %v7601
      %v7748 = vpack.c.b16 %v7604, %v7602
      %v7749 = vpack.c.b16 %v7607, %v7605
      %v7750 = vpack.c.b16 %v7608, %v7606
      %v7751 = vpack.c.b16 %v7611, %v7609
      %v7752 = vpack.c.b16 %v7612, %v7610
      %v7753 = vpack.c.b16 %v7615, %v7613
      %v7754 = vpack.c.b16 %v7616, %v7614
      %v7755 = vpack.c.b16 %v7619, %v7617
      %v7756 = vpack.c.b16 %v7620, %v7618
      %v7757 = vpack.c.b16 %v7623, %v7621
      %v7758 = vpack.c.b16 %v7624, %v7622
      %v7759 = vpack.c.b16 %v7627, %v7625
      %v7760 = vpack.c.b16 %v7628, %v7626
      %v7761 = vpack.c.b16 %v7631, %v7629
      %v7762 = vpack.c.b16 %v7632, %v7630
      %v7763 = vpack.c.b16 %v7635, %v7633
      %v7764 = vpack.c.b16 %v7636, %v7634
      %v7765 = vpack.c.b16 %v7639, %v7637
      %v7766 = vpack.c.b16 %v7640, %v7638
      %v7767 = vpack.c.b16 %v7643, %v7641
      %v7768 = vpack.c.b16 %v7644, %v7642
      %v7769 = vpack.c.b16 %v7647, %v7645
      %v7770 = vpack.c.b16 %v7648, %v7646
      %v7771 = vpack.c.b16 %v7651, %v7649
      %v7772 = vpack.c.b16 %v7652, %v7650
      %v7773 = vpack.c.b16 %v7655, %v7653
      %v7774 = vpack.c.b16 %v7656, %v7654
      %v7775 = vpack.c.b16 %v7659, %v7657
      %v7776 = vpack.c.b16 %v7660, %v7658
      %v7777 = vpack.c.b16 %v7663, %v7661
      %v7778 = vpack.c.b16 %v7664, %v7662
      %v7779 = vpack.c.b16 %v7667, %v7665
      %v7780 = vpack.c.b16 %v7668, %v7666
      %v7892 = vsel %vm6206, %v7779, 0
      %v7895 = vsel %vm6206, %v7780, 0
      %7897 = vmatprep.subr.bf16.mxu0 %v7670
      %7898 = vmatpush1.bf16.msra.mxu0 %v7669
      %7899 = vmatprep.subr.bf16.mxu0 %v7672
      %7900 = vmatpush1.bf16.msra.mxu0 %v7671
      %7901 = vmatprep.subr.bf16.mxu0 %v7674
      %7902 = vmatpush1.bf16.msra.mxu0 %v7673
      %7903 = vmatprep.subr.bf16.mxu0 %v7676
      %7904 = vmatpush1.bf16.msra.mxu0 %v7675
      %7905 = vmatprep.subr.bf16.mxu0 %v7678
      %7906 = vmatpush1.bf16.msra.mxu0 %v7677
      %7907 = vmatprep.subr.bf16.mxu0 %v7680
      %7908 = vmatpush1.bf16.msra.mxu0 %v7679
      %7909 = vmatprep.subr.bf16.mxu0 %v7682
      %7910 = vmatpush1.bf16.msra.mxu0 %v7681
      %7911 = vmatprep.subr.bf16.mxu0 %v7684
      %7912 = vmatpush1.bf16.msra.mxu0 %v7683
      %7913 = vmatprep.subr.bf16.mxu0 %v7686
      %7914 = vmatpush1.bf16.msra.mxu0 %v7685
      %7915 = vmatprep.subr.bf16.mxu0 %v7688
      %7916 = vmatpush1.bf16.msra.mxu0 %v7687
      %7917 = vmatprep.subr.bf16.mxu0 %v7690
      %7918 = vmatpush1.bf16.msra.mxu0 %v7689
      %7919 = vmatprep.subr.bf16.mxu0 %v7692
      %7920 = vmatpush1.bf16.msra.mxu0 %v7691
      %7921 = vmatprep.subr.bf16.mxu0 %v7694
      %7922 = vmatpush1.bf16.msra.mxu0 %v7693
      %7923 = vmatprep.subr.bf16.mxu0 %v7696
      %7924 = vmatpush1.bf16.msra.mxu0 %v7695
      %7925 = vmatprep.subr.bf16.mxu0 %v7698
      %7926 = vmatpush1.bf16.msra.mxu0 %v7697
      %7927 = vmatprep.subr.bf16.mxu0 %v7700
      %7928 = vmatpush1.bf16.msra.mxu0 %v7699
      %7929 = vmatprep.mubr.bf16.mxu0 %v5526
      %7930 = vmatmul.mubr.bf16.gmra.mrb[0].mxu0 %v5525
      %v7931 = vpop.f32.mrb[0].mxu0
      %v7932 = vadd.f32 0.0, %v7931
      %v7933 = vpop.f32.mrb[0].mxu0
      %v7934 = vadd.f32 0.0, %v7933
      %v7935 = vpop.f32.mrb[0].mxu0
      %v7936 = vpop.f32.mrb[0].mxu0
      %7937 = vdwg.mxu0
      %7938 = vmatprep.subr.bf16.mxu0 %v7702
      %7939 = vmatpush1.bf16.msra.mxu0 %v7701
      %7940 = vmatprep.subr.bf16.mxu0 %v7704
      %7941 = vmatpush1.bf16.msra.mxu0 %v7703
      %7942 = vmatprep.subr.bf16.mxu0 %v7706
      %7943 = vmatpush1.bf16.msra.mxu0 %v7705
      %7944 = vmatprep.subr.bf16.mxu0 %v7708
      %7945 = vmatpush1.bf16.msra.mxu0 %v7707
      %7946 = vmatprep.subr.bf16.mxu0 %v7710
      %7947 = vmatpush1.bf16.msra.mxu0 %v7709
      %7948 = vmatprep.subr.bf16.mxu0 %v7712
      %7949 = vmatpush1.bf16.msra.mxu0 %v7711
      %7950 = vmatprep.subr.bf16.mxu0 %v7714
      %7951 = vmatpush1.bf16.msra.mxu0 %v7713
      %7952 = vmatprep.subr.bf16.mxu0 %v7716
      %7953 = vmatpush1.bf16.msra.mxu0 %v7715
      %7954 = vmatprep.subr.bf16.mxu0 %v7718
      %7955 = vmatpush1.bf16.msra.mxu0 %v7717
      %7956 = vmatprep.subr.bf16.mxu0 %v7720
      %7957 = vmatpush1.bf16.msra.mxu0 %v7719
      %7958 = vmatprep.subr.bf16.mxu0 %v7722
      %7959 = vmatpush1.bf16.msra.mxu0 %v7721
      %7960 = vmatprep.subr.bf16.mxu0 %v7724
      %7961 = vmatpush1.bf16.msra.mxu0 %v7723
      %7962 = vmatprep.subr.bf16.mxu0 %v7726
      %7963 = vmatpush1.bf16.msra.mxu0 %v7725
      %7964 = vmatprep.subr.bf16.mxu0 %v7728
      %7965 = vmatpush1.bf16.msra.mxu0 %v7727
      %7966 = vmatprep.subr.bf16.mxu0 %v7730
      %7967 = vmatpush1.bf16.msra.mxu0 %v7729
      %7968 = vmatprep.subr.bf16.mxu0 %v7732
      %7969 = vmatpush1.bf16.msra.mxu0 %v7731
      %7970 = vmatprep.mubr.bf16.mxu0 %v5528
      %7971 = vmatmul.mubr.bf16.gmra.mrb[0].mxu0 %v5527
      %v7972 = vpop.f32.mrb[0].mxu0
      %v7973 = vadd.f32 %v7932, %v7972
      %v7974 = vpop.f32.mrb[0].mxu0
      %v7975 = vadd.f32 %v7934, %v7974
      %v7976 = vpop.f32.mrb[0].mxu0
      %v7977 = vpop.f32.mrb[0].mxu0
      %7978 = vdwg.mxu0
      %7979 = vmatprep.subr.bf16.mxu0 %v7734
      %7980 = vmatpush1.bf16.msra.mxu0 %v7733
      %7981 = vmatprep.subr.bf16.mxu0 %v7736
      %7982 = vmatpush1.bf16.msra.mxu0 %v7735
      %7983 = vmatprep.subr.bf16.mxu0 %v7738
      %7984 = vmatpush1.bf16.msra.mxu0 %v7737
      %7985 = vmatprep.subr.bf16.mxu0 %v7740
      %7986 = vmatpush1.bf16.msra.mxu0 %v7739
      %7987 = vmatprep.subr.bf16.mxu0 %v7742
      %7988 = vmatpush1.bf16.msra.mxu0 %v7741
      %7989 = vmatprep.subr.bf16.mxu0 %v7744
      %7990 = vmatpush1.bf16.msra.mxu0 %v7743
      %7991 = vmatprep.subr.bf16.mxu0 %v7746
      %7992 = vmatpush1.bf16.msra.mxu0 %v7745
      %7993 = vmatprep.subr.bf16.mxu0 %v7748
      %7994 = vmatpush1.bf16.msra.mxu0 %v7747
      %7995 = vmatprep.subr.bf16.mxu0 %v7750
      %7996 = vmatpush1.bf16.msra.mxu0 %v7749
      %7997 = vmatprep.subr.bf16.mxu0 %v7752
      %7998 = vmatpush1.bf16.msra.mxu0 %v7751
      %7999 = vmatprep.subr.bf16.mxu0 %v7754
      %8000 = vmatpush1.bf16.msra.mxu0 %v7753
      %8001 = vmatprep.subr.bf16.mxu0 %v7756
      %8002 = vmatpush1.bf16.msra.mxu0 %v7755
      %8003 = vmatprep.subr.bf16.mxu0 %v7758
      %8004 = vmatpush1.bf16.msra.mxu0 %v7757
      %8005 = vmatprep.subr.bf16.mxu0 %v7760
      %8006 = vmatpush1.bf16.msra.mxu0 %v7759
      %8007 = vmatprep.subr.bf16.mxu0 %v7762
      %8008 = vmatpush1.bf16.msra.mxu0 %v7761
      %8009 = vmatprep.subr.bf16.mxu0 %v7764
      %8010 = vmatpush1.bf16.msra.mxu0 %v7763
      %8011 = vmatprep.mubr.bf16.mxu0 %v5530
      %8012 = vmatmul.mubr.bf16.gmra.mrb[0].mxu0 %v5529
      %v8013 = vpop.f32.mrb[0].mxu0
      %v8014 = vadd.f32 %v7973, %v8013
      %v8015 = vpop.f32.mrb[0].mxu0
      %v8016 = vadd.f32 %v7975, %v8015
      %v8017 = vpop.f32.mrb[0].mxu0
      %v8018 = vpop.f32.mrb[0].mxu0
      %8019 = vdwg.mxu0
      %8020 = vmatprep.subr.bf16.mxu0 %v7766
      %8021 = vmatpush1.bf16.msra.mxu0 %v7765
      %8022 = vmatprep.subr.bf16.mxu0 %v7768
      %8023 = vmatpush1.bf16.msra.mxu0 %v7767
      %8024 = vmatprep.subr.bf16.mxu0 %v7770
      %8025 = vmatpush1.bf16.msra.mxu0 %v7769
      %8026 = vmatprep.subr.bf16.mxu0 %v7772
      %8027 = vmatpush1.bf16.msra.mxu0 %v7771
      %8028 = vmatprep.subr.bf16.mxu0 %v7774
      %8029 = vmatpush1.bf16.msra.mxu0 %v7773
      %8030 = vmatprep.subr.bf16.mxu0 %v7776
      %8031 = vmatpush1.bf16.msra.mxu0 %v7775
      %8032 = vmatprep.subr.bf16.mxu0 %v7778
      %8033 = vmatpush1.bf16.msra.mxu0 %v7777
      %8034 = vmatprep.subr.bf16.mxu0 %v7895
      %8035 = vmatpush1.bf16.msra.mxu0 %v7892
      %8036 = vmatprep.subr.bf16.mxu0 0
      %8037 = vmatpush1.bf16.msra.mxu0 0
      %8038 = vmatprep.subr.bf16.mxu0 0
      %8039 = vmatpush1.bf16.msra.mxu0 0
      %8040 = vmatprep.subr.bf16.mxu0 0
      %8041 = vmatpush1.bf16.msra.mxu0 0
      %8042 = vmatprep.subr.bf16.mxu0 0
      %8043 = vmatpush1.bf16.msra.mxu0 0
      %8044 = vmatprep.subr.bf16.mxu0 0
      %8045 = vmatpush1.bf16.msra.mxu0 0
      %8046 = vmatprep.subr.bf16.mxu0 0
      %8047 = vmatpush1.bf16.msra.mxu0 0
      %8048 = vmatprep.subr.bf16.mxu0 0
      %8049 = vmatpush1.bf16.msra.mxu0 0
      %8050 = vmatprep.subr.bf16.mxu0 0
      %8051 = vmatpush1.bf16.msra.mxu0 0
      %8052 = vmatprep.mubr.bf16.mxu0 0
      %8053 = vmatmul.mubr.bf16.gmra.mrb[0].mxu0 %v6204
      %v8054 = vpop.f32.mrb[0].mxu0
      %v8055 = vadd.f32 %v8014, %v8054
      %v8056 = vpop.f32.mrb[0].mxu0
      %v8057 = vadd.f32 %v8016, %v8056
      %v8058 = vpop.f32.mrb[0].mxu0
      %v8059 = vpop.f32.mrb[0].mxu0
      %8060 = vdwg.mxu0
      %v8061 = vmax.f32 %v7218, %v8055
      %v8062 = vmax.f32 %v7219, %v8057
      %s8063 = scalar_lea.vmem %s3, 2688
      %v8064 = vld [vmem:[%s8063] sm:$0xff]
      %v8065 = vld [vmem:[%s8063 + $0x8] sm:$0xff]
      %v8066 = vld [vmem:[%s8063 + $0x10] sm:$0xff]
      %v8067 = vld [vmem:[%s8063 + $0x18] sm:$0xff]
      %v8068 = vld [vmem:[%s8063 + $0x20] sm:$0xff]
      %v8069 = vld [vmem:[%s8063 + $0x28] sm:$0xff]
      %v8070 = vld [vmem:[%s8063 + $0x30] sm:$0xff]
      %v8071 = vld [vmem:[%s8063 + $0x38] sm:$0xff]
      %v8072 = vld [vmem:[%s8063 + $0x40] sm:$0xff]
      %v8073 = vld [vmem:[%s8063 + $0x48] sm:$0xff]
      %v8074 = vld [vmem:[%s8063 + $0x50] sm:$0xff]
      %v8075 = vld [vmem:[%s8063 + $0x58] sm:$0xff]
      %v8076 = vld [vmem:[%s8063 + $0x60] sm:$0xff]
      %v8077 = vld [vmem:[%s8063 + $0x68] sm:$0xff]
      %v8078 = vld [vmem:[%s8063 + $0x70] sm:$0xff]
      %v8079 = vld [vmem:[%s8063 + $0x78] sm:$0xff]
      %v8080 = vld [vmem:[%s8063 + $0x80] sm:$0xff]
      %v8081 = vld [vmem:[%s8063 + $0x88] sm:$0xff]
      %v8082 = vld [vmem:[%s8063 + $0x90] sm:$0xff]
      %v8083 = vld [vmem:[%s8063 + $0x98] sm:$0xff]
      %v8084 = vld [vmem:[%s8063 + $0xa0] sm:$0xff]
      %v8085 = vld [vmem:[%s8063 + $0xa8] sm:$0xff]
      %v8086 = vld [vmem:[%s8063 + $0xb0] sm:$0xff]
      %v8087 = vld [vmem:[%s8063 + $0xb8] sm:$0xff]
      %v8088 = vld [vmem:[%s8063 + $0xc0] sm:$0xff]
      %v8089 = vld [vmem:[%s8063 + $0xc8] sm:$0xff]
      %v8090 = vld [vmem:[%s8063 + $0xd0] sm:$0xff]
      %v8091 = vld [vmem:[%s8063 + $0xd8] sm:$0xff]
      %v8092 = vld [vmem:[%s8063 + $0xe0] sm:$0xff]
      %v8093 = vld [vmem:[%s8063 + $0xe8] sm:$0xff]
      %v8094 = vld [vmem:[%s8063 + $0xf0] sm:$0xff]
      %v8095 = vld [vmem:[%s8063 + $0xf8] sm:$0xff]
      %v8096 = vld [vmem:[%s8063 + $0x100] sm:$0xff]
      %v8097 = vld [vmem:[%s8063 + $0x108] sm:$0xff]
      %v8098 = vld [vmem:[%s8063 + $0x110] sm:$0xff]
      %v8099 = vld [vmem:[%s8063 + $0x118] sm:$0xff]
      %v8100 = vld [vmem:[%s8063 + $0x120] sm:$0xff]
      %v8101 = vld [vmem:[%s8063 + $0x128] sm:$0xff]
      %v8102 = vld [vmem:[%s8063 + $0x130] sm:$0xff]
      %v8103 = vld [vmem:[%s8063 + $0x138] sm:$0xff]
      %v8104 = vld [vmem:[%s8063 + $0x140] sm:$0xff]
      %v8105 = vld [vmem:[%s8063 + $0x148] sm:$0xff]
      %v8106 = vld [vmem:[%s8063 + $0x150] sm:$0xff]
      %v8107 = vld [vmem:[%s8063 + $0x158] sm:$0xff]
      %v8108 = vld [vmem:[%s8063 + $0x160] sm:$0xff]
      %v8109 = vld [vmem:[%s8063 + $0x168] sm:$0xff]
      %v8110 = vld [vmem:[%s8063 + $0x170] sm:$0xff]
      %v8111 = vld [vmem:[%s8063 + $0x178] sm:$0xff]
      %v8112 = vld [vmem:[%s8063 + $0x180] sm:$0xff]
      %v8113 = vld [vmem:[%s8063 + $0x188] sm:$0xff]
      %v8114 = vld [vmem:[%s8063 + $0x190] sm:$0xff]
      %v8115 = vld [vmem:[%s8063 + $0x198] sm:$0xff]
      %v8116 = vld [vmem:[%s8063 + $0x1a0] sm:$0xff]
      %v8117 = vld [vmem:[%s8063 + $0x1a8] sm:$0xff]
      %v8118 = vld [vmem:[%s8063 + $0x1b0] sm:$0xff]
      %v8119 = vld [vmem:[%s8063 + $0x1b8] sm:$0xff]
      %v8120 = vld [vmem:[%s8063 + $0x1c0] sm:$0xff]
      %v8121 = vld [vmem:[%s8063 + $0x1c8] sm:$0xff]
      %v8122 = vld [vmem:[%s8063 + $0x1d0] sm:$0xff]
      %v8123 = vld [vmem:[%s8063 + $0x1d8] sm:$0xff]
      %v8124 = vld [vmem:[%s8063 + $0x1e0] sm:$0xff]
      %v8125 = vld [vmem:[%s8063 + $0x1e8] sm:$0xff]
      %v8126 = vld [vmem:[%s8063 + $0x1f0] sm:$0xff]
      %v8127 = vld [vmem:[%s8063 + $0x1f8] sm:$0xff]
      %v8128 = vld [vmem:[%s8063 + $0x200] sm:$0xff]
      %v8129 = vld [vmem:[%s8063 + $0x208] sm:$0xff]
      %v8130 = vld [vmem:[%s8063 + $0x210] sm:$0xff]
      %v8131 = vld [vmem:[%s8063 + $0x218] sm:$0xff]
      %v8132 = vld [vmem:[%s8063 + $0x220] sm:$0xff]
      %v8133 = vld [vmem:[%s8063 + $0x228] sm:$0xff]
      %v8134 = vld [vmem:[%s8063 + $0x230] sm:$0xff]
      %v8135 = vld [vmem:[%s8063 + $0x238] sm:$0xff]
      %v8136 = vld [vmem:[%s8063 + $0x240] sm:$0xff]
      %v8137 = vld [vmem:[%s8063 + $0x248] sm:$0xff]
      %v8138 = vld [vmem:[%s8063 + $0x250] sm:$0xff]
      %v8139 = vld [vmem:[%s8063 + $0x258] sm:$0xff]
      %v8140 = vld [vmem:[%s8063 + $0x260] sm:$0xff]
      %v8141 = vld [vmem:[%s8063 + $0x268] sm:$0xff]
      %v8142 = vld [vmem:[%s8063 + $0x270] sm:$0xff]
      %v8143 = vld [vmem:[%s8063 + $0x278] sm:$0xff]
      %v8144 = vld [vmem:[%s8063 + $0x280] sm:$0xff]
      %v8145 = vld [vmem:[%s8063 + $0x288] sm:$0xff]
      %v8146 = vld [vmem:[%s8063 + $0x290] sm:$0xff]
      %v8147 = vld [vmem:[%s8063 + $0x298] sm:$0xff]
      %v8148 = vld [vmem:[%s8063 + $0x2a0] sm:$0xff]
      %v8149 = vld [vmem:[%s8063 + $0x2a8] sm:$0xff]
      %v8150 = vld [vmem:[%s8063 + $0x2b0] sm:$0xff]
      %v8151 = vld [vmem:[%s8063 + $0x2b8] sm:$0xff]
      %v8152 = vld [vmem:[%s8063 + $0x2c0] sm:$0xff]
      %v8153 = vld [vmem:[%s8063 + $0x2c8] sm:$0xff]
      %v8154 = vld [vmem:[%s8063 + $0x2d0] sm:$0xff]
      %v8155 = vld [vmem:[%s8063 + $0x2d8] sm:$0xff]
      %v8156 = vld [vmem:[%s8063 + $0x2e0] sm:$0xff]
      %v8157 = vld [vmem:[%s8063 + $0x2e8] sm:$0xff]
      %v8158 = vld [vmem:[%s8063 + $0x2f0] sm:$0xff]
      %v8159 = vld [vmem:[%s8063 + $0x2f8] sm:$0xff]
      %v8160 = vld [vmem:[%s8063 + $0x300] sm:$0xff]
      %v8161 = vld [vmem:[%s8063 + $0x308] sm:$0xff]
      %v8162 = vld [vmem:[%s8063 + $0x310] sm:$0xff]
      %v8163 = vld [vmem:[%s8063 + $0x318] sm:$0xff]
      %v8164 = vld [vmem:[%s8063 + $0x320] sm:$0xff]
      %v8165 = vld [vmem:[%s8063 + $0x328] sm:$0xff]
      %v8166 = vld [vmem:[%s8063 + $0x330] sm:$0xff]
      %v8167 = vld [vmem:[%s8063 + $0x338] sm:$0xff]
      %v8168 = vld [vmem:[%s8063 + $0x340] sm:$0xff]
      %v8169 = vld [vmem:[%s8063 + $0x348] sm:$0xff]
      %v8170 = vld [vmem:[%s8063 + $0x350] sm:$0xff]
      %v8171 = vld [vmem:[%s8063 + $0x358] sm:$0xff]
      %v8172 = vld [vmem:[%s8063 + $0x360] sm:$0xff]
      %v8173 = vld [vmem:[%s8063 + $0x368] sm:$0xff]
      %v8174 = vld [vmem:[%s8063 + $0x370] sm:$0xff]
      %v8175 = vld [vmem:[%s8063 + $0x378] sm:$0x33]
      %v8288 = vunpack.c.l.b16 %v8064
      %v8289 = vunpack.c.h.b16 %v8064
      %v8290 = vunpack.c.l.b16 %v8065
      %v8291 = vunpack.c.h.b16 %v8065
      %v8292 = vunpack.c.l.b16 %v8066
      %v8293 = vunpack.c.h.b16 %v8066
      %v8294 = vunpack.c.l.b16 %v8067
      %v8295 = vunpack.c.h.b16 %v8067
      %v8296 = vunpack.c.l.b16 %v8068
      %v8297 = vunpack.c.h.b16 %v8068
      %v8298 = vunpack.c.l.b16 %v8069
      %v8299 = vunpack.c.h.b16 %v8069
      %v8300 = vunpack.c.l.b16 %v8070
      %v8301 = vunpack.c.h.b16 %v8070
      %v8302 = vunpack.c.l.b16 %v8071
      %v8303 = vunpack.c.h.b16 %v8071
      %v8304 = vunpack.c.l.b16 %v8072
      %v8305 = vunpack.c.h.b16 %v8072
      %v8306 = vunpack.c.l.b16 %v8073
      %v8307 = vunpack.c.h.b16 %v8073
      %v8308 = vunpack.c.l.b16 %v8074
      %v8309 = vunpack.c.h.b16 %v8074
      %v8310 = vunpack.c.l.b16 %v8075
      %v8311 = vunpack.c.h.b16 %v8075
      %v8312 = vunpack.c.l.b16 %v8076
      %v8313 = vunpack.c.h.b16 %v8076
      %v8314 = vunpack.c.l.b16 %v8077
      %v8315 = vunpack.c.h.b16 %v8077
      %v8316 = vunpack.c.l.b16 %v8078
      %v8317 = vunpack.c.h.b16 %v8078
      %v8318 = vunpack.c.l.b16 %v8079
      %v8319 = vunpack.c.h.b16 %v8079
      %v8320 = vunpack.c.l.b16 %v8080
      %v8321 = vunpack.c.h.b16 %v8080
      %v8322 = vunpack.c.l.b16 %v8081
      %v8323 = vunpack.c.h.b16 %v8081
      %v8324 = vunpack.c.l.b16 %v8082
      %v8325 = vunpack.c.h.b16 %v8082
      %v8326 = vunpack.c.l.b16 %v8083
      %v8327 = vunpack.c.h.b16 %v8083
      %v8328 = vunpack.c.l.b16 %v8084
      %v8329 = vunpack.c.h.b16 %v8084
      %v8330 = vunpack.c.l.b16 %v8085
      %v8331 = vunpack.c.h.b16 %v8085
      %v8332 = vunpack.c.l.b16 %v8086
      %v8333 = vunpack.c.h.b16 %v8086
      %v8334 = vunpack.c.l.b16 %v8087
      %v8335 = vunpack.c.h.b16 %v8087
      %v8336 = vunpack.c.l.b16 %v8088
      %v8337 = vunpack.c.h.b16 %v8088
      %v8338 = vunpack.c.l.b16 %v8089
      %v8339 = vunpack.c.h.b16 %v8089
      %v8340 = vunpack.c.l.b16 %v8090
      %v8341 = vunpack.c.h.b16 %v8090
      %v8342 = vunpack.c.l.b16 %v8091
      %v8343 = vunpack.c.h.b16 %v8091
      %v8344 = vunpack.c.l.b16 %v8092
      %v8345 = vunpack.c.h.b16 %v8092
      %v8346 = vunpack.c.l.b16 %v8093
      %v8347 = vunpack.c.h.b16 %v8093
      %v8348 = vunpack.c.l.b16 %v8094
      %v8349 = vunpack.c.h.b16 %v8094
      %v8350 = vunpack.c.l.b16 %v8095
      %v8351 = vunpack.c.h.b16 %v8095
      %v8352 = vunpack.c.l.b16 %v8096
      %v8353 = vunpack.c.h.b16 %v8096
      %v8354 = vunpack.c.l.b16 %v8097
      %v8355 = vunpack.c.h.b16 %v8097
      %v8356 = vunpack.c.l.b16 %v8098
      %v8357 = vunpack.c.h.b16 %v8098
      %v8358 = vunpack.c.l.b16 %v8099
      %v8359 = vunpack.c.h.b16 %v8099
      %v8360 = vunpack.c.l.b16 %v8100
      %v8361 = vunpack.c.h.b16 %v8100
      %v8362 = vunpack.c.l.b16 %v8101
      %v8363 = vunpack.c.h.b16 %v8101
      %v8364 = vunpack.c.l.b16 %v8102
      %v8365 = vunpack.c.h.b16 %v8102
      %v8366 = vunpack.c.l.b16 %v8103
      %v8367 = vunpack.c.h.b16 %v8103
      %v8368 = vunpack.c.l.b16 %v8104
      %v8369 = vunpack.c.h.b16 %v8104
      %v8370 = vunpack.c.l.b16 %v8105
      %v8371 = vunpack.c.h.b16 %v8105
      %v8372 = vunpack.c.l.b16 %v8106
      %v8373 = vunpack.c.h.b16 %v8106
      %v8374 = vunpack.c.l.b16 %v8107
      %v8375 = vunpack.c.h.b16 %v8107
      %v8376 = vunpack.c.l.b16 %v8108
      %v8377 = vunpack.c.h.b16 %v8108
      %v8378 = vunpack.c.l.b16 %v8109
      %v8379 = vunpack.c.h.b16 %v8109
      %v8380 = vunpack.c.l.b16 %v8110
      %v8381 = vunpack.c.h.b16 %v8110
      %v8382 = vunpack.c.l.b16 %v8111
      %v8383 = vunpack.c.h.b16 %v8111
      %v8384 = vunpack.c.l.b16 %v8112
      %v8385 = vunpack.c.h.b16 %v8112
      %v8386 = vunpack.c.l.b16 %v8113
      %v8387 = vunpack.c.h.b16 %v8113
      %v8388 = vunpack.c.l.b16 %v8114
      %v8389 = vunpack.c.h.b16 %v8114
      %v8390 = vunpack.c.l.b16 %v8115
      %v8391 = vunpack.c.h.b16 %v8115
      %v8392 = vunpack.c.l.b16 %v8116
      %v8393 = vunpack.c.h.b16 %v8116
      %v8394 = vunpack.c.l.b16 %v8117
      %v8395 = vunpack.c.h.b16 %v8117
      %v8396 = vunpack.c.l.b16 %v8118
      %v8397 = vunpack.c.h.b16 %v8118
      %v8398 = vunpack.c.l.b16 %v8119
      %v8399 = vunpack.c.h.b16 %v8119
      %v8400 = vunpack.c.l.b16 %v8120
      %v8401 = vunpack.c.h.b16 %v8120
      %v8402 = vunpack.c.l.b16 %v8121
      %v8403 = vunpack.c.h.b16 %v8121
      %v8404 = vunpack.c.l.b16 %v8122
      %v8405 = vunpack.c.h.b16 %v8122
      %v8406 = vunpack.c.l.b16 %v8123
      %v8407 = vunpack.c.h.b16 %v8123
      %v8408 = vunpack.c.l.b16 %v8124
      %v8409 = vunpack.c.h.b16 %v8124
      %v8410 = vunpack.c.l.b16 %v8125
      %v8411 = vunpack.c.h.b16 %v8125
      %v8412 = vunpack.c.l.b16 %v8126
      %v8413 = vunpack.c.h.b16 %v8126
      %v8414 = vunpack.c.l.b16 %v8127
      %v8415 = vunpack.c.h.b16 %v8127
      %v8416 = vunpack.c.l.b16 %v8128
      %v8417 = vunpack.c.h.b16 %v8128
      %v8418 = vunpack.c.l.b16 %v8129
      %v8419 = vunpack.c.h.b16 %v8129
      %v8420 = vunpack.c.l.b16 %v8130
      %v8421 = vunpack.c.h.b16 %v8130
      %v8422 = vunpack.c.l.b16 %v8131
      %v8423 = vunpack.c.h.b16 %v8131
      %v8424 = vunpack.c.l.b16 %v8132
      %v8425 = vunpack.c.h.b16 %v8132
      %v8426 = vunpack.c.l.b16 %v8133
      %v8427 = vunpack.c.h.b16 %v8133
      %v8428 = vunpack.c.l.b16 %v8134
      %v8429 = vunpack.c.h.b16 %v8134
      %v8430 = vunpack.c.l.b16 %v8135
      %v8431 = vunpack.c.h.b16 %v8135
      %v8432 = vunpack.c.l.b16 %v8136
      %v8433 = vunpack.c.h.b16 %v8136
      %v8434 = vunpack.c.l.b16 %v8137
      %v8435 = vunpack.c.h.b16 %v8137
      %v8436 = vunpack.c.l.b16 %v8138
      %v8437 = vunpack.c.h.b16 %v8138
      %v8438 = vunpack.c.l.b16 %v8139
      %v8439 = vunpack.c.h.b16 %v8139
      %v8440 = vunpack.c.l.b16 %v8140
      %v8441 = vunpack.c.h.b16 %v8140
      %v8442 = vunpack.c.l.b16 %v8141
      %v8443 = vunpack.c.h.b16 %v8141
      %v8444 = vunpack.c.l.b16 %v8142
      %v8445 = vunpack.c.h.b16 %v8142
      %v8446 = vunpack.c.l.b16 %v8143
      %v8447 = vunpack.c.h.b16 %v8143
      %v8448 = vunpack.c.l.b16 %v8144
      %v8449 = vunpack.c.h.b16 %v8144
      %v8450 = vunpack.c.l.b16 %v8145
      %v8451 = vunpack.c.h.b16 %v8145
      %v8452 = vunpack.c.l.b16 %v8146
      %v8453 = vunpack.c.h.b16 %v8146
      %v8454 = vunpack.c.l.b16 %v8147
      %v8455 = vunpack.c.h.b16 %v8147
      %v8456 = vunpack.c.l.b16 %v8148
      %v8457 = vunpack.c.h.b16 %v8148
      %v8458 = vunpack.c.l.b16 %v8149
      %v8459 = vunpack.c.h.b16 %v8149
      %v8460 = vunpack.c.l.b16 %v8150
      %v8461 = vunpack.c.h.b16 %v8150
      %v8462 = vunpack.c.l.b16 %v8151
      %v8463 = vunpack.c.h.b16 %v8151
      %v8464 = vunpack.c.l.b16 %v8152
      %v8465 = vunpack.c.h.b16 %v8152
      %v8466 = vunpack.c.l.b16 %v8153
      %v8467 = vunpack.c.h.b16 %v8153
      %v8468 = vunpack.c.l.b16 %v8154
      %v8469 = vunpack.c.h.b16 %v8154
      %v8470 = vunpack.c.l.b16 %v8155
      %v8471 = vunpack.c.h.b16 %v8155
      %v8472 = vunpack.c.l.b16 %v8156
      %v8473 = vunpack.c.h.b16 %v8156
      %v8474 = vunpack.c.l.b16 %v8157
      %v8475 = vunpack.c.h.b16 %v8157
      %v8476 = vunpack.c.l.b16 %v8158
      %v8477 = vunpack.c.h.b16 %v8158
      %v8478 = vunpack.c.l.b16 %v8159
      %v8479 = vunpack.c.h.b16 %v8159
      %v8480 = vunpack.c.l.b16 %v8160
      %v8481 = vunpack.c.h.b16 %v8160
      %v8482 = vunpack.c.l.b16 %v8161
      %v8483 = vunpack.c.h.b16 %v8161
      %v8484 = vunpack.c.l.b16 %v8162
      %v8485 = vunpack.c.h.b16 %v8162
      %v8486 = vunpack.c.l.b16 %v8163
      %v8487 = vunpack.c.h.b16 %v8163
      %v8488 = vunpack.c.l.b16 %v8164
      %v8489 = vunpack.c.h.b16 %v8164
      %v8490 = vunpack.c.l.b16 %v8165
      %v8491 = vunpack.c.h.b16 %v8165
      %v8492 = vunpack.c.l.b16 %v8166
      %v8493 = vunpack.c.h.b16 %v8166
      %v8494 = vunpack.c.l.b16 %v8167
      %v8495 = vunpack.c.h.b16 %v8167
      %v8496 = vunpack.c.l.b16 %v8168
      %v8497 = vunpack.c.h.b16 %v8168
      %v8498 = vunpack.c.l.b16 %v8169
      %v8499 = vunpack.c.h.b16 %v8169
      %v8500 = vunpack.c.l.b16 %v8170
      %v8501 = vunpack.c.h.b16 %v8170
      %v8502 = vunpack.c.l.b16 %v8171
      %v8503 = vunpack.c.h.b16 %v8171
      %v8504 = vunpack.c.l.b16 %v8172
      %v8505 = vunpack.c.h.b16 %v8172
      %v8506 = vunpack.c.l.b16 %v8173
      %v8507 = vunpack.c.h.b16 %v8173
      %v8508 = vunpack.c.l.b16 %v8174
      %v8509 = vunpack.c.h.b16 %v8174
      %v8510 = vunpack.c.l.b16 %v8175
      %v8511 = vunpack.c.h.b16 %v8175
      %v8512 = vpack.c.b16 %v8290, %v8288
      %v8513 = vpack.c.b16 %v8291, %v8289
      %v8514 = vpack.c.b16 %v8294, %v8292
      %v8515 = vpack.c.b16 %v8295, %v8293
      %v8516 = vpack.c.b16 %v8298, %v8296
      %v8517 = vpack.c.b16 %v8299, %v8297
      %v8518 = vpack.c.b16 %v8302, %v8300
      %v8519 = vpack.c.b16 %v8303, %v8301
      %v8520 = vpack.c.b16 %v8306, %v8304
      %v8521 = vpack.c.b16 %v8307, %v8305
      %v8522 = vpack.c.b16 %v8310, %v8308
      %v8523 = vpack.c.b16 %v8311, %v8309
      %v8524 = vpack.c.b16 %v8314, %v8312
      %v8525 = vpack.c.b16 %v8315, %v8313
      %v8526 = vpack.c.b16 %v8318, %v8316
      %v8527 = vpack.c.b16 %v8319, %v8317
      %v8528 = vpack.c.b16 %v8322, %v8320
      %v8529 = vpack.c.b16 %v8323, %v8321
      %v8530 = vpack.c.b16 %v8326, %v8324
      %v8531 = vpack.c.b16 %v8327, %v8325
      %v8532 = vpack.c.b16 %v8330, %v8328
      %v8533 = vpack.c.b16 %v8331, %v8329
      %v8534 = vpack.c.b16 %v8334, %v8332
      %v8535 = vpack.c.b16 %v8335, %v8333
      %v8536 = vpack.c.b16 %v8338, %v8336
      %v8537 = vpack.c.b16 %v8339, %v8337
      %v8538 = vpack.c.b16 %v8342, %v8340
      %v8539 = vpack.c.b16 %v8343, %v8341
      %v8540 = vpack.c.b16 %v8346, %v8344
      %v8541 = vpack.c.b16 %v8347, %v8345
      %v8542 = vpack.c.b16 %v8350, %v8348
      %v8543 = vpack.c.b16 %v8351, %v8349
      %v8544 = vpack.c.b16 %v8354, %v8352
      %v8545 = vpack.c.b16 %v8355, %v8353
      %v8546 = vpack.c.b16 %v8358, %v8356
      %v8547 = vpack.c.b16 %v8359, %v8357
      %v8548 = vpack.c.b16 %v8362, %v8360
      %v8549 = vpack.c.b16 %v8363, %v8361
      %v8550 = vpack.c.b16 %v8366, %v8364
      %v8551 = vpack.c.b16 %v8367, %v8365
      %v8552 = vpack.c.b16 %v8370, %v8368
      %v8553 = vpack.c.b16 %v8371, %v8369
      %v8554 = vpack.c.b16 %v8374, %v8372
      %v8555 = vpack.c.b16 %v8375, %v8373
      %v8556 = vpack.c.b16 %v8378, %v8376
      %v8557 = vpack.c.b16 %v8379, %v8377
      %v8558 = vpack.c.b16 %v8382, %v8380
      %v8559 = vpack.c.b16 %v8383, %v8381
      %v8560 = vpack.c.b16 %v8386, %v8384
      %v8561 = vpack.c.b16 %v8387, %v8385
      %v8562 = vpack.c.b16 %v8390, %v8388
      %v8563 = vpack.c.b16 %v8391, %v8389
      %v8564 = vpack.c.b16 %v8394, %v8392
      %v8565 = vpack.c.b16 %v8395, %v8393
      %v8566 = vpack.c.b16 %v8398, %v8396
      %v8567 = vpack.c.b16 %v8399, %v8397
      %v8568 = vpack.c.b16 %v8402, %v8400
      %v8569 = vpack.c.b16 %v8403, %v8401
      %v8570 = vpack.c.b16 %v8406, %v8404
      %v8571 = vpack.c.b16 %v8407, %v8405
      %v8572 = vpack.c.b16 %v8410, %v8408
      %v8573 = vpack.c.b16 %v8411, %v8409
      %v8574 = vpack.c.b16 %v8414, %v8412
      %v8575 = vpack.c.b16 %v8415, %v8413
      %v8576 = vpack.c.b16 %v8418, %v8416
      %v8577 = vpack.c.b16 %v8419, %v8417
      %v8578 = vpack.c.b16 %v8422, %v8420
      %v8579 = vpack.c.b16 %v8423, %v8421
      %v8580 = vpack.c.b16 %v8426, %v8424
      %v8581 = vpack.c.b16 %v8427, %v8425
      %v8582 = vpack.c.b16 %v8430, %v8428
      %v8583 = vpack.c.b16 %v8431, %v8429
      %v8584 = vpack.c.b16 %v8434, %v8432
      %v8585 = vpack.c.b16 %v8435, %v8433
      %v8586 = vpack.c.b16 %v8438, %v8436
      %v8587 = vpack.c.b16 %v8439, %v8437
      %v8588 = vpack.c.b16 %v8442, %v8440
      %v8589 = vpack.c.b16 %v8443, %v8441
      %v8590 = vpack.c.b16 %v8446, %v8444
      %v8591 = vpack.c.b16 %v8447, %v8445
      %v8592 = vpack.c.b16 %v8450, %v8448
      %v8593 = vpack.c.b16 %v8451, %v8449
      %v8594 = vpack.c.b16 %v8454, %v8452
      %v8595 = vpack.c.b16 %v8455, %v8453
      %v8596 = vpack.c.b16 %v8458, %v8456
      %v8597 = vpack.c.b16 %v8459, %v8457
      %v8598 = vpack.c.b16 %v8462, %v8460
      %v8599 = vpack.c.b16 %v8463, %v8461
      %v8600 = vpack.c.b16 %v8466, %v8464
      %v8601 = vpack.c.b16 %v8467, %v8465
      %v8602 = vpack.c.b16 %v8470, %v8468
      %v8603 = vpack.c.b16 %v8471, %v8469
      %v8604 = vpack.c.b16 %v8474, %v8472
      %v8605 = vpack.c.b16 %v8475, %v8473
      %v8606 = vpack.c.b16 %v8478, %v8476
      %v8607 = vpack.c.b16 %v8479, %v8477
      %v8608 = vpack.c.b16 %v8482, %v8480
      %v8609 = vpack.c.b16 %v8483, %v8481
      %v8610 = vpack.c.b16 %v8486, %v8484
      %v8611 = vpack.c.b16 %v8487, %v8485
      %v8612 = vpack.c.b16 %v8490, %v8488
      %v8613 = vpack.c.b16 %v8491, %v8489
      %v8614 = vpack.c.b16 %v8494, %v8492
      %v8615 = vpack.c.b16 %v8495, %v8493
      %v8616 = vpack.c.b16 %v8498, %v8496
      %v8617 = vpack.c.b16 %v8499, %v8497
      %v8618 = vpack.c.b16 %v8502, %v8500
      %v8619 = vpack.c.b16 %v8503, %v8501
      %v8620 = vpack.c.b16 %v8506, %v8504
      %v8621 = vpack.c.b16 %v8507, %v8505
      %v8622 = vpack.c.b16 %v8510, %v8508
      %v8623 = vpack.c.b16 %v8511, %v8509
      %v8735 = vsel %vm6206, %v8622, 0
      %v8738 = vsel %vm6206, %v8623, 0
      %8740 = vmatprep.subr.bf16.mxu0 %v8513
      %8741 = vmatpush1.bf16.msra.mxu0 %v8512
      %8742 = vmatprep.subr.bf16.mxu0 %v8515
      %8743 = vmatpush1.bf16.msra.mxu0 %v8514
      %8744 = vmatprep.subr.bf16.mxu0 %v8517
      %8745 = vmatpush1.bf16.msra.mxu0 %v8516
      %8746 = vmatprep.subr.bf16.mxu0 %v8519
      %8747 = vmatpush1.bf16.msra.mxu0 %v8518
      %8748 = vmatprep.subr.bf16.mxu0 %v8521
      %8749 = vmatpush1.bf16.msra.mxu0 %v8520
      %8750 = vmatprep.subr.bf16.mxu0 %v8523
      %8751 = vmatpush1.bf16.msra.mxu0 %v8522
      %8752 = vmatprep.subr.bf16.mxu0 %v8525
      %8753 = vmatpush1.bf16.msra.mxu0 %v8524
      %8754 = vmatprep.subr.bf16.mxu0 %v8527
      %8755 = vmatpush1.bf16.msra.mxu0 %v8526
      %8756 = vmatprep.subr.bf16.mxu0 %v8529
      %8757 = vmatpush1.bf16.msra.mxu0 %v8528
      %8758 = vmatprep.subr.bf16.mxu0 %v8531
      %8759 = vmatpush1.bf16.msra.mxu0 %v8530
      %8760 = vmatprep.subr.bf16.mxu0 %v8533
      %8761 = vmatpush1.bf16.msra.mxu0 %v8532
      %8762 = vmatprep.subr.bf16.mxu0 %v8535
      %8763 = vmatpush1.bf16.msra.mxu0 %v8534
      %8764 = vmatprep.subr.bf16.mxu0 %v8537
      %8765 = vmatpush1.bf16.msra.mxu0 %v8536
      %8766 = vmatprep.subr.bf16.mxu0 %v8539
      %8767 = vmatpush1.bf16.msra.mxu0 %v8538
      %8768 = vmatprep.subr.bf16.mxu0 %v8541
      %8769 = vmatpush1.bf16.msra.mxu0 %v8540
      %8770 = vmatprep.subr.bf16.mxu0 %v8543
      %8771 = vmatpush1.bf16.msra.mxu0 %v8542
      %8772 = vmatprep.mubr.bf16.mxu0 %v5526
      %8773 = vmatmul.mubr.bf16.gmra.mrb[0].mxu0 %v5525
      %v8774 = vpop.f32.mrb[0].mxu0
      %v8775 = vadd.f32 0.0, %v8774
      %v8776 = vpop.f32.mrb[0].mxu0
      %v8777 = vadd.f32 0.0, %v8776
      %v8778 = vpop.f32.mrb[0].mxu0
      %v8779 = vpop.f32.mrb[0].mxu0
      %8780 = vdwg.mxu0
      %8781 = vmatprep.subr.bf16.mxu0 %v8545
      %8782 = vmatpush1.bf16.msra.mxu0 %v8544
      %8783 = vmatprep.subr.bf16.mxu0 %v8547
      %8784 = vmatpush1.bf16.msra.mxu0 %v8546
      %8785 = vmatprep.subr.bf16.mxu0 %v8549
      %8786 = vmatpush1.bf16.msra.mxu0 %v8548
      %8787 = vmatprep.subr.bf16.mxu0 %v8551
      %8788 = vmatpush1.bf16.msra.mxu0 %v8550
      %8789 = vmatprep.subr.bf16.mxu0 %v8553
      %8790 = vmatpush1.bf16.msra.mxu0 %v8552
      %8791 = vmatprep.subr.bf16.mxu0 %v8555
      %8792 = vmatpush1.bf16.msra.mxu0 %v8554
      %8793 = vmatprep.subr.bf16.mxu0 %v8557
      %8794 = vmatpush1.bf16.msra.mxu0 %v8556
      %8795 = vmatprep.subr.bf16.mxu0 %v8559
      %8796 = vmatpush1.bf16.msra.mxu0 %v8558
      %8797 = vmatprep.subr.bf16.mxu0 %v8561
      %8798 = vmatpush1.bf16.msra.mxu0 %v8560
      %8799 = vmatprep.subr.bf16.mxu0 %v8563
      %8800 = vmatpush1.bf16.msra.mxu0 %v8562
      %8801 = vmatprep.subr.bf16.mxu0 %v8565
      %8802 = vmatpush1.bf16.msra.mxu0 %v8564
      %8803 = vmatprep.subr.bf16.mxu0 %v8567
      %8804 = vmatpush1.bf16.msra.mxu0 %v8566
      %8805 = vmatprep.subr.bf16.mxu0 %v8569
      %8806 = vmatpush1.bf16.msra.mxu0 %v8568
      %8807 = vmatprep.subr.bf16.mxu0 %v8571
      %8808 = vmatpush1.bf16.msra.mxu0 %v8570
      %8809 = vmatprep.subr.bf16.mxu0 %v8573
      %8810 = vmatpush1.bf16.msra.mxu0 %v8572
      %8811 = vmatprep.subr.bf16.mxu0 %v8575
      %8812 = vmatpush1.bf16.msra.mxu0 %v8574
      %8813 = vmatprep.mubr.bf16.mxu0 %v5528
      %8814 = vmatmul.mubr.bf16.gmra.mrb[0].mxu0 %v5527
      %v8815 = vpop.f32.mrb[0].mxu0
      %v8816 = vadd.f32 %v8775, %v8815
      %v8817 = vpop.f32.mrb[0].mxu0
      %v8818 = vadd.f32 %v8777, %v8817
      %v8819 = vpop.f32.mrb[0].mxu0
      %v8820 = vpop.f32.mrb[0].mxu0
      %8821 = vdwg.mxu0
      %8822 = vmatprep.subr.bf16.mxu0 %v8577
      %8823 = vmatpush1.bf16.msra.mxu0 %v8576
      %8824 = vmatprep.subr.bf16.mxu0 %v8579
      %8825 = vmatpush1.bf16.msra.mxu0 %v8578
      %8826 = vmatprep.subr.bf16.mxu0 %v8581
      %8827 = vmatpush1.bf16.msra.mxu0 %v8580
      %8828 = vmatprep.subr.bf16.mxu0 %v8583
      %8829 = vmatpush1.bf16.msra.mxu0 %v8582
      %8830 = vmatprep.subr.bf16.mxu0 %v8585
      %8831 = vmatpush1.bf16.msra.mxu0 %v8584
      %8832 = vmatprep.subr.bf16.mxu0 %v8587
      %8833 = vmatpush1.bf16.msra.mxu0 %v8586
      %8834 = vmatprep.subr.bf16.mxu0 %v8589
      %8835 = vmatpush1.bf16.msra.mxu0 %v8588
      %8836 = vmatprep.subr.bf16.mxu0 %v8591
      %8837 = vmatpush1.bf16.msra.mxu0 %v8590
      %8838 = vmatprep.subr.bf16.mxu0 %v8593
      %8839 = vmatpush1.bf16.msra.mxu0 %v8592
      %8840 = vmatprep.subr.bf16.mxu0 %v8595
      %8841 = vmatpush1.bf16.msra.mxu0 %v8594
      %8842 = vmatprep.subr.bf16.mxu0 %v8597
      %8843 = vmatpush1.bf16.msra.mxu0 %v8596
      %8844 = vmatprep.subr.bf16.mxu0 %v8599
      %8845 = vmatpush1.bf16.msra.mxu0 %v8598
      %8846 = vmatprep.subr.bf16.mxu0 %v8601
      %8847 = vmatpush1.bf16.msra.mxu0 %v8600
      %8848 = vmatprep.subr.bf16.mxu0 %v8603
      %8849 = vmatpush1.bf16.msra.mxu0 %v8602
      %8850 = vmatprep.subr.bf16.mxu0 %v8605
      %8851 = vmatpush1.bf16.msra.mxu0 %v8604
      %8852 = vmatprep.subr.bf16.mxu0 %v8607
      %8853 = vmatpush1.bf16.msra.mxu0 %v8606
      %8854 = vmatprep.mubr.bf16.mxu0 %v5530
      %8855 = vmatmul.mubr.bf16.gmra.mrb[0].mxu0 %v5529
      %v8856 = vpop.f32.mrb[0].mxu0
      %v8857 = vadd.f32 %v8816, %v8856
      %v8858 = vpop.f32.mrb[0].mxu0
      %v8859 = vadd.f32 %v8818, %v8858
      %v8860 = vpop.f32.mrb[0].mxu0
      %v8861 = vpop.f32.mrb[0].mxu0
      %8862 = vdwg.mxu0
      %8863 = vmatprep.subr.bf16.mxu0 %v8609
      %8864 = vmatpush1.bf16.msra.mxu0 %v8608
      %8865 = vmatprep.subr.bf16.mxu0 %v8611
      %8866 = vmatpush1.bf16.msra.mxu0 %v8610
      %8867 = vmatprep.subr.bf16.mxu0 %v8613
      %8868 = vmatpush1.bf16.msra.mxu0 %v8612
      %8869 = vmatprep.subr.bf16.mxu0 %v8615
      %8870 = vmatpush1.bf16.msra.mxu0 %v8614
      %8871 = vmatprep.subr.bf16.mxu0 %v8617
      %8872 = vmatpush1.bf16.msra.mxu0 %v8616
      %8873 = vmatprep.subr.bf16.mxu0 %v8619
      %8874 = vmatpush1.bf16.msra.mxu0 %v8618
      %8875 = vmatprep.subr.bf16.mxu0 %v8621
      %8876 = vmatpush1.bf16.msra.mxu0 %v8620
      %8877 = vmatprep.subr.bf16.mxu0 %v8738
      %8878 = vmatpush1.bf16.msra.mxu0 %v8735
      %8879 = vmatprep.subr.bf16.mxu0 0
      %8880 = vmatpush1.bf16.msra.mxu0 0
      %8881 = vmatprep.subr.bf16.mxu0 0
      %8882 = vmatpush1.bf16.msra.mxu0 0
      %8883 = vmatprep.subr.bf16.mxu0 0
      %8884 = vmatpush1.bf16.msra.mxu0 0
      %8885 = vmatprep.subr.bf16.mxu0 0
      %8886 = vmatpush1.bf16.msra.mxu0 0
      %8887 = vmatprep.subr.bf16.mxu0 0
      %8888 = vmatpush1.bf16.msra.mxu0 0
      %8889 = vmatprep.subr.bf16.mxu0 0
      %8890 = vmatpush1.bf16.msra.mxu0 0
      %8891 = vmatprep.subr.bf16.mxu0 0
      %8892 = vmatpush1.bf16.msra.mxu0 0
      %8893 = vmatprep.subr.bf16.mxu0 0
      %8894 = vmatpush1.bf16.msra.mxu0 0
      %8895 = vmatprep.mubr.bf16.mxu0 0
      %8896 = vmatmul.mubr.bf16.gmra.mrb[0].mxu0 %v6204
      %v8897 = vpop.f32.mrb[0].mxu0
      %v8898 = vadd.f32 %v8857, %v8897
      %v8899 = vpop.f32.mrb[0].mxu0
      %v8900 = vadd.f32 %v8859, %v8899
      %v8901 = vpop.f32.mrb[0].mxu0
      %v8902 = vpop.f32.mrb[0].mxu0
      %8903 = vdwg.mxu0
      %v8904 = vmax.f32 %v8061, %v8898
      %v8905 = vmax.f32 %v8062, %v8900
      %v8906 = vpack.c.bf16 %v8904, %v8904
      %v8907 = vpack.c.bf16 %v8905, %v8905
      %v8910 = vunpack.c.l.b16 %v8906
      %v8911 = vunpack.c.l.b16 %v8907
      %v8912 = vpack.c.b16 %v8911, %v8910
      %vm8914 = vcmask 1042432
      %vm8915 = vcmask 555012
      %vm8916 = vmor %vm8915, %vm8914
      %8917 = vst.msk [vmem:[%s197] sm:$0x77] %vm8916, %v8912
      %p8918 = scmp.lt.s32.totalorder %s15, 1
      %s8919 = scalar_select %p8918, %s15, 1
      %s8920 = smul.addr %s8919, 2
      %s8921 = smul.addr %s8920, 4
      %s8922 = scalar_lea.vmem %s4, %s8921
      // Predicated region
      $region37: #{cnn_forward.3} parent=35 // pred_check
        %p8923 = pneg %p122
      $region38: #{cnn_forward.3} parent=35 // pred_check_branch
        %8925 = sbr.rel (%p8923) target = $region40
      $region39: #{cnn_forward.3} parent=35 // pred_region
        _
      $region40: #{cnn_forward.3} parent=35 // pred_fallthru
        _
    $region36: #{cnn_forward.3} parent=5 // pred_fallthru
      _
    %p8926 = scmp.le.s32.totalorder 2, %s10
    // Predicated region
    $region41: #{cnn_forward.3} parent=5 // pred_check
      %p8927 = pneg %p8926
    $region42: #{cnn_forward.3} parent=5 // pred_check_branch
      %8929 = sbr.rel (%p8927) target = $region44
    $region43: #{cnn_forward.3} parent=5 // pred_region
      %s8930 = ssub.s32 %s10, 2
      // Predicated region
      $region45: #{cnn_forward.3} parent=43 // pred_check
        %p8931 = pneg %p128
      $region46: #{cnn_forward.3} parent=43 // pred_check_branch
        %8933 = sbr.rel (%p8931) target = $region48
      $region47: #{cnn_forward.3} parent=43 // pred_region
        %p8934 = scmp.lt.s32.totalorder %s16, 1
        %s8935 = scalar_select %p8934, %s16, 1
        %s8936 = smul.addr %s8935, 2
        %s8937 = smul.addr %s8936, 4
        %s8938 = scalar_lea.vmem %s4, %s8937
      $region48: #{cnn_forward.3} parent=43 // pred_fallthru
        _
    $region44: #{cnn_forward.3} parent=5 // pred_fallthru
      _
  $region6: #{cnn_forward.3} parent=0 // loop_footer
    %s14 = sadd.s32 1, %s10
  $region7: #{cnn_forward.3} parent=0 // loop_footer_branch
    %9 = sbr.rel target = $region3
  $region8: #{cnn_forward.3} parent=0 // loop_exit
    _

</llo_original>
